<compile_context>
chip_gen: v7x
topology: tpu7x:2x2x1
jax: 0.10.0
libtpu: 0.0.40
codegen_flags: <defaults>
</compile_context>

<pallas_src>
import jax
import jax.numpy as jnp
import numpy as np
from jax import lax
from jax.experimental import pallas as pl
from jax.experimental.pallas import tpu as pltpu

INCH_DIV = 16  # inch = dim[0] / 16


def _round_up(x, m):
    return ((x + m - 1) // m) * m


def _make_kernel(C, H, W, Nb):
    L = H * W
    RC = Nb * C          # rows of the (pre-branch) normalized input
    R2 = Nb * 2 * C      # rows of the fused mask+delta activations
    GR0 = _round_up(RC, 8)   # aligned group stride in the layer-0 staging buf
    GR2 = _round_up(R2, 8)   # aligned group stride in the layer-1/2 staging buf
    inv_l = 1.0 / L

    def kernel(alpha_ref, x_ref,
               w0_ref, b0_ref, w1_ref, b1_ref, w2_ref, b2_ref,
               wf_ref, bf_ref, out_ref,
               st6_ref, st12_ref, act_ref):
        alpha = alpha_ref[0]  # nn.PReLU() single shared parameter

        def prelu(v):
            return jnp.where(v >= 0.0, v, alpha * v)

        def inorm(v):  # InstanceNorm2d(affine=False), eps=1e-5, per row over L
            s = jnp.sum(v, axis=-1, keepdims=True)
            s2 = jnp.sum(v * v, axis=-1, keepdims=True)
            mean = s * inv_l
            var = jnp.maximum(s2 * inv_l - mean * mean, 0.0)
            return (v - mean) * lax.rsqrt(var + 1e-5)

        # Hoisted boundary masks (built once; reused by all 3 convs).
        pos = lax.broadcasted_iota(jnp.int32, (1, L), 1)
        col = pos % W
        mrow_m = pos >= W                 # row r-1 valid
        mrow_p = pos < (H - 1) * W        # row r+1 valid
        mcol_m = col >= 1                 # col c-1 valid
        mcol_p = col <= W - 2             # col c+1 valid

        # Zero staging pad rows (static no-op when group strides are exact).
        if GR0 != RC:
            st6_ref[...] = jnp.zeros_like(st6_ref)
        if GR2 != R2:
            st12_ref[...] = jnp.zeros_like(st12_ref)

        def conv_block(load_src, rows, group, st_ref, w_ref, b_ref):
            # Stage the 9 shifted+masked tap planes into VMEM, then one matmul.
            for dh in (-1, 0, 1):
                v = load_src()                       # (rows, L) from VMEM
                if dh == -1:
                    base = jnp.where(mrow_m, pltpu.roll(v, W, axis=1), 0.0)
                elif dh == 1:
                    base = jnp.where(mrow_p, pltpu.roll(v, L - W, axis=1), 0.0)
                else:
                    base = v
                t0 = (dh + 1) * 3                    # taps t = kh*3 + kw
                st_ref[pl.ds((t0 + 0) * group, rows), :] = jnp.where(
                    mcol_m, pltpu.roll(base, 1, axis=1), 0.0)
                st_ref[pl.ds((t0 + 1) * group, rows), :] = base
                st_ref[pl.ds((t0 + 2) * group, rows), :] = jnp.where(
                    mcol_p, pltpu.roll(base, L - 1, axis=1), 0.0)
            pre = jnp.dot(w_ref[...], st_ref[...],
                          preferred_element_type=jnp.float32) + b_ref[...]
            return prelu(inorm(pre))

        # output = neckact(norm(output))
        x = x_ref[0]                                  # (RC, L)
        act_ref[pl.ds(0, RC), :] = prelu(inorm(x))

        # fused mask/delta branches: 3 x (conv3x3 -> IN -> PReLU) on 12 chans
        h = conv_block(lambda: act_ref[pl.ds(0, RC), :], RC, GR0,
                       st6_ref, w0_ref, b0_ref)
        act_ref[...] = h
        h = conv_block(lambda: act_ref[...], R2, GR2, st12_ref, w1_ref, b1_ref)
        act_ref[...] = h
        h = conv_block(lambda: act_ref[...], R2, GR2, st12_ref, w2_ref, b2_ref)

        # merged final 1x1 convs (mask row 0, delta rows 1..2 per batch elem)
        out_ref[0] = (jnp.dot(wf_ref[...], h, preferred_element_type=jnp.float32)
                      + bf_ref[...]).astype(out_ref.dtype)

    return kernel, RC, R2, GR0, GR2


def _default_num_blocks(N):
    # v7x has 2 TensorCores -> 2 parallel grid blocks; 1 TC otherwise -> 1 block.
    try:
        kind = jax.devices()[0].device_kind.lower()
    except Exception:
        kind = ""
    if "v7" in kind and N >= 2 and N % 2 == 0:
        return 2
    return 1


def _pack_conv(w_taps, bias, Nb, group):
    """w_taps: (9, Cout, Cin); bias: (Cout,) -> (Nb*Cout, 9*group), (Nb*Cout, 1).

    Block-diagonal over the Nb batch elements folded onto the sublane axis;
    columns beyond Nb*Cin in each tap group are zero (staging pad rows).
    """
    _, Cout, Cin = w_taps.shape
    eye = jnp.eye(Nb, dtype=jnp.float32)
    big = jnp.einsum('bB,toc->botBc', eye, w_taps).reshape(Nb * Cout, 9, Nb * Cin)
    if group > Nb * Cin:
        pad = jnp.zeros((Nb * Cout, 9, group - Nb * Cin), jnp.float32)
        big = jnp.concatenate([big, pad], axis=2)
    w_big = big.reshape(Nb * Cout, 9 * group)
    b_big = jnp.tile(bias, Nb)[:, None]
    return w_big, b_big


def ishead_forward(x0, pdict, img_height, img_width, num_blocks=None):
    """x0: (N, dim[0], h, w) NCHW float32."""
    N, C0, h, w = x0.shape
    C = C0 // INCH_DIV
    H, W = h * 4, w * 4
    out = x0.reshape(N, C, H, W)  # same raw row-major semantics as torch .view
    if H * W != img_height * img_width:
        # F.interpolate(mode='nearest') equivalent (glue, not hot path)
        # TODO(synk): matches legacy 'nearest' (floor), not 'nearest-exact';
        # in that path L may not be a multiple of 128 (lane-dense layout degrades).
        hi = (jnp.arange(img_height) * H) // img_height
        wi = (jnp.arange(img_width) * W) // img_width
        out = out[:, :, hi[:, None], wi[None, :]]
        H, W = img_height, img_width
    L = H * W

    if num_blocks is None:
        num_blocks = _default_num_blocks(N)
    if N % num_blocks != 0:
        num_blocks = 1
    Nb = N // num_blocks

    kernel, RC, R2, GR0, GR2 = _make_kernel(C, H, W, Nb)
    RO = Nb * 3

    xg = out.reshape(num_blocks, RC, L).astype(jnp.float32)

    # ---- pack fused, per-tap, batch-block-diagonal weights (host glue) ----
    def taps(wname):  # (Cout, Cin, 3, 3) -> (9, Cout, Cin), tap t = kh*3 + kw
        w4 = pdict[wname]
        return jnp.transpose(w4.reshape(w4.shape[0], w4.shape[1], 9), (2, 0, 1))

    def fuse_bd(wm, wd):  # (9,C,C) x2 -> (9, 2C, 2C) block-diag over channels
        z = jnp.zeros((9, C, C), jnp.float32)
        top = jnp.concatenate([wm, z], axis=2)
        bot = jnp.concatenate([z, wd], axis=2)
        return jnp.concatenate([top, bot], axis=1)

    wt0 = jnp.concatenate([taps('mask0_w'), taps('delta0_w')], axis=1)   # (9,2C,C)
    wt1 = fuse_bd(taps('mask1_w'), taps('delta1_w'))                     # (9,2C,2C)
    wt2 = fuse_bd(taps('mask2_w'), taps('delta2_w'))
    bt0 = jnp.concatenate([pdict['mask0_b'], pdict['delta0_b']])
    bt1 = jnp.concatenate([pdict['mask1_b'], pdict['delta1_b']])
    bt2 = jnp.concatenate([pdict['mask2_b'], pdict['delta2_b']])

    w0, b0 = _pack_conv(wt0, bt0, Nb, GR0)
    w1, b1 = _pack_conv(wt1, bt1, Nb, GR2)
    w2, b2 = _pack_conv(wt2, bt2, Nb, GR2)

    # merged final 1x1: per-batch (3, 2C) -> batch block-diag (Nb*3, Nb*2C)
    wf_m = jnp.concatenate([pdict['mask3_w'].reshape(1, C),
                            jnp.zeros((1, C), jnp.float32)], axis=1)
    wf_d = jnp.concatenate([jnp.zeros((2, C), jnp.float32),
                            pdict['delta3_w'].reshape(2, C)], axis=1)
    wf_small = jnp.concatenate([wf_m, wf_d], axis=0)                     # (3, 2C)
    bf_small = jnp.concatenate([pdict['mask3_b'], pdict['delta3_b']])    # (3,)
    eye = jnp.eye(Nb, dtype=jnp.float32)
    wf = jnp.einsum('bB,oc->boBc', eye, wf_small).reshape(Nb * 3, Nb * 2 * C)
    bf = jnp.tile(bf_small, Nb)[:, None]
    alpha = pdict['alpha'].reshape(1).astype(jnp.float32)

    def full(shape):
        nd = len(shape)
        return pl.BlockSpec(shape, lambda g, _nd=nd: (0,) * _nd)

    outp = pl.pallas_call(
        kernel,
        out_shape=jax.ShapeDtypeStruct((num_blocks, RO, L), jnp.float32),
        grid=(num_blocks,),
        in_specs=[
            pl.BlockSpec(memory_space=pltpu.MemorySpace.SMEM),      # alpha
            pl.BlockSpec((1, RC, L), lambda g: (g, 0, 0)),          # x (lane-dense)
            full(w0.shape), full(b0.shape),
            full(w1.shape), full(b1.shape),
            full(w2.shape), full(b2.shape),
            full(wf.shape), full(bf.shape),
        ],
        out_specs=pl.BlockSpec((1, RO, L), lambda g: (g, 0, 0)),
        scratch_shapes=[
            pltpu.VMEM((9 * GR0, L), jnp.float32),   # layer-0 tap staging
            pltpu.VMEM((9 * GR2, L), jnp.float32),   # layer-1/2 tap staging
            pltpu.VMEM((R2, L), jnp.float32),        # current activations
        ],
        compiler_params=pltpu.CompilerParams(
            dimension_semantics=("parallel",)),                     # v7x: 2 TCs
    )(alpha, xg, w0, b0, w1, b1, w2, b2, wf, bf)

    outp = outp.reshape(N, 3, L)
    mask = outp[:, 0:1, :].reshape(N, 1, H, W)
    delta = jnp.transpose(outp[:, 1:3, :].reshape(N, 2, H, W), (0, 2, 3, 1))
    return {'mask': mask, 'delta': delta}


def init_params(key, C):
    """Deterministic synthetic parameters. PReLU alpha uses PyTorch default 0.25."""
    keys = iter(jax.random.split(key, 32))
    pdict = {'alpha': jnp.array([0.25], jnp.float32)}

    def add_conv(name, cin, cout, k):
        pdict[f'{name}_w'] = 0.1 * jax.random.normal(next(keys), (cout, cin, k, k),
                                                     jnp.float32)
        pdict[f'{name}_b'] = 0.1 * jax.random.normal(next(keys), (cout,), jnp.float32)

    for branch, last_c in (('mask', 1), ('delta', 2)):
        for i in range(3):
            add_conv(f'{branch}{i}', C, C, 3)
        add_conv(f'{branch}3', C, last_c, 1)
    return pdict


def ishead_reference(x0, pdict, img_height, img_width):
    """Pure-JAX reference matching the PyTorch forward."""
    N, C0, h, w = x0.shape
    C = C0 // INCH_DIV
    H, W = h * 4, w * 4
    out = x0.reshape(N, C, H, W).astype(jnp.float32)
    if H * W != img_height * img_width:
        hi = (jnp.arange(img_height) * H) // img_height
        wi = (jnp.arange(img_width) * W) // img_width
        out = out[:, :, hi[:, None], wi[None, :]]
    a = pdict['alpha'][0]

    def prelu(v):
        return jnp.where(v >= 0, v, a * v)

    def inorm(v):
        mean = v.mean(axis=(2, 3), keepdims=True)
        var = ((v - mean) ** 2).mean(axis=(2, 3), keepdims=True)
        return (v - mean) / jnp.sqrt(var + 1e-5)

    def conv(v, wname, bname, pad):
        y = lax.conv_general_dilated(v, pdict[wname], (1, 1),
                                     [(pad, pad), (pad, pad)],
                                     dimension_numbers=('NCHW', 'OIHW', 'NCHW'))
        return y + pdict[bname][None, :, None, None]

    y = prelu(inorm(out))
    m = y
    for i in range(3):
        m = prelu(inorm(conv(m, f'mask{i}_w', f'mask{i}_b', 1)))
    m = conv(m, 'mask3_w', 'mask3_b', 0)
    d = y
    for i in range(3):
        d = prelu(inorm(conv(d, f'delta{i}_w', f'delta{i}_b', 1)))
    d = conv(d, 'delta3_w', 'delta3_b', 0)
    return {'mask': m, 'delta': jnp.transpose(d, (0, 2, 3, 1))}


if __name__ == "__main__":
    key = jax.random.PRNGKey(0)
    kx, kp = jax.random.split(key)

    # x[0] of the input pyramid: (N, dim[0]=96, h, w); forward only uses x[0].
    N, h, w = 2, 8, 8
    x0 = jax.random.normal(kx, (N, 96, h, w), jnp.float32)
    img_h, img_w = h * 4, w * 4  # 32 x 32 -> matches the .view, no interpolation

    pdict = init_params(kp, 96 // INCH_DIV)

    out = ishead_forward(x0, pdict, img_h, img_w)
    jax.block_until_ready(out)

    assert out['mask'].shape == (N, 1, img_h, img_w)
    assert out['delta'].shape == (N, img_h, img_w, 2)

    ref = ishead_reference(x0, pdict, img_h, img_w)
    np.testing.assert_allclose(np.asarray(out['mask']), np.asarray(ref['mask']),
                               rtol=1e-3, atol=1e-3)
    np.testing.assert_allclose(np.asarray(out['delta']), np.asarray(ref['delta']),
                               rtol=1e-3, atol=1e-3)
    print("KERNEL_OK")
</pallas_src>

<mosaic_0001>
module attributes {stable_mosaic.version = 11 : i64} {
  func.func @kernel(%arg0: i32, %arg1: memref<1xf32, #tpu.memory_space<smem>>, %arg2: memref<1x12x1024xf32, #tpu.memory_space<vmem>>, %arg3: memref<24x144xf32, #tpu.memory_space<vmem>>, %arg4: memref<24x1xf32, #tpu.memory_space<vmem>>, %arg5: memref<24x216xf32, #tpu.memory_space<vmem>>, %arg6: memref<24x1xf32, #tpu.memory_space<vmem>>, %arg7: memref<24x216xf32, #tpu.memory_space<vmem>>, %arg8: memref<24x1xf32, #tpu.memory_space<vmem>>, %arg9: memref<6x24xf32, #tpu.memory_space<vmem>>, %arg10: memref<6x1xf32, #tpu.memory_space<vmem>>, %arg11: memref<1x6x1024xf32, #tpu.memory_space<vmem>>, %arg12: memref<144x1024xf32, #tpu.memory_space<vmem>>, %arg13: memref<216x1024xf32, #tpu.memory_space<vmem>>, %arg14: memref<24x1024xf32, #tpu.memory_space<vmem>>) attributes {dimension_semantics = [#tpu.dimension_semantics<parallel>], iteration_bounds = array<i64: 1>, scalar_prefetch = 0 : i64, scratch_operands = 3 : i64, tpu.core_type = #tpu.core_type<tc>, window_params = [{transform_indices = @transform_0, window_bounds = array<i64: 1>}, {transform_indices = @transform_1, window_bounds = array<i64: 1, 12, 1024>}, {pipeline_mode = #tpu.pipeline_mode<synchronous>, transform_indices = @transform_2, window_bounds = array<i64: 24, 144>}, {pipeline_mode = #tpu.pipeline_mode<synchronous>, transform_indices = @transform_3, window_bounds = array<i64: 24, 1>}, {pipeline_mode = #tpu.pipeline_mode<synchronous>, transform_indices = @transform_4, window_bounds = array<i64: 24, 216>}, {pipeline_mode = #tpu.pipeline_mode<synchronous>, transform_indices = @transform_5, window_bounds = array<i64: 24, 1>}, {pipeline_mode = #tpu.pipeline_mode<synchronous>, transform_indices = @transform_6, window_bounds = array<i64: 24, 216>}, {pipeline_mode = #tpu.pipeline_mode<synchronous>, transform_indices = @transform_7, window_bounds = array<i64: 24, 1>}, {pipeline_mode = #tpu.pipeline_mode<synchronous>, transform_indices = @transform_8, window_bounds = array<i64: 6, 24>}, {pipeline_mode = #tpu.pipeline_mode<synchronous>, transform_indices = @transform_9, window_bounds = array<i64: 6, 1>}, {transform_indices = @transform_10, window_bounds = array<i64: 1, 6, 1024>}]} {
    %c0 = arith.constant 0 : index
    %0 = memref.load %arg1[%c0] : memref<1xf32, #tpu.memory_space<smem>>
    %1 = tpu.iota {dimensions = array<i32: 1>} : vector<1x1024xi32>
    %c32_i32 = arith.constant 32 : i32
    %c0_i32 = arith.constant 0 : i32
    %2 = arith.cmpi eq, %c32_i32, %c0_i32 : i32
    %c1_i32 = arith.constant 1 : i32
    %3 = arith.select %2, %c1_i32, %c32_i32 : i32
    %4 = vector.broadcast %3 : i32 to vector<1x1024xi32>
    %5 = arith.remsi %1, %4 : vector<1x1024xi32>
    %c0_i32_0 = arith.constant 0 : i32
    %6 = vector.broadcast %c0_i32_0 : i32 to vector<1x1024xi32>
    %7 = arith.cmpi ne, %5, %6 : vector<1x1024xi32>
    %c0_i32_1 = arith.constant 0 : i32
    %8 = vector.broadcast %c0_i32_1 : i32 to vector<1x1024xi32>
    %9 = arith.cmpi slt, %5, %8 : vector<1x1024xi32>
    %c0_i32_2 = arith.constant 0 : i32
    %10 = arith.cmpi slt, %3, %c0_i32_2 : i32
    %11 = vector.broadcast %10 : i1 to vector<1x1024xi1>
    %12 = vector.broadcast %11 : vector<1x1024xi1> to vector<1x1024xi1>
    %13 = arith.xori %9, %12 : vector<1x1024xi1>
    %14 = arith.andi %13, %7 : vector<1x1024xi1>
    %15 = vector.broadcast %3 : i32 to vector<1x1024xi32>
    %16 = arith.addi %5, %15 : vector<1x1024xi32>
    %17 = arith.select %14, %16, %5 : vector<1x1024xi1>, vector<1x1024xi32>
    %c32_i32_3 = arith.constant 32 : i32
    %18 = vector.broadcast %c32_i32_3 : i32 to vector<1x1024xi32>
    %19 = arith.cmpi sge, %1, %18 : vector<1x1024xi32>
    %c992_i32 = arith.constant 992 : i32
    %20 = vector.broadcast %c992_i32 : i32 to vector<1x1024xi32>
    %21 = arith.cmpi slt, %1, %20 : vector<1x1024xi32>
    %c1_i32_4 = arith.constant 1 : i32
    %22 = vector.broadcast %c1_i32_4 : i32 to vector<1x1024xi32>
    %23 = arith.cmpi sge, %17, %22 : vector<1x1024xi32>
    %c30_i32 = arith.constant 30 : i32
    %24 = vector.broadcast %c30_i32 : i32 to vector<1x1024xi32>
    %25 = arith.cmpi sle, %17, %24 : vector<1x1024xi32>
    %cst = arith.constant 0.000000e+00 : f32
    %26 = vector.broadcast %cst : f32 to vector<144x1024xf32>
    %c0_5 = arith.constant 0 : index
    %c0_6 = arith.constant 0 : index
    %27 = vector.load %arg12[%c0_5, %c0_6] : memref<144x1024xf32, #tpu.memory_space<vmem>>, vector<144x1024xf32>
    tpu.vector_store %arg12[%c0_5, %c0_6], %26 {strides = array<i32>} : memref<144x1024xf32, #tpu.memory_space<vmem>>, vector<144x1024xf32>,
    %c0_7 = arith.constant 0 : index
    %c0_8 = arith.constant 0 : index
    %c0_9 = arith.constant 0 : index
    %28 = vector.load %arg2[%c0_7, %c0_8, %c0_9] : memref<1x12x1024xf32, #tpu.memory_space<vmem>>, vector<1x12x1024xf32>
    %29 = vector.shape_cast %28 : vector<1x12x1024xf32> to vector<12x1024xf32>
    %cst_10 = arith.constant dense<0.000000e+00> : vector<12xf32>
    %30 = vector.multi_reduction <add>, %29, %cst_10 [1] : vector<12x1024xf32> to vector<12xf32>
    %31 = vector.shape_cast %30 : vector<12xf32> to vector<12x1xf32>
    %32 = arith.mulf %29, %29 : vector<12x1024xf32>
    %cst_11 = arith.constant dense<0.000000e+00> : vector<12xf32>
    %33 = vector.multi_reduction <add>, %32, %cst_11 [1] : vector<12x1024xf32> to vector<12xf32>
    %34 = vector.shape_cast %33 : vector<12xf32> to vector<12x1xf32>
    %cst_12 = arith.constant 9.765625E-4 : f32
    %35 = vector.broadcast %cst_12 : f32 to vector<12x1xf32>
    %36 = arith.mulf %31, %35 : vector<12x1xf32>
    %cst_13 = arith.constant 9.765625E-4 : f32
    %37 = vector.broadcast %cst_13 : f32 to vector<12x1xf32>
    %38 = arith.mulf %34, %37 : vector<12x1xf32>
    %39 = arith.mulf %36, %36 : vector<12x1xf32>
    %40 = arith.subf %38, %39 : vector<12x1xf32>
    %cst_14 = arith.constant 0.000000e+00 : f32
    %41 = vector.broadcast %cst_14 : f32 to vector<12x1xf32>
    %42 = arith.maximumf %40, %41 : vector<12x1xf32>
    %43 = vector.broadcast %36 : vector<12x1xf32> to vector<12x1024xf32>
    %44 = arith.subf %29, %43 : vector<12x1024xf32>
    %cst_15 = arith.constant 9.99999974E-6 : f32
    %45 = vector.broadcast %cst_15 : f32 to vector<12x1xf32>
    %46 = arith.addf %42, %45 : vector<12x1xf32>
    %47 = math.rsqrt %46 : vector<12x1xf32>
    %48 = vector.broadcast %47 : vector<12x1xf32> to vector<12x1024xf32>
    %49 = arith.mulf %44, %48 : vector<12x1024xf32>
    %cst_16 = arith.constant 0.000000e+00 : f32
    %50 = vector.broadcast %cst_16 : f32 to vector<12x1024xf32>
    %51 = arith.cmpf oge, %49, %50 : vector<12x1024xf32>
    %52 = vector.broadcast %0 : f32 to vector<12x1024xf32>
    %53 = arith.mulf %52, %49 : vector<12x1024xf32>
    %54 = arith.select %51, %49, %53 : vector<12x1024xi1>, vector<12x1024xf32>
    %c0_17 = arith.constant 0 : index
    %c0_18 = arith.constant 0 : index
    %55 = vector.load %arg14[%c0_17, %c0_18] : memref<24x1024xf32, #tpu.memory_space<vmem>>, vector<12x1024xf32>
    tpu.vector_store %arg14[%c0_17, %c0_18], %54 {strides = array<i32>} : memref<24x1024xf32, #tpu.memory_space<vmem>>, vector<12x1024xf32>,
    %c0_19 = arith.constant 0 : index
    %c0_20 = arith.constant 0 : index
    %56 = vector.load %arg14[%c0_19, %c0_20] : memref<24x1024xf32, #tpu.memory_space<vmem>>, vector<12x1024xf32>
    %c32_i32_21 = arith.constant 32 : i32
    %57 = tpu.dynamic_rotate %56 by %c32_i32_21 dim 1 : vector<12x1024xf32>, i32 -> vector<12x1024xf32>
    %cst_22 = arith.constant 0.000000e+00 : f32
    %58 = vector.shape_cast %19 : vector<1x1024xi1> to vector<1x1024xi1>
    %59 = vector.broadcast %58 : vector<1x1024xi1> to vector<12x1024xi1>
    %60 = vector.broadcast %cst_22 : f32 to vector<12x1024xf32>
    %61 = arith.select %59, %57, %60 : vector<12x1024xi1>, vector<12x1024xf32>
    %c1_i32_23 = arith.constant 1 : i32
    %62 = tpu.dynamic_rotate %61 by %c1_i32_23 dim 1 : vector<12x1024xf32>, i32 -> vector<12x1024xf32>
    %cst_24 = arith.constant 0.000000e+00 : f32
    %63 = vector.shape_cast %23 : vector<1x1024xi1> to vector<1x1024xi1>
    %64 = vector.broadcast %63 : vector<1x1024xi1> to vector<12x1024xi1>
    %65 = vector.broadcast %cst_24 : f32 to vector<12x1024xf32>
    %66 = arith.select %64, %62, %65 : vector<12x1024xi1>, vector<12x1024xf32>
    %c0_25 = arith.constant 0 : index
    %c0_26 = arith.constant 0 : index
    %67 = vector.load %arg12[%c0_25, %c0_26] : memref<144x1024xf32, #tpu.memory_space<vmem>>, vector<12x1024xf32>
    tpu.vector_store %arg12[%c0_25, %c0_26], %66 {strides = array<i32>} : memref<144x1024xf32, #tpu.memory_space<vmem>>, vector<12x1024xf32>,
    %c16 = arith.constant 16 : index
    %c0_27 = arith.constant 0 : index
    %68 = vector.load %arg12[%c16, %c0_27] : memref<144x1024xf32, #tpu.memory_space<vmem>>, vector<12x1024xf32>
    tpu.vector_store %arg12[%c16, %c0_27], %61 {strides = array<i32>} : memref<144x1024xf32, #tpu.memory_space<vmem>>, vector<12x1024xf32>,
    %c1023_i32 = arith.constant 1023 : i32
    %69 = tpu.dynamic_rotate %61 by %c1023_i32 dim 1 : vector<12x1024xf32>, i32 -> vector<12x1024xf32>
    %cst_28 = arith.constant 0.000000e+00 : f32
    %70 = vector.shape_cast %25 : vector<1x1024xi1> to vector<1x1024xi1>
    %71 = vector.broadcast %70 : vector<1x1024xi1> to vector<12x1024xi1>
    %72 = vector.broadcast %cst_28 : f32 to vector<12x1024xf32>
    %73 = arith.select %71, %69, %72 : vector<12x1024xi1>, vector<12x1024xf32>
    %c32 = arith.constant 32 : index
    %c0_29 = arith.constant 0 : index
    %74 = vector.load %arg12[%c32, %c0_29] : memref<144x1024xf32, #tpu.memory_space<vmem>>, vector<12x1024xf32>
    tpu.vector_store %arg12[%c32, %c0_29], %73 {strides = array<i32>} : memref<144x1024xf32, #tpu.memory_space<vmem>>, vector<12x1024xf32>,
    %c0_30 = arith.constant 0 : index
    %c0_31 = arith.constant 0 : index
    %75 = vector.load %arg14[%c0_30, %c0_31] : memref<24x1024xf32, #tpu.memory_space<vmem>>, vector<12x1024xf32>
    %c1_i32_32 = arith.constant 1 : i32
    %76 = tpu.dynamic_rotate %75 by %c1_i32_32 dim 1 : vector<12x1024xf32>, i32 -> vector<12x1024xf32>
    %cst_33 = arith.constant 0.000000e+00 : f32
    %77 = vector.shape_cast %23 : vector<1x1024xi1> to vector<1x1024xi1>
    %78 = vector.broadcast %77 : vector<1x1024xi1> to vector<12x1024xi1>
    %79 = vector.broadcast %cst_33 : f32 to vector<12x1024xf32>
    %80 = arith.select %78, %76, %79 : vector<12x1024xi1>, vector<12x1024xf32>
    %c48 = arith.constant 48 : index
    %c0_34 = arith.constant 0 : index
    %81 = vector.load %arg12[%c48, %c0_34] : memref<144x1024xf32, #tpu.memory_space<vmem>>, vector<12x1024xf32>
    tpu.vector_store %arg12[%c48, %c0_34], %80 {strides = array<i32>} : memref<144x1024xf32, #tpu.memory_space<vmem>>, vector<12x1024xf32>,
    %c64 = arith.constant 64 : index
    %c0_35 = arith.constant 0 : index
    %82 = vector.load %arg12[%c64, %c0_35] : memref<144x1024xf32, #tpu.memory_space<vmem>>, vector<12x1024xf32>
    tpu.vector_store %arg12[%c64, %c0_35], %75 {strides = array<i32>} : memref<144x1024xf32, #tpu.memory_space<vmem>>, vector<12x1024xf32>,
    %c1023_i32_36 = arith.constant 1023 : i32
    %83 = tpu.dynamic_rotate %75 by %c1023_i32_36 dim 1 : vector<12x1024xf32>, i32 -> vector<12x1024xf32>
    %cst_37 = arith.constant 0.000000e+00 : f32
    %84 = vector.shape_cast %25 : vector<1x1024xi1> to vector<1x1024xi1>
    %85 = vector.broadcast %84 : vector<1x1024xi1> to vector<12x1024xi1>
    %86 = vector.broadcast %cst_37 : f32 to vector<12x1024xf32>
    %87 = arith.select %85, %83, %86 : vector<12x1024xi1>, vector<12x1024xf32>
    %c80 = arith.constant 80 : index
    %c0_38 = arith.constant 0 : index
    %88 = vector.load %arg12[%c80, %c0_38] : memref<144x1024xf32, #tpu.memory_space<vmem>>, vector<12x1024xf32>
    tpu.vector_store %arg12[%c80, %c0_38], %87 {strides = array<i32>} : memref<144x1024xf32, #tpu.memory_space<vmem>>, vector<12x1024xf32>,
    %c0_39 = arith.constant 0 : index
    %c0_40 = arith.constant 0 : index
    %89 = vector.load %arg14[%c0_39, %c0_40] : memref<24x1024xf32, #tpu.memory_space<vmem>>, vector<12x1024xf32>
    %c992_i32_41 = arith.constant 992 : i32
    %90 = tpu.dynamic_rotate %89 by %c992_i32_41 dim 1 : vector<12x1024xf32>, i32 -> vector<12x1024xf32>
    %cst_42 = arith.constant 0.000000e+00 : f32
    %91 = vector.shape_cast %21 : vector<1x1024xi1> to vector<1x1024xi1>
    %92 = vector.broadcast %91 : vector<1x1024xi1> to vector<12x1024xi1>
    %93 = vector.broadcast %cst_42 : f32 to vector<12x1024xf32>
    %94 = arith.select %92, %90, %93 : vector<12x1024xi1>, vector<12x1024xf32>
    %c1_i32_43 = arith.constant 1 : i32
    %95 = tpu.dynamic_rotate %94 by %c1_i32_43 dim 1 : vector<12x1024xf32>, i32 -> vector<12x1024xf32>
    %cst_44 = arith.constant 0.000000e+00 : f32
    %96 = vector.shape_cast %23 : vector<1x1024xi1> to vector<1x1024xi1>
    %97 = vector.broadcast %96 : vector<1x1024xi1> to vector<12x1024xi1>
    %98 = vector.broadcast %cst_44 : f32 to vector<12x1024xf32>
    %99 = arith.select %97, %95, %98 : vector<12x1024xi1>, vector<12x1024xf32>
    %c96 = arith.constant 96 : index
    %c0_45 = arith.constant 0 : index
    %100 = vector.load %arg12[%c96, %c0_45] : memref<144x1024xf32, #tpu.memory_space<vmem>>, vector<12x1024xf32>
    tpu.vector_store %arg12[%c96, %c0_45], %99 {strides = array<i32>} : memref<144x1024xf32, #tpu.memory_space<vmem>>, vector<12x1024xf32>,
    %c112 = arith.constant 112 : index
    %c0_46 = arith.constant 0 : index
    %101 = vector.load %arg12[%c112, %c0_46] : memref<144x1024xf32, #tpu.memory_space<vmem>>, vector<12x1024xf32>
    tpu.vector_store %arg12[%c112, %c0_46], %94 {strides = array<i32>} : memref<144x1024xf32, #tpu.memory_space<vmem>>, vector<12x1024xf32>,
    %c1023_i32_47 = arith.constant 1023 : i32
    %102 = tpu.dynamic_rotate %94 by %c1023_i32_47 dim 1 : vector<12x1024xf32>, i32 -> vector<12x1024xf32>
    %cst_48 = arith.constant 0.000000e+00 : f32
    %103 = vector.shape_cast %25 : vector<1x1024xi1> to vector<1x1024xi1>
    %104 = vector.broadcast %103 : vector<1x1024xi1> to vector<12x1024xi1>
    %105 = vector.broadcast %cst_48 : f32 to vector<12x1024xf32>
    %106 = arith.select %104, %102, %105 : vector<12x1024xi1>, vector<12x1024xf32>
    %c128 = arith.constant 128 : index
    %c0_49 = arith.constant 0 : index
    %107 = vector.load %arg12[%c128, %c0_49] : memref<144x1024xf32, #tpu.memory_space<vmem>>, vector<12x1024xf32>
    tpu.vector_store %arg12[%c128, %c0_49], %106 {strides = array<i32>} : memref<144x1024xf32, #tpu.memory_space<vmem>>, vector<12x1024xf32>,
    %c0_50 = arith.constant 0 : index
    %c0_51 = arith.constant 0 : index
    %108 = vector.load %arg3[%c0_50, %c0_51] : memref<24x144xf32, #tpu.memory_space<vmem>>, vector<24x144xf32>
    %c0_52 = arith.constant 0 : index
    %c0_53 = arith.constant 0 : index
    %109 = vector.load %arg12[%c0_52, %c0_53] : memref<144x1024xf32, #tpu.memory_space<vmem>>, vector<144x1024xf32>
    %cst_54 = arith.constant dense<0.000000e+00> : vector<24x1024xf32>
    %110 = tpu.matmul %108, %109, %cst_54 {dimension_numbers = #tpu.dot_dimension_numbers<[1], [0], [0], [1], [0, 0, 1, 1], [], []>} : vector<24x144xf32>, vector<144x1024xf32>, vector<24x1024xf32> -> vector<24x1024xf32>
    %c0_55 = arith.constant 0 : index
    %c0_56 = arith.constant 0 : index
    %111 = vector.load %arg4[%c0_55, %c0_56] : memref<24x1xf32, #tpu.memory_space<vmem>>, vector<24x1xf32>
    %112 = vector.broadcast %111 : vector<24x1xf32> to vector<24x1024xf32>
    %113 = arith.addf %110, %112 : vector<24x1024xf32>
    %cst_57 = arith.constant dense<0.000000e+00> : vector<24xf32>
    %114 = vector.multi_reduction <add>, %113, %cst_57 [1] : vector<24x1024xf32> to vector<24xf32>
    %115 = vector.shape_cast %114 : vector<24xf32> to vector<24x1xf32>
    %116 = arith.mulf %113, %113 : vector<24x1024xf32>
    %cst_58 = arith.constant dense<0.000000e+00> : vector<24xf32>
    %117 = vector.multi_reduction <add>, %116, %cst_58 [1] : vector<24x1024xf32> to vector<24xf32>
    %118 = vector.shape_cast %117 : vector<24xf32> to vector<24x1xf32>
    %cst_59 = arith.constant 9.765625E-4 : f32
    %119 = vector.broadcast %cst_59 : f32 to vector<24x1xf32>
    %120 = arith.mulf %115, %119 : vector<24x1xf32>
    %cst_60 = arith.constant 9.765625E-4 : f32
    %121 = vector.broadcast %cst_60 : f32 to vector<24x1xf32>
    %122 = arith.mulf %118, %121 : vector<24x1xf32>
    %123 = arith.mulf %120, %120 : vector<24x1xf32>
    %124 = arith.subf %122, %123 : vector<24x1xf32>
    %cst_61 = arith.constant 0.000000e+00 : f32
    %125 = vector.broadcast %cst_61 : f32 to vector<24x1xf32>
    %126 = arith.maximumf %124, %125 : vector<24x1xf32>
    %127 = vector.broadcast %120 : vector<24x1xf32> to vector<24x1024xf32>
    %128 = arith.subf %113, %127 : vector<24x1024xf32>
    %cst_62 = arith.constant 9.99999974E-6 : f32
    %129 = vector.broadcast %cst_62 : f32 to vector<24x1xf32>
    %130 = arith.addf %126, %129 : vector<24x1xf32>
    %131 = math.rsqrt %130 : vector<24x1xf32>
    %132 = vector.broadcast %131 : vector<24x1xf32> to vector<24x1024xf32>
    %133 = arith.mulf %128, %132 : vector<24x1024xf32>
    %cst_63 = arith.constant 0.000000e+00 : f32
    %134 = vector.broadcast %cst_63 : f32 to vector<24x1024xf32>
    %135 = arith.cmpf oge, %133, %134 : vector<24x1024xf32>
    %136 = vector.broadcast %0 : f32 to vector<24x1024xf32>
    %137 = arith.mulf %136, %133 : vector<24x1024xf32>
    %138 = arith.select %135, %133, %137 : vector<24x1024xi1>, vector<24x1024xf32>
    %c0_64 = arith.constant 0 : index
    %c0_65 = arith.constant 0 : index
    %139 = vector.load %arg14[%c0_64, %c0_65] : memref<24x1024xf32, #tpu.memory_space<vmem>>, vector<24x1024xf32>
    tpu.vector_store %arg14[%c0_64, %c0_65], %138 {strides = array<i32>} : memref<24x1024xf32, #tpu.memory_space<vmem>>, vector<24x1024xf32>,
    %c0_66 = arith.constant 0 : index
    %c0_67 = arith.constant 0 : index
    %140 = vector.load %arg14[%c0_66, %c0_67] : memref<24x1024xf32, #tpu.memory_space<vmem>>, vector<24x1024xf32>
    %c32_i32_68 = arith.constant 32 : i32
    %141 = tpu.dynamic_rotate %140 by %c32_i32_68 dim 1 : vector<24x1024xf32>, i32 -> vector<24x1024xf32>
    %cst_69 = arith.constant 0.000000e+00 : f32
    %142 = vector.shape_cast %19 : vector<1x1024xi1> to vector<1x1024xi1>
    %143 = vector.broadcast %142 : vector<1x1024xi1> to vector<24x1024xi1>
    %144 = vector.broadcast %cst_69 : f32 to vector<24x1024xf32>
    %145 = arith.select %143, %141, %144 : vector<24x1024xi1>, vector<24x1024xf32>
    %c1_i32_70 = arith.constant 1 : i32
    %146 = tpu.dynamic_rotate %145 by %c1_i32_70 dim 1 : vector<24x1024xf32>, i32 -> vector<24x1024xf32>
    %cst_71 = arith.constant 0.000000e+00 : f32
    %147 = vector.shape_cast %23 : vector<1x1024xi1> to vector<1x1024xi1>
    %148 = vector.broadcast %147 : vector<1x1024xi1> to vector<24x1024xi1>
    %149 = vector.broadcast %cst_71 : f32 to vector<24x1024xf32>
    %150 = arith.select %148, %146, %149 : vector<24x1024xi1>, vector<24x1024xf32>
    %c0_72 = arith.constant 0 : index
    %c0_73 = arith.constant 0 : index
    %151 = vector.load %arg13[%c0_72, %c0_73] : memref<216x1024xf32, #tpu.memory_space<vmem>>, vector<24x1024xf32>
    tpu.vector_store %arg13[%c0_72, %c0_73], %150 {strides = array<i32>} : memref<216x1024xf32, #tpu.memory_space<vmem>>, vector<24x1024xf32>,
    %c24 = arith.constant 24 : index
    %c0_74 = arith.constant 0 : index
    %152 = vector.load %arg13[%c24, %c0_74] : memref<216x1024xf32, #tpu.memory_space<vmem>>, vector<24x1024xf32>
    tpu.vector_store %arg13[%c24, %c0_74], %145 {strides = array<i32>} : memref<216x1024xf32, #tpu.memory_space<vmem>>, vector<24x1024xf32>,
    %c1023_i32_75 = arith.constant 1023 : i32
    %153 = tpu.dynamic_rotate %145 by %c1023_i32_75 dim 1 : vector<24x1024xf32>, i32 -> vector<24x1024xf32>
    %cst_76 = arith.constant 0.000000e+00 : f32
    %154 = vector.shape_cast %25 : vector<1x1024xi1> to vector<1x1024xi1>
    %155 = vector.broadcast %154 : vector<1x1024xi1> to vector<24x1024xi1>
    %156 = vector.broadcast %cst_76 : f32 to vector<24x1024xf32>
    %157 = arith.select %155, %153, %156 : vector<24x1024xi1>, vector<24x1024xf32>
    %c48_77 = arith.constant 48 : index
    %c0_78 = arith.constant 0 : index
    %158 = vector.load %arg13[%c48_77, %c0_78] : memref<216x1024xf32, #tpu.memory_space<vmem>>, vector<24x1024xf32>
    tpu.vector_store %arg13[%c48_77, %c0_78], %157 {strides = array<i32>} : memref<216x1024xf32, #tpu.memory_space<vmem>>, vector<24x1024xf32>,
    %c0_79 = arith.constant 0 : index
    %c0_80 = arith.constant 0 : index
    %159 = vector.load %arg14[%c0_79, %c0_80] : memref<24x1024xf32, #tpu.memory_space<vmem>>, vector<24x1024xf32>
    %c1_i32_81 = arith.constant 1 : i32
    %160 = tpu.dynamic_rotate %159 by %c1_i32_81 dim 1 : vector<24x1024xf32>, i32 -> vector<24x1024xf32>
    %cst_82 = arith.constant 0.000000e+00 : f32
    %161 = vector.shape_cast %23 : vector<1x1024xi1> to vector<1x1024xi1>
    %162 = vector.broadcast %161 : vector<1x1024xi1> to vector<24x1024xi1>
    %163 = vector.broadcast %cst_82 : f32 to vector<24x1024xf32>
    %164 = arith.select %162, %160, %163 : vector<24x1024xi1>, vector<24x1024xf32>
    %c72 = arith.constant 72 : index
    %c0_83 = arith.constant 0 : index
    %165 = vector.load %arg13[%c72, %c0_83] : memref<216x1024xf32, #tpu.memory_space<vmem>>, vector<24x1024xf32>
    tpu.vector_store %arg13[%c72, %c0_83], %164 {strides = array<i32>} : memref<216x1024xf32, #tpu.memory_space<vmem>>, vector<24x1024xf32>,
    %c96_84 = arith.constant 96 : index
    %c0_85 = arith.constant 0 : index
    %166 = vector.load %arg13[%c96_84, %c0_85] : memref<216x1024xf32, #tpu.memory_space<vmem>>, vector<24x1024xf32>
    tpu.vector_store %arg13[%c96_84, %c0_85], %159 {strides = array<i32>} : memref<216x1024xf32, #tpu.memory_space<vmem>>, vector<24x1024xf32>,
    %c1023_i32_86 = arith.constant 1023 : i32
    %167 = tpu.dynamic_rotate %159 by %c1023_i32_86 dim 1 : vector<24x1024xf32>, i32 -> vector<24x1024xf32>
    %cst_87 = arith.constant 0.000000e+00 : f32
    %168 = vector.shape_cast %25 : vector<1x1024xi1> to vector<1x1024xi1>
    %169 = vector.broadcast %168 : vector<1x1024xi1> to vector<24x1024xi1>
    %170 = vector.broadcast %cst_87 : f32 to vector<24x1024xf32>
    %171 = arith.select %169, %167, %170 : vector<24x1024xi1>, vector<24x1024xf32>
    %c120 = arith.constant 120 : index
    %c0_88 = arith.constant 0 : index
    %172 = vector.load %arg13[%c120, %c0_88] : memref<216x1024xf32, #tpu.memory_space<vmem>>, vector<24x1024xf32>
    tpu.vector_store %arg13[%c120, %c0_88], %171 {strides = array<i32>} : memref<216x1024xf32, #tpu.memory_space<vmem>>, vector<24x1024xf32>,
    %c0_89 = arith.constant 0 : index
    %c0_90 = arith.constant 0 : index
    %173 = vector.load %arg14[%c0_89, %c0_90] : memref<24x1024xf32, #tpu.memory_space<vmem>>, vector<24x1024xf32>
    %c992_i32_91 = arith.constant 992 : i32
    %174 = tpu.dynamic_rotate %173 by %c992_i32_91 dim 1 : vector<24x1024xf32>, i32 -> vector<24x1024xf32>
    %cst_92 = arith.constant 0.000000e+00 : f32
    %175 = vector.shape_cast %21 : vector<1x1024xi1> to vector<1x1024xi1>
    %176 = vector.broadcast %175 : vector<1x1024xi1> to vector<24x1024xi1>
    %177 = vector.broadcast %cst_92 : f32 to vector<24x1024xf32>
    %178 = arith.select %176, %174, %177 : vector<24x1024xi1>, vector<24x1024xf32>
    %c1_i32_93 = arith.constant 1 : i32
    %179 = tpu.dynamic_rotate %178 by %c1_i32_93 dim 1 : vector<24x1024xf32>, i32 -> vector<24x1024xf32>
    %cst_94 = arith.constant 0.000000e+00 : f32
    %180 = vector.shape_cast %23 : vector<1x1024xi1> to vector<1x1024xi1>
    %181 = vector.broadcast %180 : vector<1x1024xi1> to vector<24x1024xi1>
    %182 = vector.broadcast %cst_94 : f32 to vector<24x1024xf32>
    %183 = arith.select %181, %179, %182 : vector<24x1024xi1>, vector<24x1024xf32>
    %c144 = arith.constant 144 : index
    %c0_95 = arith.constant 0 : index
    %184 = vector.load %arg13[%c144, %c0_95] : memref<216x1024xf32, #tpu.memory_space<vmem>>, vector<24x1024xf32>
    tpu.vector_store %arg13[%c144, %c0_95], %183 {strides = array<i32>} : memref<216x1024xf32, #tpu.memory_space<vmem>>, vector<24x1024xf32>,
    %c168 = arith.constant 168 : index
    %c0_96 = arith.constant 0 : index
    %185 = vector.load %arg13[%c168, %c0_96] : memref<216x1024xf32, #tpu.memory_space<vmem>>, vector<24x1024xf32>
    tpu.vector_store %arg13[%c168, %c0_96], %178 {strides = array<i32>} : memref<216x1024xf32, #tpu.memory_space<vmem>>, vector<24x1024xf32>,
    %c1023_i32_97 = arith.constant 1023 : i32
    %186 = tpu.dynamic_rotate %178 by %c1023_i32_97 dim 1 : vector<24x1024xf32>, i32 -> vector<24x1024xf32>
    %cst_98 = arith.constant 0.000000e+00 : f32
    %187 = vector.shape_cast %25 : vector<1x1024xi1> to vector<1x1024xi1>
    %188 = vector.broadcast %187 : vector<1x1024xi1> to vector<24x1024xi1>
    %189 = vector.broadcast %cst_98 : f32 to vector<24x1024xf32>
    %190 = arith.select %188, %186, %189 : vector<24x1024xi1>, vector<24x1024xf32>
    %c192 = arith.constant 192 : index
    %c0_99 = arith.constant 0 : index
    %191 = vector.load %arg13[%c192, %c0_99] : memref<216x1024xf32, #tpu.memory_space<vmem>>, vector<24x1024xf32>
    tpu.vector_store %arg13[%c192, %c0_99], %190 {strides = array<i32>} : memref<216x1024xf32, #tpu.memory_space<vmem>>, vector<24x1024xf32>,
    %c0_100 = arith.constant 0 : index
    %c0_101 = arith.constant 0 : index
    %192 = vector.load %arg5[%c0_100, %c0_101] : memref<24x216xf32, #tpu.memory_space<vmem>>, vector<24x216xf32>
    %c0_102 = arith.constant 0 : index
    %c0_103 = arith.constant 0 : index
    %193 = vector.load %arg13[%c0_102, %c0_103] : memref<216x1024xf32, #tpu.memory_space<vmem>>, vector<216x1024xf32>
    %cst_104 = arith.constant dense<0.000000e+00> : vector<24x1024xf32>
    %194 = tpu.matmul %192, %193, %cst_104 {dimension_numbers = #tpu.dot_dimension_numbers<[1], [0], [0], [1], [0, 0, 1, 1], [], []>} : vector<24x216xf32>, vector<216x1024xf32>, vector<24x1024xf32> -> vector<24x1024xf32>
    %c0_105 = arith.constant 0 : index
    %c0_106 = arith.constant 0 : index
    %195 = vector.load %arg6[%c0_105, %c0_106] : memref<24x1xf32, #tpu.memory_space<vmem>>, vector<24x1xf32>
    %196 = vector.broadcast %195 : vector<24x1xf32> to vector<24x1024xf32>
    %197 = arith.addf %194, %196 : vector<24x1024xf32>
    %cst_107 = arith.constant dense<0.000000e+00> : vector<24xf32>
    %198 = vector.multi_reduction <add>, %197, %cst_107 [1] : vector<24x1024xf32> to vector<24xf32>
    %199 = vector.shape_cast %198 : vector<24xf32> to vector<24x1xf32>
    %200 = arith.mulf %197, %197 : vector<24x1024xf32>
    %cst_108 = arith.constant dense<0.000000e+00> : vector<24xf32>
    %201 = vector.multi_reduction <add>, %200, %cst_108 [1] : vector<24x1024xf32> to vector<24xf32>
    %202 = vector.shape_cast %201 : vector<24xf32> to vector<24x1xf32>
    %cst_109 = arith.constant 9.765625E-4 : f32
    %203 = vector.broadcast %cst_109 : f32 to vector<24x1xf32>
    %204 = arith.mulf %199, %203 : vector<24x1xf32>
    %cst_110 = arith.constant 9.765625E-4 : f32
    %205 = vector.broadcast %cst_110 : f32 to vector<24x1xf32>
    %206 = arith.mulf %202, %205 : vector<24x1xf32>
    %207 = arith.mulf %204, %204 : vector<24x1xf32>
    %208 = arith.subf %206, %207 : vector<24x1xf32>
    %cst_111 = arith.constant 0.000000e+00 : f32
    %209 = vector.broadcast %cst_111 : f32 to vector<24x1xf32>
    %210 = arith.maximumf %208, %209 : vector<24x1xf32>
    %211 = vector.broadcast %204 : vector<24x1xf32> to vector<24x1024xf32>
    %212 = arith.subf %197, %211 : vector<24x1024xf32>
    %cst_112 = arith.constant 9.99999974E-6 : f32
    %213 = vector.broadcast %cst_112 : f32 to vector<24x1xf32>
    %214 = arith.addf %210, %213 : vector<24x1xf32>
    %215 = math.rsqrt %214 : vector<24x1xf32>
    %216 = vector.broadcast %215 : vector<24x1xf32> to vector<24x1024xf32>
    %217 = arith.mulf %212, %216 : vector<24x1024xf32>
    %cst_113 = arith.constant 0.000000e+00 : f32
    %218 = vector.broadcast %cst_113 : f32 to vector<24x1024xf32>
    %219 = arith.cmpf oge, %217, %218 : vector<24x1024xf32>
    %220 = vector.broadcast %0 : f32 to vector<24x1024xf32>
    %221 = arith.mulf %220, %217 : vector<24x1024xf32>
    %222 = arith.select %219, %217, %221 : vector<24x1024xi1>, vector<24x1024xf32>
    %c0_114 = arith.constant 0 : index
    %c0_115 = arith.constant 0 : index
    %223 = vector.load %arg14[%c0_114, %c0_115] : memref<24x1024xf32, #tpu.memory_space<vmem>>, vector<24x1024xf32>
    tpu.vector_store %arg14[%c0_114, %c0_115], %222 {strides = array<i32>} : memref<24x1024xf32, #tpu.memory_space<vmem>>, vector<24x1024xf32>,
    %c0_116 = arith.constant 0 : index
    %c0_117 = arith.constant 0 : index
    %224 = vector.load %arg14[%c0_116, %c0_117] : memref<24x1024xf32, #tpu.memory_space<vmem>>, vector<24x1024xf32>
    %c32_i32_118 = arith.constant 32 : i32
    %225 = tpu.dynamic_rotate %224 by %c32_i32_118 dim 1 : vector<24x1024xf32>, i32 -> vector<24x1024xf32>
    %cst_119 = arith.constant 0.000000e+00 : f32
    %226 = vector.shape_cast %19 : vector<1x1024xi1> to vector<1x1024xi1>
    %227 = vector.broadcast %226 : vector<1x1024xi1> to vector<24x1024xi1>
    %228 = vector.broadcast %cst_119 : f32 to vector<24x1024xf32>
    %229 = arith.select %227, %225, %228 : vector<24x1024xi1>, vector<24x1024xf32>
    %c1_i32_120 = arith.constant 1 : i32
    %230 = tpu.dynamic_rotate %229 by %c1_i32_120 dim 1 : vector<24x1024xf32>, i32 -> vector<24x1024xf32>
    %cst_121 = arith.constant 0.000000e+00 : f32
    %231 = vector.shape_cast %23 : vector<1x1024xi1> to vector<1x1024xi1>
    %232 = vector.broadcast %231 : vector<1x1024xi1> to vector<24x1024xi1>
    %233 = vector.broadcast %cst_121 : f32 to vector<24x1024xf32>
    %234 = arith.select %232, %230, %233 : vector<24x1024xi1>, vector<24x1024xf32>
    %c0_122 = arith.constant 0 : index
    %c0_123 = arith.constant 0 : index
    %235 = vector.load %arg13[%c0_122, %c0_123] : memref<216x1024xf32, #tpu.memory_space<vmem>>, vector<24x1024xf32>
    tpu.vector_store %arg13[%c0_122, %c0_123], %234 {strides = array<i32>} : memref<216x1024xf32, #tpu.memory_space<vmem>>, vector<24x1024xf32>,
    %c24_124 = arith.constant 24 : index
    %c0_125 = arith.constant 0 : index
    %236 = vector.load %arg13[%c24_124, %c0_125] : memref<216x1024xf32, #tpu.memory_space<vmem>>, vector<24x1024xf32>
    tpu.vector_store %arg13[%c24_124, %c0_125], %229 {strides = array<i32>} : memref<216x1024xf32, #tpu.memory_space<vmem>>, vector<24x1024xf32>,
    %c1023_i32_126 = arith.constant 1023 : i32
    %237 = tpu.dynamic_rotate %229 by %c1023_i32_126 dim 1 : vector<24x1024xf32>, i32 -> vector<24x1024xf32>
    %cst_127 = arith.constant 0.000000e+00 : f32
    %238 = vector.shape_cast %25 : vector<1x1024xi1> to vector<1x1024xi1>
    %239 = vector.broadcast %238 : vector<1x1024xi1> to vector<24x1024xi1>
    %240 = vector.broadcast %cst_127 : f32 to vector<24x1024xf32>
    %241 = arith.select %239, %237, %240 : vector<24x1024xi1>, vector<24x1024xf32>
    %c48_128 = arith.constant 48 : index
    %c0_129 = arith.constant 0 : index
    %242 = vector.load %arg13[%c48_128, %c0_129] : memref<216x1024xf32, #tpu.memory_space<vmem>>, vector<24x1024xf32>
    tpu.vector_store %arg13[%c48_128, %c0_129], %241 {strides = array<i32>} : memref<216x1024xf32, #tpu.memory_space<vmem>>, vector<24x1024xf32>,
    %c0_130 = arith.constant 0 : index
    %c0_131 = arith.constant 0 : index
    %243 = vector.load %arg14[%c0_130, %c0_131] : memref<24x1024xf32, #tpu.memory_space<vmem>>, vector<24x1024xf32>
    %c1_i32_132 = arith.constant 1 : i32
    %244 = tpu.dynamic_rotate %243 by %c1_i32_132 dim 1 : vector<24x1024xf32>, i32 -> vector<24x1024xf32>
    %cst_133 = arith.constant 0.000000e+00 : f32
    %245 = vector.shape_cast %23 : vector<1x1024xi1> to vector<1x1024xi1>
    %246 = vector.broadcast %245 : vector<1x1024xi1> to vector<24x1024xi1>
    %247 = vector.broadcast %cst_133 : f32 to vector<24x1024xf32>
    %248 = arith.select %246, %244, %247 : vector<24x1024xi1>, vector<24x1024xf32>
    %c72_134 = arith.constant 72 : index
    %c0_135 = arith.constant 0 : index
    %249 = vector.load %arg13[%c72_134, %c0_135] : memref<216x1024xf32, #tpu.memory_space<vmem>>, vector<24x1024xf32>
    tpu.vector_store %arg13[%c72_134, %c0_135], %248 {strides = array<i32>} : memref<216x1024xf32, #tpu.memory_space<vmem>>, vector<24x1024xf32>,
    %c96_136 = arith.constant 96 : index
    %c0_137 = arith.constant 0 : index
    %250 = vector.load %arg13[%c96_136, %c0_137] : memref<216x1024xf32, #tpu.memory_space<vmem>>, vector<24x1024xf32>
    tpu.vector_store %arg13[%c96_136, %c0_137], %243 {strides = array<i32>} : memref<216x1024xf32, #tpu.memory_space<vmem>>, vector<24x1024xf32>,
    %c1023_i32_138 = arith.constant 1023 : i32
    %251 = tpu.dynamic_rotate %243 by %c1023_i32_138 dim 1 : vector<24x1024xf32>, i32 -> vector<24x1024xf32>
    %cst_139 = arith.constant 0.000000e+00 : f32
    %252 = vector.shape_cast %25 : vector<1x1024xi1> to vector<1x1024xi1>
    %253 = vector.broadcast %252 : vector<1x1024xi1> to vector<24x1024xi1>
    %254 = vector.broadcast %cst_139 : f32 to vector<24x1024xf32>
    %255 = arith.select %253, %251, %254 : vector<24x1024xi1>, vector<24x1024xf32>
    %c120_140 = arith.constant 120 : index
    %c0_141 = arith.constant 0 : index
    %256 = vector.load %arg13[%c120_140, %c0_141] : memref<216x1024xf32, #tpu.memory_space<vmem>>, vector<24x1024xf32>
    tpu.vector_store %arg13[%c120_140, %c0_141], %255 {strides = array<i32>} : memref<216x1024xf32, #tpu.memory_space<vmem>>, vector<24x1024xf32>,
    %c0_142 = arith.constant 0 : index
    %c0_143 = arith.constant 0 : index
    %257 = vector.load %arg14[%c0_142, %c0_143] : memref<24x1024xf32, #tpu.memory_space<vmem>>, vector<24x1024xf32>
    %c992_i32_144 = arith.constant 992 : i32
    %258 = tpu.dynamic_rotate %257 by %c992_i32_144 dim 1 : vector<24x1024xf32>, i32 -> vector<24x1024xf32>
    %cst_145 = arith.constant 0.000000e+00 : f32
    %259 = vector.shape_cast %21 : vector<1x1024xi1> to vector<1x1024xi1>
    %260 = vector.broadcast %259 : vector<1x1024xi1> to vector<24x1024xi1>
    %261 = vector.broadcast %cst_145 : f32 to vector<24x1024xf32>
    %262 = arith.select %260, %258, %261 : vector<24x1024xi1>, vector<24x1024xf32>
    %c1_i32_146 = arith.constant 1 : i32
    %263 = tpu.dynamic_rotate %262 by %c1_i32_146 dim 1 : vector<24x1024xf32>, i32 -> vector<24x1024xf32>
    %cst_147 = arith.constant 0.000000e+00 : f32
    %264 = vector.shape_cast %23 : vector<1x1024xi1> to vector<1x1024xi1>
    %265 = vector.broadcast %264 : vector<1x1024xi1> to vector<24x1024xi1>
    %266 = vector.broadcast %cst_147 : f32 to vector<24x1024xf32>
    %267 = arith.select %265, %263, %266 : vector<24x1024xi1>, vector<24x1024xf32>
    %c144_148 = arith.constant 144 : index
    %c0_149 = arith.constant 0 : index
    %268 = vector.load %arg13[%c144_148, %c0_149] : memref<216x1024xf32, #tpu.memory_space<vmem>>, vector<24x1024xf32>
    tpu.vector_store %arg13[%c144_148, %c0_149], %267 {strides = array<i32>} : memref<216x1024xf32, #tpu.memory_space<vmem>>, vector<24x1024xf32>,
    %c168_150 = arith.constant 168 : index
    %c0_151 = arith.constant 0 : index
    %269 = vector.load %arg13[%c168_150, %c0_151] : memref<216x1024xf32, #tpu.memory_space<vmem>>, vector<24x1024xf32>
    tpu.vector_store %arg13[%c168_150, %c0_151], %262 {strides = array<i32>} : memref<216x1024xf32, #tpu.memory_space<vmem>>, vector<24x1024xf32>,
    %c1023_i32_152 = arith.constant 1023 : i32
    %270 = tpu.dynamic_rotate %262 by %c1023_i32_152 dim 1 : vector<24x1024xf32>, i32 -> vector<24x1024xf32>
    %cst_153 = arith.constant 0.000000e+00 : f32
    %271 = vector.shape_cast %25 : vector<1x1024xi1> to vector<1x1024xi1>
    %272 = vector.broadcast %271 : vector<1x1024xi1> to vector<24x1024xi1>
    %273 = vector.broadcast %cst_153 : f32 to vector<24x1024xf32>
    %274 = arith.select %272, %270, %273 : vector<24x1024xi1>, vector<24x1024xf32>
    %c192_154 = arith.constant 192 : index
    %c0_155 = arith.constant 0 : index
    %275 = vector.load %arg13[%c192_154, %c0_155] : memref<216x1024xf32, #tpu.memory_space<vmem>>, vector<24x1024xf32>
    tpu.vector_store %arg13[%c192_154, %c0_155], %274 {strides = array<i32>} : memref<216x1024xf32, #tpu.memory_space<vmem>>, vector<24x1024xf32>,
    %c0_156 = arith.constant 0 : index
    %c0_157 = arith.constant 0 : index
    %276 = vector.load %arg7[%c0_156, %c0_157] : memref<24x216xf32, #tpu.memory_space<vmem>>, vector<24x216xf32>
    %c0_158 = arith.constant 0 : index
    %c0_159 = arith.constant 0 : index
    %277 = vector.load %arg13[%c0_158, %c0_159] : memref<216x1024xf32, #tpu.memory_space<vmem>>, vector<216x1024xf32>
    %cst_160 = arith.constant dense<0.000000e+00> : vector<24x1024xf32>
    %278 = tpu.matmul %276, %277, %cst_160 {dimension_numbers = #tpu.dot_dimension_numbers<[1], [0], [0], [1], [0, 0, 1, 1], [], []>} : vector<24x216xf32>, vector<216x1024xf32>, vector<24x1024xf32> -> vector<24x1024xf32>
    %c0_161 = arith.constant 0 : index
    %c0_162 = arith.constant 0 : index
    %279 = vector.load %arg8[%c0_161, %c0_162] : memref<24x1xf32, #tpu.memory_space<vmem>>, vector<24x1xf32>
    %280 = vector.broadcast %279 : vector<24x1xf32> to vector<24x1024xf32>
    %281 = arith.addf %278, %280 : vector<24x1024xf32>
    %cst_163 = arith.constant dense<0.000000e+00> : vector<24xf32>
    %282 = vector.multi_reduction <add>, %281, %cst_163 [1] : vector<24x1024xf32> to vector<24xf32>
    %283 = vector.shape_cast %282 : vector<24xf32> to vector<24x1xf32>
    %284 = arith.mulf %281, %281 : vector<24x1024xf32>
    %cst_164 = arith.constant dense<0.000000e+00> : vector<24xf32>
    %285 = vector.multi_reduction <add>, %284, %cst_164 [1] : vector<24x1024xf32> to vector<24xf32>
    %286 = vector.shape_cast %285 : vector<24xf32> to vector<24x1xf32>
    %cst_165 = arith.constant 9.765625E-4 : f32
    %287 = vector.broadcast %cst_165 : f32 to vector<24x1xf32>
    %288 = arith.mulf %283, %287 : vector<24x1xf32>
    %cst_166 = arith.constant 9.765625E-4 : f32
    %289 = vector.broadcast %cst_166 : f32 to vector<24x1xf32>
    %290 = arith.mulf %286, %289 : vector<24x1xf32>
    %291 = arith.mulf %288, %288 : vector<24x1xf32>
    %292 = arith.subf %290, %291 : vector<24x1xf32>
    %cst_167 = arith.constant 0.000000e+00 : f32
    %293 = vector.broadcast %cst_167 : f32 to vector<24x1xf32>
    %294 = arith.maximumf %292, %293 : vector<24x1xf32>
    %295 = vector.broadcast %288 : vector<24x1xf32> to vector<24x1024xf32>
    %296 = arith.subf %281, %295 : vector<24x1024xf32>
    %cst_168 = arith.constant 9.99999974E-6 : f32
    %297 = vector.broadcast %cst_168 : f32 to vector<24x1xf32>
    %298 = arith.addf %294, %297 : vector<24x1xf32>
    %299 = math.rsqrt %298 : vector<24x1xf32>
    %300 = vector.broadcast %299 : vector<24x1xf32> to vector<24x1024xf32>
    %301 = arith.mulf %296, %300 : vector<24x1024xf32>
    %cst_169 = arith.constant 0.000000e+00 : f32
    %302 = vector.broadcast %cst_169 : f32 to vector<24x1024xf32>
    %303 = arith.cmpf oge, %301, %302 : vector<24x1024xf32>
    %304 = vector.broadcast %0 : f32 to vector<24x1024xf32>
    %305 = arith.mulf %304, %301 : vector<24x1024xf32>
    %306 = arith.select %303, %301, %305 : vector<24x1024xi1>, vector<24x1024xf32>
    %c0_170 = arith.constant 0 : index
    %c0_171 = arith.constant 0 : index
    %307 = vector.load %arg9[%c0_170, %c0_171] : memref<6x24xf32, #tpu.memory_space<vmem>>, vector<6x24xf32>
    %cst_172 = arith.constant dense<0.000000e+00> : vector<6x1024xf32>
    %308 = tpu.matmul %307, %306, %cst_172 {dimension_numbers = #tpu.dot_dimension_numbers<[1], [0], [0], [1], [0, 0, 1, 1], [], []>} : vector<6x24xf32>, vector<24x1024xf32>, vector<6x1024xf32> -> vector<6x1024xf32>
    %c0_173 = arith.constant 0 : index
    %c0_174 = arith.constant 0 : index
    %309 = vector.load %arg10[%c0_173, %c0_174] : memref<6x1xf32, #tpu.memory_space<vmem>>, vector<6x1xf32>
    %310 = vector.broadcast %309 : vector<6x1xf32> to vector<6x1024xf32>
    %311 = arith.addf %308, %310 : vector<6x1024xf32>
    %c0_175 = arith.constant 0 : index
    %c0_176 = arith.constant 0 : index
    %c0_177 = arith.constant 0 : index
    %312 = vector.load %arg11[%c0_175, %c0_176, %c0_177] : memref<1x6x1024xf32, #tpu.memory_space<vmem>>, vector<1x6x1024xf32>
    %313 = vector.shape_cast %312 : vector<1x6x1024xf32> to vector<6x1024xf32>
    %314 = vector.shape_cast %311 : vector<6x1024xf32> to vector<1x6x1024xf32>
    tpu.vector_store %arg11[%c0_175, %c0_176, %c0_177], %314 {strides = array<i32>} : memref<1x6x1024xf32, #tpu.memory_space<vmem>>, vector<1x6x1024xf32>,
    return
  }
  func.func @transform_0(%arg0: i32) -> i32 {
    %c0_i32 = arith.constant 0 : i32
    %c0_i32_0 = arith.constant 0 : i32
    return %c0_i32 : i32
  }
  func.func @transform_1(%arg0: i32) -> (i32, i32, i32) {
    %c0_i32 = arith.constant 0 : i32
    %c0_i32_0 = arith.constant 0 : i32
    %c0_i32_1 = arith.constant 0 : i32
    return %arg0, %c0_i32, %c0_i32_0 : i32, i32, i32
  }
  func.func @transform_2(%arg0: i32) -> (i32, i32) {
    %c0_i32 = arith.constant 0 : i32
    %c0_i32_0 = arith.constant 0 : i32
    %c0_i32_1 = arith.constant 0 : i32
    return %c0_i32, %c0_i32_0 : i32, i32
  }
  func.func @transform_3(%arg0: i32) -> (i32, i32) {
    %c0_i32 = arith.constant 0 : i32
    %c0_i32_0 = arith.constant 0 : i32
    %c0_i32_1 = arith.constant 0 : i32
    return %c0_i32, %c0_i32_0 : i32, i32
  }
  func.func @transform_4(%arg0: i32) -> (i32, i32) {
    %c0_i32 = arith.constant 0 : i32
    %c0_i32_0 = arith.constant 0 : i32
    %c0_i32_1 = arith.constant 0 : i32
    return %c0_i32, %c0_i32_0 : i32, i32
  }
  func.func @transform_5(%arg0: i32) -> (i32, i32) {
    %c0_i32 = arith.constant 0 : i32
    %c0_i32_0 = arith.constant 0 : i32
    %c0_i32_1 = arith.constant 0 : i32
    return %c0_i32, %c0_i32_0 : i32, i32
  }
  func.func @transform_6(%arg0: i32) -> (i32, i32) {
    %c0_i32 = arith.constant 0 : i32
    %c0_i32_0 = arith.constant 0 : i32
    %c0_i32_1 = arith.constant 0 : i32
    return %c0_i32, %c0_i32_0 : i32, i32
  }
  func.func @transform_7(%arg0: i32) -> (i32, i32) {
    %c0_i32 = arith.constant 0 : i32
    %c0_i32_0 = arith.constant 0 : i32
    %c0_i32_1 = arith.constant 0 : i32
    return %c0_i32, %c0_i32_0 : i32, i32
  }
  func.func @transform_8(%arg0: i32) -> (i32, i32) {
    %c0_i32 = arith.constant 0 : i32
    %c0_i32_0 = arith.constant 0 : i32
    %c0_i32_1 = arith.constant 0 : i32
    return %c0_i32, %c0_i32_0 : i32, i32
  }
  func.func @transform_9(%arg0: i32) -> (i32, i32) {
    %c0_i32 = arith.constant 0 : i32
    %c0_i32_0 = arith.constant 0 : i32
    %c0_i32_1 = arith.constant 0 : i32
    return %c0_i32, %c0_i32_0 : i32, i32
  }
  func.func @transform_10(%arg0: i32) -> (i32, i32, i32) {
    %c0_i32 = arith.constant 0 : i32
    %c0_i32_0 = arith.constant 0 : i32
    %c0_i32_1 = arith.constant 0 : i32
    return %arg0, %c0_i32, %c0_i32_0 : i32, i32, i32
  }
}

</mosaic_0001>

<llo_original>
// kernel: tpu_custom_call.1
$region0: #{tpu_custom_call.1}
  #allocation0 [shape = 'u32[]', space=smem, size = 0x4, offset = 0x4, fixed_abs, tag = 'smem constant byte address 0x4 - core index']
  #allocation1 [shape = 'u32[144,128]{1,0:T(1,128)}', space=vmem, size = 0x12000, scoped, tag = 'internal scratch']
  #allocation2 [shape = 'f32[144,1024]{1,0:T(8,128)}', space=vmem, size = 0x90000, scoped, tag = 'scratch operand']
  #allocation3 [shape = 'f32[216,1024]{1,0:T(8,128)}', space=vmem, size = 0xd8000, scoped, tag = 'scratch operand']
  #allocation4 [shape = 'f32[24,1024]{1,0:T(8,128)}', space=vmem, size = 0x18000, scoped, tag = 'scratch operand']
  #allocation5 [shape = 'f32[1]{0:T(128)S(6)}', space=smem, size = 0x200, scoped, tag = 'scoped memory for tpu_custom_call.1']
  %s0 = inlined_call_operand.<no memory space> [shape: f32[1], index: 0, kind: input, shape index: {}]
  %s1 = inlined_call_operand.vmem [shape: f32[1,12,1024], index: 1, kind: input, shape index: {}]
  %s2 = inlined_call_operand.vmem [shape: f32[24,144], index: 2, kind: input, shape index: {}]
  %s3 = inlined_call_operand.vmem [shape: f32[24,1], index: 3, kind: input, shape index: {}]
  %s4 = inlined_call_operand.vmem [shape: f32[24,216], index: 4, kind: input, shape index: {}]
  %s5 = inlined_call_operand.vmem [shape: f32[24,1], index: 5, kind: input, shape index: {}]
  %s6 = inlined_call_operand.vmem [shape: f32[24,216], index: 6, kind: input, shape index: {}]
  %s7 = inlined_call_operand.vmem [shape: f32[24,1], index: 7, kind: input, shape index: {}]
  %s8 = inlined_call_operand.vmem [shape: f32[6,24], index: 8, kind: input, shape index: {}]
  %s9 = inlined_call_operand.vmem [shape: f32[6,1], index: 9, kind: input, shape index: {}]
  %s10 = inlined_call_operand.vmem [shape: f32[1,6,1024], index: 10, kind: output, shape index: {}]
  %s11 = sld [smem:[#allocation0]]
  $region50: #{tpu_custom_call.1} parent=0
    _
  %s13 = ssub.s32 1, %s11
  %s14 = scalar_select 0, %s13, %s11
  %15 = sst [smem:[#allocation5]] %s0
  // Predicated region
  $region2: #{tpu_custom_call.1} parent=0 // pred_check
    _
  $region3: #{tpu_custom_call.1} parent=0 // pred_check_branch
    %17 = sbr.rel (0) target = $region5
  $region4: #{tpu_custom_call.1} parent=0 // pred_region
    _
  $region5: #{tpu_custom_call.1} parent=0 // pred_fallthru
    _
  // Predicated region
  $region6: #{tpu_custom_call.1} parent=0 // pred_check
    _
  $region7: #{tpu_custom_call.1} parent=0 // pred_check_branch
    %19 = sbr.rel (0) target = $region9
  $region8: #{tpu_custom_call.1} parent=0 // pred_region
    _
  $region9: #{tpu_custom_call.1} parent=0 // pred_fallthru
    _
  // Predicated region
  $region10: #{tpu_custom_call.1} parent=0 // pred_check
    _
  $region11: #{tpu_custom_call.1} parent=0 // pred_check_branch
    %21 = sbr.rel (0) target = $region13
  $region12: #{tpu_custom_call.1} parent=0 // pred_region
    _
  $region13: #{tpu_custom_call.1} parent=0 // pred_fallthru
    _
  // Predicated region
  $region14: #{tpu_custom_call.1} parent=0 // pred_check
    _
  $region15: #{tpu_custom_call.1} parent=0 // pred_check_branch
    %23 = sbr.rel (0) target = $region17
  $region16: #{tpu_custom_call.1} parent=0 // pred_region
    _
  $region17: #{tpu_custom_call.1} parent=0 // pred_fallthru
    _
  // Predicated region
  $region18: #{tpu_custom_call.1} parent=0 // pred_check
    _
  $region19: #{tpu_custom_call.1} parent=0 // pred_check_branch
    %25 = sbr.rel (0) target = $region21
  $region20: #{tpu_custom_call.1} parent=0 // pred_region
    _
  $region21: #{tpu_custom_call.1} parent=0 // pred_fallthru
    _
  // Predicated region
  $region22: #{tpu_custom_call.1} parent=0 // pred_check
    _
  $region23: #{tpu_custom_call.1} parent=0 // pred_check_branch
    %27 = sbr.rel (0) target = $region25
  $region24: #{tpu_custom_call.1} parent=0 // pred_region
    _
  $region25: #{tpu_custom_call.1} parent=0 // pred_fallthru
    _
  // Predicated region
  $region26: #{tpu_custom_call.1} parent=0 // pred_check
    _
  $region27: #{tpu_custom_call.1} parent=0 // pred_check_branch
    %29 = sbr.rel (0) target = $region29
  $region28: #{tpu_custom_call.1} parent=0 // pred_region
    _
  $region29: #{tpu_custom_call.1} parent=0 // pred_fallthru
    _
  // Predicated region
  $region30: #{tpu_custom_call.1} parent=0 // pred_check
    _
  $region31: #{tpu_custom_call.1} parent=0 // pred_check_branch
    %31 = sbr.rel (0) target = $region33
  $region32: #{tpu_custom_call.1} parent=0 // pred_region
    _
  $region33: #{tpu_custom_call.1} parent=0 // pred_fallthru
    _
  // Predicated region
  $region34: #{tpu_custom_call.1} parent=0 // pred_check
    _
  $region35: #{tpu_custom_call.1} parent=0 // pred_check_branch
    %33 = sbr.rel (0) target = $region37
  $region36: #{tpu_custom_call.1} parent=0 // pred_region
    _
  $region37: #{tpu_custom_call.1} parent=0 // pred_fallthru
    _
  // Predicated region
  $region38: #{tpu_custom_call.1} parent=0 // pred_check
    _
  $region39: #{tpu_custom_call.1} parent=0 // pred_check_branch
    %35 = sbr.rel (0) target = $region41
  $region40: #{tpu_custom_call.1} parent=0 // pred_region
    _
  $region41: #{tpu_custom_call.1} parent=0 // pred_fallthru
    _
  %s36 = sld [smem:[#allocation5]]
  %v37 = vlaneseq
  %v38 = vand.u32 %v37, 127
  %v39 = vadd.s32 %v38, 128
  %v40 = vadd.s32 %v38, 256
  %v41 = vadd.s32 %v38, 384
  %v42 = vadd.s32 %v38, 512
  %v43 = vadd.s32 %v38, 640
  %v44 = vadd.s32 %v38, 768
  %v45 = vadd.s32 %v38, 896
  %vm46 = vcmp.lt.s32.totalorder %v38, 0
  %v47 = vsub.s32 0, %v38
  %v48 = vsel %vm46, %v47, %v38
  %v49 = vshrl.u32 %v48, 5
  %v50 = vand.u32 %v48, 31
  %v51 = vsub.s32 0, %v50
  %v52 = vsel %vm46, %v51, %v50
  %vm53 = vcmp.lt.s32.totalorder %v39, 0
  %v54 = vsub.s32 0, %v39
  %v55 = vsel %vm53, %v54, %v39
  %v56 = vshrl.u32 %v55, 5
  %v57 = vand.u32 %v55, 31
  %v58 = vsub.s32 0, %v57
  %v59 = vsel %vm53, %v58, %v57
  %vm60 = vcmp.lt.s32.totalorder %v40, 0
  %v61 = vsub.s32 0, %v40
  %v62 = vsel %vm60, %v61, %v40
  %v63 = vshrl.u32 %v62, 5
  %v64 = vand.u32 %v62, 31
  %v65 = vsub.s32 0, %v64
  %v66 = vsel %vm60, %v65, %v64
  %vm67 = vcmp.lt.s32.totalorder %v41, 0
  %v68 = vsub.s32 0, %v41
  %v69 = vsel %vm67, %v68, %v41
  %v70 = vshrl.u32 %v69, 5
  %v71 = vand.u32 %v69, 31
  %v72 = vsub.s32 0, %v71
  %v73 = vsel %vm67, %v72, %v71
  %vm74 = vcmp.lt.s32.totalorder %v42, 0
  %v75 = vsub.s32 0, %v42
  %v76 = vsel %vm74, %v75, %v42
  %v77 = vshrl.u32 %v76, 5
  %v78 = vand.u32 %v76, 31
  %v79 = vsub.s32 0, %v78
  %v80 = vsel %vm74, %v79, %v78
  %vm81 = vcmp.lt.s32.totalorder %v43, 0
  %v82 = vsub.s32 0, %v43
  %v83 = vsel %vm81, %v82, %v43
  %v84 = vshrl.u32 %v83, 5
  %v85 = vand.u32 %v83, 31
  %v86 = vsub.s32 0, %v85
  %v87 = vsel %vm81, %v86, %v85
  %vm88 = vcmp.lt.s32.totalorder %v44, 0
  %v89 = vsub.s32 0, %v44
  %v90 = vsel %vm88, %v89, %v44
  %v91 = vshrl.u32 %v90, 5
  %v92 = vand.u32 %v90, 31
  %v93 = vsub.s32 0, %v92
  %v94 = vsel %vm88, %v93, %v92
  %vm95 = vcmp.lt.s32.totalorder %v45, 0
  %v96 = vsub.s32 0, %v45
  %v97 = vsel %vm95, %v96, %v45
  %v98 = vshrl.u32 %v97, 5
  %v99 = vand.u32 %v97, 31
  %v100 = vsub.s32 0, %v99
  %v101 = vsel %vm95, %v100, %v99
  %vm102 = vcmp.ne.s32.totalorder %v52, 0
  %vm103 = vcmp.ne.s32.totalorder %v59, 0
  %vm104 = vcmp.ne.s32.totalorder %v66, 0
  %vm105 = vcmp.ne.s32.totalorder %v73, 0
  %vm106 = vcmp.ne.s32.totalorder %v80, 0
  %vm107 = vcmp.ne.s32.totalorder %v87, 0
  %vm108 = vcmp.ne.s32.totalorder %v94, 0
  %vm109 = vcmp.ne.s32.totalorder %v101, 0
  %vm110 = vcmp.lt.s32.totalorder %v52, 0
  %vm111 = vcmp.lt.s32.totalorder %v59, 0
  %vm112 = vcmp.lt.s32.totalorder %v66, 0
  %vm113 = vcmp.lt.s32.totalorder %v73, 0
  %vm114 = vcmp.lt.s32.totalorder %v80, 0
  %vm115 = vcmp.lt.s32.totalorder %v87, 0
  %vm116 = vcmp.lt.s32.totalorder %v94, 0
  %vm117 = vcmp.lt.s32.totalorder %v101, 0
  %vm118 = vmand %vm110, %vm102
  %vm119 = vmand %vm111, %vm103
  %vm120 = vmand %vm112, %vm104
  %vm121 = vmand %vm113, %vm105
  %vm122 = vmand %vm114, %vm106
  %vm123 = vmand %vm115, %vm107
  %vm124 = vmand %vm116, %vm108
  %vm125 = vmand %vm117, %vm109
  %v126 = vadd.s32 %v52, 32
  %v127 = vadd.s32 %v59, 32
  %v128 = vadd.s32 %v66, 32
  %v129 = vadd.s32 %v73, 32
  %v130 = vadd.s32 %v80, 32
  %v131 = vadd.s32 %v87, 32
  %v132 = vadd.s32 %v94, 32
  %v133 = vadd.s32 %v101, 32
  %v134 = vsel %vm118, %v126, %v52
  %v135 = vsel %vm119, %v127, %v59
  %v136 = vsel %vm120, %v128, %v66
  %v137 = vsel %vm121, %v129, %v73
  %v138 = vsel %vm122, %v130, %v80
  %v139 = vsel %vm123, %v131, %v87
  %v140 = vsel %vm124, %v132, %v94
  %v141 = vsel %vm125, %v133, %v101
  %vm142 = vcmp.ge.s32.totalorder %v38, 32
  %vm143 = vcmp.ge.s32.totalorder %v39, 32
  %vm144 = vcmp.ge.s32.totalorder %v40, 32
  %vm145 = vcmp.ge.s32.totalorder %v41, 32
  %vm146 = vcmp.ge.s32.totalorder %v42, 32
  %vm147 = vcmp.ge.s32.totalorder %v43, 32
  %vm148 = vcmp.ge.s32.totalorder %v44, 32
  %vm149 = vcmp.ge.s32.totalorder %v45, 32
  %vm150 = vcmp.lt.s32.totalorder %v38, 992
  %vm151 = vcmp.lt.s32.totalorder %v39, 992
  %vm152 = vcmp.lt.s32.totalorder %v40, 992
  %vm153 = vcmp.lt.s32.totalorder %v41, 992
  %vm154 = vcmp.lt.s32.totalorder %v42, 992
  %vm155 = vcmp.lt.s32.totalorder %v43, 992
  %vm156 = vcmp.lt.s32.totalorder %v44, 992
  %vm157 = vcmp.lt.s32.totalorder %v45, 992
  %vm158 = vcmp.ge.s32.totalorder %v134, 1
  %vm159 = vcmp.ge.s32.totalorder %v135, 1
  %vm160 = vcmp.ge.s32.totalorder %v136, 1
  %vm161 = vcmp.ge.s32.totalorder %v137, 1
  %vm162 = vcmp.ge.s32.totalorder %v138, 1
  %vm163 = vcmp.ge.s32.totalorder %v139, 1
  %vm164 = vcmp.ge.s32.totalorder %v140, 1
  %vm165 = vcmp.ge.s32.totalorder %v141, 1
  %vm166 = vcmp.le.s32.totalorder %v134, 30
  %vm167 = vcmp.le.s32.totalorder %v135, 30
  %vm168 = vcmp.le.s32.totalorder %v136, 30
  %vm169 = vcmp.le.s32.totalorder %v137, 30
  %vm170 = vcmp.le.s32.totalorder %v138, 30
  %vm171 = vcmp.le.s32.totalorder %v139, 30
  %vm172 = vcmp.le.s32.totalorder %v140, 30
  %vm173 = vcmp.le.s32.totalorder %v141, 30
  %174 = vst [vmem:[#allocation2] sm:$0xff] 0.0
  %175 = vst [vmem:[#allocation2 + $0x8] sm:$0xff] 0.0
  %176 = vst [vmem:[#allocation2 + $0x10] sm:$0xff] 0.0
  %177 = vst [vmem:[#allocation2 + $0x18] sm:$0xff] 0.0
  %178 = vst [vmem:[#allocation2 + $0x20] sm:$0xff] 0.0
  %179 = vst [vmem:[#allocation2 + $0x28] sm:$0xff] 0.0
  %180 = vst [vmem:[#allocation2 + $0x30] sm:$0xff] 0.0
  %181 = vst [vmem:[#allocation2 + $0x38] sm:$0xff] 0.0
  %182 = vst [vmem:[#allocation2 + $0x40] sm:$0xff] 0.0
  %183 = vst [vmem:[#allocation2 + $0x48] sm:$0xff] 0.0
  %184 = vst [vmem:[#allocation2 + $0x50] sm:$0xff] 0.0
  %185 = vst [vmem:[#allocation2 + $0x58] sm:$0xff] 0.0
  %186 = vst [vmem:[#allocation2 + $0x60] sm:$0xff] 0.0
  %187 = vst [vmem:[#allocation2 + $0x68] sm:$0xff] 0.0
  %188 = vst [vmem:[#allocation2 + $0x70] sm:$0xff] 0.0
  %189 = vst [vmem:[#allocation2 + $0x78] sm:$0xff] 0.0
  %190 = vst [vmem:[#allocation2 + $0x80] sm:$0xff] 0.0
  %191 = vst [vmem:[#allocation2 + $0x88] sm:$0xff] 0.0
  %192 = vst [vmem:[#allocation2 + $0x90] sm:$0xff] 0.0
  %193 = vst [vmem:[#allocation2 + $0x98] sm:$0xff] 0.0
  %194 = vst [vmem:[#allocation2 + $0xa0] sm:$0xff] 0.0
  %195 = vst [vmem:[#allocation2 + $0xa8] sm:$0xff] 0.0
  %196 = vst [vmem:[#allocation2 + $0xb0] sm:$0xff] 0.0
  %197 = vst [vmem:[#allocation2 + $0xb8] sm:$0xff] 0.0
  %198 = vst [vmem:[#allocation2 + $0xc0] sm:$0xff] 0.0
  %199 = vst [vmem:[#allocation2 + $0xc8] sm:$0xff] 0.0
  %200 = vst [vmem:[#allocation2 + $0xd0] sm:$0xff] 0.0
  %201 = vst [vmem:[#allocation2 + $0xd8] sm:$0xff] 0.0
  %202 = vst [vmem:[#allocation2 + $0xe0] sm:$0xff] 0.0
  %203 = vst [vmem:[#allocation2 + $0xe8] sm:$0xff] 0.0
  %204 = vst [vmem:[#allocation2 + $0xf0] sm:$0xff] 0.0
  %205 = vst [vmem:[#allocation2 + $0xf8] sm:$0xff] 0.0
  %206 = vst [vmem:[#allocation2 + $0x100] sm:$0xff] 0.0
  %207 = vst [vmem:[#allocation2 + $0x108] sm:$0xff] 0.0
  %208 = vst [vmem:[#allocation2 + $0x110] sm:$0xff] 0.0
  %209 = vst [vmem:[#allocation2 + $0x118] sm:$0xff] 0.0
  %210 = vst [vmem:[#allocation2 + $0x120] sm:$0xff] 0.0
  %211 = vst [vmem:[#allocation2 + $0x128] sm:$0xff] 0.0
  %212 = vst [vmem:[#allocation2 + $0x130] sm:$0xff] 0.0
  %213 = vst [vmem:[#allocation2 + $0x138] sm:$0xff] 0.0
  %214 = vst [vmem:[#allocation2 + $0x140] sm:$0xff] 0.0
  %215 = vst [vmem:[#allocation2 + $0x148] sm:$0xff] 0.0
  %216 = vst [vmem:[#allocation2 + $0x150] sm:$0xff] 0.0
  %217 = vst [vmem:[#allocation2 + $0x158] sm:$0xff] 0.0
  %218 = vst [vmem:[#allocation2 + $0x160] sm:$0xff] 0.0
  %219 = vst [vmem:[#allocation2 + $0x168] sm:$0xff] 0.0
  %220 = vst [vmem:[#allocation2 + $0x170] sm:$0xff] 0.0
  %221 = vst [vmem:[#allocation2 + $0x178] sm:$0xff] 0.0
  %222 = vst [vmem:[#allocation2 + $0x180] sm:$0xff] 0.0
  %223 = vst [vmem:[#allocation2 + $0x188] sm:$0xff] 0.0
  %224 = vst [vmem:[#allocation2 + $0x190] sm:$0xff] 0.0
  %225 = vst [vmem:[#allocation2 + $0x198] sm:$0xff] 0.0
  %226 = vst [vmem:[#allocation2 + $0x1a0] sm:$0xff] 0.0
  %227 = vst [vmem:[#allocation2 + $0x1a8] sm:$0xff] 0.0
  %228 = vst [vmem:[#allocation2 + $0x1b0] sm:$0xff] 0.0
  %229 = vst [vmem:[#allocation2 + $0x1b8] sm:$0xff] 0.0
  %230 = vst [vmem:[#allocation2 + $0x1c0] sm:$0xff] 0.0
  %231 = vst [vmem:[#allocation2 + $0x1c8] sm:$0xff] 0.0
  %232 = vst [vmem:[#allocation2 + $0x1d0] sm:$0xff] 0.0
  %233 = vst [vmem:[#allocation2 + $0x1d8] sm:$0xff] 0.0
  %234 = vst [vmem:[#allocation2 + $0x1e0] sm:$0xff] 0.0
  %235 = vst [vmem:[#allocation2 + $0x1e8] sm:$0xff] 0.0
  %236 = vst [vmem:[#allocation2 + $0x1f0] sm:$0xff] 0.0
  %237 = vst [vmem:[#allocation2 + $0x1f8] sm:$0xff] 0.0
  %238 = vst [vmem:[#allocation2 + $0x200] sm:$0xff] 0.0
  %239 = vst [vmem:[#allocation2 + $0x208] sm:$0xff] 0.0
  %240 = vst [vmem:[#allocation2 + $0x210] sm:$0xff] 0.0
  %241 = vst [vmem:[#allocation2 + $0x218] sm:$0xff] 0.0
  %242 = vst [vmem:[#allocation2 + $0x220] sm:$0xff] 0.0
  %243 = vst [vmem:[#allocation2 + $0x228] sm:$0xff] 0.0
  %244 = vst [vmem:[#allocation2 + $0x230] sm:$0xff] 0.0
  %245 = vst [vmem:[#allocation2 + $0x238] sm:$0xff] 0.0
  %246 = vst [vmem:[#allocation2 + $0x240] sm:$0xff] 0.0
  %247 = vst [vmem:[#allocation2 + $0x248] sm:$0xff] 0.0
  %248 = vst [vmem:[#allocation2 + $0x250] sm:$0xff] 0.0
  %249 = vst [vmem:[#allocation2 + $0x258] sm:$0xff] 0.0
  %250 = vst [vmem:[#allocation2 + $0x260] sm:$0xff] 0.0
  %251 = vst [vmem:[#allocation2 + $0x268] sm:$0xff] 0.0
  %252 = vst [vmem:[#allocation2 + $0x270] sm:$0xff] 0.0
  %253 = vst [vmem:[#allocation2 + $0x278] sm:$0xff] 0.0
  %254 = vst [vmem:[#allocation2 + $0x280] sm:$0xff] 0.0
  %255 = vst [vmem:[#allocation2 + $0x288] sm:$0xff] 0.0
  %256 = vst [vmem:[#allocation2 + $0x290] sm:$0xff] 0.0
  %257 = vst [vmem:[#allocation2 + $0x298] sm:$0xff] 0.0
  %258 = vst [vmem:[#allocation2 + $0x2a0] sm:$0xff] 0.0
  %259 = vst [vmem:[#allocation2 + $0x2a8] sm:$0xff] 0.0
  %260 = vst [vmem:[#allocation2 + $0x2b0] sm:$0xff] 0.0
  %261 = vst [vmem:[#allocation2 + $0x2b8] sm:$0xff] 0.0
  %262 = vst [vmem:[#allocation2 + $0x2c0] sm:$0xff] 0.0
  %263 = vst [vmem:[#allocation2 + $0x2c8] sm:$0xff] 0.0
  %264 = vst [vmem:[#allocation2 + $0x2d0] sm:$0xff] 0.0
  %265 = vst [vmem:[#allocation2 + $0x2d8] sm:$0xff] 0.0
  %266 = vst [vmem:[#allocation2 + $0x2e0] sm:$0xff] 0.0
  %267 = vst [vmem:[#allocation2 + $0x2e8] sm:$0xff] 0.0
  %268 = vst [vmem:[#allocation2 + $0x2f0] sm:$0xff] 0.0
  %269 = vst [vmem:[#allocation2 + $0x2f8] sm:$0xff] 0.0
  %270 = vst [vmem:[#allocation2 + $0x300] sm:$0xff] 0.0
  %271 = vst [vmem:[#allocation2 + $0x308] sm:$0xff] 0.0
  %272 = vst [vmem:[#allocation2 + $0x310] sm:$0xff] 0.0
  %273 = vst [vmem:[#allocation2 + $0x318] sm:$0xff] 0.0
  %274 = vst [vmem:[#allocation2 + $0x320] sm:$0xff] 0.0
  %275 = vst [vmem:[#allocation2 + $0x328] sm:$0xff] 0.0
  %276 = vst [vmem:[#allocation2 + $0x330] sm:$0xff] 0.0
  %277 = vst [vmem:[#allocation2 + $0x338] sm:$0xff] 0.0
  %278 = vst [vmem:[#allocation2 + $0x340] sm:$0xff] 0.0
  %279 = vst [vmem:[#allocation2 + $0x348] sm:$0xff] 0.0
  %280 = vst [vmem:[#allocation2 + $0x350] sm:$0xff] 0.0
  %281 = vst [vmem:[#allocation2 + $0x358] sm:$0xff] 0.0
  %282 = vst [vmem:[#allocation2 + $0x360] sm:$0xff] 0.0
  %283 = vst [vmem:[#allocation2 + $0x368] sm:$0xff] 0.0
  %284 = vst [vmem:[#allocation2 + $0x370] sm:$0xff] 0.0
  %285 = vst [vmem:[#allocation2 + $0x378] sm:$0xff] 0.0
  %286 = vst [vmem:[#allocation2 + $0x380] sm:$0xff] 0.0
  %287 = vst [vmem:[#allocation2 + $0x388] sm:$0xff] 0.0
  %288 = vst [vmem:[#allocation2 + $0x390] sm:$0xff] 0.0
  %289 = vst [vmem:[#allocation2 + $0x398] sm:$0xff] 0.0
  %290 = vst [vmem:[#allocation2 + $0x3a0] sm:$0xff] 0.0
  %291 = vst [vmem:[#allocation2 + $0x3a8] sm:$0xff] 0.0
  %292 = vst [vmem:[#allocation2 + $0x3b0] sm:$0xff] 0.0
  %293 = vst [vmem:[#allocation2 + $0x3b8] sm:$0xff] 0.0
  %294 = vst [vmem:[#allocation2 + $0x3c0] sm:$0xff] 0.0
  %295 = vst [vmem:[#allocation2 + $0x3c8] sm:$0xff] 0.0
  %296 = vst [vmem:[#allocation2 + $0x3d0] sm:$0xff] 0.0
  %297 = vst [vmem:[#allocation2 + $0x3d8] sm:$0xff] 0.0
  %298 = vst [vmem:[#allocation2 + $0x3e0] sm:$0xff] 0.0
  %299 = vst [vmem:[#allocation2 + $0x3e8] sm:$0xff] 0.0
  %300 = vst [vmem:[#allocation2 + $0x3f0] sm:$0xff] 0.0
  %301 = vst [vmem:[#allocation2 + $0x3f8] sm:$0xff] 0.0
  %302 = vst [vmem:[#allocation2 + $0x400] sm:$0xff] 0.0
  %303 = vst [vmem:[#allocation2 + $0x408] sm:$0xff] 0.0
  %304 = vst [vmem:[#allocation2 + $0x410] sm:$0xff] 0.0
  %305 = vst [vmem:[#allocation2 + $0x418] sm:$0xff] 0.0
  %306 = vst [vmem:[#allocation2 + $0x420] sm:$0xff] 0.0
  %307 = vst [vmem:[#allocation2 + $0x428] sm:$0xff] 0.0
  %308 = vst [vmem:[#allocation2 + $0x430] sm:$0xff] 0.0
  %309 = vst [vmem:[#allocation2 + $0x438] sm:$0xff] 0.0
  %310 = vst [vmem:[#allocation2 + $0x440] sm:$0xff] 0.0
  %311 = vst [vmem:[#allocation2 + $0x448] sm:$0xff] 0.0
  %312 = vst [vmem:[#allocation2 + $0x450] sm:$0xff] 0.0
  %313 = vst [vmem:[#allocation2 + $0x458] sm:$0xff] 0.0
  %314 = vst [vmem:[#allocation2 + $0x460] sm:$0xff] 0.0
  %315 = vst [vmem:[#allocation2 + $0x468] sm:$0xff] 0.0
  %316 = vst [vmem:[#allocation2 + $0x470] sm:$0xff] 0.0
  %317 = vst [vmem:[#allocation2 + $0x478] sm:$0xff] 0.0
  %v318 = vld [vmem:[%s1] sm:$0xff]
  %v319 = vld [vmem:[%s1 + $0x8] sm:$0xff]
  %v320 = vld [vmem:[%s1 + $0x10] sm:$0xff]
  %v321 = vld [vmem:[%s1 + $0x18] sm:$0xff]
  %v322 = vld [vmem:[%s1 + $0x20] sm:$0xff]
  %v323 = vld [vmem:[%s1 + $0x28] sm:$0xff]
  %v324 = vld [vmem:[%s1 + $0x30] sm:$0xff]
  %v325 = vld [vmem:[%s1 + $0x38] sm:$0xff]
  %v326 = vld [vmem:[%s1 + $0x40] sm:$0xf]
  %v327 = vld [vmem:[%s1 + $0x48] sm:$0xf]
  %v328 = vld [vmem:[%s1 + $0x50] sm:$0xf]
  %v329 = vld [vmem:[%s1 + $0x58] sm:$0xf]
  %v330 = vld [vmem:[%s1 + $0x60] sm:$0xf]
  %v331 = vld [vmem:[%s1 + $0x68] sm:$0xf]
  %v332 = vld [vmem:[%s1 + $0x70] sm:$0xf]
  %v333 = vld [vmem:[%s1 + $0x78] sm:$0xf]
  %v334 = vadd.f32 %v318, %v319
  %v335 = vadd.f32 %v334, %v320
  %v336 = vadd.f32 %v335, %v321
  %v337 = vadd.f32 %v336, %v322
  %v338 = vadd.f32 %v337, %v323
  %v339 = vadd.f32 %v338, %v324
  %v340 = vadd.f32 %v339, %v325
  %341 = vadd.xlane.f32.xlu0 %v340
  %v342 = vpop.xlane.xlu0 %341
  %vm343 = vcmask 1043456
  %v344 = vsel %vm343, %v326, 0.0
  %v345 = vsel %vm343, %v327, 0.0
  %v346 = vadd.f32 %v344, %v345
  %v347 = vsel %vm343, %v328, 0.0
  %v348 = vadd.f32 %v346, %v347
  %v349 = vsel %vm343, %v329, 0.0
  %v350 = vadd.f32 %v348, %v349
  %v351 = vsel %vm343, %v330, 0.0
  %v352 = vadd.f32 %v350, %v351
  %v353 = vsel %vm343, %v331, 0.0
  %v354 = vadd.f32 %v352, %v353
  %v355 = vsel %vm343, %v332, 0.0
  %v356 = vadd.f32 %v354, %v355
  %v357 = vsel %vm343, %v333, 0.0
  %v358 = vadd.f32 %v356, %v357
  %359 = vadd.xlane.f32.xlu0 %v358
  %v360 = vpop.xlane.xlu0 %359
  %v361 = vmul.f32 %v318, %v318
  %v362 = vmul.f32 %v319, %v319
  %v363 = vmul.f32 %v320, %v320
  %v364 = vmul.f32 %v321, %v321
  %v365 = vmul.f32 %v322, %v322
  %v366 = vmul.f32 %v323, %v323
  %v367 = vmul.f32 %v324, %v324
  %v368 = vmul.f32 %v325, %v325
  %v369 = vmul.f32 %v326, %v326
  %v370 = vmul.f32 %v327, %v327
  %v371 = vmul.f32 %v328, %v328
  %v372 = vmul.f32 %v329, %v329
  %v373 = vmul.f32 %v330, %v330
  %v374 = vmul.f32 %v331, %v331
  %v375 = vmul.f32 %v332, %v332
  %v376 = vmul.f32 %v333, %v333
  %v377 = vadd.f32 %v361, %v362
  %v378 = vadd.f32 %v377, %v363
  %v379 = vadd.f32 %v378, %v364
  %v380 = vadd.f32 %v379, %v365
  %v381 = vadd.f32 %v380, %v366
  %v382 = vadd.f32 %v381, %v367
  %v383 = vadd.f32 %v382, %v368
  %384 = vadd.xlane.f32.xlu0 %v383
  %v385 = vpop.xlane.xlu0 %384
  %v386 = vsel %vm343, %v369, 0.0
  %v387 = vsel %vm343, %v370, 0.0
  %v388 = vadd.f32 %v386, %v387
  %v389 = vsel %vm343, %v371, 0.0
  %v390 = vadd.f32 %v388, %v389
  %v391 = vsel %vm343, %v372, 0.0
  %v392 = vadd.f32 %v390, %v391
  %v393 = vsel %vm343, %v373, 0.0
  %v394 = vadd.f32 %v392, %v393
  %v395 = vsel %vm343, %v374, 0.0
  %v396 = vadd.f32 %v394, %v395
  %v397 = vsel %vm343, %v375, 0.0
  %v398 = vadd.f32 %v396, %v397
  %v399 = vsel %vm343, %v376, 0.0
  %v400 = vadd.f32 %v398, %v399
  %401 = vadd.xlane.f32.xlu0 %v400
  %v402 = vpop.xlane.xlu0 %401
  %v403 = vmul.f32 %v342, 0.0009765625
  %v404 = vmul.f32 %v360, 0.0009765625
  %v405 = vmul.f32 %v385, 0.0009765625
  %v406 = vmul.f32 %v402, 0.0009765625
  %v407 = vmul.f32 %v403, %v403
  %v408 = vmul.f32 %v404, %v404
  %v409 = vsub.f32 %v405, %v407
  %v410 = vsub.f32 %v406, %v408
  %v411 = vmax.f32 %v409, 0.0
  %v412 = vmax.f32 %v410, 0.0
  %v413 = vsub.f32 %v318, %v403
  %v414 = vsub.f32 %v319, %v403
  %v415 = vsub.f32 %v320, %v403
  %v416 = vsub.f32 %v321, %v403
  %v417 = vsub.f32 %v322, %v403
  %v418 = vsub.f32 %v323, %v403
  %v419 = vsub.f32 %v324, %v403
  %v420 = vsub.f32 %v325, %v403
  %v421 = vsub.f32 %v326, %v404
  %v422 = vsub.f32 %v327, %v404
  %v423 = vsub.f32 %v328, %v404
  %v424 = vsub.f32 %v329, %v404
  %v425 = vsub.f32 %v330, %v404
  %v426 = vsub.f32 %v331, %v404
  %v427 = vsub.f32 %v332, %v404
  %v428 = vsub.f32 %v333, %v404
  %v429 = vadd.f32 %v411, 1e-05
  %v430 = vadd.f32 %v412, 1e-05
  %v431 = vrsqrt.pop %v429
  %v432 = vrsqrt.pop %v430
  %v433 = vmul.f32 %v413, %v431
  %v434 = vmul.f32 %v414, %v431
  %v435 = vmul.f32 %v415, %v431
  %v436 = vmul.f32 %v416, %v431
  %v437 = vmul.f32 %v417, %v431
  %v438 = vmul.f32 %v418, %v431
  %v439 = vmul.f32 %v419, %v431
  %v440 = vmul.f32 %v420, %v431
  %v441 = vmul.f32 %v421, %v432
  %v442 = vmul.f32 %v422, %v432
  %v443 = vmul.f32 %v423, %v432
  %v444 = vmul.f32 %v424, %v432
  %v445 = vmul.f32 %v425, %v432
  %v446 = vmul.f32 %v426, %v432
  %v447 = vmul.f32 %v427, %v432
  %v448 = vmul.f32 %v428, %v432
  %vm449 = vcmp.ge.f32.partialorder %v433, 0.0
  %vm450 = vcmp.ge.f32.partialorder %v434, 0.0
  %vm451 = vcmp.ge.f32.partialorder %v435, 0.0
  %vm452 = vcmp.ge.f32.partialorder %v436, 0.0
  %vm453 = vcmp.ge.f32.partialorder %v437, 0.0
  %vm454 = vcmp.ge.f32.partialorder %v438, 0.0
  %vm455 = vcmp.ge.f32.partialorder %v439, 0.0
  %vm456 = vcmp.ge.f32.partialorder %v440, 0.0
  %vm457 = vcmp.ge.f32.partialorder %v441, 0.0
  %vm458 = vcmp.ge.f32.partialorder %v442, 0.0
  %vm459 = vcmp.ge.f32.partialorder %v443, 0.0
  %vm460 = vcmp.ge.f32.partialorder %v444, 0.0
  %vm461 = vcmp.ge.f32.partialorder %v445, 0.0
  %vm462 = vcmp.ge.f32.partialorder %v446, 0.0
  %vm463 = vcmp.ge.f32.partialorder %v447, 0.0
  %vm464 = vcmp.ge.f32.partialorder %v448, 0.0
  %v465 = vstv %s36
  %v466 = vmul.f32 %v465, %v433
  %v467 = vmul.f32 %v465, %v434
  %v468 = vmul.f32 %v465, %v435
  %v469 = vmul.f32 %v465, %v436
  %v470 = vmul.f32 %v465, %v437
  %v471 = vmul.f32 %v465, %v438
  %v472 = vmul.f32 %v465, %v439
  %v473 = vmul.f32 %v465, %v440
  %v474 = vmul.f32 %v465, %v441
  %v475 = vmul.f32 %v465, %v442
  %v476 = vmul.f32 %v465, %v443
  %v477 = vmul.f32 %v465, %v444
  %v478 = vmul.f32 %v465, %v445
  %v479 = vmul.f32 %v465, %v446
  %v480 = vmul.f32 %v465, %v447
  %v481 = vmul.f32 %v465, %v448
  %v482 = vsel %vm449, %v433, %v466
  %v483 = vsel %vm450, %v434, %v467
  %v484 = vsel %vm451, %v435, %v468
  %v485 = vsel %vm452, %v436, %v469
  %v486 = vsel %vm453, %v437, %v470
  %v487 = vsel %vm454, %v438, %v471
  %v488 = vsel %vm455, %v439, %v472
  %v489 = vsel %vm456, %v440, %v473
  %v490 = vsel %vm457, %v441, %v474
  %v491 = vsel %vm458, %v442, %v475
  %v492 = vsel %vm459, %v443, %v476
  %v493 = vsel %vm460, %v444, %v477
  %v494 = vsel %vm461, %v445, %v478
  %v495 = vsel %vm462, %v446, %v479
  %v496 = vsel %vm463, %v447, %v480
  %v497 = vsel %vm464, %v448, %v481
  %498 = vst [vmem:[#allocation4] sm:$0xff] %v482
  %499 = vst [vmem:[#allocation4 + $0x8] sm:$0xff] %v483
  %500 = vst [vmem:[#allocation4 + $0x10] sm:$0xff] %v484
  %501 = vst [vmem:[#allocation4 + $0x18] sm:$0xff] %v485
  %502 = vst [vmem:[#allocation4 + $0x20] sm:$0xff] %v486
  %503 = vst [vmem:[#allocation4 + $0x28] sm:$0xff] %v487
  %504 = vst [vmem:[#allocation4 + $0x30] sm:$0xff] %v488
  %505 = vst [vmem:[#allocation4 + $0x38] sm:$0xff] %v489
  %506 = vst [vmem:[#allocation4 + $0x40] sm:$0xf] %v490
  %507 = vst [vmem:[#allocation4 + $0x48] sm:$0xf] %v491
  %508 = vst [vmem:[#allocation4 + $0x50] sm:$0xf] %v492
  %509 = vst [vmem:[#allocation4 + $0x58] sm:$0xf] %v493
  %510 = vst [vmem:[#allocation4 + $0x60] sm:$0xf] %v494
  %511 = vst [vmem:[#allocation4 + $0x68] sm:$0xf] %v495
  %512 = vst [vmem:[#allocation4 + $0x70] sm:$0xf] %v496
  %513 = vst [vmem:[#allocation4 + $0x78] sm:$0xf] %v497
  %v514 = vld [vmem:[#allocation4] sm:$0xff]
  %v515 = vld [vmem:[#allocation4 + $0x8] sm:$0xff]
  %v516 = vld [vmem:[#allocation4 + $0x10] sm:$0xff]
  %v517 = vld [vmem:[#allocation4 + $0x18] sm:$0xff]
  %v518 = vld [vmem:[#allocation4 + $0x20] sm:$0xff]
  %v519 = vld [vmem:[#allocation4 + $0x28] sm:$0xff]
  %v520 = vld [vmem:[#allocation4 + $0x30] sm:$0xff]
  %v521 = vld [vmem:[#allocation4 + $0x38] sm:$0xff]
  %v522 = vld [vmem:[#allocation4 + $0x40] sm:$0xf]
  %v523 = vld [vmem:[#allocation4 + $0x48] sm:$0xf]
  %v524 = vld [vmem:[#allocation4 + $0x50] sm:$0xf]
  %v525 = vld [vmem:[#allocation4 + $0x58] sm:$0xf]
  %v526 = vld [vmem:[#allocation4 + $0x60] sm:$0xf]
  %v527 = vld [vmem:[#allocation4 + $0x68] sm:$0xf]
  %v528 = vld [vmem:[#allocation4 + $0x70] sm:$0xf]
  %v529 = vld [vmem:[#allocation4 + $0x78] sm:$0xf]
  %530 = vrot.lane.b32.xlu0 %v514, 32
  %v531 = vpop.permute.xlu0 %530
  %532 = vrot.lane.b32.xlu0 %v522, 32
  %v533 = vpop.permute.xlu0 %532
  %534 = vrot.lane.b32.xlu0 %v515, 32
  %v535 = vpop.permute.xlu0 %534
  %536 = vrot.lane.b32.xlu0 %v523, 32
  %v537 = vpop.permute.xlu0 %536
  %538 = vrot.lane.b32.xlu0 %v516, 32
  %v539 = vpop.permute.xlu0 %538
  %540 = vrot.lane.b32.xlu0 %v524, 32
  %v541 = vpop.permute.xlu0 %540
  %542 = vrot.lane.b32.xlu0 %v517, 32
  %v543 = vpop.permute.xlu0 %542
  %544 = vrot.lane.b32.xlu0 %v525, 32
  %v545 = vpop.permute.xlu0 %544
  %546 = vrot.lane.b32.xlu0 %v518, 32
  %v547 = vpop.permute.xlu0 %546
  %548 = vrot.lane.b32.xlu0 %v526, 32
  %v549 = vpop.permute.xlu0 %548
  %550 = vrot.lane.b32.xlu0 %v519, 32
  %v551 = vpop.permute.xlu0 %550
  %552 = vrot.lane.b32.xlu0 %v527, 32
  %v553 = vpop.permute.xlu0 %552
  %554 = vrot.lane.b32.xlu0 %v520, 32
  %v555 = vpop.permute.xlu0 %554
  %556 = vrot.lane.b32.xlu0 %v528, 32
  %v557 = vpop.permute.xlu0 %556
  %558 = vrot.lane.b32.xlu0 %v521, 32
  %v559 = vpop.permute.xlu0 %558
  %560 = vrot.lane.b32.xlu0 %v529, 32
  %v561 = vpop.permute.xlu0 %560
  %vm562 = vcmp.lt.s32.totalorder %v38, 32
  %v563 = vsel %vm562, %v555, %v559
  %v564 = vsel %vm562, %v557, %v561
  %v565 = vsel %vm562, %v551, %v555
  %v566 = vsel %vm562, %v553, %v557
  %v567 = vsel %vm562, %v547, %v551
  %v568 = vsel %vm562, %v549, %v553
  %v569 = vsel %vm562, %v543, %v547
  %v570 = vsel %vm562, %v545, %v549
  %v571 = vsel %vm562, %v539, %v543
  %v572 = vsel %vm562, %v541, %v545
  %v573 = vsel %vm562, %v535, %v539
  %v574 = vsel %vm562, %v537, %v541
  %v575 = vsel %vm562, %v531, %v535
  %v576 = vsel %vm562, %v533, %v537
  %v577 = vsel %vm562, %v559, %v531
  %v578 = vsel %vm562, %v561, %v533
  %v579 = vsel %vm142, 1, 0
  %v580 = vsel %vm143, 1, 0
  %v581 = vsel %vm144, 1, 0
  %v582 = vsel %vm145, 1, 0
  %v583 = vsel %vm146, 1, 0
  %v584 = vsel %vm147, 1, 0
  %v585 = vsel %vm148, 1, 0
  %v586 = vsel %vm149, 1, 0
  %vm587 = vcmp.eq.s32.totalorder %v579, 1
  %vm588 = vcmp.eq.s32.totalorder %v580, 1
  %vm589 = vcmp.eq.s32.totalorder %v581, 1
  %vm590 = vcmp.eq.s32.totalorder %v582, 1
  %vm591 = vcmp.eq.s32.totalorder %v583, 1
  %vm592 = vcmp.eq.s32.totalorder %v584, 1
  %vm593 = vcmp.eq.s32.totalorder %v585, 1
  %vm594 = vcmp.eq.s32.totalorder %v586, 1
  %v595 = vsel %vm587, %v577, 0.0
  %v596 = vsel %vm588, %v575, 0.0
  %v597 = vsel %vm589, %v573, 0.0
  %v598 = vsel %vm590, %v571, 0.0
  %v599 = vsel %vm591, %v569, 0.0
  %v600 = vsel %vm592, %v567, 0.0
  %v601 = vsel %vm593, %v565, 0.0
  %v602 = vsel %vm594, %v563, 0.0
  %v603 = vsel %vm587, %v578, 0.0
  %v604 = vsel %vm588, %v576, 0.0
  %v605 = vsel %vm589, %v574, 0.0
  %v606 = vsel %vm590, %v572, 0.0
  %v607 = vsel %vm591, %v570, 0.0
  %v608 = vsel %vm592, %v568, 0.0
  %v609 = vsel %vm593, %v566, 0.0
  %v610 = vsel %vm594, %v564, 0.0
  %611 = vrot.lane.b32.xlu0 %v595, 1
  %v612 = vpop.permute.xlu0 %611
  %613 = vrot.lane.b32.xlu0 %v603, 1
  %v614 = vpop.permute.xlu0 %613
  %615 = vrot.lane.b32.xlu0 %v596, 1
  %v616 = vpop.permute.xlu0 %615
  %617 = vrot.lane.b32.xlu0 %v604, 1
  %v618 = vpop.permute.xlu0 %617
  %619 = vrot.lane.b32.xlu0 %v597, 1
  %v620 = vpop.permute.xlu0 %619
  %621 = vrot.lane.b32.xlu0 %v605, 1
  %v622 = vpop.permute.xlu0 %621
  %623 = vrot.lane.b32.xlu0 %v598, 1
  %v624 = vpop.permute.xlu0 %623
  %625 = vrot.lane.b32.xlu0 %v606, 1
  %v626 = vpop.permute.xlu0 %625
  %627 = vrot.lane.b32.xlu0 %v599, 1
  %v628 = vpop.permute.xlu0 %627
  %629 = vrot.lane.b32.xlu0 %v607, 1
  %v630 = vpop.permute.xlu0 %629
  %631 = vrot.lane.b32.xlu0 %v600, 1
  %v632 = vpop.permute.xlu0 %631
  %633 = vrot.lane.b32.xlu0 %v608, 1
  %v634 = vpop.permute.xlu0 %633
  %635 = vrot.lane.b32.xlu0 %v601, 1
  %v636 = vpop.permute.xlu0 %635
  %637 = vrot.lane.b32.xlu0 %v609, 1
  %v638 = vpop.permute.xlu0 %637
  %639 = vrot.lane.b32.xlu0 %v602, 1
  %v640 = vpop.permute.xlu0 %639
  %641 = vrot.lane.b32.xlu0 %v610, 1
  %v642 = vpop.permute.xlu0 %641
  %vm643 = vcmp.lt.s32.totalorder %v38, 1
  %v644 = vsel %vm643, %v636, %v640
  %v645 = vsel %vm643, %v638, %v642
  %v646 = vsel %vm643, %v632, %v636
  %v647 = vsel %vm643, %v634, %v638
  %v648 = vsel %vm643, %v628, %v632
  %v649 = vsel %vm643, %v630, %v634
  %v650 = vsel %vm643, %v624, %v628
  %v651 = vsel %vm643, %v626, %v630
  %v652 = vsel %vm643, %v620, %v624
  %v653 = vsel %vm643, %v622, %v626
  %v654 = vsel %vm643, %v616, %v620
  %v655 = vsel %vm643, %v618, %v622
  %v656 = vsel %vm643, %v612, %v616
  %v657 = vsel %vm643, %v614, %v618
  %v658 = vsel %vm643, %v640, %v612
  %v659 = vsel %vm643, %v642, %v614
  %v660 = vsel %vm158, 1, 0
  %v661 = vsel %vm159, 1, 0
  %v662 = vsel %vm160, 1, 0
  %v663 = vsel %vm161, 1, 0
  %v664 = vsel %vm162, 1, 0
  %v665 = vsel %vm163, 1, 0
  %v666 = vsel %vm164, 1, 0
  %v667 = vsel %vm165, 1, 0
  %vm668 = vcmp.eq.s32.totalorder %v660, 1
  %vm669 = vcmp.eq.s32.totalorder %v661, 1
  %vm670 = vcmp.eq.s32.totalorder %v662, 1
  %vm671 = vcmp.eq.s32.totalorder %v663, 1
  %vm672 = vcmp.eq.s32.totalorder %v664, 1
  %vm673 = vcmp.eq.s32.totalorder %v665, 1
  %vm674 = vcmp.eq.s32.totalorder %v666, 1
  %vm675 = vcmp.eq.s32.totalorder %v667, 1
  %v676 = vsel %vm668, %v658, 0.0
  %v677 = vsel %vm669, %v656, 0.0
  %v678 = vsel %vm670, %v654, 0.0
  %v679 = vsel %vm671, %v652, 0.0
  %v680 = vsel %vm672, %v650, 0.0
  %v681 = vsel %vm673, %v648, 0.0
  %v682 = vsel %vm674, %v646, 0.0
  %v683 = vsel %vm675, %v644, 0.0
  %v684 = vsel %vm668, %v659, 0.0
  %v685 = vsel %vm669, %v657, 0.0
  %v686 = vsel %vm670, %v655, 0.0
  %v687 = vsel %vm671, %v653, 0.0
  %v688 = vsel %vm672, %v651, 0.0
  %v689 = vsel %vm673, %v649, 0.0
  %v690 = vsel %vm674, %v647, 0.0
  %v691 = vsel %vm675, %v645, 0.0
  %692 = vst [vmem:[#allocation2] sm:$0xff] %v676
  %693 = vst [vmem:[#allocation2 + $0x8] sm:$0xff] %v677
  %694 = vst [vmem:[#allocation2 + $0x10] sm:$0xff] %v678
  %695 = vst [vmem:[#allocation2 + $0x18] sm:$0xff] %v679
  %696 = vst [vmem:[#allocation2 + $0x20] sm:$0xff] %v680
  %697 = vst [vmem:[#allocation2 + $0x28] sm:$0xff] %v681
  %698 = vst [vmem:[#allocation2 + $0x30] sm:$0xff] %v682
  %699 = vst [vmem:[#allocation2 + $0x38] sm:$0xff] %v683
  %700 = vst [vmem:[#allocation2 + $0x40] sm:$0xf] %v684
  %701 = vst [vmem:[#allocation2 + $0x48] sm:$0xf] %v685
  %702 = vst [vmem:[#allocation2 + $0x50] sm:$0xf] %v686
  %703 = vst [vmem:[#allocation2 + $0x58] sm:$0xf] %v687
  %704 = vst [vmem:[#allocation2 + $0x60] sm:$0xf] %v688
  %705 = vst [vmem:[#allocation2 + $0x68] sm:$0xf] %v689
  %706 = vst [vmem:[#allocation2 + $0x70] sm:$0xf] %v690
  %707 = vst [vmem:[#allocation2 + $0x78] sm:$0xf] %v691
  %708 = vst [vmem:[#allocation2 + $0x80] sm:$0xff] %v595
  %709 = vst [vmem:[#allocation2 + $0x88] sm:$0xff] %v596
  %710 = vst [vmem:[#allocation2 + $0x90] sm:$0xff] %v597
  %711 = vst [vmem:[#allocation2 + $0x98] sm:$0xff] %v598
  %712 = vst [vmem:[#allocation2 + $0xa0] sm:$0xff] %v599
  %713 = vst [vmem:[#allocation2 + $0xa8] sm:$0xff] %v600
  %714 = vst [vmem:[#allocation2 + $0xb0] sm:$0xff] %v601
  %715 = vst [vmem:[#allocation2 + $0xb8] sm:$0xff] %v602
  %716 = vst [vmem:[#allocation2 + $0xc0] sm:$0xf] %v603
  %717 = vst [vmem:[#allocation2 + $0xc8] sm:$0xf] %v604
  %718 = vst [vmem:[#allocation2 + $0xd0] sm:$0xf] %v605
  %719 = vst [vmem:[#allocation2 + $0xd8] sm:$0xf] %v606
  %720 = vst [vmem:[#allocation2 + $0xe0] sm:$0xf] %v607
  %721 = vst [vmem:[#allocation2 + $0xe8] sm:$0xf] %v608
  %722 = vst [vmem:[#allocation2 + $0xf0] sm:$0xf] %v609
  %723 = vst [vmem:[#allocation2 + $0xf8] sm:$0xf] %v610
  %724 = vrot.lane.b32.xlu0 %v595, 127
  %v725 = vpop.permute.xlu0 %724
  %726 = vrot.lane.b32.xlu0 %v603, 127
  %v727 = vpop.permute.xlu0 %726
  %728 = vrot.lane.b32.xlu0 %v596, 127
  %v729 = vpop.permute.xlu0 %728
  %730 = vrot.lane.b32.xlu0 %v604, 127
  %v731 = vpop.permute.xlu0 %730
  %732 = vrot.lane.b32.xlu0 %v597, 127
  %v733 = vpop.permute.xlu0 %732
  %734 = vrot.lane.b32.xlu0 %v605, 127
  %v735 = vpop.permute.xlu0 %734
  %736 = vrot.lane.b32.xlu0 %v598, 127
  %v737 = vpop.permute.xlu0 %736
  %738 = vrot.lane.b32.xlu0 %v606, 127
  %v739 = vpop.permute.xlu0 %738
  %740 = vrot.lane.b32.xlu0 %v599, 127
  %v741 = vpop.permute.xlu0 %740
  %742 = vrot.lane.b32.xlu0 %v607, 127
  %v743 = vpop.permute.xlu0 %742
  %744 = vrot.lane.b32.xlu0 %v600, 127
  %v745 = vpop.permute.xlu0 %744
  %746 = vrot.lane.b32.xlu0 %v608, 127
  %v747 = vpop.permute.xlu0 %746
  %748 = vrot.lane.b32.xlu0 %v601, 127
  %v749 = vpop.permute.xlu0 %748
  %750 = vrot.lane.b32.xlu0 %v609, 127
  %v751 = vpop.permute.xlu0 %750
  %752 = vrot.lane.b32.xlu0 %v602, 127
  %v753 = vpop.permute.xlu0 %752
  %754 = vrot.lane.b32.xlu0 %v610, 127
  %v755 = vpop.permute.xlu0 %754
  %vm756 = vcmp.lt.s32.totalorder %v38, 127
  %v757 = vsel %vm756, %v749, %v753
  %v758 = vsel %vm756, %v751, %v755
  %v759 = vsel %vm756, %v745, %v749
  %v760 = vsel %vm756, %v747, %v751
  %v761 = vsel %vm756, %v741, %v745
  %v762 = vsel %vm756, %v743, %v747
  %v763 = vsel %vm756, %v737, %v741
  %v764 = vsel %vm756, %v739, %v743
  %v765 = vsel %vm756, %v733, %v737
  %v766 = vsel %vm756, %v735, %v739
  %v767 = vsel %vm756, %v729, %v733
  %v768 = vsel %vm756, %v731, %v735
  %v769 = vsel %vm756, %v725, %v729
  %v770 = vsel %vm756, %v727, %v731
  %v771 = vsel %vm756, %v753, %v725
  %v772 = vsel %vm756, %v755, %v727
  %v773 = vsel %vm166, 1, 0
  %v774 = vsel %vm167, 1, 0
  %v775 = vsel %vm168, 1, 0
  %v776 = vsel %vm169, 1, 0
  %v777 = vsel %vm170, 1, 0
  %v778 = vsel %vm171, 1, 0
  %v779 = vsel %vm172, 1, 0
  %v780 = vsel %vm173, 1, 0
  %vm781 = vcmp.eq.s32.totalorder %v773, 1
  %vm782 = vcmp.eq.s32.totalorder %v774, 1
  %vm783 = vcmp.eq.s32.totalorder %v775, 1
  %vm784 = vcmp.eq.s32.totalorder %v776, 1
  %vm785 = vcmp.eq.s32.totalorder %v777, 1
  %vm786 = vcmp.eq.s32.totalorder %v778, 1
  %vm787 = vcmp.eq.s32.totalorder %v779, 1
  %vm788 = vcmp.eq.s32.totalorder %v780, 1
  %v789 = vsel %vm781, %v769, 0.0
  %v790 = vsel %vm782, %v767, 0.0
  %v791 = vsel %vm783, %v765, 0.0
  %v792 = vsel %vm784, %v763, 0.0
  %v793 = vsel %vm785, %v761, 0.0
  %v794 = vsel %vm786, %v759, 0.0
  %v795 = vsel %vm787, %v757, 0.0
  %v796 = vsel %vm788, %v771, 0.0
  %v797 = vsel %vm781, %v770, 0.0
  %v798 = vsel %vm782, %v768, 0.0
  %v799 = vsel %vm783, %v766, 0.0
  %v800 = vsel %vm784, %v764, 0.0
  %v801 = vsel %vm785, %v762, 0.0
  %v802 = vsel %vm786, %v760, 0.0
  %v803 = vsel %vm787, %v758, 0.0
  %v804 = vsel %vm788, %v772, 0.0
  %805 = vst [vmem:[#allocation2 + $0x100] sm:$0xff] %v789
  %806 = vst [vmem:[#allocation2 + $0x108] sm:$0xff] %v790
  %807 = vst [vmem:[#allocation2 + $0x110] sm:$0xff] %v791
  %808 = vst [vmem:[#allocation2 + $0x118] sm:$0xff] %v792
  %809 = vst [vmem:[#allocation2 + $0x120] sm:$0xff] %v793
  %810 = vst [vmem:[#allocation2 + $0x128] sm:$0xff] %v794
  %811 = vst [vmem:[#allocation2 + $0x130] sm:$0xff] %v795
  %812 = vst [vmem:[#allocation2 + $0x138] sm:$0xff] %v796
  %813 = vst [vmem:[#allocation2 + $0x140] sm:$0xf] %v797
  %814 = vst [vmem:[#allocation2 + $0x148] sm:$0xf] %v798
  %815 = vst [vmem:[#allocation2 + $0x150] sm:$0xf] %v799
  %816 = vst [vmem:[#allocation2 + $0x158] sm:$0xf] %v800
  %817 = vst [vmem:[#allocation2 + $0x160] sm:$0xf] %v801
  %818 = vst [vmem:[#allocation2 + $0x168] sm:$0xf] %v802
  %819 = vst [vmem:[#allocation2 + $0x170] sm:$0xf] %v803
  %820 = vst [vmem:[#allocation2 + $0x178] sm:$0xf] %v804
  %v821 = vld [vmem:[#allocation4] sm:$0xff]
  %v822 = vld [vmem:[#allocation4 + $0x8] sm:$0xff]
  %v823 = vld [vmem:[#allocation4 + $0x10] sm:$0xff]
  %v824 = vld [vmem:[#allocation4 + $0x18] sm:$0xff]
  %v825 = vld [vmem:[#allocation4 + $0x20] sm:$0xff]
  %v826 = vld [vmem:[#allocation4 + $0x28] sm:$0xff]
  %v827 = vld [vmem:[#allocation4 + $0x30] sm:$0xff]
  %v828 = vld [vmem:[#allocation4 + $0x38] sm:$0xff]
  %v829 = vld [vmem:[#allocation4 + $0x40] sm:$0xf]
  %v830 = vld [vmem:[#allocation4 + $0x48] sm:$0xf]
  %v831 = vld [vmem:[#allocation4 + $0x50] sm:$0xf]
  %v832 = vld [vmem:[#allocation4 + $0x58] sm:$0xf]
  %v833 = vld [vmem:[#allocation4 + $0x60] sm:$0xf]
  %v834 = vld [vmem:[#allocation4 + $0x68] sm:$0xf]
  %v835 = vld [vmem:[#allocation4 + $0x70] sm:$0xf]
  %v836 = vld [vmem:[#allocation4 + $0x78] sm:$0xf]
  %837 = vrot.lane.b32.xlu0 %v821, 1
  %v838 = vpop.permute.xlu0 %837
  %839 = vrot.lane.b32.xlu0 %v829, 1
  %v840 = vpop.permute.xlu0 %839
  %841 = vrot.lane.b32.xlu0 %v822, 1
  %v842 = vpop.permute.xlu0 %841
  %843 = vrot.lane.b32.xlu0 %v830, 1
  %v844 = vpop.permute.xlu0 %843
  %845 = vrot.lane.b32.xlu0 %v823, 1
  %v846 = vpop.permute.xlu0 %845
  %847 = vrot.lane.b32.xlu0 %v831, 1
  %v848 = vpop.permute.xlu0 %847
  %849 = vrot.lane.b32.xlu0 %v824, 1
  %v850 = vpop.permute.xlu0 %849
  %851 = vrot.lane.b32.xlu0 %v832, 1
  %v852 = vpop.permute.xlu0 %851
  %853 = vrot.lane.b32.xlu0 %v825, 1
  %v854 = vpop.permute.xlu0 %853
  %855 = vrot.lane.b32.xlu0 %v833, 1
  %v856 = vpop.permute.xlu0 %855
  %857 = vrot.lane.b32.xlu0 %v826, 1
  %v858 = vpop.permute.xlu0 %857
  %859 = vrot.lane.b32.xlu0 %v834, 1
  %v860 = vpop.permute.xlu0 %859
  %861 = vrot.lane.b32.xlu0 %v827, 1
  %v862 = vpop.permute.xlu0 %861
  %863 = vrot.lane.b32.xlu0 %v835, 1
  %v864 = vpop.permute.xlu0 %863
  %865 = vrot.lane.b32.xlu0 %v828, 1
  %v866 = vpop.permute.xlu0 %865
  %867 = vrot.lane.b32.xlu0 %v836, 1
  %v868 = vpop.permute.xlu0 %867
  %v869 = vsel %vm643, %v862, %v866
  %v870 = vsel %vm643, %v864, %v868
  %v871 = vsel %vm643, %v858, %v862
  %v872 = vsel %vm643, %v860, %v864
  %v873 = vsel %vm643, %v854, %v858
  %v874 = vsel %vm643, %v856, %v860
  %v875 = vsel %vm643, %v850, %v854
  %v876 = vsel %vm643, %v852, %v856
  %v877 = vsel %vm643, %v846, %v850
  %v878 = vsel %vm643, %v848, %v852
  %v879 = vsel %vm643, %v842, %v846
  %v880 = vsel %vm643, %v844, %v848
  %v881 = vsel %vm643, %v838, %v842
  %v882 = vsel %vm643, %v840, %v844
  %v883 = vsel %vm643, %v866, %v838
  %v884 = vsel %vm643, %v868, %v840
  %v885 = vsel %vm668, %v883, 0.0
  %v886 = vsel %vm669, %v881, 0.0
  %v887 = vsel %vm670, %v879, 0.0
  %v888 = vsel %vm671, %v877, 0.0
  %v889 = vsel %vm672, %v875, 0.0
  %v890 = vsel %vm673, %v873, 0.0
  %v891 = vsel %vm674, %v871, 0.0
  %v892 = vsel %vm675, %v869, 0.0
  %v893 = vsel %vm668, %v884, 0.0
  %v894 = vsel %vm669, %v882, 0.0
  %v895 = vsel %vm670, %v880, 0.0
  %v896 = vsel %vm671, %v878, 0.0
  %v897 = vsel %vm672, %v876, 0.0
  %v898 = vsel %vm673, %v874, 0.0
  %v899 = vsel %vm674, %v872, 0.0
  %v900 = vsel %vm675, %v870, 0.0
  %901 = vst [vmem:[#allocation2 + $0x180] sm:$0xff] %v885
  %902 = vst [vmem:[#allocation2 + $0x188] sm:$0xff] %v886
  %903 = vst [vmem:[#allocation2 + $0x190] sm:$0xff] %v887
  %904 = vst [vmem:[#allocation2 + $0x198] sm:$0xff] %v888
  %905 = vst [vmem:[#allocation2 + $0x1a0] sm:$0xff] %v889
  %906 = vst [vmem:[#allocation2 + $0x1a8] sm:$0xff] %v890
  %907 = vst [vmem:[#allocation2 + $0x1b0] sm:$0xff] %v891
  %908 = vst [vmem:[#allocation2 + $0x1b8] sm:$0xff] %v892
  %909 = vst [vmem:[#allocation2 + $0x1c0] sm:$0xf] %v893
  %910 = vst [vmem:[#allocation2 + $0x1c8] sm:$0xf] %v894
  %911 = vst [vmem:[#allocation2 + $0x1d0] sm:$0xf] %v895
  %912 = vst [vmem:[#allocation2 + $0x1d8] sm:$0xf] %v896
  %913 = vst [vmem:[#allocation2 + $0x1e0] sm:$0xf] %v897
  %914 = vst [vmem:[#allocation2 + $0x1e8] sm:$0xf] %v898
  %915 = vst [vmem:[#allocation2 + $0x1f0] sm:$0xf] %v899
  %916 = vst [vmem:[#allocation2 + $0x1f8] sm:$0xf] %v900
  %917 = vst [vmem:[#allocation2 + $0x200] sm:$0xff] %v821
  %918 = vst [vmem:[#allocation2 + $0x208] sm:$0xff] %v822
  %919 = vst [vmem:[#allocation2 + $0x210] sm:$0xff] %v823
  %920 = vst [vmem:[#allocation2 + $0x218] sm:$0xff] %v824
  %921 = vst [vmem:[#allocation2 + $0x220] sm:$0xff] %v825
  %922 = vst [vmem:[#allocation2 + $0x228] sm:$0xff] %v826
  %923 = vst [vmem:[#allocation2 + $0x230] sm:$0xff] %v827
  %924 = vst [vmem:[#allocation2 + $0x238] sm:$0xff] %v828
  %925 = vst [vmem:[#allocation2 + $0x240] sm:$0xf] %v829
  %926 = vst [vmem:[#allocation2 + $0x248] sm:$0xf] %v830
  %927 = vst [vmem:[#allocation2 + $0x250] sm:$0xf] %v831
  %928 = vst [vmem:[#allocation2 + $0x258] sm:$0xf] %v832
  %929 = vst [vmem:[#allocation2 + $0x260] sm:$0xf] %v833
  %930 = vst [vmem:[#allocation2 + $0x268] sm:$0xf] %v834
  %931 = vst [vmem:[#allocation2 + $0x270] sm:$0xf] %v835
  %932 = vst [vmem:[#allocation2 + $0x278] sm:$0xf] %v836
  %933 = vrot.lane.b32.xlu0 %v821, 127
  %v934 = vpop.permute.xlu0 %933
  %935 = vrot.lane.b32.xlu0 %v829, 127
  %v936 = vpop.permute.xlu0 %935
  %937 = vrot.lane.b32.xlu0 %v822, 127
  %v938 = vpop.permute.xlu0 %937
  %939 = vrot.lane.b32.xlu0 %v830, 127
  %v940 = vpop.permute.xlu0 %939
  %941 = vrot.lane.b32.xlu0 %v823, 127
  %v942 = vpop.permute.xlu0 %941
  %943 = vrot.lane.b32.xlu0 %v831, 127
  %v944 = vpop.permute.xlu0 %943
  %945 = vrot.lane.b32.xlu0 %v824, 127
  %v946 = vpop.permute.xlu0 %945
  %947 = vrot.lane.b32.xlu0 %v832, 127
  %v948 = vpop.permute.xlu0 %947
  %949 = vrot.lane.b32.xlu0 %v825, 127
  %v950 = vpop.permute.xlu0 %949
  %951 = vrot.lane.b32.xlu0 %v833, 127
  %v952 = vpop.permute.xlu0 %951
  %953 = vrot.lane.b32.xlu0 %v826, 127
  %v954 = vpop.permute.xlu0 %953
  %955 = vrot.lane.b32.xlu0 %v834, 127
  %v956 = vpop.permute.xlu0 %955
  %957 = vrot.lane.b32.xlu0 %v827, 127
  %v958 = vpop.permute.xlu0 %957
  %959 = vrot.lane.b32.xlu0 %v835, 127
  %v960 = vpop.permute.xlu0 %959
  %961 = vrot.lane.b32.xlu0 %v828, 127
  %v962 = vpop.permute.xlu0 %961
  %963 = vrot.lane.b32.xlu0 %v836, 127
  %v964 = vpop.permute.xlu0 %963
  %v965 = vsel %vm756, %v958, %v962
  %v966 = vsel %vm756, %v960, %v964
  %v967 = vsel %vm756, %v954, %v958
  %v968 = vsel %vm756, %v956, %v960
  %v969 = vsel %vm756, %v950, %v954
  %v970 = vsel %vm756, %v952, %v956
  %v971 = vsel %vm756, %v946, %v950
  %v972 = vsel %vm756, %v948, %v952
  %v973 = vsel %vm756, %v942, %v946
  %v974 = vsel %vm756, %v944, %v948
  %v975 = vsel %vm756, %v938, %v942
  %v976 = vsel %vm756, %v940, %v944
  %v977 = vsel %vm756, %v934, %v938
  %v978 = vsel %vm756, %v936, %v940
  %v979 = vsel %vm756, %v962, %v934
  %v980 = vsel %vm756, %v964, %v936
  %v981 = vsel %vm781, %v977, 0.0
  %v982 = vsel %vm782, %v975, 0.0
  %v983 = vsel %vm783, %v973, 0.0
  %v984 = vsel %vm784, %v971, 0.0
  %v985 = vsel %vm785, %v969, 0.0
  %v986 = vsel %vm786, %v967, 0.0
  %v987 = vsel %vm787, %v965, 0.0
  %v988 = vsel %vm788, %v979, 0.0
  %v989 = vsel %vm781, %v978, 0.0
  %v990 = vsel %vm782, %v976, 0.0
  %v991 = vsel %vm783, %v974, 0.0
  %v992 = vsel %vm784, %v972, 0.0
  %v993 = vsel %vm785, %v970, 0.0
  %v994 = vsel %vm786, %v968, 0.0
  %v995 = vsel %vm787, %v966, 0.0
  %v996 = vsel %vm788, %v980, 0.0
  %997 = vst [vmem:[#allocation2 + $0x280] sm:$0xff] %v981
  %998 = vst [vmem:[#allocation2 + $0x288] sm:$0xff] %v982
  %999 = vst [vmem:[#allocation2 + $0x290] sm:$0xff] %v983
  %1000 = vst [vmem:[#allocation2 + $0x298] sm:$0xff] %v984
  %1001 = vst [vmem:[#allocation2 + $0x2a0] sm:$0xff] %v985
  %1002 = vst [vmem:[#allocation2 + $0x2a8] sm:$0xff] %v986
  %1003 = vst [vmem:[#allocation2 + $0x2b0] sm:$0xff] %v987
  %1004 = vst [vmem:[#allocation2 + $0x2b8] sm:$0xff] %v988
  %1005 = vst [vmem:[#allocation2 + $0x2c0] sm:$0xf] %v989
  %1006 = vst [vmem:[#allocation2 + $0x2c8] sm:$0xf] %v990
  %1007 = vst [vmem:[#allocation2 + $0x2d0] sm:$0xf] %v991
  %1008 = vst [vmem:[#allocation2 + $0x2d8] sm:$0xf] %v992
  %1009 = vst [vmem:[#allocation2 + $0x2e0] sm:$0xf] %v993
  %1010 = vst [vmem:[#allocation2 + $0x2e8] sm:$0xf] %v994
  %1011 = vst [vmem:[#allocation2 + $0x2f0] sm:$0xf] %v995
  %1012 = vst [vmem:[#allocation2 + $0x2f8] sm:$0xf] %v996
  %v1013 = vld [vmem:[#allocation4] sm:$0xff]
  %v1014 = vld [vmem:[#allocation4 + $0x8] sm:$0xff]
  %v1015 = vld [vmem:[#allocation4 + $0x10] sm:$0xff]
  %v1016 = vld [vmem:[#allocation4 + $0x18] sm:$0xff]
  %v1017 = vld [vmem:[#allocation4 + $0x20] sm:$0xff]
  %v1018 = vld [vmem:[#allocation4 + $0x28] sm:$0xff]
  %v1019 = vld [vmem:[#allocation4 + $0x30] sm:$0xff]
  %v1020 = vld [vmem:[#allocation4 + $0x38] sm:$0xff]
  %v1021 = vld [vmem:[#allocation4 + $0x40] sm:$0xf]
  %v1022 = vld [vmem:[#allocation4 + $0x48] sm:$0xf]
  %v1023 = vld [vmem:[#allocation4 + $0x50] sm:$0xf]
  %v1024 = vld [vmem:[#allocation4 + $0x58] sm:$0xf]
  %v1025 = vld [vmem:[#allocation4 + $0x60] sm:$0xf]
  %v1026 = vld [vmem:[#allocation4 + $0x68] sm:$0xf]
  %v1027 = vld [vmem:[#allocation4 + $0x70] sm:$0xf]
  %v1028 = vld [vmem:[#allocation4 + $0x78] sm:$0xf]
  %1029 = vrot.lane.b32.xlu0 %v1013, 96
  %v1030 = vpop.permute.xlu0 %1029
  %1031 = vrot.lane.b32.xlu0 %v1021, 96
  %v1032 = vpop.permute.xlu0 %1031
  %1033 = vrot.lane.b32.xlu0 %v1014, 96
  %v1034 = vpop.permute.xlu0 %1033
  %1035 = vrot.lane.b32.xlu0 %v1022, 96
  %v1036 = vpop.permute.xlu0 %1035
  %1037 = vrot.lane.b32.xlu0 %v1015, 96
  %v1038 = vpop.permute.xlu0 %1037
  %1039 = vrot.lane.b32.xlu0 %v1023, 96
  %v1040 = vpop.permute.xlu0 %1039
  %1041 = vrot.lane.b32.xlu0 %v1016, 96
  %v1042 = vpop.permute.xlu0 %1041
  %1043 = vrot.lane.b32.xlu0 %v1024, 96
  %v1044 = vpop.permute.xlu0 %1043
  %1045 = vrot.lane.b32.xlu0 %v1017, 96
  %v1046 = vpop.permute.xlu0 %1045
  %1047 = vrot.lane.b32.xlu0 %v1025, 96
  %v1048 = vpop.permute.xlu0 %1047
  %1049 = vrot.lane.b32.xlu0 %v1018, 96
  %v1050 = vpop.permute.xlu0 %1049
  %1051 = vrot.lane.b32.xlu0 %v1026, 96
  %v1052 = vpop.permute.xlu0 %1051
  %1053 = vrot.lane.b32.xlu0 %v1019, 96
  %v1054 = vpop.permute.xlu0 %1053
  %1055 = vrot.lane.b32.xlu0 %v1027, 96
  %v1056 = vpop.permute.xlu0 %1055
  %1057 = vrot.lane.b32.xlu0 %v1020, 96
  %v1058 = vpop.permute.xlu0 %1057
  %1059 = vrot.lane.b32.xlu0 %v1028, 96
  %v1060 = vpop.permute.xlu0 %1059
  %vm1061 = vcmp.lt.s32.totalorder %v38, 96
  %v1062 = vsel %vm1061, %v1054, %v1058
  %v1063 = vsel %vm1061, %v1056, %v1060
  %v1064 = vsel %vm1061, %v1050, %v1054
  %v1065 = vsel %vm1061, %v1052, %v1056
  %v1066 = vsel %vm1061, %v1046, %v1050
  %v1067 = vsel %vm1061, %v1048, %v1052
  %v1068 = vsel %vm1061, %v1042, %v1046
  %v1069 = vsel %vm1061, %v1044, %v1048
  %v1070 = vsel %vm1061, %v1038, %v1042
  %v1071 = vsel %vm1061, %v1040, %v1044
  %v1072 = vsel %vm1061, %v1034, %v1038
  %v1073 = vsel %vm1061, %v1036, %v1040
  %v1074 = vsel %vm1061, %v1030, %v1034
  %v1075 = vsel %vm1061, %v1032, %v1036
  %v1076 = vsel %vm1061, %v1058, %v1030
  %v1077 = vsel %vm1061, %v1060, %v1032
  %v1078 = vsel %vm150, 1, 0
  %v1079 = vsel %vm151, 1, 0
  %v1080 = vsel %vm152, 1, 0
  %v1081 = vsel %vm153, 1, 0
  %v1082 = vsel %vm154, 1, 0
  %v1083 = vsel %vm155, 1, 0
  %v1084 = vsel %vm156, 1, 0
  %v1085 = vsel %vm157, 1, 0
  %vm1086 = vcmp.eq.s32.totalorder %v1078, 1
  %vm1087 = vcmp.eq.s32.totalorder %v1079, 1
  %vm1088 = vcmp.eq.s32.totalorder %v1080, 1
  %vm1089 = vcmp.eq.s32.totalorder %v1081, 1
  %vm1090 = vcmp.eq.s32.totalorder %v1082, 1
  %vm1091 = vcmp.eq.s32.totalorder %v1083, 1
  %vm1092 = vcmp.eq.s32.totalorder %v1084, 1
  %vm1093 = vcmp.eq.s32.totalorder %v1085, 1
  %v1094 = vsel %vm1086, %v1074, 0.0
  %v1095 = vsel %vm1087, %v1072, 0.0
  %v1096 = vsel %vm1088, %v1070, 0.0
  %v1097 = vsel %vm1089, %v1068, 0.0
  %v1098 = vsel %vm1090, %v1066, 0.0
  %v1099 = vsel %vm1091, %v1064, 0.0
  %v1100 = vsel %vm1092, %v1062, 0.0
  %v1101 = vsel %vm1093, %v1076, 0.0
  %v1102 = vsel %vm1086, %v1075, 0.0
  %v1103 = vsel %vm1087, %v1073, 0.0
  %v1104 = vsel %vm1088, %v1071, 0.0
  %v1105 = vsel %vm1089, %v1069, 0.0
  %v1106 = vsel %vm1090, %v1067, 0.0
  %v1107 = vsel %vm1091, %v1065, 0.0
  %v1108 = vsel %vm1092, %v1063, 0.0
  %v1109 = vsel %vm1093, %v1077, 0.0
  %1110 = vrot.lane.b32.xlu0 %v1094, 1
  %v1111 = vpop.permute.xlu0 %1110
  %1112 = vrot.lane.b32.xlu0 %v1102, 1
  %v1113 = vpop.permute.xlu0 %1112
  %1114 = vrot.lane.b32.xlu0 %v1095, 1
  %v1115 = vpop.permute.xlu0 %1114
  %1116 = vrot.lane.b32.xlu0 %v1103, 1
  %v1117 = vpop.permute.xlu0 %1116
  %1118 = vrot.lane.b32.xlu0 %v1096, 1
  %v1119 = vpop.permute.xlu0 %1118
  %1120 = vrot.lane.b32.xlu0 %v1104, 1
  %v1121 = vpop.permute.xlu0 %1120
  %1122 = vrot.lane.b32.xlu0 %v1097, 1
  %v1123 = vpop.permute.xlu0 %1122
  %1124 = vrot.lane.b32.xlu0 %v1105, 1
  %v1125 = vpop.permute.xlu0 %1124
  %1126 = vrot.lane.b32.xlu0 %v1098, 1
  %v1127 = vpop.permute.xlu0 %1126
  %1128 = vrot.lane.b32.xlu0 %v1106, 1
  %v1129 = vpop.permute.xlu0 %1128
  %1130 = vrot.lane.b32.xlu0 %v1099, 1
  %v1131 = vpop.permute.xlu0 %1130
  %1132 = vrot.lane.b32.xlu0 %v1107, 1
  %v1133 = vpop.permute.xlu0 %1132
  %1134 = vrot.lane.b32.xlu0 %v1100, 1
  %v1135 = vpop.permute.xlu0 %1134
  %1136 = vrot.lane.b32.xlu0 %v1108, 1
  %v1137 = vpop.permute.xlu0 %1136
  %1138 = vrot.lane.b32.xlu0 %v1101, 1
  %v1139 = vpop.permute.xlu0 %1138
  %1140 = vrot.lane.b32.xlu0 %v1109, 1
  %v1141 = vpop.permute.xlu0 %1140
  %v1142 = vsel %vm643, %v1135, %v1139
  %v1143 = vsel %vm643, %v1137, %v1141
  %v1144 = vsel %vm643, %v1131, %v1135
  %v1145 = vsel %vm643, %v1133, %v1137
  %v1146 = vsel %vm643, %v1127, %v1131
  %v1147 = vsel %vm643, %v1129, %v1133
  %v1148 = vsel %vm643, %v1123, %v1127
  %v1149 = vsel %vm643, %v1125, %v1129
  %v1150 = vsel %vm643, %v1119, %v1123
  %v1151 = vsel %vm643, %v1121, %v1125
  %v1152 = vsel %vm643, %v1115, %v1119
  %v1153 = vsel %vm643, %v1117, %v1121
  %v1154 = vsel %vm643, %v1111, %v1115
  %v1155 = vsel %vm643, %v1113, %v1117
  %v1156 = vsel %vm643, %v1139, %v1111
  %v1157 = vsel %vm643, %v1141, %v1113
  %v1158 = vsel %vm668, %v1156, 0.0
  %v1159 = vsel %vm669, %v1154, 0.0
  %v1160 = vsel %vm670, %v1152, 0.0
  %v1161 = vsel %vm671, %v1150, 0.0
  %v1162 = vsel %vm672, %v1148, 0.0
  %v1163 = vsel %vm673, %v1146, 0.0
  %v1164 = vsel %vm674, %v1144, 0.0
  %v1165 = vsel %vm675, %v1142, 0.0
  %v1166 = vsel %vm668, %v1157, 0.0
  %v1167 = vsel %vm669, %v1155, 0.0
  %v1168 = vsel %vm670, %v1153, 0.0
  %v1169 = vsel %vm671, %v1151, 0.0
  %v1170 = vsel %vm672, %v1149, 0.0
  %v1171 = vsel %vm673, %v1147, 0.0
  %v1172 = vsel %vm674, %v1145, 0.0
  %v1173 = vsel %vm675, %v1143, 0.0
  %1174 = vst [vmem:[#allocation2 + $0x300] sm:$0xff] %v1158
  %1175 = vst [vmem:[#allocation2 + $0x308] sm:$0xff] %v1159
  %1176 = vst [vmem:[#allocation2 + $0x310] sm:$0xff] %v1160
  %1177 = vst [vmem:[#allocation2 + $0x318] sm:$0xff] %v1161
  %1178 = vst [vmem:[#allocation2 + $0x320] sm:$0xff] %v1162
  %1179 = vst [vmem:[#allocation2 + $0x328] sm:$0xff] %v1163
  %1180 = vst [vmem:[#allocation2 + $0x330] sm:$0xff] %v1164
  %1181 = vst [vmem:[#allocation2 + $0x338] sm:$0xff] %v1165
  %1182 = vst [vmem:[#allocation2 + $0x340] sm:$0xf] %v1166
  %1183 = vst [vmem:[#allocation2 + $0x348] sm:$0xf] %v1167
  %1184 = vst [vmem:[#allocation2 + $0x350] sm:$0xf] %v1168
  %1185 = vst [vmem:[#allocation2 + $0x358] sm:$0xf] %v1169
  %1186 = vst [vmem:[#allocation2 + $0x360] sm:$0xf] %v1170
  %1187 = vst [vmem:[#allocation2 + $0x368] sm:$0xf] %v1171
  %1188 = vst [vmem:[#allocation2 + $0x370] sm:$0xf] %v1172
  %1189 = vst [vmem:[#allocation2 + $0x378] sm:$0xf] %v1173
  %1190 = vst [vmem:[#allocation2 + $0x380] sm:$0xff] %v1094
  %1191 = vst [vmem:[#allocation2 + $0x388] sm:$0xff] %v1095
  %1192 = vst [vmem:[#allocation2 + $0x390] sm:$0xff] %v1096
  %1193 = vst [vmem:[#allocation2 + $0x398] sm:$0xff] %v1097
  %1194 = vst [vmem:[#allocation2 + $0x3a0] sm:$0xff] %v1098
  %1195 = vst [vmem:[#allocation2 + $0x3a8] sm:$0xff] %v1099
  %1196 = vst [vmem:[#allocation2 + $0x3b0] sm:$0xff] %v1100
  %1197 = vst [vmem:[#allocation2 + $0x3b8] sm:$0xff] %v1101
  %1198 = vst [vmem:[#allocation2 + $0x3c0] sm:$0xf] %v1102
  %1199 = vst [vmem:[#allocation2 + $0x3c8] sm:$0xf] %v1103
  %1200 = vst [vmem:[#allocation2 + $0x3d0] sm:$0xf] %v1104
  %1201 = vst [vmem:[#allocation2 + $0x3d8] sm:$0xf] %v1105
  %1202 = vst [vmem:[#allocation2 + $0x3e0] sm:$0xf] %v1106
  %1203 = vst [vmem:[#allocation2 + $0x3e8] sm:$0xf] %v1107
  %1204 = vst [vmem:[#allocation2 + $0x3f0] sm:$0xf] %v1108
  %1205 = vst [vmem:[#allocation2 + $0x3f8] sm:$0xf] %v1109
  %1206 = vrot.lane.b32.xlu0 %v1094, 127
  %v1207 = vpop.permute.xlu0 %1206
  %1208 = vrot.lane.b32.xlu0 %v1102, 127
  %v1209 = vpop.permute.xlu0 %1208
  %1210 = vrot.lane.b32.xlu0 %v1095, 127
  %v1211 = vpop.permute.xlu0 %1210
  %1212 = vrot.lane.b32.xlu0 %v1103, 127
  %v1213 = vpop.permute.xlu0 %1212
  %1214 = vrot.lane.b32.xlu0 %v1096, 127
  %v1215 = vpop.permute.xlu0 %1214
  %1216 = vrot.lane.b32.xlu0 %v1104, 127
  %v1217 = vpop.permute.xlu0 %1216
  %1218 = vrot.lane.b32.xlu0 %v1097, 127
  %v1219 = vpop.permute.xlu0 %1218
  %1220 = vrot.lane.b32.xlu0 %v1105, 127
  %v1221 = vpop.permute.xlu0 %1220
  %1222 = vrot.lane.b32.xlu0 %v1098, 127
  %v1223 = vpop.permute.xlu0 %1222
  %1224 = vrot.lane.b32.xlu0 %v1106, 127
  %v1225 = vpop.permute.xlu0 %1224
  %1226 = vrot.lane.b32.xlu0 %v1099, 127
  %v1227 = vpop.permute.xlu0 %1226
  %1228 = vrot.lane.b32.xlu0 %v1107, 127
  %v1229 = vpop.permute.xlu0 %1228
  %1230 = vrot.lane.b32.xlu0 %v1100, 127
  %v1231 = vpop.permute.xlu0 %1230
  %1232 = vrot.lane.b32.xlu0 %v1108, 127
  %v1233 = vpop.permute.xlu0 %1232
  %1234 = vrot.lane.b32.xlu0 %v1101, 127
  %v1235 = vpop.permute.xlu0 %1234
  %1236 = vrot.lane.b32.xlu0 %v1109, 127
  %v1237 = vpop.permute.xlu0 %1236
  %v1238 = vsel %vm756, %v1231, %v1235
  %v1239 = vsel %vm756, %v1233, %v1237
  %v1240 = vsel %vm756, %v1227, %v1231
  %v1241 = vsel %vm756, %v1229, %v1233
  %v1242 = vsel %vm756, %v1223, %v1227
  %v1243 = vsel %vm756, %v1225, %v1229
  %v1244 = vsel %vm756, %v1219, %v1223
  %v1245 = vsel %vm756, %v1221, %v1225
  %v1246 = vsel %vm756, %v1215, %v1219
  %v1247 = vsel %vm756, %v1217, %v1221
  %v1248 = vsel %vm756, %v1211, %v1215
  %v1249 = vsel %vm756, %v1213, %v1217
  %v1250 = vsel %vm756, %v1207, %v1211
  %v1251 = vsel %vm756, %v1209, %v1213
  %v1252 = vsel %vm756, %v1235, %v1207
  %v1253 = vsel %vm756, %v1237, %v1209
  %v1254 = vsel %vm781, %v1250, 0.0
  %v1255 = vsel %vm782, %v1248, 0.0
  %v1256 = vsel %vm783, %v1246, 0.0
  %v1257 = vsel %vm784, %v1244, 0.0
  %v1258 = vsel %vm785, %v1242, 0.0
  %v1259 = vsel %vm786, %v1240, 0.0
  %v1260 = vsel %vm787, %v1238, 0.0
  %v1261 = vsel %vm788, %v1252, 0.0
  %v1262 = vsel %vm781, %v1251, 0.0
  %v1263 = vsel %vm782, %v1249, 0.0
  %v1264 = vsel %vm783, %v1247, 0.0
  %v1265 = vsel %vm784, %v1245, 0.0
  %v1266 = vsel %vm785, %v1243, 0.0
  %v1267 = vsel %vm786, %v1241, 0.0
  %v1268 = vsel %vm787, %v1239, 0.0
  %v1269 = vsel %vm788, %v1253, 0.0
  %1270 = vst [vmem:[#allocation2 + $0x400] sm:$0xff] %v1254
  %1271 = vst [vmem:[#allocation2 + $0x408] sm:$0xff] %v1255
  %1272 = vst [vmem:[#allocation2 + $0x410] sm:$0xff] %v1256
  %1273 = vst [vmem:[#allocation2 + $0x418] sm:$0xff] %v1257
  %1274 = vst [vmem:[#allocation2 + $0x420] sm:$0xff] %v1258
  %1275 = vst [vmem:[#allocation2 + $0x428] sm:$0xff] %v1259
  %1276 = vst [vmem:[#allocation2 + $0x430] sm:$0xff] %v1260
  %1277 = vst [vmem:[#allocation2 + $0x438] sm:$0xff] %v1261
  %1278 = vst [vmem:[#allocation2 + $0x440] sm:$0xf] %v1262
  %1279 = vst [vmem:[#allocation2 + $0x448] sm:$0xf] %v1263
  %1280 = vst [vmem:[#allocation2 + $0x450] sm:$0xf] %v1264
  %1281 = vst [vmem:[#allocation2 + $0x458] sm:$0xf] %v1265
  %1282 = vst [vmem:[#allocation2 + $0x460] sm:$0xf] %v1266
  %1283 = vst [vmem:[#allocation2 + $0x468] sm:$0xf] %v1267
  %1284 = vst [vmem:[#allocation2 + $0x470] sm:$0xf] %v1268
  %1285 = vst [vmem:[#allocation2 + $0x478] sm:$0xf] %v1269
  %v1286 = vld [vmem:[%s2] sm:$0xff]
  %v1287 = vld [vmem:[%s2 + $0x8] sm:$0xff]
  %v1288 = vld [vmem:[%s2 + $0x10] sm:$0xff]
  %v1289 = vld [vmem:[%s2 + $0x18] sm:$0xff]
  %v1290 = vld [vmem:[%s2 + $0x20] sm:$0xff]
  %v1291 = vld [vmem:[%s2 + $0x28] sm:$0xff]
  %v1292 = vld [vmem:[#allocation2] sm:$0xff]
  %v1293 = vld [vmem:[#allocation2 + $0x8] sm:$0xff]
  %v1294 = vld [vmem:[#allocation2 + $0x10] sm:$0xff]
  %v1295 = vld [vmem:[#allocation2 + $0x18] sm:$0xff]
  %v1296 = vld [vmem:[#allocation2 + $0x20] sm:$0xff]
  %v1297 = vld [vmem:[#allocation2 + $0x28] sm:$0xff]
  %v1298 = vld [vmem:[#allocation2 + $0x30] sm:$0xff]
  %v1299 = vld [vmem:[#allocation2 + $0x38] sm:$0xff]
  %v1300 = vld [vmem:[#allocation2 + $0x40] sm:$0xff]
  %v1301 = vld [vmem:[#allocation2 + $0x48] sm:$0xff]
  %v1302 = vld [vmem:[#allocation2 + $0x50] sm:$0xff]
  %v1303 = vld [vmem:[#allocation2 + $0x58] sm:$0xff]
  %v1304 = vld [vmem:[#allocation2 + $0x60] sm:$0xff]
  %v1305 = vld [vmem:[#allocation2 + $0x68] sm:$0xff]
  %v1306 = vld [vmem:[#allocation2 + $0x70] sm:$0xff]
  %v1307 = vld [vmem:[#allocation2 + $0x78] sm:$0xff]
  %v1308 = vld [vmem:[#allocation2 + $0x80] sm:$0xff]
  %v1309 = vld [vmem:[#allocation2 + $0x88] sm:$0xff]
  %v1310 = vld [vmem:[#allocation2 + $0x90] sm:$0xff]
  %v1311 = vld [vmem:[#allocation2 + $0x98] sm:$0xff]
  %v1312 = vld [vmem:[#allocation2 + $0xa0] sm:$0xff]
  %v1313 = vld [vmem:[#allocation2 + $0xa8] sm:$0xff]
  %v1314 = vld [vmem:[#allocation2 + $0xb0] sm:$0xff]
  %v1315 = vld [vmem:[#allocation2 + $0xb8] sm:$0xff]
  %v1316 = vld [vmem:[#allocation2 + $0xc0] sm:$0xff]
  %v1317 = vld [vmem:[#allocation2 + $0xc8] sm:$0xff]
  %v1318 = vld [vmem:[#allocation2 + $0xd0] sm:$0xff]
  %v1319 = vld [vmem:[#allocation2 + $0xd8] sm:$0xff]
  %v1320 = vld [vmem:[#allocation2 + $0xe0] sm:$0xff]
  %v1321 = vld [vmem:[#allocation2 + $0xe8] sm:$0xff]
  %v1322 = vld [vmem:[#allocation2 + $0xf0] sm:$0xff]
  %v1323 = vld [vmem:[#allocation2 + $0xf8] sm:$0xff]
  %v1324 = vld [vmem:[#allocation2 + $0x100] sm:$0xff]
  %v1325 = vld [vmem:[#allocation2 + $0x108] sm:$0xff]
  %v1326 = vld [vmem:[#allocation2 + $0x110] sm:$0xff]
  %v1327 = vld [vmem:[#allocation2 + $0x118] sm:$0xff]
  %v1328 = vld [vmem:[#allocation2 + $0x120] sm:$0xff]
  %v1329 = vld [vmem:[#allocation2 + $0x128] sm:$0xff]
  %v1330 = vld [vmem:[#allocation2 + $0x130] sm:$0xff]
  %v1331 = vld [vmem:[#allocation2 + $0x138] sm:$0xff]
  %v1332 = vld [vmem:[#allocation2 + $0x140] sm:$0xff]
  %v1333 = vld [vmem:[#allocation2 + $0x148] sm:$0xff]
  %v1334 = vld [vmem:[#allocation2 + $0x150] sm:$0xff]
  %v1335 = vld [vmem:[#allocation2 + $0x158] sm:$0xff]
  %v1336 = vld [vmem:[#allocation2 + $0x160] sm:$0xff]
  %v1337 = vld [vmem:[#allocation2 + $0x168] sm:$0xff]
  %v1338 = vld [vmem:[#allocation2 + $0x170] sm:$0xff]
  %v1339 = vld [vmem:[#allocation2 + $0x178] sm:$0xff]
  %v1340 = vld [vmem:[#allocation2 + $0x180] sm:$0xff]
  %v1341 = vld [vmem:[#allocation2 + $0x188] sm:$0xff]
  %v1342 = vld [vmem:[#allocation2 + $0x190] sm:$0xff]
  %v1343 = vld [vmem:[#allocation2 + $0x198] sm:$0xff]
  %v1344 = vld [vmem:[#allocation2 + $0x1a0] sm:$0xff]
  %v1345 = vld [vmem:[#allocation2 + $0x1a8] sm:$0xff]
  %v1346 = vld [vmem:[#allocation2 + $0x1b0] sm:$0xff]
  %v1347 = vld [vmem:[#allocation2 + $0x1b8] sm:$0xff]
  %v1348 = vld [vmem:[#allocation2 + $0x1c0] sm:$0xff]
  %v1349 = vld [vmem:[#allocation2 + $0x1c8] sm:$0xff]
  %v1350 = vld [vmem:[#allocation2 + $0x1d0] sm:$0xff]
  %v1351 = vld [vmem:[#allocation2 + $0x1d8] sm:$0xff]
  %v1352 = vld [vmem:[#allocation2 + $0x1e0] sm:$0xff]
  %v1353 = vld [vmem:[#allocation2 + $0x1e8] sm:$0xff]
  %v1354 = vld [vmem:[#allocation2 + $0x1f0] sm:$0xff]
  %v1355 = vld [vmem:[#allocation2 + $0x1f8] sm:$0xff]
  %v1356 = vld [vmem:[#allocation2 + $0x200] sm:$0xff]
  %v1357 = vld [vmem:[#allocation2 + $0x208] sm:$0xff]
  %v1358 = vld [vmem:[#allocation2 + $0x210] sm:$0xff]
  %v1359 = vld [vmem:[#allocation2 + $0x218] sm:$0xff]
  %v1360 = vld [vmem:[#allocation2 + $0x220] sm:$0xff]
  %v1361 = vld [vmem:[#allocation2 + $0x228] sm:$0xff]
  %v1362 = vld [vmem:[#allocation2 + $0x230] sm:$0xff]
  %v1363 = vld [vmem:[#allocation2 + $0x238] sm:$0xff]
  %v1364 = vld [vmem:[#allocation2 + $0x240] sm:$0xff]
  %v1365 = vld [vmem:[#allocation2 + $0x248] sm:$0xff]
  %v1366 = vld [vmem:[#allocation2 + $0x250] sm:$0xff]
  %v1367 = vld [vmem:[#allocation2 + $0x258] sm:$0xff]
  %v1368 = vld [vmem:[#allocation2 + $0x260] sm:$0xff]
  %v1369 = vld [vmem:[#allocation2 + $0x268] sm:$0xff]
  %v1370 = vld [vmem:[#allocation2 + $0x270] sm:$0xff]
  %v1371 = vld [vmem:[#allocation2 + $0x278] sm:$0xff]
  %v1372 = vld [vmem:[#allocation2 + $0x280] sm:$0xff]
  %v1373 = vld [vmem:[#allocation2 + $0x288] sm:$0xff]
  %v1374 = vld [vmem:[#allocation2 + $0x290] sm:$0xff]
  %v1375 = vld [vmem:[#allocation2 + $0x298] sm:$0xff]
  %v1376 = vld [vmem:[#allocation2 + $0x2a0] sm:$0xff]
  %v1377 = vld [vmem:[#allocation2 + $0x2a8] sm:$0xff]
  %v1378 = vld [vmem:[#allocation2 + $0x2b0] sm:$0xff]
  %v1379 = vld [vmem:[#allocation2 + $0x2b8] sm:$0xff]
  %v1380 = vld [vmem:[#allocation2 + $0x2c0] sm:$0xff]
  %v1381 = vld [vmem:[#allocation2 + $0x2c8] sm:$0xff]
  %v1382 = vld [vmem:[#allocation2 + $0x2d0] sm:$0xff]
  %v1383 = vld [vmem:[#allocation2 + $0x2d8] sm:$0xff]
  %v1384 = vld [vmem:[#allocation2 + $0x2e0] sm:$0xff]
  %v1385 = vld [vmem:[#allocation2 + $0x2e8] sm:$0xff]
  %v1386 = vld [vmem:[#allocation2 + $0x2f0] sm:$0xff]
  %v1387 = vld [vmem:[#allocation2 + $0x2f8] sm:$0xff]
  %v1388 = vld [vmem:[#allocation2 + $0x300] sm:$0xff]
  %v1389 = vld [vmem:[#allocation2 + $0x308] sm:$0xff]
  %v1390 = vld [vmem:[#allocation2 + $0x310] sm:$0xff]
  %v1391 = vld [vmem:[#allocation2 + $0x318] sm:$0xff]
  %v1392 = vld [vmem:[#allocation2 + $0x320] sm:$0xff]
  %v1393 = vld [vmem:[#allocation2 + $0x328] sm:$0xff]
  %v1394 = vld [vmem:[#allocation2 + $0x330] sm:$0xff]
  %v1395 = vld [vmem:[#allocation2 + $0x338] sm:$0xff]
  %v1396 = vld [vmem:[#allocation2 + $0x340] sm:$0xff]
  %v1397 = vld [vmem:[#allocation2 + $0x348] sm:$0xff]
  %v1398 = vld [vmem:[#allocation2 + $0x350] sm:$0xff]
  %v1399 = vld [vmem:[#allocation2 + $0x358] sm:$0xff]
  %v1400 = vld [vmem:[#allocation2 + $0x360] sm:$0xff]
  %v1401 = vld [vmem:[#allocation2 + $0x368] sm:$0xff]
  %v1402 = vld [vmem:[#allocation2 + $0x370] sm:$0xff]
  %v1403 = vld [vmem:[#allocation2 + $0x378] sm:$0xff]
  %v1404 = vld [vmem:[#allocation2 + $0x380] sm:$0xff]
  %v1405 = vld [vmem:[#allocation2 + $0x388] sm:$0xff]
  %v1406 = vld [vmem:[#allocation2 + $0x390] sm:$0xff]
  %v1407 = vld [vmem:[#allocation2 + $0x398] sm:$0xff]
  %v1408 = vld [vmem:[#allocation2 + $0x3a0] sm:$0xff]
  %v1409 = vld [vmem:[#allocation2 + $0x3a8] sm:$0xff]
  %v1410 = vld [vmem:[#allocation2 + $0x3b0] sm:$0xff]
  %v1411 = vld [vmem:[#allocation2 + $0x3b8] sm:$0xff]
  %v1412 = vld [vmem:[#allocation2 + $0x3c0] sm:$0xff]
  %v1413 = vld [vmem:[#allocation2 + $0x3c8] sm:$0xff]
  %v1414 = vld [vmem:[#allocation2 + $0x3d0] sm:$0xff]
  %v1415 = vld [vmem:[#allocation2 + $0x3d8] sm:$0xff]
  %v1416 = vld [vmem:[#allocation2 + $0x3e0] sm:$0xff]
  %v1417 = vld [vmem:[#allocation2 + $0x3e8] sm:$0xff]
  %v1418 = vld [vmem:[#allocation2 + $0x3f0] sm:$0xff]
  %v1419 = vld [vmem:[#allocation2 + $0x3f8] sm:$0xff]
  %v1420 = vld [vmem:[#allocation2 + $0x400] sm:$0xff]
  %v1421 = vld [vmem:[#allocation2 + $0x408] sm:$0xff]
  %v1422 = vld [vmem:[#allocation2 + $0x410] sm:$0xff]
  %v1423 = vld [vmem:[#allocation2 + $0x418] sm:$0xff]
  %v1424 = vld [vmem:[#allocation2 + $0x420] sm:$0xff]
  %v1425 = vld [vmem:[#allocation2 + $0x428] sm:$0xff]
  %v1426 = vld [vmem:[#allocation2 + $0x430] sm:$0xff]
  %v1427 = vld [vmem:[#allocation2 + $0x438] sm:$0xff]
  %v1428 = vld [vmem:[#allocation2 + $0x440] sm:$0xff]
  %v1429 = vld [vmem:[#allocation2 + $0x448] sm:$0xff]
  %v1430 = vld [vmem:[#allocation2 + $0x450] sm:$0xff]
  %v1431 = vld [vmem:[#allocation2 + $0x458] sm:$0xff]
  %v1432 = vld [vmem:[#allocation2 + $0x460] sm:$0xff]
  %v1433 = vld [vmem:[#allocation2 + $0x468] sm:$0xff]
  %v1434 = vld [vmem:[#allocation2 + $0x470] sm:$0xff]
  %v1435 = vld [vmem:[#allocation2 + $0x478] sm:$0xff]
  %v1436 = vld [vmem:[%s3] sm:$0xff]
  %v1437 = vld [vmem:[%s3 + $0x8] sm:$0xff]
  %v1438 = vld [vmem:[%s3 + $0x10] sm:$0xff]
  %1440 = vset.pattern.permute.xlu0 0
  %1441 = vperm.xlu0 %1440, %v1436
  %v1442 = vpop.permute.xlu0 %1441
  %1445 = vset.pattern.permute.xlu0 0
  %1446 = vperm.xlu0 %1445, %v1437
  %v1447 = vpop.permute.xlu0 %1446
  %1450 = vset.pattern.permute.xlu0 0
  %1451 = vperm.xlu0 %1450, %v1438
  %v1452 = vpop.permute.xlu0 %1451
  %vm1454 = vcmask 130048
  %v1456 = vsel %vm1454, %v1287, 0
  %v1459 = vsel %vm1454, %v1289, 0
  %v1462 = vsel %vm1454, %v1291, 0
  %1464 = vmatprep.subr.mxu0 %v1293
  %1465 = vmatpush1.msra.mxu0 %v1292
  %1466 = vmatprep.subr.mxu0 %v1301
  %1467 = vmatpush1.msra.mxu0 %v1300
  %1468 = vmatprep.subr.mxu0 %v1309
  %1469 = vmatpush1.msra.mxu0 %v1308
  %1470 = vmatprep.subr.mxu0 %v1317
  %1471 = vmatpush1.msra.mxu0 %v1316
  %1472 = vmatprep.subr.mxu0 %v1325
  %1473 = vmatpush1.msra.mxu0 %v1324
  %1474 = vmatprep.subr.mxu0 %v1333
  %1475 = vmatpush1.msra.mxu0 %v1332
  %1476 = vmatprep.subr.mxu0 %v1341
  %1477 = vmatpush1.msra.mxu0 %v1340
  %1478 = vmatprep.subr.mxu0 %v1349
  %1479 = vmatpush1.msra.mxu0 %v1348
  %1480 = vmatprep.subr.mxu0 %v1357
  %1481 = vmatpush1.msra.mxu0 %v1356
  %1482 = vmatprep.subr.mxu0 %v1365
  %1483 = vmatpush1.msra.mxu0 %v1364
  %1484 = vmatprep.subr.mxu0 %v1373
  %1485 = vmatpush1.msra.mxu0 %v1372
  %1486 = vmatprep.subr.mxu0 %v1381
  %1487 = vmatpush1.msra.mxu0 %v1380
  %1488 = vmatprep.subr.mxu0 %v1389
  %1489 = vmatpush1.msra.mxu0 %v1388
  %1490 = vmatprep.subr.mxu0 %v1397
  %1491 = vmatpush1.msra.mxu0 %v1396
  %1492 = vmatprep.subr.mxu0 %v1405
  %1493 = vmatpush1.msra.mxu0 %v1404
  %1494 = vmatprep.subr.mxu0 %v1413
  %1495 = vmatpush1.msra.mxu0 %v1412
  %1496 = vmatprep.subr.mxu0 %v1421
  %1497 = vmatpush1.msra.mxu0 %v1420
  %1498 = vmatprep.subr.mxu0 %v1429
  %1499 = vmatpush1.msra.mxu0 %v1428
  %1500 = vmatprep.subr.mxu0 0.0
  %1501 = vmatpush1.msra.mxu0 0.0
  %1502 = vmatprep.subr.mxu0 0.0
  %1503 = vmatpush1.msra.mxu0 0.0
  %1504 = vmatprep.subr.mxu0 0.0
  %1505 = vmatpush1.msra.mxu0 0.0
  %1506 = vmatprep.subr.mxu0 0.0
  %1507 = vmatpush1.msra.mxu0 0.0
  %1508 = vmatprep.subr.mxu0 0.0
  %1509 = vmatpush1.msra.mxu0 0.0
  %1510 = vmatprep.subr.mxu0 0.0
  %1511 = vmatpush1.msra.mxu0 0.0
  %1512 = vmatprep.subr.mxu0 0.0
  %1513 = vmatpush1.msra.mxu0 0.0
  %1514 = vmatprep.subr.mxu0 0.0
  %1515 = vmatpush1.msra.mxu0 0.0
  %1516 = vmatprep.subr.mxu0 0.0
  %1517 = vmatpush1.msra.mxu0 0.0
  %1518 = vmatprep.subr.mxu0 0.0
  %1519 = vmatpush1.msra.mxu0 0.0
  %1520 = vmatprep.subr.mxu0 0.0
  %1521 = vmatpush1.msra.mxu0 0.0
  %1522 = vmatprep.subr.mxu0 0.0
  %1523 = vmatpush1.msra.mxu0 0.0
  %1524 = vmatprep.subr.mxu0 0.0
  %1525 = vmatpush1.msra.mxu0 0.0
  %1526 = vmatprep.subr.mxu0 0.0
  %1527 = vmatpush1.msra.mxu0 0.0
  %1528 = vmatprep.mubr.f32.mxu0 %v1456
  %1529 = vmatmul.mubr.f32.gmra.mrb[0].mxu0 %v1286
  %v1530 = vpop.f32.mrb[0].mxu0
  %v1531 = vadd.f32 %v1442, %v1530
  %v1532 = vpop.f32.mrb[0].mxu0
  %v1533 = vadd.f32 %v1442, %v1532
  %1534 = vmatprep.mubr.f32.mxu0 %v1459
  %1535 = vmatmul.mubr.f32.gmra.mrb[0].mxu0 %v1288
  %v1536 = vpop.f32.mrb[0].mxu0
  %v1537 = vadd.f32 %v1447, %v1536
  %v1538 = vpop.f32.mrb[0].mxu0
  %v1539 = vadd.f32 %v1447, %v1538
  %1540 = vmatprep.mubr.f32.mxu0 %v1462
  %1541 = vmatmul.mubr.f32.gmra.mrb[0].mxu0 %v1290
  %v1542 = vpop.f32.mrb[0].mxu0
  %v1543 = vadd.f32 %v1452, %v1542
  %v1544 = vpop.f32.mrb[0].mxu0
  %v1545 = vadd.f32 %v1452, %v1544
  %1546 = vdwg.mxu0
  %1547 = vmatprep.subr.mxu0 %v1295
  %1548 = vmatpush1.msra.mxu0 %v1294
  %1549 = vmatprep.subr.mxu0 %v1303
  %1550 = vmatpush1.msra.mxu0 %v1302
  %1551 = vmatprep.subr.mxu0 %v1311
  %1552 = vmatpush1.msra.mxu0 %v1310
  %1553 = vmatprep.subr.mxu0 %v1319
  %1554 = vmatpush1.msra.mxu0 %v1318
  %1555 = vmatprep.subr.mxu0 %v1327
  %1556 = vmatpush1.msra.mxu0 %v1326
  %1557 = vmatprep.subr.mxu0 %v1335
  %1558 = vmatpush1.msra.mxu0 %v1334
  %1559 = vmatprep.subr.mxu0 %v1343
  %1560 = vmatpush1.msra.mxu0 %v1342
  %1561 = vmatprep.subr.mxu0 %v1351
  %1562 = vmatpush1.msra.mxu0 %v1350
  %1563 = vmatprep.subr.mxu0 %v1359
  %1564 = vmatpush1.msra.mxu0 %v1358
  %1565 = vmatprep.subr.mxu0 %v1367
  %1566 = vmatpush1.msra.mxu0 %v1366
  %1567 = vmatprep.subr.mxu0 %v1375
  %1568 = vmatpush1.msra.mxu0 %v1374
  %1569 = vmatprep.subr.mxu0 %v1383
  %1570 = vmatpush1.msra.mxu0 %v1382
  %1571 = vmatprep.subr.mxu0 %v1391
  %1572 = vmatpush1.msra.mxu0 %v1390
  %1573 = vmatprep.subr.mxu0 %v1399
  %1574 = vmatpush1.msra.mxu0 %v1398
  %1575 = vmatprep.subr.mxu0 %v1407
  %1576 = vmatpush1.msra.mxu0 %v1406
  %1577 = vmatprep.subr.mxu0 %v1415
  %1578 = vmatpush1.msra.mxu0 %v1414
  %1579 = vmatprep.subr.mxu0 %v1423
  %1580 = vmatpush1.msra.mxu0 %v1422
  %1581 = vmatprep.subr.mxu0 %v1431
  %1582 = vmatpush1.msra.mxu0 %v1430
  %1583 = vmatprep.subr.mxu0 0.0
  %1584 = vmatpush1.msra.mxu0 0.0
  %1585 = vmatprep.subr.mxu0 0.0
  %1586 = vmatpush1.msra.mxu0 0.0
  %1587 = vmatprep.subr.mxu0 0.0
  %1588 = vmatpush1.msra.mxu0 0.0
  %1589 = vmatprep.subr.mxu0 0.0
  %1590 = vmatpush1.msra.mxu0 0.0
  %1591 = vmatprep.subr.mxu0 0.0
  %1592 = vmatpush1.msra.mxu0 0.0
  %1593 = vmatprep.subr.mxu0 0.0
  %1594 = vmatpush1.msra.mxu0 0.0
  %1595 = vmatprep.subr.mxu0 0.0
  %1596 = vmatpush1.msra.mxu0 0.0
  %1597 = vmatprep.subr.mxu0 0.0
  %1598 = vmatpush1.msra.mxu0 0.0
  %1599 = vmatprep.subr.mxu0 0.0
  %1600 = vmatpush1.msra.mxu0 0.0
  %1601 = vmatprep.subr.mxu0 0.0
  %1602 = vmatpush1.msra.mxu0 0.0
  %1603 = vmatprep.subr.mxu0 0.0
  %1604 = vmatpush1.msra.mxu0 0.0
  %1605 = vmatprep.subr.mxu0 0.0
  %1606 = vmatpush1.msra.mxu0 0.0
  %1607 = vmatprep.subr.mxu0 0.0
  %1608 = vmatpush1.msra.mxu0 0.0
  %1609 = vmatprep.subr.mxu0 0.0
  %1610 = vmatpush1.msra.mxu0 0.0
  %1611 = vmatprep.mubr.f32.mxu0 %v1456
  %1612 = vmatmul.mubr.f32.gmra.mrb[0].mxu0 %v1286
  %v1613 = vpop.f32.mrb[0].mxu0
  %v1614 = vadd.f32 %v1442, %v1613
  %v1615 = vpop.f32.mrb[0].mxu0
  %v1616 = vadd.f32 %v1442, %v1615
  %1617 = vmatprep.mubr.f32.mxu0 %v1459
  %1618 = vmatmul.mubr.f32.gmra.mrb[0].mxu0 %v1288
  %v1619 = vpop.f32.mrb[0].mxu0
  %v1620 = vadd.f32 %v1447, %v1619
  %v1621 = vpop.f32.mrb[0].mxu0
  %v1622 = vadd.f32 %v1447, %v1621
  %1623 = vmatprep.mubr.f32.mxu0 %v1462
  %1624 = vmatmul.mubr.f32.gmra.mrb[0].mxu0 %v1290
  %v1625 = vpop.f32.mrb[0].mxu0
  %v1626 = vadd.f32 %v1452, %v1625
  %v1627 = vpop.f32.mrb[0].mxu0
  %v1628 = vadd.f32 %v1452, %v1627
  %1629 = vdwg.mxu0
  %1630 = vmatprep.subr.mxu0 %v1297
  %1631 = vmatpush1.msra.mxu0 %v1296
  %1632 = vmatprep.subr.mxu0 %v1305
  %1633 = vmatpush1.msra.mxu0 %v1304
  %1634 = vmatprep.subr.mxu0 %v1313
  %1635 = vmatpush1.msra.mxu0 %v1312
  %1636 = vmatprep.subr.mxu0 %v1321
  %1637 = vmatpush1.msra.mxu0 %v1320
  %1638 = vmatprep.subr.mxu0 %v1329
  %1639 = vmatpush1.msra.mxu0 %v1328
  %1640 = vmatprep.subr.mxu0 %v1337
  %1641 = vmatpush1.msra.mxu0 %v1336
  %1642 = vmatprep.subr.mxu0 %v1345
  %1643 = vmatpush1.msra.mxu0 %v1344
  %1644 = vmatprep.subr.mxu0 %v1353
  %1645 = vmatpush1.msra.mxu0 %v1352
  %1646 = vmatprep.subr.mxu0 %v1361
  %1647 = vmatpush1.msra.mxu0 %v1360
  %1648 = vmatprep.subr.mxu0 %v1369
  %1649 = vmatpush1.msra.mxu0 %v1368
  %1650 = vmatprep.subr.mxu0 %v1377
  %1651 = vmatpush1.msra.mxu0 %v1376
  %1652 = vmatprep.subr.mxu0 %v1385
  %1653 = vmatpush1.msra.mxu0 %v1384
  %1654 = vmatprep.subr.mxu0 %v1393
  %1655 = vmatpush1.msra.mxu0 %v1392
  %1656 = vmatprep.subr.mxu0 %v1401
  %1657 = vmatpush1.msra.mxu0 %v1400
  %1658 = vmatprep.subr.mxu0 %v1409
  %1659 = vmatpush1.msra.mxu0 %v1408
  %1660 = vmatprep.subr.mxu0 %v1417
  %1661 = vmatpush1.msra.mxu0 %v1416
  %1662 = vmatprep.subr.mxu0 %v1425
  %1663 = vmatpush1.msra.mxu0 %v1424
  %1664 = vmatprep.subr.mxu0 %v1433
  %1665 = vmatpush1.msra.mxu0 %v1432
  %1666 = vmatprep.subr.mxu0 0.0
  %1667 = vmatpush1.msra.mxu0 0.0
  %1668 = vmatprep.subr.mxu0 0.0
  %1669 = vmatpush1.msra.mxu0 0.0
  %1670 = vmatprep.subr.mxu0 0.0
  %1671 = vmatpush1.msra.mxu0 0.0
  %1672 = vmatprep.subr.mxu0 0.0
  %1673 = vmatpush1.msra.mxu0 0.0
  %1674 = vmatprep.subr.mxu0 0.0
  %1675 = vmatpush1.msra.mxu0 0.0
  %1676 = vmatprep.subr.mxu0 0.0
  %1677 = vmatpush1.msra.mxu0 0.0
  %1678 = vmatprep.subr.mxu0 0.0
  %1679 = vmatpush1.msra.mxu0 0.0
  %1680 = vmatprep.subr.mxu0 0.0
  %1681 = vmatpush1.msra.mxu0 0.0
  %1682 = vmatprep.subr.mxu0 0.0
  %1683 = vmatpush1.msra.mxu0 0.0
  %1684 = vmatprep.subr.mxu0 0.0
  %1685 = vmatpush1.msra.mxu0 0.0
  %1686 = vmatprep.subr.mxu0 0.0
  %1687 = vmatpush1.msra.mxu0 0.0
  %1688 = vmatprep.subr.mxu0 0.0
  %1689 = vmatpush1.msra.mxu0 0.0
  %1690 = vmatprep.subr.mxu0 0.0
  %1691 = vmatpush1.msra.mxu0 0.0
  %1692 = vmatprep.subr.mxu0 0.0
  %1693 = vmatpush1.msra.mxu0 0.0
  %1694 = vmatprep.mubr.f32.mxu0 %v1456
  %1695 = vmatmul.mubr.f32.gmra.mrb[0].mxu0 %v1286
  %v1696 = vpop.f32.mrb[0].mxu0
  %v1697 = vadd.f32 %v1442, %v1696
  %v1698 = vpop.f32.mrb[0].mxu0
  %v1699 = vadd.f32 %v1442, %v1698
  %1700 = vmatprep.mubr.f32.mxu0 %v1459
  %1701 = vmatmul.mubr.f32.gmra.mrb[0].mxu0 %v1288
  %v1702 = vpop.f32.mrb[0].mxu0
  %v1703 = vadd.f32 %v1447, %v1702
  %v1704 = vpop.f32.mrb[0].mxu0
  %v1705 = vadd.f32 %v1447, %v1704
  %1706 = vmatprep.mubr.f32.mxu0 %v1462
  %1707 = vmatmul.mubr.f32.gmra.mrb[0].mxu0 %v1290
  %v1708 = vpop.f32.mrb[0].mxu0
  %v1709 = vadd.f32 %v1452, %v1708
  %v1710 = vpop.f32.mrb[0].mxu0
  %v1711 = vadd.f32 %v1452, %v1710
  %1712 = vdwg.mxu0
  %1713 = vmatprep.subr.mxu0 %v1299
  %1714 = vmatpush1.msra.mxu0 %v1298
  %1715 = vmatprep.subr.mxu0 %v1307
  %1716 = vmatpush1.msra.mxu0 %v1306
  %1717 = vmatprep.subr.mxu0 %v1315
  %1718 = vmatpush1.msra.mxu0 %v1314
  %1719 = vmatprep.subr.mxu0 %v1323
  %1720 = vmatpush1.msra.mxu0 %v1322
  %1721 = vmatprep.subr.mxu0 %v1331
  %1722 = vmatpush1.msra.mxu0 %v1330
  %1723 = vmatprep.subr.mxu0 %v1339
  %1724 = vmatpush1.msra.mxu0 %v1338
  %1725 = vmatprep.subr.mxu0 %v1347
  %1726 = vmatpush1.msra.mxu0 %v1346
  %1727 = vmatprep.subr.mxu0 %v1355
  %1728 = vmatpush1.msra.mxu0 %v1354
  %1729 = vmatprep.subr.mxu0 %v1363
  %1730 = vmatpush1.msra.mxu0 %v1362
  %1731 = vmatprep.subr.mxu0 %v1371
  %1732 = vmatpush1.msra.mxu0 %v1370
  %1733 = vmatprep.subr.mxu0 %v1379
  %1734 = vmatpush1.msra.mxu0 %v1378
  %1735 = vmatprep.subr.mxu0 %v1387
  %1736 = vmatpush1.msra.mxu0 %v1386
  %1737 = vmatprep.subr.mxu0 %v1395
  %1738 = vmatpush1.msra.mxu0 %v1394
  %1739 = vmatprep.subr.mxu0 %v1403
  %1740 = vmatpush1.msra.mxu0 %v1402
  %1741 = vmatprep.subr.mxu0 %v1411
  %1742 = vmatpush1.msra.mxu0 %v1410
  %1743 = vmatprep.subr.mxu0 %v1419
  %1744 = vmatpush1.msra.mxu0 %v1418
  %1745 = vmatprep.subr.mxu0 %v1427
  %1746 = vmatpush1.msra.mxu0 %v1426
  %1747 = vmatprep.subr.mxu0 %v1435
  %1748 = vmatpush1.msra.mxu0 %v1434
  %1749 = vmatprep.subr.mxu0 0.0
  %1750 = vmatpush1.msra.mxu0 0.0
  %1751 = vmatprep.subr.mxu0 0.0
  %1752 = vmatpush1.msra.mxu0 0.0
  %1753 = vmatprep.subr.mxu0 0.0
  %1754 = vmatpush1.msra.mxu0 0.0
  %1755 = vmatprep.subr.mxu0 0.0
  %1756 = vmatpush1.msra.mxu0 0.0
  %1757 = vmatprep.subr.mxu0 0.0
  %1758 = vmatpush1.msra.mxu0 0.0
  %1759 = vmatprep.subr.mxu0 0.0
  %1760 = vmatpush1.msra.mxu0 0.0
  %1761 = vmatprep.subr.mxu0 0.0
  %1762 = vmatpush1.msra.mxu0 0.0
  %1763 = vmatprep.subr.mxu0 0.0
  %1764 = vmatpush1.msra.mxu0 0.0
  %1765 = vmatprep.subr.mxu0 0.0
  %1766 = vmatpush1.msra.mxu0 0.0
  %1767 = vmatprep.subr.mxu0 0.0
  %1768 = vmatpush1.msra.mxu0 0.0
  %1769 = vmatprep.subr.mxu0 0.0
  %1770 = vmatpush1.msra.mxu0 0.0
  %1771 = vmatprep.subr.mxu0 0.0
  %1772 = vmatpush1.msra.mxu0 0.0
  %1773 = vmatprep.subr.mxu0 0.0
  %1774 = vmatpush1.msra.mxu0 0.0
  %1775 = vmatprep.subr.mxu0 0.0
  %1776 = vmatpush1.msra.mxu0 0.0
  %1777 = vmatprep.mubr.f32.mxu0 %v1456
  %1778 = vmatmul.mubr.f32.gmra.mrb[0].mxu0 %v1286
  %v1779 = vpop.f32.mrb[0].mxu0
  %v1780 = vadd.f32 %v1442, %v1779
  %v1781 = vpop.f32.mrb[0].mxu0
  %v1782 = vadd.f32 %v1442, %v1781
  %1783 = vmatprep.mubr.f32.mxu0 %v1459
  %1784 = vmatmul.mubr.f32.gmra.mrb[0].mxu0 %v1288
  %v1785 = vpop.f32.mrb[0].mxu0
  %v1786 = vadd.f32 %v1447, %v1785
  %v1787 = vpop.f32.mrb[0].mxu0
  %v1788 = vadd.f32 %v1447, %v1787
  %1789 = vmatprep.mubr.f32.mxu0 %v1462
  %1790 = vmatmul.mubr.f32.gmra.mrb[0].mxu0 %v1290
  %v1791 = vpop.f32.mrb[0].mxu0
  %v1792 = vadd.f32 %v1452, %v1791
  %v1793 = vpop.f32.mrb[0].mxu0
  %v1794 = vadd.f32 %v1452, %v1793
  %1795 = vdwg.mxu0
  %v1796 = vadd.f32 %v1531, %v1533
  %v1797 = vadd.f32 %v1796, %v1614
  %v1798 = vadd.f32 %v1797, %v1616
  %v1799 = vadd.f32 %v1798, %v1697
  %v1800 = vadd.f32 %v1799, %v1699
  %v1801 = vadd.f32 %v1800, %v1780
  %v1802 = vadd.f32 %v1801, %v1782
  %1803 = vadd.xlane.f32.xlu0 %v1802
  %v1804 = vpop.xlane.xlu0 %1803
  %v1805 = vadd.f32 %v1537, %v1539
  %v1806 = vadd.f32 %v1805, %v1620
  %v1807 = vadd.f32 %v1806, %v1622
  %v1808 = vadd.f32 %v1807, %v1703
  %v1809 = vadd.f32 %v1808, %v1705
  %v1810 = vadd.f32 %v1809, %v1786
  %v1811 = vadd.f32 %v1810, %v1788
  %1812 = vadd.xlane.f32.xlu0 %v1811
  %v1813 = vpop.xlane.xlu0 %1812
  %v1814 = vadd.f32 %v1543, %v1545
  %v1815 = vadd.f32 %v1814, %v1626
  %v1816 = vadd.f32 %v1815, %v1628
  %v1817 = vadd.f32 %v1816, %v1709
  %v1818 = vadd.f32 %v1817, %v1711
  %v1819 = vadd.f32 %v1818, %v1792
  %v1820 = vadd.f32 %v1819, %v1794
  %1821 = vadd.xlane.f32.xlu0 %v1820
  %v1822 = vpop.xlane.xlu0 %1821
  %v1823 = vmul.f32 %v1531, %v1531
  %v1824 = vmul.f32 %v1533, %v1533
  %v1825 = vmul.f32 %v1614, %v1614
  %v1826 = vmul.f32 %v1616, %v1616
  %v1827 = vmul.f32 %v1697, %v1697
  %v1828 = vmul.f32 %v1699, %v1699
  %v1829 = vmul.f32 %v1780, %v1780
  %v1830 = vmul.f32 %v1782, %v1782
  %v1831 = vmul.f32 %v1537, %v1537
  %v1832 = vmul.f32 %v1539, %v1539
  %v1833 = vmul.f32 %v1620, %v1620
  %v1834 = vmul.f32 %v1622, %v1622
  %v1835 = vmul.f32 %v1703, %v1703
  %v1836 = vmul.f32 %v1705, %v1705
  %v1837 = vmul.f32 %v1786, %v1786
  %v1838 = vmul.f32 %v1788, %v1788
  %v1839 = vmul.f32 %v1543, %v1543
  %v1840 = vmul.f32 %v1545, %v1545
  %v1841 = vmul.f32 %v1626, %v1626
  %v1842 = vmul.f32 %v1628, %v1628
  %v1843 = vmul.f32 %v1709, %v1709
  %v1844 = vmul.f32 %v1711, %v1711
  %v1845 = vmul.f32 %v1792, %v1792
  %v1846 = vmul.f32 %v1794, %v1794
  %v1847 = vadd.f32 %v1823, %v1824
  %v1848 = vadd.f32 %v1847, %v1825
  %v1849 = vadd.f32 %v1848, %v1826
  %v1850 = vadd.f32 %v1849, %v1827
  %v1851 = vadd.f32 %v1850, %v1828
  %v1852 = vadd.f32 %v1851, %v1829
  %v1853 = vadd.f32 %v1852, %v1830
  %1854 = vadd.xlane.f32.xlu0 %v1853
  %v1855 = vpop.xlane.xlu0 %1854
  %v1856 = vadd.f32 %v1831, %v1832
  %v1857 = vadd.f32 %v1856, %v1833
  %v1858 = vadd.f32 %v1857, %v1834
  %v1859 = vadd.f32 %v1858, %v1835
  %v1860 = vadd.f32 %v1859, %v1836
  %v1861 = vadd.f32 %v1860, %v1837
  %v1862 = vadd.f32 %v1861, %v1838
  %1863 = vadd.xlane.f32.xlu0 %v1862
  %v1864 = vpop.xlane.xlu0 %1863
  %v1865 = vadd.f32 %v1839, %v1840
  %v1866 = vadd.f32 %v1865, %v1841
  %v1867 = vadd.f32 %v1866, %v1842
  %v1868 = vadd.f32 %v1867, %v1843
  %v1869 = vadd.f32 %v1868, %v1844
  %v1870 = vadd.f32 %v1869, %v1845
  %v1871 = vadd.f32 %v1870, %v1846
  %1872 = vadd.xlane.f32.xlu0 %v1871
  %v1873 = vpop.xlane.xlu0 %1872
  %v1874 = vmul.f32 %v1804, 0.0009765625
  %v1875 = vmul.f32 %v1813, 0.0009765625
  %v1876 = vmul.f32 %v1822, 0.0009765625
  %v1877 = vmul.f32 %v1855, 0.0009765625
  %v1878 = vmul.f32 %v1864, 0.0009765625
  %v1879 = vmul.f32 %v1873, 0.0009765625
  %v1880 = vmul.f32 %v1874, %v1874
  %v1881 = vmul.f32 %v1875, %v1875
  %v1882 = vmul.f32 %v1876, %v1876
  %v1883 = vsub.f32 %v1877, %v1880
  %v1884 = vsub.f32 %v1878, %v1881
  %v1885 = vsub.f32 %v1879, %v1882
  %v1886 = vmax.f32 %v1883, 0.0
  %v1887 = vmax.f32 %v1884, 0.0
  %v1888 = vmax.f32 %v1885, 0.0
  %v1889 = vsub.f32 %v1531, %v1874
  %v1890 = vsub.f32 %v1533, %v1874
  %v1891 = vsub.f32 %v1614, %v1874
  %v1892 = vsub.f32 %v1616, %v1874
  %v1893 = vsub.f32 %v1697, %v1874
  %v1894 = vsub.f32 %v1699, %v1874
  %v1895 = vsub.f32 %v1780, %v1874
  %v1896 = vsub.f32 %v1782, %v1874
  %v1897 = vsub.f32 %v1537, %v1875
  %v1898 = vsub.f32 %v1539, %v1875
  %v1899 = vsub.f32 %v1620, %v1875
  %v1900 = vsub.f32 %v1622, %v1875
  %v1901 = vsub.f32 %v1703, %v1875
  %v1902 = vsub.f32 %v1705, %v1875
  %v1903 = vsub.f32 %v1786, %v1875
  %v1904 = vsub.f32 %v1788, %v1875
  %v1905 = vsub.f32 %v1543, %v1876
  %v1906 = vsub.f32 %v1545, %v1876
  %v1907 = vsub.f32 %v1626, %v1876
  %v1908 = vsub.f32 %v1628, %v1876
  %v1909 = vsub.f32 %v1709, %v1876
  %v1910 = vsub.f32 %v1711, %v1876
  %v1911 = vsub.f32 %v1792, %v1876
  %v1912 = vsub.f32 %v1794, %v1876
  %v1913 = vadd.f32 %v1886, 1e-05
  %v1914 = vadd.f32 %v1887, 1e-05
  %v1915 = vadd.f32 %v1888, 1e-05
  %v1916 = vrsqrt.pop %v1913
  %v1917 = vrsqrt.pop %v1914
  %v1918 = vrsqrt.pop %v1915
  %v1919 = vmul.f32 %v1889, %v1916
  %v1920 = vmul.f32 %v1890, %v1916
  %v1921 = vmul.f32 %v1891, %v1916
  %v1922 = vmul.f32 %v1892, %v1916
  %v1923 = vmul.f32 %v1893, %v1916
  %v1924 = vmul.f32 %v1894, %v1916
  %v1925 = vmul.f32 %v1895, %v1916
  %v1926 = vmul.f32 %v1896, %v1916
  %v1927 = vmul.f32 %v1897, %v1917
  %v1928 = vmul.f32 %v1898, %v1917
  %v1929 = vmul.f32 %v1899, %v1917
  %v1930 = vmul.f32 %v1900, %v1917
  %v1931 = vmul.f32 %v1901, %v1917
  %v1932 = vmul.f32 %v1902, %v1917
  %v1933 = vmul.f32 %v1903, %v1917
  %v1934 = vmul.f32 %v1904, %v1917
  %v1935 = vmul.f32 %v1905, %v1918
  %v1936 = vmul.f32 %v1906, %v1918
  %v1937 = vmul.f32 %v1907, %v1918
  %v1938 = vmul.f32 %v1908, %v1918
  %v1939 = vmul.f32 %v1909, %v1918
  %v1940 = vmul.f32 %v1910, %v1918
  %v1941 = vmul.f32 %v1911, %v1918
  %v1942 = vmul.f32 %v1912, %v1918
  %vm1943 = vcmp.ge.f32.partialorder %v1919, 0.0
  %vm1944 = vcmp.ge.f32.partialorder %v1920, 0.0
  %vm1945 = vcmp.ge.f32.partialorder %v1921, 0.0
  %vm1946 = vcmp.ge.f32.partialorder %v1922, 0.0
  %vm1947 = vcmp.ge.f32.partialorder %v1923, 0.0
  %vm1948 = vcmp.ge.f32.partialorder %v1924, 0.0
  %vm1949 = vcmp.ge.f32.partialorder %v1925, 0.0
  %vm1950 = vcmp.ge.f32.partialorder %v1926, 0.0
  %vm1951 = vcmp.ge.f32.partialorder %v1927, 0.0
  %vm1952 = vcmp.ge.f32.partialorder %v1928, 0.0
  %vm1953 = vcmp.ge.f32.partialorder %v1929, 0.0
  %vm1954 = vcmp.ge.f32.partialorder %v1930, 0.0
  %vm1955 = vcmp.ge.f32.partialorder %v1931, 0.0
  %vm1956 = vcmp.ge.f32.partialorder %v1932, 0.0
  %vm1957 = vcmp.ge.f32.partialorder %v1933, 0.0
  %vm1958 = vcmp.ge.f32.partialorder %v1934, 0.0
  %vm1959 = vcmp.ge.f32.partialorder %v1935, 0.0
  %vm1960 = vcmp.ge.f32.partialorder %v1936, 0.0
  %vm1961 = vcmp.ge.f32.partialorder %v1937, 0.0
  %vm1962 = vcmp.ge.f32.partialorder %v1938, 0.0
  %vm1963 = vcmp.ge.f32.partialorder %v1939, 0.0
  %vm1964 = vcmp.ge.f32.partialorder %v1940, 0.0
  %vm1965 = vcmp.ge.f32.partialorder %v1941, 0.0
  %vm1966 = vcmp.ge.f32.partialorder %v1942, 0.0
  %v1967 = vmul.f32 %v465, %v1919
  %v1968 = vmul.f32 %v465, %v1920
  %v1969 = vmul.f32 %v465, %v1921
  %v1970 = vmul.f32 %v465, %v1922
  %v1971 = vmul.f32 %v465, %v1923
  %v1972 = vmul.f32 %v465, %v1924
  %v1973 = vmul.f32 %v465, %v1925
  %v1974 = vmul.f32 %v465, %v1926
  %v1975 = vmul.f32 %v465, %v1927
  %v1976 = vmul.f32 %v465, %v1928
  %v1977 = vmul.f32 %v465, %v1929
  %v1978 = vmul.f32 %v465, %v1930
  %v1979 = vmul.f32 %v465, %v1931
  %v1980 = vmul.f32 %v465, %v1932
  %v1981 = vmul.f32 %v465, %v1933
  %v1982 = vmul.f32 %v465, %v1934
  %v1983 = vmul.f32 %v465, %v1935
  %v1984 = vmul.f32 %v465, %v1936
  %v1985 = vmul.f32 %v465, %v1937
  %v1986 = vmul.f32 %v465, %v1938
  %v1987 = vmul.f32 %v465, %v1939
  %v1988 = vmul.f32 %v465, %v1940
  %v1989 = vmul.f32 %v465, %v1941
  %v1990 = vmul.f32 %v465, %v1942
  %v1991 = vsel %vm1943, %v1919, %v1967
  %v1992 = vsel %vm1944, %v1920, %v1968
  %v1993 = vsel %vm1945, %v1921, %v1969
  %v1994 = vsel %vm1946, %v1922, %v1970
  %v1995 = vsel %vm1947, %v1923, %v1971
  %v1996 = vsel %vm1948, %v1924, %v1972
  %v1997 = vsel %vm1949, %v1925, %v1973
  %v1998 = vsel %vm1950, %v1926, %v1974
  %v1999 = vsel %vm1951, %v1927, %v1975
  %v2000 = vsel %vm1952, %v1928, %v1976
  %v2001 = vsel %vm1953, %v1929, %v1977
  %v2002 = vsel %vm1954, %v1930, %v1978
  %v2003 = vsel %vm1955, %v1931, %v1979
  %v2004 = vsel %vm1956, %v1932, %v1980
  %v2005 = vsel %vm1957, %v1933, %v1981
  %v2006 = vsel %vm1958, %v1934, %v1982
  %v2007 = vsel %vm1959, %v1935, %v1983
  %v2008 = vsel %vm1960, %v1936, %v1984
  %v2009 = vsel %vm1961, %v1937, %v1985
  %v2010 = vsel %vm1962, %v1938, %v1986
  %v2011 = vsel %vm1963, %v1939, %v1987
  %v2012 = vsel %vm1964, %v1940, %v1988
  %v2013 = vsel %vm1965, %v1941, %v1989
  %v2014 = vsel %vm1966, %v1942, %v1990
  %2015 = vst [vmem:[#allocation4] sm:$0xff] %v1991
  %2016 = vst [vmem:[#allocation4 + $0x8] sm:$0xff] %v1992
  %2017 = vst [vmem:[#allocation4 + $0x10] sm:$0xff] %v1993
  %2018 = vst [vmem:[#allocation4 + $0x18] sm:$0xff] %v1994
  %2019 = vst [vmem:[#allocation4 + $0x20] sm:$0xff] %v1995
  %2020 = vst [vmem:[#allocation4 + $0x28] sm:$0xff] %v1996
  %2021 = vst [vmem:[#allocation4 + $0x30] sm:$0xff] %v1997
  %2022 = vst [vmem:[#allocation4 + $0x38] sm:$0xff] %v1998
  %2023 = vst [vmem:[#allocation4 + $0x40] sm:$0xff] %v1999
  %2024 = vst [vmem:[#allocation4 + $0x48] sm:$0xff] %v2000
  %2025 = vst [vmem:[#allocation4 + $0x50] sm:$0xff] %v2001
  %2026 = vst [vmem:[#allocation4 + $0x58] sm:$0xff] %v2002
  %2027 = vst [vmem:[#allocation4 + $0x60] sm:$0xff] %v2003
  %2028 = vst [vmem:[#allocation4 + $0x68] sm:$0xff] %v2004
  %2029 = vst [vmem:[#allocation4 + $0x70] sm:$0xff] %v2005
  %2030 = vst [vmem:[#allocation4 + $0x78] sm:$0xff] %v2006
  %2031 = vst [vmem:[#allocation4 + $0x80] sm:$0xff] %v2007
  %2032 = vst [vmem:[#allocation4 + $0x88] sm:$0xff] %v2008
  %2033 = vst [vmem:[#allocation4 + $0x90] sm:$0xff] %v2009
  %2034 = vst [vmem:[#allocation4 + $0x98] sm:$0xff] %v2010
  %2035 = vst [vmem:[#allocation4 + $0xa0] sm:$0xff] %v2011
  %2036 = vst [vmem:[#allocation4 + $0xa8] sm:$0xff] %v2012
  %2037 = vst [vmem:[#allocation4 + $0xb0] sm:$0xff] %v2013
  %2038 = vst [vmem:[#allocation4 + $0xb8] sm:$0xff] %v2014
  %v2039 = vld [vmem:[#allocation4] sm:$0xff]
  %v2040 = vld [vmem:[#allocation4 + $0x8] sm:$0xff]
  %v2041 = vld [vmem:[#allocation4 + $0x10] sm:$0xff]
  %v2042 = vld [vmem:[#allocation4 + $0x18] sm:$0xff]
  %v2043 = vld [vmem:[#allocation4 + $0x20] sm:$0xff]
  %v2044 = vld [vmem:[#allocation4 + $0x28] sm:$0xff]
  %v2045 = vld [vmem:[#allocation4 + $0x30] sm:$0xff]
  %v2046 = vld [vmem:[#allocation4 + $0x38] sm:$0xff]
  %v2047 = vld [vmem:[#allocation4 + $0x40] sm:$0xff]
  %v2048 = vld [vmem:[#allocation4 + $0x48] sm:$0xff]
  %v2049 = vld [vmem:[#allocation4 + $0x50] sm:$0xff]
  %v2050 = vld [vmem:[#allocation4 + $0x58] sm:$0xff]
  %v2051 = vld [vmem:[#allocation4 + $0x60] sm:$0xff]
  %v2052 = vld [vmem:[#allocation4 + $0x68] sm:$0xff]
  %v2053 = vld [vmem:[#allocation4 + $0x70] sm:$0xff]
  %v2054 = vld [vmem:[#allocation4 + $0x78] sm:$0xff]
  %v2055 = vld [vmem:[#allocation4 + $0x80] sm:$0xff]
  %v2056 = vld [vmem:[#allocation4 + $0x88] sm:$0xff]
  %v2057 = vld [vmem:[#allocation4 + $0x90] sm:$0xff]
  %v2058 = vld [vmem:[#allocation4 + $0x98] sm:$0xff]
  %v2059 = vld [vmem:[#allocation4 + $0xa0] sm:$0xff]
  %v2060 = vld [vmem:[#allocation4 + $0xa8] sm:$0xff]
  %v2061 = vld [vmem:[#allocation4 + $0xb0] sm:$0xff]
  %v2062 = vld [vmem:[#allocation4 + $0xb8] sm:$0xff]
  %2063 = vrot.lane.b32.xlu0 %v2039, 32
  %v2064 = vpop.permute.xlu0 %2063
  %2065 = vrot.lane.b32.xlu0 %v2047, 32
  %v2066 = vpop.permute.xlu0 %2065
  %2067 = vrot.lane.b32.xlu0 %v2055, 32
  %v2068 = vpop.permute.xlu0 %2067
  %2069 = vrot.lane.b32.xlu0 %v2040, 32
  %v2070 = vpop.permute.xlu0 %2069
  %2071 = vrot.lane.b32.xlu0 %v2048, 32
  %v2072 = vpop.permute.xlu0 %2071
  %2073 = vrot.lane.b32.xlu0 %v2056, 32
  %v2074 = vpop.permute.xlu0 %2073
  %2075 = vrot.lane.b32.xlu0 %v2041, 32
  %v2076 = vpop.permute.xlu0 %2075
  %2077 = vrot.lane.b32.xlu0 %v2049, 32
  %v2078 = vpop.permute.xlu0 %2077
  %2079 = vrot.lane.b32.xlu0 %v2057, 32
  %v2080 = vpop.permute.xlu0 %2079
  %2081 = vrot.lane.b32.xlu0 %v2042, 32
  %v2082 = vpop.permute.xlu0 %2081
  %2083 = vrot.lane.b32.xlu0 %v2050, 32
  %v2084 = vpop.permute.xlu0 %2083
  %2085 = vrot.lane.b32.xlu0 %v2058, 32
  %v2086 = vpop.permute.xlu0 %2085
  %2087 = vrot.lane.b32.xlu0 %v2043, 32
  %v2088 = vpop.permute.xlu0 %2087
  %2089 = vrot.lane.b32.xlu0 %v2051, 32
  %v2090 = vpop.permute.xlu0 %2089
  %2091 = vrot.lane.b32.xlu0 %v2059, 32
  %v2092 = vpop.permute.xlu0 %2091
  %2093 = vrot.lane.b32.xlu0 %v2044, 32
  %v2094 = vpop.permute.xlu0 %2093
  %2095 = vrot.lane.b32.xlu0 %v2052, 32
  %v2096 = vpop.permute.xlu0 %2095
  %2097 = vrot.lane.b32.xlu0 %v2060, 32
  %v2098 = vpop.permute.xlu0 %2097
  %2099 = vrot.lane.b32.xlu0 %v2045, 32
  %v2100 = vpop.permute.xlu0 %2099
  %2101 = vrot.lane.b32.xlu0 %v2053, 32
  %v2102 = vpop.permute.xlu0 %2101
  %2103 = vrot.lane.b32.xlu0 %v2061, 32
  %v2104 = vpop.permute.xlu0 %2103
  %2105 = vrot.lane.b32.xlu0 %v2046, 32
  %v2106 = vpop.permute.xlu0 %2105
  %2107 = vrot.lane.b32.xlu0 %v2054, 32
  %v2108 = vpop.permute.xlu0 %2107
  %2109 = vrot.lane.b32.xlu0 %v2062, 32
  %v2110 = vpop.permute.xlu0 %2109
  %v2111 = vsel %vm562, %v2100, %v2106
  %v2112 = vsel %vm562, %v2102, %v2108
  %v2113 = vsel %vm562, %v2104, %v2110
  %v2114 = vsel %vm562, %v2094, %v2100
  %v2115 = vsel %vm562, %v2096, %v2102
  %v2116 = vsel %vm562, %v2098, %v2104
  %v2117 = vsel %vm562, %v2088, %v2094
  %v2118 = vsel %vm562, %v2090, %v2096
  %v2119 = vsel %vm562, %v2092, %v2098
  %v2120 = vsel %vm562, %v2082, %v2088
  %v2121 = vsel %vm562, %v2084, %v2090
  %v2122 = vsel %vm562, %v2086, %v2092
  %v2123 = vsel %vm562, %v2076, %v2082
  %v2124 = vsel %vm562, %v2078, %v2084
  %v2125 = vsel %vm562, %v2080, %v2086
  %v2126 = vsel %vm562, %v2070, %v2076
  %v2127 = vsel %vm562, %v2072, %v2078
  %v2128 = vsel %vm562, %v2074, %v2080
  %v2129 = vsel %vm562, %v2064, %v2070
  %v2130 = vsel %vm562, %v2066, %v2072
  %v2131 = vsel %vm562, %v2068, %v2074
  %v2132 = vsel %vm562, %v2106, %v2064
  %v2133 = vsel %vm562, %v2108, %v2066
  %v2134 = vsel %vm562, %v2110, %v2068
  %v2135 = vsel %vm587, %v2132, 0.0
  %v2136 = vsel %vm588, %v2129, 0.0
  %v2137 = vsel %vm589, %v2126, 0.0
  %v2138 = vsel %vm590, %v2123, 0.0
  %v2139 = vsel %vm591, %v2120, 0.0
  %v2140 = vsel %vm592, %v2117, 0.0
  %v2141 = vsel %vm593, %v2114, 0.0
  %v2142 = vsel %vm594, %v2111, 0.0
  %v2143 = vsel %vm587, %v2133, 0.0
  %v2144 = vsel %vm588, %v2130, 0.0
  %v2145 = vsel %vm589, %v2127, 0.0
  %v2146 = vsel %vm590, %v2124, 0.0
  %v2147 = vsel %vm591, %v2121, 0.0
  %v2148 = vsel %vm592, %v2118, 0.0
  %v2149 = vsel %vm593, %v2115, 0.0
  %v2150 = vsel %vm594, %v2112, 0.0
  %v2151 = vsel %vm587, %v2134, 0.0
  %v2152 = vsel %vm588, %v2131, 0.0
  %v2153 = vsel %vm589, %v2128, 0.0
  %v2154 = vsel %vm590, %v2125, 0.0
  %v2155 = vsel %vm591, %v2122, 0.0
  %v2156 = vsel %vm592, %v2119, 0.0
  %v2157 = vsel %vm593, %v2116, 0.0
  %v2158 = vsel %vm594, %v2113, 0.0
  %2159 = vrot.lane.b32.xlu0 %v2135, 1
  %v2160 = vpop.permute.xlu0 %2159
  %2161 = vrot.lane.b32.xlu0 %v2143, 1
  %v2162 = vpop.permute.xlu0 %2161
  %2163 = vrot.lane.b32.xlu0 %v2151, 1
  %v2164 = vpop.permute.xlu0 %2163
  %2165 = vrot.lane.b32.xlu0 %v2136, 1
  %v2166 = vpop.permute.xlu0 %2165
  %2167 = vrot.lane.b32.xlu0 %v2144, 1
  %v2168 = vpop.permute.xlu0 %2167
  %2169 = vrot.lane.b32.xlu0 %v2152, 1
  %v2170 = vpop.permute.xlu0 %2169
  %2171 = vrot.lane.b32.xlu0 %v2137, 1
  %v2172 = vpop.permute.xlu0 %2171
  %2173 = vrot.lane.b32.xlu0 %v2145, 1
  %v2174 = vpop.permute.xlu0 %2173
  %2175 = vrot.lane.b32.xlu0 %v2153, 1
  %v2176 = vpop.permute.xlu0 %2175
  %2177 = vrot.lane.b32.xlu0 %v2138, 1
  %v2178 = vpop.permute.xlu0 %2177
  %2179 = vrot.lane.b32.xlu0 %v2146, 1
  %v2180 = vpop.permute.xlu0 %2179
  %2181 = vrot.lane.b32.xlu0 %v2154, 1
  %v2182 = vpop.permute.xlu0 %2181
  %2183 = vrot.lane.b32.xlu0 %v2139, 1
  %v2184 = vpop.permute.xlu0 %2183
  %2185 = vrot.lane.b32.xlu0 %v2147, 1
  %v2186 = vpop.permute.xlu0 %2185
  %2187 = vrot.lane.b32.xlu0 %v2155, 1
  %v2188 = vpop.permute.xlu0 %2187
  %2189 = vrot.lane.b32.xlu0 %v2140, 1
  %v2190 = vpop.permute.xlu0 %2189
  %2191 = vrot.lane.b32.xlu0 %v2148, 1
  %v2192 = vpop.permute.xlu0 %2191
  %2193 = vrot.lane.b32.xlu0 %v2156, 1
  %v2194 = vpop.permute.xlu0 %2193
  %2195 = vrot.lane.b32.xlu0 %v2141, 1
  %v2196 = vpop.permute.xlu0 %2195
  %2197 = vrot.lane.b32.xlu0 %v2149, 1
  %v2198 = vpop.permute.xlu0 %2197
  %2199 = vrot.lane.b32.xlu0 %v2157, 1
  %v2200 = vpop.permute.xlu0 %2199
  %2201 = vrot.lane.b32.xlu0 %v2142, 1
  %v2202 = vpop.permute.xlu0 %2201
  %2203 = vrot.lane.b32.xlu0 %v2150, 1
  %v2204 = vpop.permute.xlu0 %2203
  %2205 = vrot.lane.b32.xlu0 %v2158, 1
  %v2206 = vpop.permute.xlu0 %2205
  %v2207 = vsel %vm643, %v2196, %v2202
  %v2208 = vsel %vm643, %v2198, %v2204
  %v2209 = vsel %vm643, %v2200, %v2206
  %v2210 = vsel %vm643, %v2190, %v2196
  %v2211 = vsel %vm643, %v2192, %v2198
  %v2212 = vsel %vm643, %v2194, %v2200
  %v2213 = vsel %vm643, %v2184, %v2190
  %v2214 = vsel %vm643, %v2186, %v2192
  %v2215 = vsel %vm643, %v2188, %v2194
  %v2216 = vsel %vm643, %v2178, %v2184
  %v2217 = vsel %vm643, %v2180, %v2186
  %v2218 = vsel %vm643, %v2182, %v2188
  %v2219 = vsel %vm643, %v2172, %v2178
  %v2220 = vsel %vm643, %v2174, %v2180
  %v2221 = vsel %vm643, %v2176, %v2182
  %v2222 = vsel %vm643, %v2166, %v2172
  %v2223 = vsel %vm643, %v2168, %v2174
  %v2224 = vsel %vm643, %v2170, %v2176
  %v2225 = vsel %vm643, %v2160, %v2166
  %v2226 = vsel %vm643, %v2162, %v2168
  %v2227 = vsel %vm643, %v2164, %v2170
  %v2228 = vsel %vm643, %v2202, %v2160
  %v2229 = vsel %vm643, %v2204, %v2162
  %v2230 = vsel %vm643, %v2206, %v2164
  %v2231 = vsel %vm668, %v2228, 0.0
  %v2232 = vsel %vm669, %v2225, 0.0
  %v2233 = vsel %vm670, %v2222, 0.0
  %v2234 = vsel %vm671, %v2219, 0.0
  %v2235 = vsel %vm672, %v2216, 0.0
  %v2236 = vsel %vm673, %v2213, 0.0
  %v2237 = vsel %vm674, %v2210, 0.0
  %v2238 = vsel %vm675, %v2207, 0.0
  %v2239 = vsel %vm668, %v2229, 0.0
  %v2240 = vsel %vm669, %v2226, 0.0
  %v2241 = vsel %vm670, %v2223, 0.0
  %v2242 = vsel %vm671, %v2220, 0.0
  %v2243 = vsel %vm672, %v2217, 0.0
  %v2244 = vsel %vm673, %v2214, 0.0
  %v2245 = vsel %vm674, %v2211, 0.0
  %v2246 = vsel %vm675, %v2208, 0.0
  %v2247 = vsel %vm668, %v2230, 0.0
  %v2248 = vsel %vm669, %v2227, 0.0
  %v2249 = vsel %vm670, %v2224, 0.0
  %v2250 = vsel %vm671, %v2221, 0.0
  %v2251 = vsel %vm672, %v2218, 0.0
  %v2252 = vsel %vm673, %v2215, 0.0
  %v2253 = vsel %vm674, %v2212, 0.0
  %v2254 = vsel %vm675, %v2209, 0.0
  %2255 = vst [vmem:[#allocation3] sm:$0xff] %v2231
  %2256 = vst [vmem:[#allocation3 + $0x8] sm:$0xff] %v2232
  %2257 = vst [vmem:[#allocation3 + $0x10] sm:$0xff] %v2233
  %2258 = vst [vmem:[#allocation3 + $0x18] sm:$0xff] %v2234
  %2259 = vst [vmem:[#allocation3 + $0x20] sm:$0xff] %v2235
  %2260 = vst [vmem:[#allocation3 + $0x28] sm:$0xff] %v2236
  %2261 = vst [vmem:[#allocation3 + $0x30] sm:$0xff] %v2237
  %2262 = vst [vmem:[#allocation3 + $0x38] sm:$0xff] %v2238
  %2263 = vst [vmem:[#allocation3 + $0x40] sm:$0xff] %v2239
  %2264 = vst [vmem:[#allocation3 + $0x48] sm:$0xff] %v2240
  %2265 = vst [vmem:[#allocation3 + $0x50] sm:$0xff] %v2241
  %2266 = vst [vmem:[#allocation3 + $0x58] sm:$0xff] %v2242
  %2267 = vst [vmem:[#allocation3 + $0x60] sm:$0xff] %v2243
  %2268 = vst [vmem:[#allocation3 + $0x68] sm:$0xff] %v2244
  %2269 = vst [vmem:[#allocation3 + $0x70] sm:$0xff] %v2245
  %2270 = vst [vmem:[#allocation3 + $0x78] sm:$0xff] %v2246
  %2271 = vst [vmem:[#allocation3 + $0x80] sm:$0xff] %v2247
  %2272 = vst [vmem:[#allocation3 + $0x88] sm:$0xff] %v2248
  %2273 = vst [vmem:[#allocation3 + $0x90] sm:$0xff] %v2249
  %2274 = vst [vmem:[#allocation3 + $0x98] sm:$0xff] %v2250
  %2275 = vst [vmem:[#allocation3 + $0xa0] sm:$0xff] %v2251
  %2276 = vst [vmem:[#allocation3 + $0xa8] sm:$0xff] %v2252
  %2277 = vst [vmem:[#allocation3 + $0xb0] sm:$0xff] %v2253
  %2278 = vst [vmem:[#allocation3 + $0xb8] sm:$0xff] %v2254
  %2279 = vst [vmem:[#allocation3 + $0xc0] sm:$0xff] %v2135
  %2280 = vst [vmem:[#allocation3 + $0xc8] sm:$0xff] %v2136
  %2281 = vst [vmem:[#allocation3 + $0xd0] sm:$0xff] %v2137
  %2282 = vst [vmem:[#allocation3 + $0xd8] sm:$0xff] %v2138
  %2283 = vst [vmem:[#allocation3 + $0xe0] sm:$0xff] %v2139
  %2284 = vst [vmem:[#allocation3 + $0xe8] sm:$0xff] %v2140
  %2285 = vst [vmem:[#allocation3 + $0xf0] sm:$0xff] %v2141
  %2286 = vst [vmem:[#allocation3 + $0xf8] sm:$0xff] %v2142
  %2287 = vst [vmem:[#allocation3 + $0x100] sm:$0xff] %v2143
  %2288 = vst [vmem:[#allocation3 + $0x108] sm:$0xff] %v2144
  %2289 = vst [vmem:[#allocation3 + $0x110] sm:$0xff] %v2145
  %2290 = vst [vmem:[#allocation3 + $0x118] sm:$0xff] %v2146
  %2291 = vst [vmem:[#allocation3 + $0x120] sm:$0xff] %v2147
  %2292 = vst [vmem:[#allocation3 + $0x128] sm:$0xff] %v2148
  %2293 = vst [vmem:[#allocation3 + $0x130] sm:$0xff] %v2149
  %2294 = vst [vmem:[#allocation3 + $0x138] sm:$0xff] %v2150
  %2295 = vst [vmem:[#allocation3 + $0x140] sm:$0xff] %v2151
  %2296 = vst [vmem:[#allocation3 + $0x148] sm:$0xff] %v2152
  %2297 = vst [vmem:[#allocation3 + $0x150] sm:$0xff] %v2153
  %2298 = vst [vmem:[#allocation3 + $0x158] sm:$0xff] %v2154
  %2299 = vst [vmem:[#allocation3 + $0x160] sm:$0xff] %v2155
  %2300 = vst [vmem:[#allocation3 + $0x168] sm:$0xff] %v2156
  %2301 = vst [vmem:[#allocation3 + $0x170] sm:$0xff] %v2157
  %2302 = vst [vmem:[#allocation3 + $0x178] sm:$0xff] %v2158
  %2303 = vrot.lane.b32.xlu0 %v2135, 127
  %v2304 = vpop.permute.xlu0 %2303
  %2305 = vrot.lane.b32.xlu0 %v2143, 127
  %v2306 = vpop.permute.xlu0 %2305
  %2307 = vrot.lane.b32.xlu0 %v2151, 127
  %v2308 = vpop.permute.xlu0 %2307
  %2309 = vrot.lane.b32.xlu0 %v2136, 127
  %v2310 = vpop.permute.xlu0 %2309
  %2311 = vrot.lane.b32.xlu0 %v2144, 127
  %v2312 = vpop.permute.xlu0 %2311
  %2313 = vrot.lane.b32.xlu0 %v2152, 127
  %v2314 = vpop.permute.xlu0 %2313
  %2315 = vrot.lane.b32.xlu0 %v2137, 127
  %v2316 = vpop.permute.xlu0 %2315
  %2317 = vrot.lane.b32.xlu0 %v2145, 127
  %v2318 = vpop.permute.xlu0 %2317
  %2319 = vrot.lane.b32.xlu0 %v2153, 127
  %v2320 = vpop.permute.xlu0 %2319
  %2321 = vrot.lane.b32.xlu0 %v2138, 127
  %v2322 = vpop.permute.xlu0 %2321
  %2323 = vrot.lane.b32.xlu0 %v2146, 127
  %v2324 = vpop.permute.xlu0 %2323
  %2325 = vrot.lane.b32.xlu0 %v2154, 127
  %v2326 = vpop.permute.xlu0 %2325
  %2327 = vrot.lane.b32.xlu0 %v2139, 127
  %v2328 = vpop.permute.xlu0 %2327
  %2329 = vrot.lane.b32.xlu0 %v2147, 127
  %v2330 = vpop.permute.xlu0 %2329
  %2331 = vrot.lane.b32.xlu0 %v2155, 127
  %v2332 = vpop.permute.xlu0 %2331
  %2333 = vrot.lane.b32.xlu0 %v2140, 127
  %v2334 = vpop.permute.xlu0 %2333
  %2335 = vrot.lane.b32.xlu0 %v2148, 127
  %v2336 = vpop.permute.xlu0 %2335
  %2337 = vrot.lane.b32.xlu0 %v2156, 127
  %v2338 = vpop.permute.xlu0 %2337
  %2339 = vrot.lane.b32.xlu0 %v2141, 127
  %v2340 = vpop.permute.xlu0 %2339
  %2341 = vrot.lane.b32.xlu0 %v2149, 127
  %v2342 = vpop.permute.xlu0 %2341
  %2343 = vrot.lane.b32.xlu0 %v2157, 127
  %v2344 = vpop.permute.xlu0 %2343
  %2345 = vrot.lane.b32.xlu0 %v2142, 127
  %v2346 = vpop.permute.xlu0 %2345
  %2347 = vrot.lane.b32.xlu0 %v2150, 127
  %v2348 = vpop.permute.xlu0 %2347
  %2349 = vrot.lane.b32.xlu0 %v2158, 127
  %v2350 = vpop.permute.xlu0 %2349
  %v2351 = vsel %vm756, %v2340, %v2346
  %v2352 = vsel %vm756, %v2342, %v2348
  %v2353 = vsel %vm756, %v2344, %v2350
  %v2354 = vsel %vm756, %v2334, %v2340
  %v2355 = vsel %vm756, %v2336, %v2342
  %v2356 = vsel %vm756, %v2338, %v2344
  %v2357 = vsel %vm756, %v2328, %v2334
  %v2358 = vsel %vm756, %v2330, %v2336
  %v2359 = vsel %vm756, %v2332, %v2338
  %v2360 = vsel %vm756, %v2322, %v2328
  %v2361 = vsel %vm756, %v2324, %v2330
  %v2362 = vsel %vm756, %v2326, %v2332
  %v2363 = vsel %vm756, %v2316, %v2322
  %v2364 = vsel %vm756, %v2318, %v2324
  %v2365 = vsel %vm756, %v2320, %v2326
  %v2366 = vsel %vm756, %v2310, %v2316
  %v2367 = vsel %vm756, %v2312, %v2318
  %v2368 = vsel %vm756, %v2314, %v2320
  %v2369 = vsel %vm756, %v2304, %v2310
  %v2370 = vsel %vm756, %v2306, %v2312
  %v2371 = vsel %vm756, %v2308, %v2314
  %v2372 = vsel %vm756, %v2346, %v2304
  %v2373 = vsel %vm756, %v2348, %v2306
  %v2374 = vsel %vm756, %v2350, %v2308
  %v2375 = vsel %vm781, %v2369, 0.0
  %v2376 = vsel %vm782, %v2366, 0.0
  %v2377 = vsel %vm783, %v2363, 0.0
  %v2378 = vsel %vm784, %v2360, 0.0
  %v2379 = vsel %vm785, %v2357, 0.0
  %v2380 = vsel %vm786, %v2354, 0.0
  %v2381 = vsel %vm787, %v2351, 0.0
  %v2382 = vsel %vm788, %v2372, 0.0
  %v2383 = vsel %vm781, %v2370, 0.0
  %v2384 = vsel %vm782, %v2367, 0.0
  %v2385 = vsel %vm783, %v2364, 0.0
  %v2386 = vsel %vm784, %v2361, 0.0
  %v2387 = vsel %vm785, %v2358, 0.0
  %v2388 = vsel %vm786, %v2355, 0.0
  %v2389 = vsel %vm787, %v2352, 0.0
  %v2390 = vsel %vm788, %v2373, 0.0
  %v2391 = vsel %vm781, %v2371, 0.0
  %v2392 = vsel %vm782, %v2368, 0.0
  %v2393 = vsel %vm783, %v2365, 0.0
  %v2394 = vsel %vm784, %v2362, 0.0
  %v2395 = vsel %vm785, %v2359, 0.0
  %v2396 = vsel %vm786, %v2356, 0.0
  %v2397 = vsel %vm787, %v2353, 0.0
  %v2398 = vsel %vm788, %v2374, 0.0
  %2399 = vst [vmem:[#allocation3 + $0x180] sm:$0xff] %v2375
  %2400 = vst [vmem:[#allocation3 + $0x188] sm:$0xff] %v2376
  %2401 = vst [vmem:[#allocation3 + $0x190] sm:$0xff] %v2377
  %2402 = vst [vmem:[#allocation3 + $0x198] sm:$0xff] %v2378
  %2403 = vst [vmem:[#allocation3 + $0x1a0] sm:$0xff] %v2379
  %2404 = vst [vmem:[#allocation3 + $0x1a8] sm:$0xff] %v2380
  %2405 = vst [vmem:[#allocation3 + $0x1b0] sm:$0xff] %v2381
  %2406 = vst [vmem:[#allocation3 + $0x1b8] sm:$0xff] %v2382
  %2407 = vst [vmem:[#allocation3 + $0x1c0] sm:$0xff] %v2383
  %2408 = vst [vmem:[#allocation3 + $0x1c8] sm:$0xff] %v2384
  %2409 = vst [vmem:[#allocation3 + $0x1d0] sm:$0xff] %v2385
  %2410 = vst [vmem:[#allocation3 + $0x1d8] sm:$0xff] %v2386
  %2411 = vst [vmem:[#allocation3 + $0x1e0] sm:$0xff] %v2387
  %2412 = vst [vmem:[#allocation3 + $0x1e8] sm:$0xff] %v2388
  %2413 = vst [vmem:[#allocation3 + $0x1f0] sm:$0xff] %v2389
  %2414 = vst [vmem:[#allocation3 + $0x1f8] sm:$0xff] %v2390
  %2415 = vst [vmem:[#allocation3 + $0x200] sm:$0xff] %v2391
  %2416 = vst [vmem:[#allocation3 + $0x208] sm:$0xff] %v2392
  %2417 = vst [vmem:[#allocation3 + $0x210] sm:$0xff] %v2393
  %2418 = vst [vmem:[#allocation3 + $0x218] sm:$0xff] %v2394
  %2419 = vst [vmem:[#allocation3 + $0x220] sm:$0xff] %v2395
  %2420 = vst [vmem:[#allocation3 + $0x228] sm:$0xff] %v2396
  %2421 = vst [vmem:[#allocation3 + $0x230] sm:$0xff] %v2397
  %2422 = vst [vmem:[#allocation3 + $0x238] sm:$0xff] %v2398
  %v2423 = vld [vmem:[#allocation4] sm:$0xff]
  %v2424 = vld [vmem:[#allocation4 + $0x8] sm:$0xff]
  %v2425 = vld [vmem:[#allocation4 + $0x10] sm:$0xff]
  %v2426 = vld [vmem:[#allocation4 + $0x18] sm:$0xff]
  %v2427 = vld [vmem:[#allocation4 + $0x20] sm:$0xff]
  %v2428 = vld [vmem:[#allocation4 + $0x28] sm:$0xff]
  %v2429 = vld [vmem:[#allocation4 + $0x30] sm:$0xff]
  %v2430 = vld [vmem:[#allocation4 + $0x38] sm:$0xff]
  %v2431 = vld [vmem:[#allocation4 + $0x40] sm:$0xff]
  %v2432 = vld [vmem:[#allocation4 + $0x48] sm:$0xff]
  %v2433 = vld [vmem:[#allocation4 + $0x50] sm:$0xff]
  %v2434 = vld [vmem:[#allocation4 + $0x58] sm:$0xff]
  %v2435 = vld [vmem:[#allocation4 + $0x60] sm:$0xff]
  %v2436 = vld [vmem:[#allocation4 + $0x68] sm:$0xff]
  %v2437 = vld [vmem:[#allocation4 + $0x70] sm:$0xff]
  %v2438 = vld [vmem:[#allocation4 + $0x78] sm:$0xff]
  %v2439 = vld [vmem:[#allocation4 + $0x80] sm:$0xff]
  %v2440 = vld [vmem:[#allocation4 + $0x88] sm:$0xff]
  %v2441 = vld [vmem:[#allocation4 + $0x90] sm:$0xff]
  %v2442 = vld [vmem:[#allocation4 + $0x98] sm:$0xff]
  %v2443 = vld [vmem:[#allocation4 + $0xa0] sm:$0xff]
  %v2444 = vld [vmem:[#allocation4 + $0xa8] sm:$0xff]
  %v2445 = vld [vmem:[#allocation4 + $0xb0] sm:$0xff]
  %v2446 = vld [vmem:[#allocation4 + $0xb8] sm:$0xff]
  %2447 = vrot.lane.b32.xlu0 %v2423, 1
  %v2448 = vpop.permute.xlu0 %2447
  %2449 = vrot.lane.b32.xlu0 %v2431, 1
  %v2450 = vpop.permute.xlu0 %2449
  %2451 = vrot.lane.b32.xlu0 %v2439, 1
  %v2452 = vpop.permute.xlu0 %2451
  %2453 = vrot.lane.b32.xlu0 %v2424, 1
  %v2454 = vpop.permute.xlu0 %2453
  %2455 = vrot.lane.b32.xlu0 %v2432, 1
  %v2456 = vpop.permute.xlu0 %2455
  %2457 = vrot.lane.b32.xlu0 %v2440, 1
  %v2458 = vpop.permute.xlu0 %2457
  %2459 = vrot.lane.b32.xlu0 %v2425, 1
  %v2460 = vpop.permute.xlu0 %2459
  %2461 = vrot.lane.b32.xlu0 %v2433, 1
  %v2462 = vpop.permute.xlu0 %2461
  %2463 = vrot.lane.b32.xlu0 %v2441, 1
  %v2464 = vpop.permute.xlu0 %2463
  %2465 = vrot.lane.b32.xlu0 %v2426, 1
  %v2466 = vpop.permute.xlu0 %2465
  %2467 = vrot.lane.b32.xlu0 %v2434, 1
  %v2468 = vpop.permute.xlu0 %2467
  %2469 = vrot.lane.b32.xlu0 %v2442, 1
  %v2470 = vpop.permute.xlu0 %2469
  %2471 = vrot.lane.b32.xlu0 %v2427, 1
  %v2472 = vpop.permute.xlu0 %2471
  %2473 = vrot.lane.b32.xlu0 %v2435, 1
  %v2474 = vpop.permute.xlu0 %2473
  %2475 = vrot.lane.b32.xlu0 %v2443, 1
  %v2476 = vpop.permute.xlu0 %2475
  %2477 = vrot.lane.b32.xlu0 %v2428, 1
  %v2478 = vpop.permute.xlu0 %2477
  %2479 = vrot.lane.b32.xlu0 %v2436, 1
  %v2480 = vpop.permute.xlu0 %2479
  %2481 = vrot.lane.b32.xlu0 %v2444, 1
  %v2482 = vpop.permute.xlu0 %2481
  %2483 = vrot.lane.b32.xlu0 %v2429, 1
  %v2484 = vpop.permute.xlu0 %2483
  %2485 = vrot.lane.b32.xlu0 %v2437, 1
  %v2486 = vpop.permute.xlu0 %2485
  %2487 = vrot.lane.b32.xlu0 %v2445, 1
  %v2488 = vpop.permute.xlu0 %2487
  %2489 = vrot.lane.b32.xlu0 %v2430, 1
  %v2490 = vpop.permute.xlu0 %2489
  %2491 = vrot.lane.b32.xlu0 %v2438, 1
  %v2492 = vpop.permute.xlu0 %2491
  %2493 = vrot.lane.b32.xlu0 %v2446, 1
  %v2494 = vpop.permute.xlu0 %2493
  %v2495 = vsel %vm643, %v2484, %v2490
  %v2496 = vsel %vm643, %v2486, %v2492
  %v2497 = vsel %vm643, %v2488, %v2494
  %v2498 = vsel %vm643, %v2478, %v2484
  %v2499 = vsel %vm643, %v2480, %v2486
  %v2500 = vsel %vm643, %v2482, %v2488
  %v2501 = vsel %vm643, %v2472, %v2478
  %v2502 = vsel %vm643, %v2474, %v2480
  %v2503 = vsel %vm643, %v2476, %v2482
  %v2504 = vsel %vm643, %v2466, %v2472
  %v2505 = vsel %vm643, %v2468, %v2474
  %v2506 = vsel %vm643, %v2470, %v2476
  %v2507 = vsel %vm643, %v2460, %v2466
  %v2508 = vsel %vm643, %v2462, %v2468
  %v2509 = vsel %vm643, %v2464, %v2470
  %v2510 = vsel %vm643, %v2454, %v2460
  %v2511 = vsel %vm643, %v2456, %v2462
  %v2512 = vsel %vm643, %v2458, %v2464
  %v2513 = vsel %vm643, %v2448, %v2454
  %v2514 = vsel %vm643, %v2450, %v2456
  %v2515 = vsel %vm643, %v2452, %v2458
  %v2516 = vsel %vm643, %v2490, %v2448
  %v2517 = vsel %vm643, %v2492, %v2450
  %v2518 = vsel %vm643, %v2494, %v2452
  %v2519 = vsel %vm668, %v2516, 0.0
  %v2520 = vsel %vm669, %v2513, 0.0
  %v2521 = vsel %vm670, %v2510, 0.0
  %v2522 = vsel %vm671, %v2507, 0.0
  %v2523 = vsel %vm672, %v2504, 0.0
  %v2524 = vsel %vm673, %v2501, 0.0
  %v2525 = vsel %vm674, %v2498, 0.0
  %v2526 = vsel %vm675, %v2495, 0.0
  %v2527 = vsel %vm668, %v2517, 0.0
  %v2528 = vsel %vm669, %v2514, 0.0
  %v2529 = vsel %vm670, %v2511, 0.0
  %v2530 = vsel %vm671, %v2508, 0.0
  %v2531 = vsel %vm672, %v2505, 0.0
  %v2532 = vsel %vm673, %v2502, 0.0
  %v2533 = vsel %vm674, %v2499, 0.0
  %v2534 = vsel %vm675, %v2496, 0.0
  %v2535 = vsel %vm668, %v2518, 0.0
  %v2536 = vsel %vm669, %v2515, 0.0
  %v2537 = vsel %vm670, %v2512, 0.0
  %v2538 = vsel %vm671, %v2509, 0.0
  %v2539 = vsel %vm672, %v2506, 0.0
  %v2540 = vsel %vm673, %v2503, 0.0
  %v2541 = vsel %vm674, %v2500, 0.0
  %v2542 = vsel %vm675, %v2497, 0.0
  %2543 = vst [vmem:[#allocation3 + $0x240] sm:$0xff] %v2519
  %2544 = vst [vmem:[#allocation3 + $0x248] sm:$0xff] %v2520
  %2545 = vst [vmem:[#allocation3 + $0x250] sm:$0xff] %v2521
  %2546 = vst [vmem:[#allocation3 + $0x258] sm:$0xff] %v2522
  %2547 = vst [vmem:[#allocation3 + $0x260] sm:$0xff] %v2523
  %2548 = vst [vmem:[#allocation3 + $0x268] sm:$0xff] %v2524
  %2549 = vst [vmem:[#allocation3 + $0x270] sm:$0xff] %v2525
  %2550 = vst [vmem:[#allocation3 + $0x278] sm:$0xff] %v2526
  %2551 = vst [vmem:[#allocation3 + $0x280] sm:$0xff] %v2527
  %2552 = vst [vmem:[#allocation3 + $0x288] sm:$0xff] %v2528
  %2553 = vst [vmem:[#allocation3 + $0x290] sm:$0xff] %v2529
  %2554 = vst [vmem:[#allocation3 + $0x298] sm:$0xff] %v2530
  %2555 = vst [vmem:[#allocation3 + $0x2a0] sm:$0xff] %v2531
  %2556 = vst [vmem:[#allocation3 + $0x2a8] sm:$0xff] %v2532
  %2557 = vst [vmem:[#allocation3 + $0x2b0] sm:$0xff] %v2533
  %2558 = vst [vmem:[#allocation3 + $0x2b8] sm:$0xff] %v2534
  %2559 = vst [vmem:[#allocation3 + $0x2c0] sm:$0xff] %v2535
  %2560 = vst [vmem:[#allocation3 + $0x2c8] sm:$0xff] %v2536
  %2561 = vst [vmem:[#allocation3 + $0x2d0] sm:$0xff] %v2537
  %2562 = vst [vmem:[#allocation3 + $0x2d8] sm:$0xff] %v2538
  %2563 = vst [vmem:[#allocation3 + $0x2e0] sm:$0xff] %v2539
  %2564 = vst [vmem:[#allocation3 + $0x2e8] sm:$0xff] %v2540
  %2565 = vst [vmem:[#allocation3 + $0x2f0] sm:$0xff] %v2541
  %2566 = vst [vmem:[#allocation3 + $0x2f8] sm:$0xff] %v2542
  %2567 = vst [vmem:[#allocation3 + $0x300] sm:$0xff] %v2423
  %2568 = vst [vmem:[#allocation3 + $0x308] sm:$0xff] %v2424
  %2569 = vst [vmem:[#allocation3 + $0x310] sm:$0xff] %v2425
  %2570 = vst [vmem:[#allocation3 + $0x318] sm:$0xff] %v2426
  %2571 = vst [vmem:[#allocation3 + $0x320] sm:$0xff] %v2427
  %2572 = vst [vmem:[#allocation3 + $0x328] sm:$0xff] %v2428
  %2573 = vst [vmem:[#allocation3 + $0x330] sm:$0xff] %v2429
  %2574 = vst [vmem:[#allocation3 + $0x338] sm:$0xff] %v2430
  %2575 = vst [vmem:[#allocation3 + $0x340] sm:$0xff] %v2431
  %2576 = vst [vmem:[#allocation3 + $0x348] sm:$0xff] %v2432
  %2577 = vst [vmem:[#allocation3 + $0x350] sm:$0xff] %v2433
  %2578 = vst [vmem:[#allocation3 + $0x358] sm:$0xff] %v2434
  %2579 = vst [vmem:[#allocation3 + $0x360] sm:$0xff] %v2435
  %2580 = vst [vmem:[#allocation3 + $0x368] sm:$0xff] %v2436
  %2581 = vst [vmem:[#allocation3 + $0x370] sm:$0xff] %v2437
  %2582 = vst [vmem:[#allocation3 + $0x378] sm:$0xff] %v2438
  %2583 = vst [vmem:[#allocation3 + $0x380] sm:$0xff] %v2439
  %2584 = vst [vmem:[#allocation3 + $0x388] sm:$0xff] %v2440
  %2585 = vst [vmem:[#allocation3 + $0x390] sm:$0xff] %v2441
  %2586 = vst [vmem:[#allocation3 + $0x398] sm:$0xff] %v2442
  %2587 = vst [vmem:[#allocation3 + $0x3a0] sm:$0xff] %v2443
  %2588 = vst [vmem:[#allocation3 + $0x3a8] sm:$0xff] %v2444
  %2589 = vst [vmem:[#allocation3 + $0x3b0] sm:$0xff] %v2445
  %2590 = vst [vmem:[#allocation3 + $0x3b8] sm:$0xff] %v2446
  %2591 = vrot.lane.b32.xlu0 %v2423, 127
  %v2592 = vpop.permute.xlu0 %2591
  %2593 = vrot.lane.b32.xlu0 %v2431, 127
  %v2594 = vpop.permute.xlu0 %2593
  %2595 = vrot.lane.b32.xlu0 %v2439, 127
  %v2596 = vpop.permute.xlu0 %2595
  %2597 = vrot.lane.b32.xlu0 %v2424, 127
  %v2598 = vpop.permute.xlu0 %2597
  %2599 = vrot.lane.b32.xlu0 %v2432, 127
  %v2600 = vpop.permute.xlu0 %2599
  %2601 = vrot.lane.b32.xlu0 %v2440, 127
  %v2602 = vpop.permute.xlu0 %2601
  %2603 = vrot.lane.b32.xlu0 %v2425, 127
  %v2604 = vpop.permute.xlu0 %2603
  %2605 = vrot.lane.b32.xlu0 %v2433, 127
  %v2606 = vpop.permute.xlu0 %2605
  %2607 = vrot.lane.b32.xlu0 %v2441, 127
  %v2608 = vpop.permute.xlu0 %2607
  %2609 = vrot.lane.b32.xlu0 %v2426, 127
  %v2610 = vpop.permute.xlu0 %2609
  %2611 = vrot.lane.b32.xlu0 %v2434, 127
  %v2612 = vpop.permute.xlu0 %2611
  %2613 = vrot.lane.b32.xlu0 %v2442, 127
  %v2614 = vpop.permute.xlu0 %2613
  %2615 = vrot.lane.b32.xlu0 %v2427, 127
  %v2616 = vpop.permute.xlu0 %2615
  %2617 = vrot.lane.b32.xlu0 %v2435, 127
  %v2618 = vpop.permute.xlu0 %2617
  %2619 = vrot.lane.b32.xlu0 %v2443, 127
  %v2620 = vpop.permute.xlu0 %2619
  %2621 = vrot.lane.b32.xlu0 %v2428, 127
  %v2622 = vpop.permute.xlu0 %2621
  %2623 = vrot.lane.b32.xlu0 %v2436, 127
  %v2624 = vpop.permute.xlu0 %2623
  %2625 = vrot.lane.b32.xlu0 %v2444, 127
  %v2626 = vpop.permute.xlu0 %2625
  %2627 = vrot.lane.b32.xlu0 %v2429, 127
  %v2628 = vpop.permute.xlu0 %2627
  %2629 = vrot.lane.b32.xlu0 %v2437, 127
  %v2630 = vpop.permute.xlu0 %2629
  %2631 = vrot.lane.b32.xlu0 %v2445, 127
  %v2632 = vpop.permute.xlu0 %2631
  %2633 = vrot.lane.b32.xlu0 %v2430, 127
  %v2634 = vpop.permute.xlu0 %2633
  %2635 = vrot.lane.b32.xlu0 %v2438, 127
  %v2636 = vpop.permute.xlu0 %2635
  %2637 = vrot.lane.b32.xlu0 %v2446, 127
  %v2638 = vpop.permute.xlu0 %2637
  %v2639 = vsel %vm756, %v2628, %v2634
  %v2640 = vsel %vm756, %v2630, %v2636
  %v2641 = vsel %vm756, %v2632, %v2638
  %v2642 = vsel %vm756, %v2622, %v2628
  %v2643 = vsel %vm756, %v2624, %v2630
  %v2644 = vsel %vm756, %v2626, %v2632
  %v2645 = vsel %vm756, %v2616, %v2622
  %v2646 = vsel %vm756, %v2618, %v2624
  %v2647 = vsel %vm756, %v2620, %v2626
  %v2648 = vsel %vm756, %v2610, %v2616
  %v2649 = vsel %vm756, %v2612, %v2618
  %v2650 = vsel %vm756, %v2614, %v2620
  %v2651 = vsel %vm756, %v2604, %v2610
  %v2652 = vsel %vm756, %v2606, %v2612
  %v2653 = vsel %vm756, %v2608, %v2614
  %v2654 = vsel %vm756, %v2598, %v2604
  %v2655 = vsel %vm756, %v2600, %v2606
  %v2656 = vsel %vm756, %v2602, %v2608
  %v2657 = vsel %vm756, %v2592, %v2598
  %v2658 = vsel %vm756, %v2594, %v2600
  %v2659 = vsel %vm756, %v2596, %v2602
  %v2660 = vsel %vm756, %v2634, %v2592
  %v2661 = vsel %vm756, %v2636, %v2594
  %v2662 = vsel %vm756, %v2638, %v2596
  %v2663 = vsel %vm781, %v2657, 0.0
  %v2664 = vsel %vm782, %v2654, 0.0
  %v2665 = vsel %vm783, %v2651, 0.0
  %v2666 = vsel %vm784, %v2648, 0.0
  %v2667 = vsel %vm785, %v2645, 0.0
  %v2668 = vsel %vm786, %v2642, 0.0
  %v2669 = vsel %vm787, %v2639, 0.0
  %v2670 = vsel %vm788, %v2660, 0.0
  %v2671 = vsel %vm781, %v2658, 0.0
  %v2672 = vsel %vm782, %v2655, 0.0
  %v2673 = vsel %vm783, %v2652, 0.0
  %v2674 = vsel %vm784, %v2649, 0.0
  %v2675 = vsel %vm785, %v2646, 0.0
  %v2676 = vsel %vm786, %v2643, 0.0
  %v2677 = vsel %vm787, %v2640, 0.0
  %v2678 = vsel %vm788, %v2661, 0.0
  %v2679 = vsel %vm781, %v2659, 0.0
  %v2680 = vsel %vm782, %v2656, 0.0
  %v2681 = vsel %vm783, %v2653, 0.0
  %v2682 = vsel %vm784, %v2650, 0.0
  %v2683 = vsel %vm785, %v2647, 0.0
  %v2684 = vsel %vm786, %v2644, 0.0
  %v2685 = vsel %vm787, %v2641, 0.0
  %v2686 = vsel %vm788, %v2662, 0.0
  %2687 = vst [vmem:[#allocation3 + $0x3c0] sm:$0xff] %v2663
  %2688 = vst [vmem:[#allocation3 + $0x3c8] sm:$0xff] %v2664
  %2689 = vst [vmem:[#allocation3 + $0x3d0] sm:$0xff] %v2665
  %2690 = vst [vmem:[#allocation3 + $0x3d8] sm:$0xff] %v2666
  %2691 = vst [vmem:[#allocation3 + $0x3e0] sm:$0xff] %v2667
  %2692 = vst [vmem:[#allocation3 + $0x3e8] sm:$0xff] %v2668
  %2693 = vst [vmem:[#allocation3 + $0x3f0] sm:$0xff] %v2669
  %2694 = vst [vmem:[#allocation3 + $0x3f8] sm:$0xff] %v2670
  %2695 = vst [vmem:[#allocation3 + $0x400] sm:$0xff] %v2671
  %2696 = vst [vmem:[#allocation3 + $0x408] sm:$0xff] %v2672
  %2697 = vst [vmem:[#allocation3 + $0x410] sm:$0xff] %v2673
  %2698 = vst [vmem:[#allocation3 + $0x418] sm:$0xff] %v2674
  %2699 = vst [vmem:[#allocation3 + $0x420] sm:$0xff] %v2675
  %2700 = vst [vmem:[#allocation3 + $0x428] sm:$0xff] %v2676
  %2701 = vst [vmem:[#allocation3 + $0x430] sm:$0xff] %v2677
  %2702 = vst [vmem:[#allocation3 + $0x438] sm:$0xff] %v2678
  %2703 = vst [vmem:[#allocation3 + $0x440] sm:$0xff] %v2679
  %2704 = vst [vmem:[#allocation3 + $0x448] sm:$0xff] %v2680
  %2705 = vst [vmem:[#allocation3 + $0x450] sm:$0xff] %v2681
  %2706 = vst [vmem:[#allocation3 + $0x458] sm:$0xff] %v2682
  %2707 = vst [vmem:[#allocation3 + $0x460] sm:$0xff] %v2683
  %2708 = vst [vmem:[#allocation3 + $0x468] sm:$0xff] %v2684
  %2709 = vst [vmem:[#allocation3 + $0x470] sm:$0xff] %v2685
  %2710 = vst [vmem:[#allocation3 + $0x478] sm:$0xff] %v2686
  %v2711 = vld [vmem:[#allocation4] sm:$0xff]
  %v2712 = vld [vmem:[#allocation4 + $0x8] sm:$0xff]
  %v2713 = vld [vmem:[#allocation4 + $0x10] sm:$0xff]
  %v2714 = vld [vmem:[#allocation4 + $0x18] sm:$0xff]
  %v2715 = vld [vmem:[#allocation4 + $0x20] sm:$0xff]
  %v2716 = vld [vmem:[#allocation4 + $0x28] sm:$0xff]
  %v2717 = vld [vmem:[#allocation4 + $0x30] sm:$0xff]
  %v2718 = vld [vmem:[#allocation4 + $0x38] sm:$0xff]
  %v2719 = vld [vmem:[#allocation4 + $0x40] sm:$0xff]
  %v2720 = vld [vmem:[#allocation4 + $0x48] sm:$0xff]
  %v2721 = vld [vmem:[#allocation4 + $0x50] sm:$0xff]
  %v2722 = vld [vmem:[#allocation4 + $0x58] sm:$0xff]
  %v2723 = vld [vmem:[#allocation4 + $0x60] sm:$0xff]
  %v2724 = vld [vmem:[#allocation4 + $0x68] sm:$0xff]
  %v2725 = vld [vmem:[#allocation4 + $0x70] sm:$0xff]
  %v2726 = vld [vmem:[#allocation4 + $0x78] sm:$0xff]
  %v2727 = vld [vmem:[#allocation4 + $0x80] sm:$0xff]
  %v2728 = vld [vmem:[#allocation4 + $0x88] sm:$0xff]
  %v2729 = vld [vmem:[#allocation4 + $0x90] sm:$0xff]
  %v2730 = vld [vmem:[#allocation4 + $0x98] sm:$0xff]
  %v2731 = vld [vmem:[#allocation4 + $0xa0] sm:$0xff]
  %v2732 = vld [vmem:[#allocation4 + $0xa8] sm:$0xff]
  %v2733 = vld [vmem:[#allocation4 + $0xb0] sm:$0xff]
  %v2734 = vld [vmem:[#allocation4 + $0xb8] sm:$0xff]
  %2735 = vrot.lane.b32.xlu0 %v2711, 96
  %v2736 = vpop.permute.xlu0 %2735
  %2737 = vrot.lane.b32.xlu0 %v2719, 96
  %v2738 = vpop.permute.xlu0 %2737
  %2739 = vrot.lane.b32.xlu0 %v2727, 96
  %v2740 = vpop.permute.xlu0 %2739
  %2741 = vrot.lane.b32.xlu0 %v2712, 96
  %v2742 = vpop.permute.xlu0 %2741
  %2743 = vrot.lane.b32.xlu0 %v2720, 96
  %v2744 = vpop.permute.xlu0 %2743
  %2745 = vrot.lane.b32.xlu0 %v2728, 96
  %v2746 = vpop.permute.xlu0 %2745
  %2747 = vrot.lane.b32.xlu0 %v2713, 96
  %v2748 = vpop.permute.xlu0 %2747
  %2749 = vrot.lane.b32.xlu0 %v2721, 96
  %v2750 = vpop.permute.xlu0 %2749
  %2751 = vrot.lane.b32.xlu0 %v2729, 96
  %v2752 = vpop.permute.xlu0 %2751
  %2753 = vrot.lane.b32.xlu0 %v2714, 96
  %v2754 = vpop.permute.xlu0 %2753
  %2755 = vrot.lane.b32.xlu0 %v2722, 96
  %v2756 = vpop.permute.xlu0 %2755
  %2757 = vrot.lane.b32.xlu0 %v2730, 96
  %v2758 = vpop.permute.xlu0 %2757
  %2759 = vrot.lane.b32.xlu0 %v2715, 96
  %v2760 = vpop.permute.xlu0 %2759
  %2761 = vrot.lane.b32.xlu0 %v2723, 96
  %v2762 = vpop.permute.xlu0 %2761
  %2763 = vrot.lane.b32.xlu0 %v2731, 96
  %v2764 = vpop.permute.xlu0 %2763
  %2765 = vrot.lane.b32.xlu0 %v2716, 96
  %v2766 = vpop.permute.xlu0 %2765
  %2767 = vrot.lane.b32.xlu0 %v2724, 96
  %v2768 = vpop.permute.xlu0 %2767
  %2769 = vrot.lane.b32.xlu0 %v2732, 96
  %v2770 = vpop.permute.xlu0 %2769
  %2771 = vrot.lane.b32.xlu0 %v2717, 96
  %v2772 = vpop.permute.xlu0 %2771
  %2773 = vrot.lane.b32.xlu0 %v2725, 96
  %v2774 = vpop.permute.xlu0 %2773
  %2775 = vrot.lane.b32.xlu0 %v2733, 96
  %v2776 = vpop.permute.xlu0 %2775
  %2777 = vrot.lane.b32.xlu0 %v2718, 96
  %v2778 = vpop.permute.xlu0 %2777
  %2779 = vrot.lane.b32.xlu0 %v2726, 96
  %v2780 = vpop.permute.xlu0 %2779
  %2781 = vrot.lane.b32.xlu0 %v2734, 96
  %v2782 = vpop.permute.xlu0 %2781
  %v2783 = vsel %vm1061, %v2772, %v2778
  %v2784 = vsel %vm1061, %v2774, %v2780
  %v2785 = vsel %vm1061, %v2776, %v2782
  %v2786 = vsel %vm1061, %v2766, %v2772
  %v2787 = vsel %vm1061, %v2768, %v2774
  %v2788 = vsel %vm1061, %v2770, %v2776
  %v2789 = vsel %vm1061, %v2760, %v2766
  %v2790 = vsel %vm1061, %v2762, %v2768
  %v2791 = vsel %vm1061, %v2764, %v2770
  %v2792 = vsel %vm1061, %v2754, %v2760
  %v2793 = vsel %vm1061, %v2756, %v2762
  %v2794 = vsel %vm1061, %v2758, %v2764
  %v2795 = vsel %vm1061, %v2748, %v2754
  %v2796 = vsel %vm1061, %v2750, %v2756
  %v2797 = vsel %vm1061, %v2752, %v2758
  %v2798 = vsel %vm1061, %v2742, %v2748
  %v2799 = vsel %vm1061, %v2744, %v2750
  %v2800 = vsel %vm1061, %v2746, %v2752
  %v2801 = vsel %vm1061, %v2736, %v2742
  %v2802 = vsel %vm1061, %v2738, %v2744
  %v2803 = vsel %vm1061, %v2740, %v2746
  %v2804 = vsel %vm1061, %v2778, %v2736
  %v2805 = vsel %vm1061, %v2780, %v2738
  %v2806 = vsel %vm1061, %v2782, %v2740
  %v2807 = vsel %vm1086, %v2801, 0.0
  %v2808 = vsel %vm1087, %v2798, 0.0
  %v2809 = vsel %vm1088, %v2795, 0.0
  %v2810 = vsel %vm1089, %v2792, 0.0
  %v2811 = vsel %vm1090, %v2789, 0.0
  %v2812 = vsel %vm1091, %v2786, 0.0
  %v2813 = vsel %vm1092, %v2783, 0.0
  %v2814 = vsel %vm1093, %v2804, 0.0
  %v2815 = vsel %vm1086, %v2802, 0.0
  %v2816 = vsel %vm1087, %v2799, 0.0
  %v2817 = vsel %vm1088, %v2796, 0.0
  %v2818 = vsel %vm1089, %v2793, 0.0
  %v2819 = vsel %vm1090, %v2790, 0.0
  %v2820 = vsel %vm1091, %v2787, 0.0
  %v2821 = vsel %vm1092, %v2784, 0.0
  %v2822 = vsel %vm1093, %v2805, 0.0
  %v2823 = vsel %vm1086, %v2803, 0.0
  %v2824 = vsel %vm1087, %v2800, 0.0
  %v2825 = vsel %vm1088, %v2797, 0.0
  %v2826 = vsel %vm1089, %v2794, 0.0
  %v2827 = vsel %vm1090, %v2791, 0.0
  %v2828 = vsel %vm1091, %v2788, 0.0
  %v2829 = vsel %vm1092, %v2785, 0.0
  %v2830 = vsel %vm1093, %v2806, 0.0
  %2831 = vrot.lane.b32.xlu0 %v2807, 1
  %v2832 = vpop.permute.xlu0 %2831
  %2833 = vrot.lane.b32.xlu0 %v2815, 1
  %v2834 = vpop.permute.xlu0 %2833
  %2835 = vrot.lane.b32.xlu0 %v2823, 1
  %v2836 = vpop.permute.xlu0 %2835
  %2837 = vrot.lane.b32.xlu0 %v2808, 1
  %v2838 = vpop.permute.xlu0 %2837
  %2839 = vrot.lane.b32.xlu0 %v2816, 1
  %v2840 = vpop.permute.xlu0 %2839
  %2841 = vrot.lane.b32.xlu0 %v2824, 1
  %v2842 = vpop.permute.xlu0 %2841
  %2843 = vrot.lane.b32.xlu0 %v2809, 1
  %v2844 = vpop.permute.xlu0 %2843
  %2845 = vrot.lane.b32.xlu0 %v2817, 1
  %v2846 = vpop.permute.xlu0 %2845
  %2847 = vrot.lane.b32.xlu0 %v2825, 1
  %v2848 = vpop.permute.xlu0 %2847
  %2849 = vrot.lane.b32.xlu0 %v2810, 1
  %v2850 = vpop.permute.xlu0 %2849
  %2851 = vrot.lane.b32.xlu0 %v2818, 1
  %v2852 = vpop.permute.xlu0 %2851
  %2853 = vrot.lane.b32.xlu0 %v2826, 1
  %v2854 = vpop.permute.xlu0 %2853
  %2855 = vrot.lane.b32.xlu0 %v2811, 1
  %v2856 = vpop.permute.xlu0 %2855
  %2857 = vrot.lane.b32.xlu0 %v2819, 1
  %v2858 = vpop.permute.xlu0 %2857
  %2859 = vrot.lane.b32.xlu0 %v2827, 1
  %v2860 = vpop.permute.xlu0 %2859
  %2861 = vrot.lane.b32.xlu0 %v2812, 1
  %v2862 = vpop.permute.xlu0 %2861
  %2863 = vrot.lane.b32.xlu0 %v2820, 1
  %v2864 = vpop.permute.xlu0 %2863
  %2865 = vrot.lane.b32.xlu0 %v2828, 1
  %v2866 = vpop.permute.xlu0 %2865
  %2867 = vrot.lane.b32.xlu0 %v2813, 1
  %v2868 = vpop.permute.xlu0 %2867
  %2869 = vrot.lane.b32.xlu0 %v2821, 1
  %v2870 = vpop.permute.xlu0 %2869
  %2871 = vrot.lane.b32.xlu0 %v2829, 1
  %v2872 = vpop.permute.xlu0 %2871
  %2873 = vrot.lane.b32.xlu0 %v2814, 1
  %v2874 = vpop.permute.xlu0 %2873
  %2875 = vrot.lane.b32.xlu0 %v2822, 1
  %v2876 = vpop.permute.xlu0 %2875
  %2877 = vrot.lane.b32.xlu0 %v2830, 1
  %v2878 = vpop.permute.xlu0 %2877
  %v2879 = vsel %vm643, %v2868, %v2874
  %v2880 = vsel %vm643, %v2870, %v2876
  %v2881 = vsel %vm643, %v2872, %v2878
  %v2882 = vsel %vm643, %v2862, %v2868
  %v2883 = vsel %vm643, %v2864, %v2870
  %v2884 = vsel %vm643, %v2866, %v2872
  %v2885 = vsel %vm643, %v2856, %v2862
  %v2886 = vsel %vm643, %v2858, %v2864
  %v2887 = vsel %vm643, %v2860, %v2866
  %v2888 = vsel %vm643, %v2850, %v2856
  %v2889 = vsel %vm643, %v2852, %v2858
  %v2890 = vsel %vm643, %v2854, %v2860
  %v2891 = vsel %vm643, %v2844, %v2850
  %v2892 = vsel %vm643, %v2846, %v2852
  %v2893 = vsel %vm643, %v2848, %v2854
  %v2894 = vsel %vm643, %v2838, %v2844
  %v2895 = vsel %vm643, %v2840, %v2846
  %v2896 = vsel %vm643, %v2842, %v2848
  %v2897 = vsel %vm643, %v2832, %v2838
  %v2898 = vsel %vm643, %v2834, %v2840
  %v2899 = vsel %vm643, %v2836, %v2842
  %v2900 = vsel %vm643, %v2874, %v2832
  %v2901 = vsel %vm643, %v2876, %v2834
  %v2902 = vsel %vm643, %v2878, %v2836
  %v2903 = vsel %vm668, %v2900, 0.0
  %v2904 = vsel %vm669, %v2897, 0.0
  %v2905 = vsel %vm670, %v2894, 0.0
  %v2906 = vsel %vm671, %v2891, 0.0
  %v2907 = vsel %vm672, %v2888, 0.0
  %v2908 = vsel %vm673, %v2885, 0.0
  %v2909 = vsel %vm674, %v2882, 0.0
  %v2910 = vsel %vm675, %v2879, 0.0
  %v2911 = vsel %vm668, %v2901, 0.0
  %v2912 = vsel %vm669, %v2898, 0.0
  %v2913 = vsel %vm670, %v2895, 0.0
  %v2914 = vsel %vm671, %v2892, 0.0
  %v2915 = vsel %vm672, %v2889, 0.0
  %v2916 = vsel %vm673, %v2886, 0.0
  %v2917 = vsel %vm674, %v2883, 0.0
  %v2918 = vsel %vm675, %v2880, 0.0
  %v2919 = vsel %vm668, %v2902, 0.0
  %v2920 = vsel %vm669, %v2899, 0.0
  %v2921 = vsel %vm670, %v2896, 0.0
  %v2922 = vsel %vm671, %v2893, 0.0
  %v2923 = vsel %vm672, %v2890, 0.0
  %v2924 = vsel %vm673, %v2887, 0.0
  %v2925 = vsel %vm674, %v2884, 0.0
  %v2926 = vsel %vm675, %v2881, 0.0
  %2927 = vst [vmem:[#allocation3 + $0x480] sm:$0xff] %v2903
  %2928 = vst [vmem:[#allocation3 + $0x488] sm:$0xff] %v2904
  %2929 = vst [vmem:[#allocation3 + $0x490] sm:$0xff] %v2905
  %2930 = vst [vmem:[#allocation3 + $0x498] sm:$0xff] %v2906
  %2931 = vst [vmem:[#allocation3 + $0x4a0] sm:$0xff] %v2907
  %2932 = vst [vmem:[#allocation3 + $0x4a8] sm:$0xff] %v2908
  %2933 = vst [vmem:[#allocation3 + $0x4b0] sm:$0xff] %v2909
  %2934 = vst [vmem:[#allocation3 + $0x4b8] sm:$0xff] %v2910
  %2935 = vst [vmem:[#allocation3 + $0x4c0] sm:$0xff] %v2911
  %2936 = vst [vmem:[#allocation3 + $0x4c8] sm:$0xff] %v2912
  %2937 = vst [vmem:[#allocation3 + $0x4d0] sm:$0xff] %v2913
  %2938 = vst [vmem:[#allocation3 + $0x4d8] sm:$0xff] %v2914
  %2939 = vst [vmem:[#allocation3 + $0x4e0] sm:$0xff] %v2915
  %2940 = vst [vmem:[#allocation3 + $0x4e8] sm:$0xff] %v2916
  %2941 = vst [vmem:[#allocation3 + $0x4f0] sm:$0xff] %v2917
  %2942 = vst [vmem:[#allocation3 + $0x4f8] sm:$0xff] %v2918
  %2943 = vst [vmem:[#allocation3 + $0x500] sm:$0xff] %v2919
  %2944 = vst [vmem:[#allocation3 + $0x508] sm:$0xff] %v2920
  %2945 = vst [vmem:[#allocation3 + $0x510] sm:$0xff] %v2921
  %2946 = vst [vmem:[#allocation3 + $0x518] sm:$0xff] %v2922
  %2947 = vst [vmem:[#allocation3 + $0x520] sm:$0xff] %v2923
  %2948 = vst [vmem:[#allocation3 + $0x528] sm:$0xff] %v2924
  %2949 = vst [vmem:[#allocation3 + $0x530] sm:$0xff] %v2925
  %2950 = vst [vmem:[#allocation3 + $0x538] sm:$0xff] %v2926
  %2951 = vst [vmem:[#allocation3 + $0x540] sm:$0xff] %v2807
  %2952 = vst [vmem:[#allocation3 + $0x548] sm:$0xff] %v2808
  %2953 = vst [vmem:[#allocation3 + $0x550] sm:$0xff] %v2809
  %2954 = vst [vmem:[#allocation3 + $0x558] sm:$0xff] %v2810
  %2955 = vst [vmem:[#allocation3 + $0x560] sm:$0xff] %v2811
  %2956 = vst [vmem:[#allocation3 + $0x568] sm:$0xff] %v2812
  %2957 = vst [vmem:[#allocation3 + $0x570] sm:$0xff] %v2813
  %2958 = vst [vmem:[#allocation3 + $0x578] sm:$0xff] %v2814
  %2959 = vst [vmem:[#allocation3 + $0x580] sm:$0xff] %v2815
  %2960 = vst [vmem:[#allocation3 + $0x588] sm:$0xff] %v2816
  %2961 = vst [vmem:[#allocation3 + $0x590] sm:$0xff] %v2817
  %2962 = vst [vmem:[#allocation3 + $0x598] sm:$0xff] %v2818
  %2963 = vst [vmem:[#allocation3 + $0x5a0] sm:$0xff] %v2819
  %2964 = vst [vmem:[#allocation3 + $0x5a8] sm:$0xff] %v2820
  %2965 = vst [vmem:[#allocation3 + $0x5b0] sm:$0xff] %v2821
  %2966 = vst [vmem:[#allocation3 + $0x5b8] sm:$0xff] %v2822
  %2967 = vst [vmem:[#allocation3 + $0x5c0] sm:$0xff] %v2823
  %2968 = vst [vmem:[#allocation3 + $0x5c8] sm:$0xff] %v2824
  %2969 = vst [vmem:[#allocation3 + $0x5d0] sm:$0xff] %v2825
  %2970 = vst [vmem:[#allocation3 + $0x5d8] sm:$0xff] %v2826
  %2971 = vst [vmem:[#allocation3 + $0x5e0] sm:$0xff] %v2827
  %2972 = vst [vmem:[#allocation3 + $0x5e8] sm:$0xff] %v2828
  %2973 = vst [vmem:[#allocation3 + $0x5f0] sm:$0xff] %v2829
  %2974 = vst [vmem:[#allocation3 + $0x5f8] sm:$0xff] %v2830
  %2975 = vrot.lane.b32.xlu0 %v2807, 127
  %v2976 = vpop.permute.xlu0 %2975
  %2977 = vrot.lane.b32.xlu0 %v2815, 127
  %v2978 = vpop.permute.xlu0 %2977
  %2979 = vrot.lane.b32.xlu0 %v2823, 127
  %v2980 = vpop.permute.xlu0 %2979
  %2981 = vrot.lane.b32.xlu0 %v2808, 127
  %v2982 = vpop.permute.xlu0 %2981
  %2983 = vrot.lane.b32.xlu0 %v2816, 127
  %v2984 = vpop.permute.xlu0 %2983
  %2985 = vrot.lane.b32.xlu0 %v2824, 127
  %v2986 = vpop.permute.xlu0 %2985
  %2987 = vrot.lane.b32.xlu0 %v2809, 127
  %v2988 = vpop.permute.xlu0 %2987
  %2989 = vrot.lane.b32.xlu0 %v2817, 127
  %v2990 = vpop.permute.xlu0 %2989
  %2991 = vrot.lane.b32.xlu0 %v2825, 127
  %v2992 = vpop.permute.xlu0 %2991
  %2993 = vrot.lane.b32.xlu0 %v2810, 127
  %v2994 = vpop.permute.xlu0 %2993
  %2995 = vrot.lane.b32.xlu0 %v2818, 127
  %v2996 = vpop.permute.xlu0 %2995
  %2997 = vrot.lane.b32.xlu0 %v2826, 127
  %v2998 = vpop.permute.xlu0 %2997
  %2999 = vrot.lane.b32.xlu0 %v2811, 127
  %v3000 = vpop.permute.xlu0 %2999
  %3001 = vrot.lane.b32.xlu0 %v2819, 127
  %v3002 = vpop.permute.xlu0 %3001
  %3003 = vrot.lane.b32.xlu0 %v2827, 127
  %v3004 = vpop.permute.xlu0 %3003
  %3005 = vrot.lane.b32.xlu0 %v2812, 127
  %v3006 = vpop.permute.xlu0 %3005
  %3007 = vrot.lane.b32.xlu0 %v2820, 127
  %v3008 = vpop.permute.xlu0 %3007
  %3009 = vrot.lane.b32.xlu0 %v2828, 127
  %v3010 = vpop.permute.xlu0 %3009
  %3011 = vrot.lane.b32.xlu0 %v2813, 127
  %v3012 = vpop.permute.xlu0 %3011
  %3013 = vrot.lane.b32.xlu0 %v2821, 127
  %v3014 = vpop.permute.xlu0 %3013
  %3015 = vrot.lane.b32.xlu0 %v2829, 127
  %v3016 = vpop.permute.xlu0 %3015
  %3017 = vrot.lane.b32.xlu0 %v2814, 127
  %v3018 = vpop.permute.xlu0 %3017
  %3019 = vrot.lane.b32.xlu0 %v2822, 127
  %v3020 = vpop.permute.xlu0 %3019
  %3021 = vrot.lane.b32.xlu0 %v2830, 127
  %v3022 = vpop.permute.xlu0 %3021
  %v3023 = vsel %vm756, %v3012, %v3018
  %v3024 = vsel %vm756, %v3014, %v3020
  %v3025 = vsel %vm756, %v3016, %v3022
  %v3026 = vsel %vm756, %v3006, %v3012
  %v3027 = vsel %vm756, %v3008, %v3014
  %v3028 = vsel %vm756, %v3010, %v3016
  %v3029 = vsel %vm756, %v3000, %v3006
  %v3030 = vsel %vm756, %v3002, %v3008
  %v3031 = vsel %vm756, %v3004, %v3010
  %v3032 = vsel %vm756, %v2994, %v3000
  %v3033 = vsel %vm756, %v2996, %v3002
  %v3034 = vsel %vm756, %v2998, %v3004
  %v3035 = vsel %vm756, %v2988, %v2994
  %v3036 = vsel %vm756, %v2990, %v2996
  %v3037 = vsel %vm756, %v2992, %v2998
  %v3038 = vsel %vm756, %v2982, %v2988
  %v3039 = vsel %vm756, %v2984, %v2990
  %v3040 = vsel %vm756, %v2986, %v2992
  %v3041 = vsel %vm756, %v2976, %v2982
  %v3042 = vsel %vm756, %v2978, %v2984
  %v3043 = vsel %vm756, %v2980, %v2986
  %v3044 = vsel %vm756, %v3018, %v2976
  %v3045 = vsel %vm756, %v3020, %v2978
  %v3046 = vsel %vm756, %v3022, %v2980
  %v3047 = vsel %vm781, %v3041, 0.0
  %v3048 = vsel %vm782, %v3038, 0.0
  %v3049 = vsel %vm783, %v3035, 0.0
  %v3050 = vsel %vm784, %v3032, 0.0
  %v3051 = vsel %vm785, %v3029, 0.0
  %v3052 = vsel %vm786, %v3026, 0.0
  %v3053 = vsel %vm787, %v3023, 0.0
  %v3054 = vsel %vm788, %v3044, 0.0
  %v3055 = vsel %vm781, %v3042, 0.0
  %v3056 = vsel %vm782, %v3039, 0.0
  %v3057 = vsel %vm783, %v3036, 0.0
  %v3058 = vsel %vm784, %v3033, 0.0
  %v3059 = vsel %vm785, %v3030, 0.0
  %v3060 = vsel %vm786, %v3027, 0.0
  %v3061 = vsel %vm787, %v3024, 0.0
  %v3062 = vsel %vm788, %v3045, 0.0
  %v3063 = vsel %vm781, %v3043, 0.0
  %v3064 = vsel %vm782, %v3040, 0.0
  %v3065 = vsel %vm783, %v3037, 0.0
  %v3066 = vsel %vm784, %v3034, 0.0
  %v3067 = vsel %vm785, %v3031, 0.0
  %v3068 = vsel %vm786, %v3028, 0.0
  %v3069 = vsel %vm787, %v3025, 0.0
  %v3070 = vsel %vm788, %v3046, 0.0
  %3071 = vst [vmem:[#allocation3 + $0x600] sm:$0xff] %v3047
  %3072 = vst [vmem:[#allocation3 + $0x608] sm:$0xff] %v3048
  %3073 = vst [vmem:[#allocation3 + $0x610] sm:$0xff] %v3049
  %3074 = vst [vmem:[#allocation3 + $0x618] sm:$0xff] %v3050
  %3075 = vst [vmem:[#allocation3 + $0x620] sm:$0xff] %v3051
  %3076 = vst [vmem:[#allocation3 + $0x628] sm:$0xff] %v3052
  %3077 = vst [vmem:[#allocation3 + $0x630] sm:$0xff] %v3053
  %3078 = vst [vmem:[#allocation3 + $0x638] sm:$0xff] %v3054
  %3079 = vst [vmem:[#allocation3 + $0x640] sm:$0xff] %v3055
  %3080 = vst [vmem:[#allocation3 + $0x648] sm:$0xff] %v3056
  %3081 = vst [vmem:[#allocation3 + $0x650] sm:$0xff] %v3057
  %3082 = vst [vmem:[#allocation3 + $0x658] sm:$0xff] %v3058
  %3083 = vst [vmem:[#allocation3 + $0x660] sm:$0xff] %v3059
  %3084 = vst [vmem:[#allocation3 + $0x668] sm:$0xff] %v3060
  %3085 = vst [vmem:[#allocation3 + $0x670] sm:$0xff] %v3061
  %3086 = vst [vmem:[#allocation3 + $0x678] sm:$0xff] %v3062
  %3087 = vst [vmem:[#allocation3 + $0x680] sm:$0xff] %v3063
  %3088 = vst [vmem:[#allocation3 + $0x688] sm:$0xff] %v3064
  %3089 = vst [vmem:[#allocation3 + $0x690] sm:$0xff] %v3065
  %3090 = vst [vmem:[#allocation3 + $0x698] sm:$0xff] %v3066
  %3091 = vst [vmem:[#allocation3 + $0x6a0] sm:$0xff] %v3067
  %3092 = vst [vmem:[#allocation3 + $0x6a8] sm:$0xff] %v3068
  %3093 = vst [vmem:[#allocation3 + $0x6b0] sm:$0xff] %v3069
  %3094 = vst [vmem:[#allocation3 + $0x6b8] sm:$0xff] %v3070
  %v3095 = vld [vmem:[%s4] sm:$0xff]
  %v3096 = vld [vmem:[%s4 + $0x8] sm:$0xff]
  %v3097 = vld [vmem:[%s4 + $0x10] sm:$0xff]
  %v3098 = vld [vmem:[%s4 + $0x18] sm:$0xff]
  %v3099 = vld [vmem:[%s4 + $0x20] sm:$0xff]
  %v3100 = vld [vmem:[%s4 + $0x28] sm:$0xff]
  %v3101 = vld [vmem:[#allocation3] sm:$0xff]
  %v3102 = vld [vmem:[#allocation3 + $0x8] sm:$0xff]
  %v3103 = vld [vmem:[#allocation3 + $0x10] sm:$0xff]
  %v3104 = vld [vmem:[#allocation3 + $0x18] sm:$0xff]
  %v3105 = vld [vmem:[#allocation3 + $0x20] sm:$0xff]
  %v3106 = vld [vmem:[#allocation3 + $0x28] sm:$0xff]
  %v3107 = vld [vmem:[#allocation3 + $0x30] sm:$0xff]
  %v3108 = vld [vmem:[#allocation3 + $0x38] sm:$0xff]
  %v3109 = vld [vmem:[#allocation3 + $0x40] sm:$0xff]
  %v3110 = vld [vmem:[#allocation3 + $0x48] sm:$0xff]
  %v3111 = vld [vmem:[#allocation3 + $0x50] sm:$0xff]
  %v3112 = vld [vmem:[#allocation3 + $0x58] sm:$0xff]
  %v3113 = vld [vmem:[#allocation3 + $0x60] sm:$0xff]
  %v3114 = vld [vmem:[#allocation3 + $0x68] sm:$0xff]
  %v3115 = vld [vmem:[#allocation3 + $0x70] sm:$0xff]
  %v3116 = vld [vmem:[#allocation3 + $0x78] sm:$0xff]
  %v3117 = vld [vmem:[#allocation3 + $0x80] sm:$0xff]
  %v3118 = vld [vmem:[#allocation3 + $0x88] sm:$0xff]
  %v3119 = vld [vmem:[#allocation3 + $0x90] sm:$0xff]
  %v3120 = vld [vmem:[#allocation3 + $0x98] sm:$0xff]
  %v3121 = vld [vmem:[#allocation3 + $0xa0] sm:$0xff]
  %v3122 = vld [vmem:[#allocation3 + $0xa8] sm:$0xff]
  %v3123 = vld [vmem:[#allocation3 + $0xb0] sm:$0xff]
  %v3124 = vld [vmem:[#allocation3 + $0xb8] sm:$0xff]
  %v3125 = vld [vmem:[#allocation3 + $0xc0] sm:$0xff]
  %v3126 = vld [vmem:[#allocation3 + $0xc8] sm:$0xff]
  %v3127 = vld [vmem:[#allocation3 + $0xd0] sm:$0xff]
  %v3128 = vld [vmem:[#allocation3 + $0xd8] sm:$0xff]
  %v3129 = vld [vmem:[#allocation3 + $0xe0] sm:$0xff]
  %v3130 = vld [vmem:[#allocation3 + $0xe8] sm:$0xff]
  %v3131 = vld [vmem:[#allocation3 + $0xf0] sm:$0xff]
  %v3132 = vld [vmem:[#allocation3 + $0xf8] sm:$0xff]
  %v3133 = vld [vmem:[#allocation3 + $0x100] sm:$0xff]
  %v3134 = vld [vmem:[#allocation3 + $0x108] sm:$0xff]
  %v3135 = vld [vmem:[#allocation3 + $0x110] sm:$0xff]
  %v3136 = vld [vmem:[#allocation3 + $0x118] sm:$0xff]
  %v3137 = vld [vmem:[#allocation3 + $0x120] sm:$0xff]
  %v3138 = vld [vmem:[#allocation3 + $0x128] sm:$0xff]
  %v3139 = vld [vmem:[#allocation3 + $0x130] sm:$0xff]
  %v3140 = vld [vmem:[#allocation3 + $0x138] sm:$0xff]
  %v3141 = vld [vmem:[#allocation3 + $0x140] sm:$0xff]
  %v3142 = vld [vmem:[#allocation3 + $0x148] sm:$0xff]
  %v3143 = vld [vmem:[#allocation3 + $0x150] sm:$0xff]
  %v3144 = vld [vmem:[#allocation3 + $0x158] sm:$0xff]
  %v3145 = vld [vmem:[#allocation3 + $0x160] sm:$0xff]
  %v3146 = vld [vmem:[#allocation3 + $0x168] sm:$0xff]
  %v3147 = vld [vmem:[#allocation3 + $0x170] sm:$0xff]
  %v3148 = vld [vmem:[#allocation3 + $0x178] sm:$0xff]
  %v3149 = vld [vmem:[#allocation3 + $0x180] sm:$0xff]
  %v3150 = vld [vmem:[#allocation3 + $0x188] sm:$0xff]
  %v3151 = vld [vmem:[#allocation3 + $0x190] sm:$0xff]
  %v3152 = vld [vmem:[#allocation3 + $0x198] sm:$0xff]
  %v3153 = vld [vmem:[#allocation3 + $0x1a0] sm:$0xff]
  %v3154 = vld [vmem:[#allocation3 + $0x1a8] sm:$0xff]
  %v3155 = vld [vmem:[#allocation3 + $0x1b0] sm:$0xff]
  %v3156 = vld [vmem:[#allocation3 + $0x1b8] sm:$0xff]
  %v3157 = vld [vmem:[#allocation3 + $0x1c0] sm:$0xff]
  %v3158 = vld [vmem:[#allocation3 + $0x1c8] sm:$0xff]
  %v3159 = vld [vmem:[#allocation3 + $0x1d0] sm:$0xff]
  %v3160 = vld [vmem:[#allocation3 + $0x1d8] sm:$0xff]
  %v3161 = vld [vmem:[#allocation3 + $0x1e0] sm:$0xff]
  %v3162 = vld [vmem:[#allocation3 + $0x1e8] sm:$0xff]
  %v3163 = vld [vmem:[#allocation3 + $0x1f0] sm:$0xff]
  %v3164 = vld [vmem:[#allocation3 + $0x1f8] sm:$0xff]
  %v3165 = vld [vmem:[#allocation3 + $0x200] sm:$0xff]
  %v3166 = vld [vmem:[#allocation3 + $0x208] sm:$0xff]
  %v3167 = vld [vmem:[#allocation3 + $0x210] sm:$0xff]
  %v3168 = vld [vmem:[#allocation3 + $0x218] sm:$0xff]
  %v3169 = vld [vmem:[#allocation3 + $0x220] sm:$0xff]
  %v3170 = vld [vmem:[#allocation3 + $0x228] sm:$0xff]
  %v3171 = vld [vmem:[#allocation3 + $0x230] sm:$0xff]
  %v3172 = vld [vmem:[#allocation3 + $0x238] sm:$0xff]
  %v3173 = vld [vmem:[#allocation3 + $0x240] sm:$0xff]
  %v3174 = vld [vmem:[#allocation3 + $0x248] sm:$0xff]
  %v3175 = vld [vmem:[#allocation3 + $0x250] sm:$0xff]
  %v3176 = vld [vmem:[#allocation3 + $0x258] sm:$0xff]
  %v3177 = vld [vmem:[#allocation3 + $0x260] sm:$0xff]
  %v3178 = vld [vmem:[#allocation3 + $0x268] sm:$0xff]
  %v3179 = vld [vmem:[#allocation3 + $0x270] sm:$0xff]
  %v3180 = vld [vmem:[#allocation3 + $0x278] sm:$0xff]
  %v3181 = vld [vmem:[#allocation3 + $0x280] sm:$0xff]
  %v3182 = vld [vmem:[#allocation3 + $0x288] sm:$0xff]
  %v3183 = vld [vmem:[#allocation3 + $0x290] sm:$0xff]
  %v3184 = vld [vmem:[#allocation3 + $0x298] sm:$0xff]
  %v3185 = vld [vmem:[#allocation3 + $0x2a0] sm:$0xff]
  %v3186 = vld [vmem:[#allocation3 + $0x2a8] sm:$0xff]
  %v3187 = vld [vmem:[#allocation3 + $0x2b0] sm:$0xff]
  %v3188 = vld [vmem:[#allocation3 + $0x2b8] sm:$0xff]
  %v3189 = vld [vmem:[#allocation3 + $0x2c0] sm:$0xff]
  %v3190 = vld [vmem:[#allocation3 + $0x2c8] sm:$0xff]
  %v3191 = vld [vmem:[#allocation3 + $0x2d0] sm:$0xff]
  %v3192 = vld [vmem:[#allocation3 + $0x2d8] sm:$0xff]
  %v3193 = vld [vmem:[#allocation3 + $0x2e0] sm:$0xff]
  %v3194 = vld [vmem:[#allocation3 + $0x2e8] sm:$0xff]
  %v3195 = vld [vmem:[#allocation3 + $0x2f0] sm:$0xff]
  %v3196 = vld [vmem:[#allocation3 + $0x2f8] sm:$0xff]
  %v3197 = vld [vmem:[#allocation3 + $0x300] sm:$0xff]
  %v3198 = vld [vmem:[#allocation3 + $0x308] sm:$0xff]
  %v3199 = vld [vmem:[#allocation3 + $0x310] sm:$0xff]
  %v3200 = vld [vmem:[#allocation3 + $0x318] sm:$0xff]
  %v3201 = vld [vmem:[#allocation3 + $0x320] sm:$0xff]
  %v3202 = vld [vmem:[#allocation3 + $0x328] sm:$0xff]
  %v3203 = vld [vmem:[#allocation3 + $0x330] sm:$0xff]
  %v3204 = vld [vmem:[#allocation3 + $0x338] sm:$0xff]
  %v3205 = vld [vmem:[#allocation3 + $0x340] sm:$0xff]
  %v3206 = vld [vmem:[#allocation3 + $0x348] sm:$0xff]
  %v3207 = vld [vmem:[#allocation3 + $0x350] sm:$0xff]
  %v3208 = vld [vmem:[#allocation3 + $0x358] sm:$0xff]
  %v3209 = vld [vmem:[#allocation3 + $0x360] sm:$0xff]
  %v3210 = vld [vmem:[#allocation3 + $0x368] sm:$0xff]
  %v3211 = vld [vmem:[#allocation3 + $0x370] sm:$0xff]
  %v3212 = vld [vmem:[#allocation3 + $0x378] sm:$0xff]
  %v3213 = vld [vmem:[#allocation3 + $0x380] sm:$0xff]
  %v3214 = vld [vmem:[#allocation3 + $0x388] sm:$0xff]
  %v3215 = vld [vmem:[#allocation3 + $0x390] sm:$0xff]
  %v3216 = vld [vmem:[#allocation3 + $0x398] sm:$0xff]
  %v3217 = vld [vmem:[#allocation3 + $0x3a0] sm:$0xff]
  %v3218 = vld [vmem:[#allocation3 + $0x3a8] sm:$0xff]
  %v3219 = vld [vmem:[#allocation3 + $0x3b0] sm:$0xff]
  %v3220 = vld [vmem:[#allocation3 + $0x3b8] sm:$0xff]
  %v3221 = vld [vmem:[#allocation3 + $0x3c0] sm:$0xff]
  %v3222 = vld [vmem:[#allocation3 + $0x3c8] sm:$0xff]
  %v3223 = vld [vmem:[#allocation3 + $0x3d0] sm:$0xff]
  %v3224 = vld [vmem:[#allocation3 + $0x3d8] sm:$0xff]
  %v3225 = vld [vmem:[#allocation3 + $0x3e0] sm:$0xff]
  %v3226 = vld [vmem:[#allocation3 + $0x3e8] sm:$0xff]
  %v3227 = vld [vmem:[#allocation3 + $0x3f0] sm:$0xff]
  %v3228 = vld [vmem:[#allocation3 + $0x3f8] sm:$0xff]
  %v3229 = vld [vmem:[#allocation3 + $0x400] sm:$0xff]
  %v3230 = vld [vmem:[#allocation3 + $0x408] sm:$0xff]
  %v3231 = vld [vmem:[#allocation3 + $0x410] sm:$0xff]
  %v3232 = vld [vmem:[#allocation3 + $0x418] sm:$0xff]
  %v3233 = vld [vmem:[#allocation3 + $0x420] sm:$0xff]
  %v3234 = vld [vmem:[#allocation3 + $0x428] sm:$0xff]
  %v3235 = vld [vmem:[#allocation3 + $0x430] sm:$0xff]
  %v3236 = vld [vmem:[#allocation3 + $0x438] sm:$0xff]
  %v3237 = vld [vmem:[#allocation3 + $0x440] sm:$0xff]
  %v3238 = vld [vmem:[#allocation3 + $0x448] sm:$0xff]
  %v3239 = vld [vmem:[#allocation3 + $0x450] sm:$0xff]
  %v3240 = vld [vmem:[#allocation3 + $0x458] sm:$0xff]
  %v3241 = vld [vmem:[#allocation3 + $0x460] sm:$0xff]
  %v3242 = vld [vmem:[#allocation3 + $0x468] sm:$0xff]
  %v3243 = vld [vmem:[#allocation3 + $0x470] sm:$0xff]
  %v3244 = vld [vmem:[#allocation3 + $0x478] sm:$0xff]
  %v3245 = vld [vmem:[#allocation3 + $0x480] sm:$0xff]
  %v3246 = vld [vmem:[#allocation3 + $0x488] sm:$0xff]
  %v3247 = vld [vmem:[#allocation3 + $0x490] sm:$0xff]
  %v3248 = vld [vmem:[#allocation3 + $0x498] sm:$0xff]
  %v3249 = vld [vmem:[#allocation3 + $0x4a0] sm:$0xff]
  %v3250 = vld [vmem:[#allocation3 + $0x4a8] sm:$0xff]
  %v3251 = vld [vmem:[#allocation3 + $0x4b0] sm:$0xff]
  %v3252 = vld [vmem:[#allocation3 + $0x4b8] sm:$0xff]
  %v3253 = vld [vmem:[#allocation3 + $0x4c0] sm:$0xff]
  %v3254 = vld [vmem:[#allocation3 + $0x4c8] sm:$0xff]
  %v3255 = vld [vmem:[#allocation3 + $0x4d0] sm:$0xff]
  %v3256 = vld [vmem:[#allocation3 + $0x4d8] sm:$0xff]
  %v3257 = vld [vmem:[#allocation3 + $0x4e0] sm:$0xff]
  %v3258 = vld [vmem:[#allocation3 + $0x4e8] sm:$0xff]
  %v3259 = vld [vmem:[#allocation3 + $0x4f0] sm:$0xff]
  %v3260 = vld [vmem:[#allocation3 + $0x4f8] sm:$0xff]
  %v3261 = vld [vmem:[#allocation3 + $0x500] sm:$0xff]
  %v3262 = vld [vmem:[#allocation3 + $0x508] sm:$0xff]
  %v3263 = vld [vmem:[#allocation3 + $0x510] sm:$0xff]
  %v3264 = vld [vmem:[#allocation3 + $0x518] sm:$0xff]
  %v3265 = vld [vmem:[#allocation3 + $0x520] sm:$0xff]
  %v3266 = vld [vmem:[#allocation3 + $0x528] sm:$0xff]
  %v3267 = vld [vmem:[#allocation3 + $0x530] sm:$0xff]
  %v3268 = vld [vmem:[#allocation3 + $0x538] sm:$0xff]
  %v3269 = vld [vmem:[#allocation3 + $0x540] sm:$0xff]
  %v3270 = vld [vmem:[#allocation3 + $0x548] sm:$0xff]
  %v3271 = vld [vmem:[#allocation3 + $0x550] sm:$0xff]
  %v3272 = vld [vmem:[#allocation3 + $0x558] sm:$0xff]
  %v3273 = vld [vmem:[#allocation3 + $0x560] sm:$0xff]
  %v3274 = vld [vmem:[#allocation3 + $0x568] sm:$0xff]
  %v3275 = vld [vmem:[#allocation3 + $0x570] sm:$0xff]
  %v3276 = vld [vmem:[#allocation3 + $0x578] sm:$0xff]
  %v3277 = vld [vmem:[#allocation3 + $0x580] sm:$0xff]
  %v3278 = vld [vmem:[#allocation3 + $0x588] sm:$0xff]
  %v3279 = vld [vmem:[#allocation3 + $0x590] sm:$0xff]
  %v3280 = vld [vmem:[#allocation3 + $0x598] sm:$0xff]
  %v3281 = vld [vmem:[#allocation3 + $0x5a0] sm:$0xff]
  %v3282 = vld [vmem:[#allocation3 + $0x5a8] sm:$0xff]
  %v3283 = vld [vmem:[#allocation3 + $0x5b0] sm:$0xff]
  %v3284 = vld [vmem:[#allocation3 + $0x5b8] sm:$0xff]
  %v3285 = vld [vmem:[#allocation3 + $0x5c0] sm:$0xff]
  %v3286 = vld [vmem:[#allocation3 + $0x5c8] sm:$0xff]
  %v3287 = vld [vmem:[#allocation3 + $0x5d0] sm:$0xff]
  %v3288 = vld [vmem:[#allocation3 + $0x5d8] sm:$0xff]
  %v3289 = vld [vmem:[#allocation3 + $0x5e0] sm:$0xff]
  %v3290 = vld [vmem:[#allocation3 + $0x5e8] sm:$0xff]
  %v3291 = vld [vmem:[#allocation3 + $0x5f0] sm:$0xff]
  %v3292 = vld [vmem:[#allocation3 + $0x5f8] sm:$0xff]
  %v3293 = vld [vmem:[#allocation3 + $0x600] sm:$0xff]
  %v3294 = vld [vmem:[#allocation3 + $0x608] sm:$0xff]
  %v3295 = vld [vmem:[#allocation3 + $0x610] sm:$0xff]
  %v3296 = vld [vmem:[#allocation3 + $0x618] sm:$0xff]
  %v3297 = vld [vmem:[#allocation3 + $0x620] sm:$0xff]
  %v3298 = vld [vmem:[#allocation3 + $0x628] sm:$0xff]
  %v3299 = vld [vmem:[#allocation3 + $0x630] sm:$0xff]
  %v3300 = vld [vmem:[#allocation3 + $0x638] sm:$0xff]
  %v3301 = vld [vmem:[#allocation3 + $0x640] sm:$0xff]
  %v3302 = vld [vmem:[#allocation3 + $0x648] sm:$0xff]
  %v3303 = vld [vmem:[#allocation3 + $0x650] sm:$0xff]
  %v3304 = vld [vmem:[#allocation3 + $0x658] sm:$0xff]
  %v3305 = vld [vmem:[#allocation3 + $0x660] sm:$0xff]
  %v3306 = vld [vmem:[#allocation3 + $0x668] sm:$0xff]
  %v3307 = vld [vmem:[#allocation3 + $0x670] sm:$0xff]
  %v3308 = vld [vmem:[#allocation3 + $0x678] sm:$0xff]
  %v3309 = vld [vmem:[#allocation3 + $0x680] sm:$0xff]
  %v3310 = vld [vmem:[#allocation3 + $0x688] sm:$0xff]
  %v3311 = vld [vmem:[#allocation3 + $0x690] sm:$0xff]
  %v3312 = vld [vmem:[#allocation3 + $0x698] sm:$0xff]
  %v3313 = vld [vmem:[#allocation3 + $0x6a0] sm:$0xff]
  %v3314 = vld [vmem:[#allocation3 + $0x6a8] sm:$0xff]
  %v3315 = vld [vmem:[#allocation3 + $0x6b0] sm:$0xff]
  %v3316 = vld [vmem:[#allocation3 + $0x6b8] sm:$0xff]
  %v3317 = vld [vmem:[%s5] sm:$0xff]
  %v3318 = vld [vmem:[%s5 + $0x8] sm:$0xff]
  %v3319 = vld [vmem:[%s5 + $0x10] sm:$0xff]
  %3321 = vset.pattern.permute.xlu0 0
  %3322 = vperm.xlu0 %3321, %v3317
  %v3323 = vpop.permute.xlu0 %3322
  %3326 = vset.pattern.permute.xlu0 0
  %3327 = vperm.xlu0 %3326, %v3318
  %v3328 = vpop.permute.xlu0 %3327
  %3331 = vset.pattern.permute.xlu0 0
  %3332 = vperm.xlu0 %3331, %v3319
  %v3333 = vpop.permute.xlu0 %3332
  %vm3335 = vcmask 719872
  %v3337 = vsel %vm3335, %v3096, 0
  %v3340 = vsel %vm3335, %v3098, 0
  %v3343 = vsel %vm3335, %v3100, 0
  %3345 = vmatprep.subr.mxu0 %v3102
  %3346 = vmatpush1.msra.mxu0 %v3101
  %3347 = vmatprep.subr.mxu0 %v3110
  %3348 = vmatpush1.msra.mxu0 %v3109
  %3349 = vmatprep.subr.mxu0 %v3118
  %3350 = vmatpush1.msra.mxu0 %v3117
  %3351 = vmatprep.subr.mxu0 %v3126
  %3352 = vmatpush1.msra.mxu0 %v3125
  %3353 = vmatprep.subr.mxu0 %v3134
  %3354 = vmatpush1.msra.mxu0 %v3133
  %3355 = vmatprep.subr.mxu0 %v3142
  %3356 = vmatpush1.msra.mxu0 %v3141
  %3357 = vmatprep.subr.mxu0 %v3150
  %3358 = vmatpush1.msra.mxu0 %v3149
  %3359 = vmatprep.subr.mxu0 %v3158
  %3360 = vmatpush1.msra.mxu0 %v3157
  %3361 = vmatprep.subr.mxu0 %v3166
  %3362 = vmatpush1.msra.mxu0 %v3165
  %3363 = vmatprep.subr.mxu0 %v3174
  %3364 = vmatpush1.msra.mxu0 %v3173
  %3365 = vmatprep.subr.mxu0 %v3182
  %3366 = vmatpush1.msra.mxu0 %v3181
  %3367 = vmatprep.subr.mxu0 %v3190
  %3368 = vmatpush1.msra.mxu0 %v3189
  %3369 = vmatprep.subr.mxu0 %v3198
  %3370 = vmatpush1.msra.mxu0 %v3197
  %3371 = vmatprep.subr.mxu0 %v3206
  %3372 = vmatpush1.msra.mxu0 %v3205
  %3373 = vmatprep.subr.mxu0 %v3214
  %3374 = vmatpush1.msra.mxu0 %v3213
  %3375 = vmatprep.subr.mxu0 %v3222
  %3376 = vmatpush1.msra.mxu0 %v3221
  %3377 = vmatprep.subr.mxu0 %v3230
  %3378 = vmatpush1.msra.mxu0 %v3229
  %3379 = vmatprep.subr.mxu0 %v3238
  %3380 = vmatpush1.msra.mxu0 %v3237
  %3381 = vmatprep.subr.mxu0 %v3246
  %3382 = vmatpush1.msra.mxu0 %v3245
  %3383 = vmatprep.subr.mxu0 %v3254
  %3384 = vmatpush1.msra.mxu0 %v3253
  %3385 = vmatprep.subr.mxu0 %v3262
  %3386 = vmatpush1.msra.mxu0 %v3261
  %3387 = vmatprep.subr.mxu0 %v3270
  %3388 = vmatpush1.msra.mxu0 %v3269
  %3389 = vmatprep.subr.mxu0 %v3278
  %3390 = vmatpush1.msra.mxu0 %v3277
  %3391 = vmatprep.subr.mxu0 %v3286
  %3392 = vmatpush1.msra.mxu0 %v3285
  %3393 = vmatprep.subr.mxu0 %v3294
  %3394 = vmatpush1.msra.mxu0 %v3293
  %3395 = vmatprep.subr.mxu0 %v3302
  %3396 = vmatpush1.msra.mxu0 %v3301
  %3397 = vmatprep.subr.mxu0 %v3310
  %3398 = vmatpush1.msra.mxu0 %v3309
  %3399 = vmatprep.subr.mxu0 0.0
  %3400 = vmatpush1.msra.mxu0 0.0
  %3401 = vmatprep.subr.mxu0 0.0
  %3402 = vmatpush1.msra.mxu0 0.0
  %3403 = vmatprep.subr.mxu0 0.0
  %3404 = vmatpush1.msra.mxu0 0.0
  %3405 = vmatprep.subr.mxu0 0.0
  %3406 = vmatpush1.msra.mxu0 0.0
  %3407 = vmatprep.subr.mxu0 0.0
  %3408 = vmatpush1.msra.mxu0 0.0
  %3409 = vmatprep.mubr.f32.mxu0 %v3337
  %3410 = vmatmul.mubr.f32.gmra.mrb[0].mxu0 %v3095
  %v3411 = vpop.f32.mrb[0].mxu0
  %v3412 = vadd.f32 %v3323, %v3411
  %v3413 = vpop.f32.mrb[0].mxu0
  %v3414 = vadd.f32 %v3323, %v3413
  %3415 = vmatprep.mubr.f32.mxu0 %v3340
  %3416 = vmatmul.mubr.f32.gmra.mrb[0].mxu0 %v3097
  %v3417 = vpop.f32.mrb[0].mxu0
  %v3418 = vadd.f32 %v3328, %v3417
  %v3419 = vpop.f32.mrb[0].mxu0
  %v3420 = vadd.f32 %v3328, %v3419
  %3421 = vmatprep.mubr.f32.mxu0 %v3343
  %3422 = vmatmul.mubr.f32.gmra.mrb[0].mxu0 %v3099
  %v3423 = vpop.f32.mrb[0].mxu0
  %v3424 = vadd.f32 %v3333, %v3423
  %v3425 = vpop.f32.mrb[0].mxu0
  %v3426 = vadd.f32 %v3333, %v3425
  %3427 = vdwg.mxu0
  %3428 = vmatprep.subr.mxu0 %v3104
  %3429 = vmatpush1.msra.mxu0 %v3103
  %3430 = vmatprep.subr.mxu0 %v3112
  %3431 = vmatpush1.msra.mxu0 %v3111
  %3432 = vmatprep.subr.mxu0 %v3120
  %3433 = vmatpush1.msra.mxu0 %v3119
  %3434 = vmatprep.subr.mxu0 %v3128
  %3435 = vmatpush1.msra.mxu0 %v3127
  %3436 = vmatprep.subr.mxu0 %v3136
  %3437 = vmatpush1.msra.mxu0 %v3135
  %3438 = vmatprep.subr.mxu0 %v3144
  %3439 = vmatpush1.msra.mxu0 %v3143
  %3440 = vmatprep.subr.mxu0 %v3152
  %3441 = vmatpush1.msra.mxu0 %v3151
  %3442 = vmatprep.subr.mxu0 %v3160
  %3443 = vmatpush1.msra.mxu0 %v3159
  %3444 = vmatprep.subr.mxu0 %v3168
  %3445 = vmatpush1.msra.mxu0 %v3167
  %3446 = vmatprep.subr.mxu0 %v3176
  %3447 = vmatpush1.msra.mxu0 %v3175
  %3448 = vmatprep.subr.mxu0 %v3184
  %3449 = vmatpush1.msra.mxu0 %v3183
  %3450 = vmatprep.subr.mxu0 %v3192
  %3451 = vmatpush1.msra.mxu0 %v3191
  %3452 = vmatprep.subr.mxu0 %v3200
  %3453 = vmatpush1.msra.mxu0 %v3199
  %3454 = vmatprep.subr.mxu0 %v3208
  %3455 = vmatpush1.msra.mxu0 %v3207
  %3456 = vmatprep.subr.mxu0 %v3216
  %3457 = vmatpush1.msra.mxu0 %v3215
  %3458 = vmatprep.subr.mxu0 %v3224
  %3459 = vmatpush1.msra.mxu0 %v3223
  %3460 = vmatprep.subr.mxu0 %v3232
  %3461 = vmatpush1.msra.mxu0 %v3231
  %3462 = vmatprep.subr.mxu0 %v3240
  %3463 = vmatpush1.msra.mxu0 %v3239
  %3464 = vmatprep.subr.mxu0 %v3248
  %3465 = vmatpush1.msra.mxu0 %v3247
  %3466 = vmatprep.subr.mxu0 %v3256
  %3467 = vmatpush1.msra.mxu0 %v3255
  %3468 = vmatprep.subr.mxu0 %v3264
  %3469 = vmatpush1.msra.mxu0 %v3263
  %3470 = vmatprep.subr.mxu0 %v3272
  %3471 = vmatpush1.msra.mxu0 %v3271
  %3472 = vmatprep.subr.mxu0 %v3280
  %3473 = vmatpush1.msra.mxu0 %v3279
  %3474 = vmatprep.subr.mxu0 %v3288
  %3475 = vmatpush1.msra.mxu0 %v3287
  %3476 = vmatprep.subr.mxu0 %v3296
  %3477 = vmatpush1.msra.mxu0 %v3295
  %3478 = vmatprep.subr.mxu0 %v3304
  %3479 = vmatpush1.msra.mxu0 %v3303
  %3480 = vmatprep.subr.mxu0 %v3312
  %3481 = vmatpush1.msra.mxu0 %v3311
  %3482 = vmatprep.subr.mxu0 0.0
  %3483 = vmatpush1.msra.mxu0 0.0
  %3484 = vmatprep.subr.mxu0 0.0
  %3485 = vmatpush1.msra.mxu0 0.0
  %3486 = vmatprep.subr.mxu0 0.0
  %3487 = vmatpush1.msra.mxu0 0.0
  %3488 = vmatprep.subr.mxu0 0.0
  %3489 = vmatpush1.msra.mxu0 0.0
  %3490 = vmatprep.subr.mxu0 0.0
  %3491 = vmatpush1.msra.mxu0 0.0
  %3492 = vmatprep.mubr.f32.mxu0 %v3337
  %3493 = vmatmul.mubr.f32.gmra.mrb[0].mxu0 %v3095
  %v3494 = vpop.f32.mrb[0].mxu0
  %v3495 = vadd.f32 %v3323, %v3494
  %v3496 = vpop.f32.mrb[0].mxu0
  %v3497 = vadd.f32 %v3323, %v3496
  %3498 = vmatprep.mubr.f32.mxu0 %v3340
  %3499 = vmatmul.mubr.f32.gmra.mrb[0].mxu0 %v3097
  %v3500 = vpop.f32.mrb[0].mxu0
  %v3501 = vadd.f32 %v3328, %v3500
  %v3502 = vpop.f32.mrb[0].mxu0
  %v3503 = vadd.f32 %v3328, %v3502
  %3504 = vmatprep.mubr.f32.mxu0 %v3343
  %3505 = vmatmul.mubr.f32.gmra.mrb[0].mxu0 %v3099
  %v3506 = vpop.f32.mrb[0].mxu0
  %v3507 = vadd.f32 %v3333, %v3506
  %v3508 = vpop.f32.mrb[0].mxu0
  %v3509 = vadd.f32 %v3333, %v3508
  %3510 = vdwg.mxu0
  %3511 = vmatprep.subr.mxu0 %v3106
  %3512 = vmatpush1.msra.mxu0 %v3105
  %3513 = vmatprep.subr.mxu0 %v3114
  %3514 = vmatpush1.msra.mxu0 %v3113
  %3515 = vmatprep.subr.mxu0 %v3122
  %3516 = vmatpush1.msra.mxu0 %v3121
  %3517 = vmatprep.subr.mxu0 %v3130
  %3518 = vmatpush1.msra.mxu0 %v3129
  %3519 = vmatprep.subr.mxu0 %v3138
  %3520 = vmatpush1.msra.mxu0 %v3137
  %3521 = vmatprep.subr.mxu0 %v3146
  %3522 = vmatpush1.msra.mxu0 %v3145
  %3523 = vmatprep.subr.mxu0 %v3154
  %3524 = vmatpush1.msra.mxu0 %v3153
  %3525 = vmatprep.subr.mxu0 %v3162
  %3526 = vmatpush1.msra.mxu0 %v3161
  %3527 = vmatprep.subr.mxu0 %v3170
  %3528 = vmatpush1.msra.mxu0 %v3169
  %3529 = vmatprep.subr.mxu0 %v3178
  %3530 = vmatpush1.msra.mxu0 %v3177
  %3531 = vmatprep.subr.mxu0 %v3186
  %3532 = vmatpush1.msra.mxu0 %v3185
  %3533 = vmatprep.subr.mxu0 %v3194
  %3534 = vmatpush1.msra.mxu0 %v3193
  %3535 = vmatprep.subr.mxu0 %v3202
  %3536 = vmatpush1.msra.mxu0 %v3201
  %3537 = vmatprep.subr.mxu0 %v3210
  %3538 = vmatpush1.msra.mxu0 %v3209
  %3539 = vmatprep.subr.mxu0 %v3218
  %3540 = vmatpush1.msra.mxu0 %v3217
  %3541 = vmatprep.subr.mxu0 %v3226
  %3542 = vmatpush1.msra.mxu0 %v3225
  %3543 = vmatprep.subr.mxu0 %v3234
  %3544 = vmatpush1.msra.mxu0 %v3233
  %3545 = vmatprep.subr.mxu0 %v3242
  %3546 = vmatpush1.msra.mxu0 %v3241
  %3547 = vmatprep.subr.mxu0 %v3250
  %3548 = vmatpush1.msra.mxu0 %v3249
  %3549 = vmatprep.subr.mxu0 %v3258
  %3550 = vmatpush1.msra.mxu0 %v3257
  %3551 = vmatprep.subr.mxu0 %v3266
  %3552 = vmatpush1.msra.mxu0 %v3265
  %3553 = vmatprep.subr.mxu0 %v3274
  %3554 = vmatpush1.msra.mxu0 %v3273
  %3555 = vmatprep.subr.mxu0 %v3282
  %3556 = vmatpush1.msra.mxu0 %v3281
  %3557 = vmatprep.subr.mxu0 %v3290
  %3558 = vmatpush1.msra.mxu0 %v3289
  %3559 = vmatprep.subr.mxu0 %v3298
  %3560 = vmatpush1.msra.mxu0 %v3297
  %3561 = vmatprep.subr.mxu0 %v3306
  %3562 = vmatpush1.msra.mxu0 %v3305
  %3563 = vmatprep.subr.mxu0 %v3314
  %3564 = vmatpush1.msra.mxu0 %v3313
  %3565 = vmatprep.subr.mxu0 0.0
  %3566 = vmatpush1.msra.mxu0 0.0
  %3567 = vmatprep.subr.mxu0 0.0
  %3568 = vmatpush1.msra.mxu0 0.0
  %3569 = vmatprep.subr.mxu0 0.0
  %3570 = vmatpush1.msra.mxu0 0.0
  %3571 = vmatprep.subr.mxu0 0.0
  %3572 = vmatpush1.msra.mxu0 0.0
  %3573 = vmatprep.subr.mxu0 0.0
  %3574 = vmatpush1.msra.mxu0 0.0
  %3575 = vmatprep.mubr.f32.mxu0 %v3337
  %3576 = vmatmul.mubr.f32.gmra.mrb[0].mxu0 %v3095
  %v3577 = vpop.f32.mrb[0].mxu0
  %v3578 = vadd.f32 %v3323, %v3577
  %v3579 = vpop.f32.mrb[0].mxu0
  %v3580 = vadd.f32 %v3323, %v3579
  %3581 = vmatprep.mubr.f32.mxu0 %v3340
  %3582 = vmatmul.mubr.f32.gmra.mrb[0].mxu0 %v3097
  %v3583 = vpop.f32.mrb[0].mxu0
  %v3584 = vadd.f32 %v3328, %v3583
  %v3585 = vpop.f32.mrb[0].mxu0
  %v3586 = vadd.f32 %v3328, %v3585
  %3587 = vmatprep.mubr.f32.mxu0 %v3343
  %3588 = vmatmul.mubr.f32.gmra.mrb[0].mxu0 %v3099
  %v3589 = vpop.f32.mrb[0].mxu0
  %v3590 = vadd.f32 %v3333, %v3589
  %v3591 = vpop.f32.mrb[0].mxu0
  %v3592 = vadd.f32 %v3333, %v3591
  %3593 = vdwg.mxu0
  %3594 = vmatprep.subr.mxu0 %v3108
  %3595 = vmatpush1.msra.mxu0 %v3107
  %3596 = vmatprep.subr.mxu0 %v3116
  %3597 = vmatpush1.msra.mxu0 %v3115
  %3598 = vmatprep.subr.mxu0 %v3124
  %3599 = vmatpush1.msra.mxu0 %v3123
  %3600 = vmatprep.subr.mxu0 %v3132
  %3601 = vmatpush1.msra.mxu0 %v3131
  %3602 = vmatprep.subr.mxu0 %v3140
  %3603 = vmatpush1.msra.mxu0 %v3139
  %3604 = vmatprep.subr.mxu0 %v3148
  %3605 = vmatpush1.msra.mxu0 %v3147
  %3606 = vmatprep.subr.mxu0 %v3156
  %3607 = vmatpush1.msra.mxu0 %v3155
  %3608 = vmatprep.subr.mxu0 %v3164
  %3609 = vmatpush1.msra.mxu0 %v3163
  %3610 = vmatprep.subr.mxu0 %v3172
  %3611 = vmatpush1.msra.mxu0 %v3171
  %3612 = vmatprep.subr.mxu0 %v3180
  %3613 = vmatpush1.msra.mxu0 %v3179
  %3614 = vmatprep.subr.mxu0 %v3188
  %3615 = vmatpush1.msra.mxu0 %v3187
  %3616 = vmatprep.subr.mxu0 %v3196
  %3617 = vmatpush1.msra.mxu0 %v3195
  %3618 = vmatprep.subr.mxu0 %v3204
  %3619 = vmatpush1.msra.mxu0 %v3203
  %3620 = vmatprep.subr.mxu0 %v3212
  %3621 = vmatpush1.msra.mxu0 %v3211
  %3622 = vmatprep.subr.mxu0 %v3220
  %3623 = vmatpush1.msra.mxu0 %v3219
  %3624 = vmatprep.subr.mxu0 %v3228
  %3625 = vmatpush1.msra.mxu0 %v3227
  %3626 = vmatprep.subr.mxu0 %v3236
  %3627 = vmatpush1.msra.mxu0 %v3235
  %3628 = vmatprep.subr.mxu0 %v3244
  %3629 = vmatpush1.msra.mxu0 %v3243
  %3630 = vmatprep.subr.mxu0 %v3252
  %3631 = vmatpush1.msra.mxu0 %v3251
  %3632 = vmatprep.subr.mxu0 %v3260
  %3633 = vmatpush1.msra.mxu0 %v3259
  %3634 = vmatprep.subr.mxu0 %v3268
  %3635 = vmatpush1.msra.mxu0 %v3267
  %3636 = vmatprep.subr.mxu0 %v3276
  %3637 = vmatpush1.msra.mxu0 %v3275
  %3638 = vmatprep.subr.mxu0 %v3284
  %3639 = vmatpush1.msra.mxu0 %v3283
  %3640 = vmatprep.subr.mxu0 %v3292
  %3641 = vmatpush1.msra.mxu0 %v3291
  %3642 = vmatprep.subr.mxu0 %v3300
  %3643 = vmatpush1.msra.mxu0 %v3299
  %3644 = vmatprep.subr.mxu0 %v3308
  %3645 = vmatpush1.msra.mxu0 %v3307
  %3646 = vmatprep.subr.mxu0 %v3316
  %3647 = vmatpush1.msra.mxu0 %v3315
  %3648 = vmatprep.subr.mxu0 0.0
  %3649 = vmatpush1.msra.mxu0 0.0
  %3650 = vmatprep.subr.mxu0 0.0
  %3651 = vmatpush1.msra.mxu0 0.0
  %3652 = vmatprep.subr.mxu0 0.0
  %3653 = vmatpush1.msra.mxu0 0.0
  %3654 = vmatprep.subr.mxu0 0.0
  %3655 = vmatpush1.msra.mxu0 0.0
  %3656 = vmatprep.subr.mxu0 0.0
  %3657 = vmatpush1.msra.mxu0 0.0
  %3658 = vmatprep.mubr.f32.mxu0 %v3337
  %3659 = vmatmul.mubr.f32.gmra.mrb[0].mxu0 %v3095
  %v3660 = vpop.f32.mrb[0].mxu0
  %v3661 = vadd.f32 %v3323, %v3660
  %v3662 = vpop.f32.mrb[0].mxu0
  %v3663 = vadd.f32 %v3323, %v3662
  %3664 = vmatprep.mubr.f32.mxu0 %v3340
  %3665 = vmatmul.mubr.f32.gmra.mrb[0].mxu0 %v3097
  %v3666 = vpop.f32.mrb[0].mxu0
  %v3667 = vadd.f32 %v3328, %v3666
  %v3668 = vpop.f32.mrb[0].mxu0
  %v3669 = vadd.f32 %v3328, %v3668
  %3670 = vmatprep.mubr.f32.mxu0 %v3343
  %3671 = vmatmul.mubr.f32.gmra.mrb[0].mxu0 %v3099
  %v3672 = vpop.f32.mrb[0].mxu0
  %v3673 = vadd.f32 %v3333, %v3672
  %v3674 = vpop.f32.mrb[0].mxu0
  %v3675 = vadd.f32 %v3333, %v3674
  %3676 = vdwg.mxu0
  %v3677 = vadd.f32 %v3412, %v3414
  %v3678 = vadd.f32 %v3677, %v3495
  %v3679 = vadd.f32 %v3678, %v3497
  %v3680 = vadd.f32 %v3679, %v3578
  %v3681 = vadd.f32 %v3680, %v3580
  %v3682 = vadd.f32 %v3681, %v3661
  %v3683 = vadd.f32 %v3682, %v3663
  %3684 = vadd.xlane.f32.xlu0 %v3683
  %v3685 = vpop.xlane.xlu0 %3684
  %v3686 = vadd.f32 %v3418, %v3420
  %v3687 = vadd.f32 %v3686, %v3501
  %v3688 = vadd.f32 %v3687, %v3503
  %v3689 = vadd.f32 %v3688, %v3584
  %v3690 = vadd.f32 %v3689, %v3586
  %v3691 = vadd.f32 %v3690, %v3667
  %v3692 = vadd.f32 %v3691, %v3669
  %3693 = vadd.xlane.f32.xlu0 %v3692
  %v3694 = vpop.xlane.xlu0 %3693
  %v3695 = vadd.f32 %v3424, %v3426
  %v3696 = vadd.f32 %v3695, %v3507
  %v3697 = vadd.f32 %v3696, %v3509
  %v3698 = vadd.f32 %v3697, %v3590
  %v3699 = vadd.f32 %v3698, %v3592
  %v3700 = vadd.f32 %v3699, %v3673
  %v3701 = vadd.f32 %v3700, %v3675
  %3702 = vadd.xlane.f32.xlu0 %v3701
  %v3703 = vpop.xlane.xlu0 %3702
  %v3704 = vmul.f32 %v3412, %v3412
  %v3705 = vmul.f32 %v3414, %v3414
  %v3706 = vmul.f32 %v3495, %v3495
  %v3707 = vmul.f32 %v3497, %v3497
  %v3708 = vmul.f32 %v3578, %v3578
  %v3709 = vmul.f32 %v3580, %v3580
  %v3710 = vmul.f32 %v3661, %v3661
  %v3711 = vmul.f32 %v3663, %v3663
  %v3712 = vmul.f32 %v3418, %v3418
  %v3713 = vmul.f32 %v3420, %v3420
  %v3714 = vmul.f32 %v3501, %v3501
  %v3715 = vmul.f32 %v3503, %v3503
  %v3716 = vmul.f32 %v3584, %v3584
  %v3717 = vmul.f32 %v3586, %v3586
  %v3718 = vmul.f32 %v3667, %v3667
  %v3719 = vmul.f32 %v3669, %v3669
  %v3720 = vmul.f32 %v3424, %v3424
  %v3721 = vmul.f32 %v3426, %v3426
  %v3722 = vmul.f32 %v3507, %v3507
  %v3723 = vmul.f32 %v3509, %v3509
  %v3724 = vmul.f32 %v3590, %v3590
  %v3725 = vmul.f32 %v3592, %v3592
  %v3726 = vmul.f32 %v3673, %v3673
  %v3727 = vmul.f32 %v3675, %v3675
  %v3728 = vadd.f32 %v3704, %v3705
  %v3729 = vadd.f32 %v3728, %v3706
  %v3730 = vadd.f32 %v3729, %v3707
  %v3731 = vadd.f32 %v3730, %v3708
  %v3732 = vadd.f32 %v3731, %v3709
  %v3733 = vadd.f32 %v3732, %v3710
  %v3734 = vadd.f32 %v3733, %v3711
  %3735 = vadd.xlane.f32.xlu0 %v3734
  %v3736 = vpop.xlane.xlu0 %3735
  %v3737 = vadd.f32 %v3712, %v3713
  %v3738 = vadd.f32 %v3737, %v3714
  %v3739 = vadd.f32 %v3738, %v3715
  %v3740 = vadd.f32 %v3739, %v3716
  %v3741 = vadd.f32 %v3740, %v3717
  %v3742 = vadd.f32 %v3741, %v3718
  %v3743 = vadd.f32 %v3742, %v3719
  %3744 = vadd.xlane.f32.xlu0 %v3743
  %v3745 = vpop.xlane.xlu0 %3744
  %v3746 = vadd.f32 %v3720, %v3721
  %v3747 = vadd.f32 %v3746, %v3722
  %v3748 = vadd.f32 %v3747, %v3723
  %v3749 = vadd.f32 %v3748, %v3724
  %v3750 = vadd.f32 %v3749, %v3725
  %v3751 = vadd.f32 %v3750, %v3726
  %v3752 = vadd.f32 %v3751, %v3727
  %3753 = vadd.xlane.f32.xlu0 %v3752
  %v3754 = vpop.xlane.xlu0 %3753
  %v3755 = vmul.f32 %v3685, 0.0009765625
  %v3756 = vmul.f32 %v3694, 0.0009765625
  %v3757 = vmul.f32 %v3703, 0.0009765625
  %v3758 = vmul.f32 %v3736, 0.0009765625
  %v3759 = vmul.f32 %v3745, 0.0009765625
  %v3760 = vmul.f32 %v3754, 0.0009765625
  %v3761 = vmul.f32 %v3755, %v3755
  %v3762 = vmul.f32 %v3756, %v3756
  %v3763 = vmul.f32 %v3757, %v3757
  %v3764 = vsub.f32 %v3758, %v3761
  %v3765 = vsub.f32 %v3759, %v3762
  %v3766 = vsub.f32 %v3760, %v3763
  %v3767 = vmax.f32 %v3764, 0.0
  %v3768 = vmax.f32 %v3765, 0.0
  %v3769 = vmax.f32 %v3766, 0.0
  %v3770 = vsub.f32 %v3412, %v3755
  %v3771 = vsub.f32 %v3414, %v3755
  %v3772 = vsub.f32 %v3495, %v3755
  %v3773 = vsub.f32 %v3497, %v3755
  %v3774 = vsub.f32 %v3578, %v3755
  %v3775 = vsub.f32 %v3580, %v3755
  %v3776 = vsub.f32 %v3661, %v3755
  %v3777 = vsub.f32 %v3663, %v3755
  %v3778 = vsub.f32 %v3418, %v3756
  %v3779 = vsub.f32 %v3420, %v3756
  %v3780 = vsub.f32 %v3501, %v3756
  %v3781 = vsub.f32 %v3503, %v3756
  %v3782 = vsub.f32 %v3584, %v3756
  %v3783 = vsub.f32 %v3586, %v3756
  %v3784 = vsub.f32 %v3667, %v3756
  %v3785 = vsub.f32 %v3669, %v3756
  %v3786 = vsub.f32 %v3424, %v3757
  %v3787 = vsub.f32 %v3426, %v3757
  %v3788 = vsub.f32 %v3507, %v3757
  %v3789 = vsub.f32 %v3509, %v3757
  %v3790 = vsub.f32 %v3590, %v3757
  %v3791 = vsub.f32 %v3592, %v3757
  %v3792 = vsub.f32 %v3673, %v3757
  %v3793 = vsub.f32 %v3675, %v3757
  %v3794 = vadd.f32 %v3767, 1e-05
  %v3795 = vadd.f32 %v3768, 1e-05
  %v3796 = vadd.f32 %v3769, 1e-05
  %v3797 = vrsqrt.pop %v3794
  %v3798 = vrsqrt.pop %v3795
  %v3799 = vrsqrt.pop %v3796
  %v3800 = vmul.f32 %v3770, %v3797
  %v3801 = vmul.f32 %v3771, %v3797
  %v3802 = vmul.f32 %v3772, %v3797
  %v3803 = vmul.f32 %v3773, %v3797
  %v3804 = vmul.f32 %v3774, %v3797
  %v3805 = vmul.f32 %v3775, %v3797
  %v3806 = vmul.f32 %v3776, %v3797
  %v3807 = vmul.f32 %v3777, %v3797
  %v3808 = vmul.f32 %v3778, %v3798
  %v3809 = vmul.f32 %v3779, %v3798
  %v3810 = vmul.f32 %v3780, %v3798
  %v3811 = vmul.f32 %v3781, %v3798
  %v3812 = vmul.f32 %v3782, %v3798
  %v3813 = vmul.f32 %v3783, %v3798
  %v3814 = vmul.f32 %v3784, %v3798
  %v3815 = vmul.f32 %v3785, %v3798
  %v3816 = vmul.f32 %v3786, %v3799
  %v3817 = vmul.f32 %v3787, %v3799
  %v3818 = vmul.f32 %v3788, %v3799
  %v3819 = vmul.f32 %v3789, %v3799
  %v3820 = vmul.f32 %v3790, %v3799
  %v3821 = vmul.f32 %v3791, %v3799
  %v3822 = vmul.f32 %v3792, %v3799
  %v3823 = vmul.f32 %v3793, %v3799
  %vm3824 = vcmp.ge.f32.partialorder %v3800, 0.0
  %vm3825 = vcmp.ge.f32.partialorder %v3801, 0.0
  %vm3826 = vcmp.ge.f32.partialorder %v3802, 0.0
  %vm3827 = vcmp.ge.f32.partialorder %v3803, 0.0
  %vm3828 = vcmp.ge.f32.partialorder %v3804, 0.0
  %vm3829 = vcmp.ge.f32.partialorder %v3805, 0.0
  %vm3830 = vcmp.ge.f32.partialorder %v3806, 0.0
  %vm3831 = vcmp.ge.f32.partialorder %v3807, 0.0
  %vm3832 = vcmp.ge.f32.partialorder %v3808, 0.0
  %vm3833 = vcmp.ge.f32.partialorder %v3809, 0.0
  %vm3834 = vcmp.ge.f32.partialorder %v3810, 0.0
  %vm3835 = vcmp.ge.f32.partialorder %v3811, 0.0
  %vm3836 = vcmp.ge.f32.partialorder %v3812, 0.0
  %vm3837 = vcmp.ge.f32.partialorder %v3813, 0.0
  %vm3838 = vcmp.ge.f32.partialorder %v3814, 0.0
  %vm3839 = vcmp.ge.f32.partialorder %v3815, 0.0
  %vm3840 = vcmp.ge.f32.partialorder %v3816, 0.0
  %vm3841 = vcmp.ge.f32.partialorder %v3817, 0.0
  %vm3842 = vcmp.ge.f32.partialorder %v3818, 0.0
  %vm3843 = vcmp.ge.f32.partialorder %v3819, 0.0
  %vm3844 = vcmp.ge.f32.partialorder %v3820, 0.0
  %vm3845 = vcmp.ge.f32.partialorder %v3821, 0.0
  %vm3846 = vcmp.ge.f32.partialorder %v3822, 0.0
  %vm3847 = vcmp.ge.f32.partialorder %v3823, 0.0
  %v3848 = vmul.f32 %v465, %v3800
  %v3849 = vmul.f32 %v465, %v3801
  %v3850 = vmul.f32 %v465, %v3802
  %v3851 = vmul.f32 %v465, %v3803
  %v3852 = vmul.f32 %v465, %v3804
  %v3853 = vmul.f32 %v465, %v3805
  %v3854 = vmul.f32 %v465, %v3806
  %v3855 = vmul.f32 %v465, %v3807
  %v3856 = vmul.f32 %v465, %v3808
  %v3857 = vmul.f32 %v465, %v3809
  %v3858 = vmul.f32 %v465, %v3810
  %v3859 = vmul.f32 %v465, %v3811
  %v3860 = vmul.f32 %v465, %v3812
  %v3861 = vmul.f32 %v465, %v3813
  %v3862 = vmul.f32 %v465, %v3814
  %v3863 = vmul.f32 %v465, %v3815
  %v3864 = vmul.f32 %v465, %v3816
  %v3865 = vmul.f32 %v465, %v3817
  %v3866 = vmul.f32 %v465, %v3818
  %v3867 = vmul.f32 %v465, %v3819
  %v3868 = vmul.f32 %v465, %v3820
  %v3869 = vmul.f32 %v465, %v3821
  %v3870 = vmul.f32 %v465, %v3822
  %v3871 = vmul.f32 %v465, %v3823
  %v3872 = vsel %vm3824, %v3800, %v3848
  %v3873 = vsel %vm3825, %v3801, %v3849
  %v3874 = vsel %vm3826, %v3802, %v3850
  %v3875 = vsel %vm3827, %v3803, %v3851
  %v3876 = vsel %vm3828, %v3804, %v3852
  %v3877 = vsel %vm3829, %v3805, %v3853
  %v3878 = vsel %vm3830, %v3806, %v3854
  %v3879 = vsel %vm3831, %v3807, %v3855
  %v3880 = vsel %vm3832, %v3808, %v3856
  %v3881 = vsel %vm3833, %v3809, %v3857
  %v3882 = vsel %vm3834, %v3810, %v3858
  %v3883 = vsel %vm3835, %v3811, %v3859
  %v3884 = vsel %vm3836, %v3812, %v3860
  %v3885 = vsel %vm3837, %v3813, %v3861
  %v3886 = vsel %vm3838, %v3814, %v3862
  %v3887 = vsel %vm3839, %v3815, %v3863
  %v3888 = vsel %vm3840, %v3816, %v3864
  %v3889 = vsel %vm3841, %v3817, %v3865
  %v3890 = vsel %vm3842, %v3818, %v3866
  %v3891 = vsel %vm3843, %v3819, %v3867
  %v3892 = vsel %vm3844, %v3820, %v3868
  %v3893 = vsel %vm3845, %v3821, %v3869
  %v3894 = vsel %vm3846, %v3822, %v3870
  %v3895 = vsel %vm3847, %v3823, %v3871
  %3896 = vst [vmem:[#allocation4] sm:$0xff] %v3872
  %3897 = vst [vmem:[#allocation4 + $0x8] sm:$0xff] %v3873
  %3898 = vst [vmem:[#allocation4 + $0x10] sm:$0xff] %v3874
  %3899 = vst [vmem:[#allocation4 + $0x18] sm:$0xff] %v3875
  %3900 = vst [vmem:[#allocation4 + $0x20] sm:$0xff] %v3876
  %3901 = vst [vmem:[#allocation4 + $0x28] sm:$0xff] %v3877
  %3902 = vst [vmem:[#allocation4 + $0x30] sm:$0xff] %v3878
  %3903 = vst [vmem:[#allocation4 + $0x38] sm:$0xff] %v3879
  %3904 = vst [vmem:[#allocation4 + $0x40] sm:$0xff] %v3880
  %3905 = vst [vmem:[#allocation4 + $0x48] sm:$0xff] %v3881
  %3906 = vst [vmem:[#allocation4 + $0x50] sm:$0xff] %v3882
  %3907 = vst [vmem:[#allocation4 + $0x58] sm:$0xff] %v3883
  %3908 = vst [vmem:[#allocation4 + $0x60] sm:$0xff] %v3884
  %3909 = vst [vmem:[#allocation4 + $0x68] sm:$0xff] %v3885
  %3910 = vst [vmem:[#allocation4 + $0x70] sm:$0xff] %v3886
  %3911 = vst [vmem:[#allocation4 + $0x78] sm:$0xff] %v3887
  %3912 = vst [vmem:[#allocation4 + $0x80] sm:$0xff] %v3888
  %3913 = vst [vmem:[#allocation4 + $0x88] sm:$0xff] %v3889
  %3914 = vst [vmem:[#allocation4 + $0x90] sm:$0xff] %v3890
  %3915 = vst [vmem:[#allocation4 + $0x98] sm:$0xff] %v3891
  %3916 = vst [vmem:[#allocation4 + $0xa0] sm:$0xff] %v3892
  %3917 = vst [vmem:[#allocation4 + $0xa8] sm:$0xff] %v3893
  %3918 = vst [vmem:[#allocation4 + $0xb0] sm:$0xff] %v3894
  %3919 = vst [vmem:[#allocation4 + $0xb8] sm:$0xff] %v3895
  %v3920 = vld [vmem:[#allocation4] sm:$0xff]
  %v3921 = vld [vmem:[#allocation4 + $0x8] sm:$0xff]
  %v3922 = vld [vmem:[#allocation4 + $0x10] sm:$0xff]
  %v3923 = vld [vmem:[#allocation4 + $0x18] sm:$0xff]
  %v3924 = vld [vmem:[#allocation4 + $0x20] sm:$0xff]
  %v3925 = vld [vmem:[#allocation4 + $0x28] sm:$0xff]
  %v3926 = vld [vmem:[#allocation4 + $0x30] sm:$0xff]
  %v3927 = vld [vmem:[#allocation4 + $0x38] sm:$0xff]
  %v3928 = vld [vmem:[#allocation4 + $0x40] sm:$0xff]
  %v3929 = vld [vmem:[#allocation4 + $0x48] sm:$0xff]
  %v3930 = vld [vmem:[#allocation4 + $0x50] sm:$0xff]
  %v3931 = vld [vmem:[#allocation4 + $0x58] sm:$0xff]
  %v3932 = vld [vmem:[#allocation4 + $0x60] sm:$0xff]
  %v3933 = vld [vmem:[#allocation4 + $0x68] sm:$0xff]
  %v3934 = vld [vmem:[#allocation4 + $0x70] sm:$0xff]
  %v3935 = vld [vmem:[#allocation4 + $0x78] sm:$0xff]
  %v3936 = vld [vmem:[#allocation4 + $0x80] sm:$0xff]
  %v3937 = vld [vmem:[#allocation4 + $0x88] sm:$0xff]
  %v3938 = vld [vmem:[#allocation4 + $0x90] sm:$0xff]
  %v3939 = vld [vmem:[#allocation4 + $0x98] sm:$0xff]
  %v3940 = vld [vmem:[#allocation4 + $0xa0] sm:$0xff]
  %v3941 = vld [vmem:[#allocation4 + $0xa8] sm:$0xff]
  %v3942 = vld [vmem:[#allocation4 + $0xb0] sm:$0xff]
  %v3943 = vld [vmem:[#allocation4 + $0xb8] sm:$0xff]
  %3944 = vrot.lane.b32.xlu0 %v3920, 32
  %v3945 = vpop.permute.xlu0 %3944
  %3946 = vrot.lane.b32.xlu0 %v3928, 32
  %v3947 = vpop.permute.xlu0 %3946
  %3948 = vrot.lane.b32.xlu0 %v3936, 32
  %v3949 = vpop.permute.xlu0 %3948
  %3950 = vrot.lane.b32.xlu0 %v3921, 32
  %v3951 = vpop.permute.xlu0 %3950
  %3952 = vrot.lane.b32.xlu0 %v3929, 32
  %v3953 = vpop.permute.xlu0 %3952
  %3954 = vrot.lane.b32.xlu0 %v3937, 32
  %v3955 = vpop.permute.xlu0 %3954
  %3956 = vrot.lane.b32.xlu0 %v3922, 32
  %v3957 = vpop.permute.xlu0 %3956
  %3958 = vrot.lane.b32.xlu0 %v3930, 32
  %v3959 = vpop.permute.xlu0 %3958
  %3960 = vrot.lane.b32.xlu0 %v3938, 32
  %v3961 = vpop.permute.xlu0 %3960
  %3962 = vrot.lane.b32.xlu0 %v3923, 32
  %v3963 = vpop.permute.xlu0 %3962
  %3964 = vrot.lane.b32.xlu0 %v3931, 32
  %v3965 = vpop.permute.xlu0 %3964
  %3966 = vrot.lane.b32.xlu0 %v3939, 32
  %v3967 = vpop.permute.xlu0 %3966
  %3968 = vrot.lane.b32.xlu0 %v3924, 32
  %v3969 = vpop.permute.xlu0 %3968
  %3970 = vrot.lane.b32.xlu0 %v3932, 32
  %v3971 = vpop.permute.xlu0 %3970
  %3972 = vrot.lane.b32.xlu0 %v3940, 32
  %v3973 = vpop.permute.xlu0 %3972
  %3974 = vrot.lane.b32.xlu0 %v3925, 32
  %v3975 = vpop.permute.xlu0 %3974
  %3976 = vrot.lane.b32.xlu0 %v3933, 32
  %v3977 = vpop.permute.xlu0 %3976
  %3978 = vrot.lane.b32.xlu0 %v3941, 32
  %v3979 = vpop.permute.xlu0 %3978
  %3980 = vrot.lane.b32.xlu0 %v3926, 32
  %v3981 = vpop.permute.xlu0 %3980
  %3982 = vrot.lane.b32.xlu0 %v3934, 32
  %v3983 = vpop.permute.xlu0 %3982
  %3984 = vrot.lane.b32.xlu0 %v3942, 32
  %v3985 = vpop.permute.xlu0 %3984
  %3986 = vrot.lane.b32.xlu0 %v3927, 32
  %v3987 = vpop.permute.xlu0 %3986
  %3988 = vrot.lane.b32.xlu0 %v3935, 32
  %v3989 = vpop.permute.xlu0 %3988
  %3990 = vrot.lane.b32.xlu0 %v3943, 32
  %v3991 = vpop.permute.xlu0 %3990
  %v3992 = vsel %vm562, %v3981, %v3987
  %v3993 = vsel %vm562, %v3983, %v3989
  %v3994 = vsel %vm562, %v3985, %v3991
  %v3995 = vsel %vm562, %v3975, %v3981
  %v3996 = vsel %vm562, %v3977, %v3983
  %v3997 = vsel %vm562, %v3979, %v3985
  %v3998 = vsel %vm562, %v3969, %v3975
  %v3999 = vsel %vm562, %v3971, %v3977
  %v4000 = vsel %vm562, %v3973, %v3979
  %v4001 = vsel %vm562, %v3963, %v3969
  %v4002 = vsel %vm562, %v3965, %v3971
  %v4003 = vsel %vm562, %v3967, %v3973
  %v4004 = vsel %vm562, %v3957, %v3963
  %v4005 = vsel %vm562, %v3959, %v3965
  %v4006 = vsel %vm562, %v3961, %v3967
  %v4007 = vsel %vm562, %v3951, %v3957
  %v4008 = vsel %vm562, %v3953, %v3959
  %v4009 = vsel %vm562, %v3955, %v3961
  %v4010 = vsel %vm562, %v3945, %v3951
  %v4011 = vsel %vm562, %v3947, %v3953
  %v4012 = vsel %vm562, %v3949, %v3955
  %v4013 = vsel %vm562, %v3987, %v3945
  %v4014 = vsel %vm562, %v3989, %v3947
  %v4015 = vsel %vm562, %v3991, %v3949
  %v4016 = vsel %vm587, %v4013, 0.0
  %v4017 = vsel %vm588, %v4010, 0.0
  %v4018 = vsel %vm589, %v4007, 0.0
  %v4019 = vsel %vm590, %v4004, 0.0
  %v4020 = vsel %vm591, %v4001, 0.0
  %v4021 = vsel %vm592, %v3998, 0.0
  %v4022 = vsel %vm593, %v3995, 0.0
  %v4023 = vsel %vm594, %v3992, 0.0
  %v4024 = vsel %vm587, %v4014, 0.0
  %v4025 = vsel %vm588, %v4011, 0.0
  %v4026 = vsel %vm589, %v4008, 0.0
  %v4027 = vsel %vm590, %v4005, 0.0
  %v4028 = vsel %vm591, %v4002, 0.0
  %v4029 = vsel %vm592, %v3999, 0.0
  %v4030 = vsel %vm593, %v3996, 0.0
  %v4031 = vsel %vm594, %v3993, 0.0
  %v4032 = vsel %vm587, %v4015, 0.0
  %v4033 = vsel %vm588, %v4012, 0.0
  %v4034 = vsel %vm589, %v4009, 0.0
  %v4035 = vsel %vm590, %v4006, 0.0
  %v4036 = vsel %vm591, %v4003, 0.0
  %v4037 = vsel %vm592, %v4000, 0.0
  %v4038 = vsel %vm593, %v3997, 0.0
  %v4039 = vsel %vm594, %v3994, 0.0
  %4040 = vrot.lane.b32.xlu0 %v4016, 1
  %v4041 = vpop.permute.xlu0 %4040
  %4042 = vrot.lane.b32.xlu0 %v4024, 1
  %v4043 = vpop.permute.xlu0 %4042
  %4044 = vrot.lane.b32.xlu0 %v4032, 1
  %v4045 = vpop.permute.xlu0 %4044
  %4046 = vrot.lane.b32.xlu0 %v4017, 1
  %v4047 = vpop.permute.xlu0 %4046
  %4048 = vrot.lane.b32.xlu0 %v4025, 1
  %v4049 = vpop.permute.xlu0 %4048
  %4050 = vrot.lane.b32.xlu0 %v4033, 1
  %v4051 = vpop.permute.xlu0 %4050
  %4052 = vrot.lane.b32.xlu0 %v4018, 1
  %v4053 = vpop.permute.xlu0 %4052
  %4054 = vrot.lane.b32.xlu0 %v4026, 1
  %v4055 = vpop.permute.xlu0 %4054
  %4056 = vrot.lane.b32.xlu0 %v4034, 1
  %v4057 = vpop.permute.xlu0 %4056
  %4058 = vrot.lane.b32.xlu0 %v4019, 1
  %v4059 = vpop.permute.xlu0 %4058
  %4060 = vrot.lane.b32.xlu0 %v4027, 1
  %v4061 = vpop.permute.xlu0 %4060
  %4062 = vrot.lane.b32.xlu0 %v4035, 1
  %v4063 = vpop.permute.xlu0 %4062
  %4064 = vrot.lane.b32.xlu0 %v4020, 1
  %v4065 = vpop.permute.xlu0 %4064
  %4066 = vrot.lane.b32.xlu0 %v4028, 1
  %v4067 = vpop.permute.xlu0 %4066
  %4068 = vrot.lane.b32.xlu0 %v4036, 1
  %v4069 = vpop.permute.xlu0 %4068
  %4070 = vrot.lane.b32.xlu0 %v4021, 1
  %v4071 = vpop.permute.xlu0 %4070
  %4072 = vrot.lane.b32.xlu0 %v4029, 1
  %v4073 = vpop.permute.xlu0 %4072
  %4074 = vrot.lane.b32.xlu0 %v4037, 1
  %v4075 = vpop.permute.xlu0 %4074
  %4076 = vrot.lane.b32.xlu0 %v4022, 1
  %v4077 = vpop.permute.xlu0 %4076
  %4078 = vrot.lane.b32.xlu0 %v4030, 1
  %v4079 = vpop.permute.xlu0 %4078
  %4080 = vrot.lane.b32.xlu0 %v4038, 1
  %v4081 = vpop.permute.xlu0 %4080
  %4082 = vrot.lane.b32.xlu0 %v4023, 1
  %v4083 = vpop.permute.xlu0 %4082
  %4084 = vrot.lane.b32.xlu0 %v4031, 1
  %v4085 = vpop.permute.xlu0 %4084
  %4086 = vrot.lane.b32.xlu0 %v4039, 1
  %v4087 = vpop.permute.xlu0 %4086
  %v4088 = vsel %vm643, %v4077, %v4083
  %v4089 = vsel %vm643, %v4079, %v4085
  %v4090 = vsel %vm643, %v4081, %v4087
  %v4091 = vsel %vm643, %v4071, %v4077
  %v4092 = vsel %vm643, %v4073, %v4079
  %v4093 = vsel %vm643, %v4075, %v4081
  %v4094 = vsel %vm643, %v4065, %v4071
  %v4095 = vsel %vm643, %v4067, %v4073
  %v4096 = vsel %vm643, %v4069, %v4075
  %v4097 = vsel %vm643, %v4059, %v4065
  %v4098 = vsel %vm643, %v4061, %v4067
  %v4099 = vsel %vm643, %v4063, %v4069
  %v4100 = vsel %vm643, %v4053, %v4059
  %v4101 = vsel %vm643, %v4055, %v4061
  %v4102 = vsel %vm643, %v4057, %v4063
  %v4103 = vsel %vm643, %v4047, %v4053
  %v4104 = vsel %vm643, %v4049, %v4055
  %v4105 = vsel %vm643, %v4051, %v4057
  %v4106 = vsel %vm643, %v4041, %v4047
  %v4107 = vsel %vm643, %v4043, %v4049
  %v4108 = vsel %vm643, %v4045, %v4051
  %v4109 = vsel %vm643, %v4083, %v4041
  %v4110 = vsel %vm643, %v4085, %v4043
  %v4111 = vsel %vm643, %v4087, %v4045
  %v4112 = vsel %vm668, %v4109, 0.0
  %v4113 = vsel %vm669, %v4106, 0.0
  %v4114 = vsel %vm670, %v4103, 0.0
  %v4115 = vsel %vm671, %v4100, 0.0
  %v4116 = vsel %vm672, %v4097, 0.0
  %v4117 = vsel %vm673, %v4094, 0.0
  %v4118 = vsel %vm674, %v4091, 0.0
  %v4119 = vsel %vm675, %v4088, 0.0
  %v4120 = vsel %vm668, %v4110, 0.0
  %v4121 = vsel %vm669, %v4107, 0.0
  %v4122 = vsel %vm670, %v4104, 0.0
  %v4123 = vsel %vm671, %v4101, 0.0
  %v4124 = vsel %vm672, %v4098, 0.0
  %v4125 = vsel %vm673, %v4095, 0.0
  %v4126 = vsel %vm674, %v4092, 0.0
  %v4127 = vsel %vm675, %v4089, 0.0
  %v4128 = vsel %vm668, %v4111, 0.0
  %v4129 = vsel %vm669, %v4108, 0.0
  %v4130 = vsel %vm670, %v4105, 0.0
  %v4131 = vsel %vm671, %v4102, 0.0
  %v4132 = vsel %vm672, %v4099, 0.0
  %v4133 = vsel %vm673, %v4096, 0.0
  %v4134 = vsel %vm674, %v4093, 0.0
  %v4135 = vsel %vm675, %v4090, 0.0
  %4136 = vst [vmem:[#allocation3] sm:$0xff] %v4112
  %4137 = vst [vmem:[#allocation3 + $0x8] sm:$0xff] %v4113
  %4138 = vst [vmem:[#allocation3 + $0x10] sm:$0xff] %v4114
  %4139 = vst [vmem:[#allocation3 + $0x18] sm:$0xff] %v4115
  %4140 = vst [vmem:[#allocation3 + $0x20] sm:$0xff] %v4116
  %4141 = vst [vmem:[#allocation3 + $0x28] sm:$0xff] %v4117
  %4142 = vst [vmem:[#allocation3 + $0x30] sm:$0xff] %v4118
  %4143 = vst [vmem:[#allocation3 + $0x38] sm:$0xff] %v4119
  %4144 = vst [vmem:[#allocation3 + $0x40] sm:$0xff] %v4120
  %4145 = vst [vmem:[#allocation3 + $0x48] sm:$0xff] %v4121
  %4146 = vst [vmem:[#allocation3 + $0x50] sm:$0xff] %v4122
  %4147 = vst [vmem:[#allocation3 + $0x58] sm:$0xff] %v4123
  %4148 = vst [vmem:[#allocation3 + $0x60] sm:$0xff] %v4124
  %4149 = vst [vmem:[#allocation3 + $0x68] sm:$0xff] %v4125
  %4150 = vst [vmem:[#allocation3 + $0x70] sm:$0xff] %v4126
  %4151 = vst [vmem:[#allocation3 + $0x78] sm:$0xff] %v4127
  %4152 = vst [vmem:[#allocation3 + $0x80] sm:$0xff] %v4128
  %4153 = vst [vmem:[#allocation3 + $0x88] sm:$0xff] %v4129
  %4154 = vst [vmem:[#allocation3 + $0x90] sm:$0xff] %v4130
  %4155 = vst [vmem:[#allocation3 + $0x98] sm:$0xff] %v4131
  %4156 = vst [vmem:[#allocation3 + $0xa0] sm:$0xff] %v4132
  %4157 = vst [vmem:[#allocation3 + $0xa8] sm:$0xff] %v4133
  %4158 = vst [vmem:[#allocation3 + $0xb0] sm:$0xff] %v4134
  %4159 = vst [vmem:[#allocation3 + $0xb8] sm:$0xff] %v4135
  %4160 = vst [vmem:[#allocation3 + $0xc0] sm:$0xff] %v4016
  %4161 = vst [vmem:[#allocation3 + $0xc8] sm:$0xff] %v4017
  %4162 = vst [vmem:[#allocation3 + $0xd0] sm:$0xff] %v4018
  %4163 = vst [vmem:[#allocation3 + $0xd8] sm:$0xff] %v4019
  %4164 = vst [vmem:[#allocation3 + $0xe0] sm:$0xff] %v4020
  %4165 = vst [vmem:[#allocation3 + $0xe8] sm:$0xff] %v4021
  %4166 = vst [vmem:[#allocation3 + $0xf0] sm:$0xff] %v4022
  %4167 = vst [vmem:[#allocation3 + $0xf8] sm:$0xff] %v4023
  %4168 = vst [vmem:[#allocation3 + $0x100] sm:$0xff] %v4024
  %4169 = vst [vmem:[#allocation3 + $0x108] sm:$0xff] %v4025
  %4170 = vst [vmem:[#allocation3 + $0x110] sm:$0xff] %v4026
  %4171 = vst [vmem:[#allocation3 + $0x118] sm:$0xff] %v4027
  %4172 = vst [vmem:[#allocation3 + $0x120] sm:$0xff] %v4028
  %4173 = vst [vmem:[#allocation3 + $0x128] sm:$0xff] %v4029
  %4174 = vst [vmem:[#allocation3 + $0x130] sm:$0xff] %v4030
  %4175 = vst [vmem:[#allocation3 + $0x138] sm:$0xff] %v4031
  %4176 = vst [vmem:[#allocation3 + $0x140] sm:$0xff] %v4032
  %4177 = vst [vmem:[#allocation3 + $0x148] sm:$0xff] %v4033
  %4178 = vst [vmem:[#allocation3 + $0x150] sm:$0xff] %v4034
  %4179 = vst [vmem:[#allocation3 + $0x158] sm:$0xff] %v4035
  %4180 = vst [vmem:[#allocation3 + $0x160] sm:$0xff] %v4036
  %4181 = vst [vmem:[#allocation3 + $0x168] sm:$0xff] %v4037
  %4182 = vst [vmem:[#allocation3 + $0x170] sm:$0xff] %v4038
  %4183 = vst [vmem:[#allocation3 + $0x178] sm:$0xff] %v4039
  %4184 = vrot.lane.b32.xlu0 %v4016, 127
  %v4185 = vpop.permute.xlu0 %4184
  %4186 = vrot.lane.b32.xlu0 %v4024, 127
  %v4187 = vpop.permute.xlu0 %4186
  %4188 = vrot.lane.b32.xlu0 %v4032, 127
  %v4189 = vpop.permute.xlu0 %4188
  %4190 = vrot.lane.b32.xlu0 %v4017, 127
  %v4191 = vpop.permute.xlu0 %4190
  %4192 = vrot.lane.b32.xlu0 %v4025, 127
  %v4193 = vpop.permute.xlu0 %4192
  %4194 = vrot.lane.b32.xlu0 %v4033, 127
  %v4195 = vpop.permute.xlu0 %4194
  %4196 = vrot.lane.b32.xlu0 %v4018, 127
  %v4197 = vpop.permute.xlu0 %4196
  %4198 = vrot.lane.b32.xlu0 %v4026, 127
  %v4199 = vpop.permute.xlu0 %4198
  %4200 = vrot.lane.b32.xlu0 %v4034, 127
  %v4201 = vpop.permute.xlu0 %4200
  %4202 = vrot.lane.b32.xlu0 %v4019, 127
  %v4203 = vpop.permute.xlu0 %4202
  %4204 = vrot.lane.b32.xlu0 %v4027, 127
  %v4205 = vpop.permute.xlu0 %4204
  %4206 = vrot.lane.b32.xlu0 %v4035, 127
  %v4207 = vpop.permute.xlu0 %4206
  %4208 = vrot.lane.b32.xlu0 %v4020, 127
  %v4209 = vpop.permute.xlu0 %4208
  %4210 = vrot.lane.b32.xlu0 %v4028, 127
  %v4211 = vpop.permute.xlu0 %4210
  %4212 = vrot.lane.b32.xlu0 %v4036, 127
  %v4213 = vpop.permute.xlu0 %4212
  %4214 = vrot.lane.b32.xlu0 %v4021, 127
  %v4215 = vpop.permute.xlu0 %4214
  %4216 = vrot.lane.b32.xlu0 %v4029, 127
  %v4217 = vpop.permute.xlu0 %4216
  %4218 = vrot.lane.b32.xlu0 %v4037, 127
  %v4219 = vpop.permute.xlu0 %4218
  %4220 = vrot.lane.b32.xlu0 %v4022, 127
  %v4221 = vpop.permute.xlu0 %4220
  %4222 = vrot.lane.b32.xlu0 %v4030, 127
  %v4223 = vpop.permute.xlu0 %4222
  %4224 = vrot.lane.b32.xlu0 %v4038, 127
  %v4225 = vpop.permute.xlu0 %4224
  %4226 = vrot.lane.b32.xlu0 %v4023, 127
  %v4227 = vpop.permute.xlu0 %4226
  %4228 = vrot.lane.b32.xlu0 %v4031, 127
  %v4229 = vpop.permute.xlu0 %4228
  %4230 = vrot.lane.b32.xlu0 %v4039, 127
  %v4231 = vpop.permute.xlu0 %4230
  %v4232 = vsel %vm756, %v4221, %v4227
  %v4233 = vsel %vm756, %v4223, %v4229
  %v4234 = vsel %vm756, %v4225, %v4231
  %v4235 = vsel %vm756, %v4215, %v4221
  %v4236 = vsel %vm756, %v4217, %v4223
  %v4237 = vsel %vm756, %v4219, %v4225
  %v4238 = vsel %vm756, %v4209, %v4215
  %v4239 = vsel %vm756, %v4211, %v4217
  %v4240 = vsel %vm756, %v4213, %v4219
  %v4241 = vsel %vm756, %v4203, %v4209
  %v4242 = vsel %vm756, %v4205, %v4211
  %v4243 = vsel %vm756, %v4207, %v4213
  %v4244 = vsel %vm756, %v4197, %v4203
  %v4245 = vsel %vm756, %v4199, %v4205
  %v4246 = vsel %vm756, %v4201, %v4207
  %v4247 = vsel %vm756, %v4191, %v4197
  %v4248 = vsel %vm756, %v4193, %v4199
  %v4249 = vsel %vm756, %v4195, %v4201
  %v4250 = vsel %vm756, %v4185, %v4191
  %v4251 = vsel %vm756, %v4187, %v4193
  %v4252 = vsel %vm756, %v4189, %v4195
  %v4253 = vsel %vm756, %v4227, %v4185
  %v4254 = vsel %vm756, %v4229, %v4187
  %v4255 = vsel %vm756, %v4231, %v4189
  %v4256 = vsel %vm781, %v4250, 0.0
  %v4257 = vsel %vm782, %v4247, 0.0
  %v4258 = vsel %vm783, %v4244, 0.0
  %v4259 = vsel %vm784, %v4241, 0.0
  %v4260 = vsel %vm785, %v4238, 0.0
  %v4261 = vsel %vm786, %v4235, 0.0
  %v4262 = vsel %vm787, %v4232, 0.0
  %v4263 = vsel %vm788, %v4253, 0.0
  %v4264 = vsel %vm781, %v4251, 0.0
  %v4265 = vsel %vm782, %v4248, 0.0
  %v4266 = vsel %vm783, %v4245, 0.0
  %v4267 = vsel %vm784, %v4242, 0.0
  %v4268 = vsel %vm785, %v4239, 0.0
  %v4269 = vsel %vm786, %v4236, 0.0
  %v4270 = vsel %vm787, %v4233, 0.0
  %v4271 = vsel %vm788, %v4254, 0.0
  %v4272 = vsel %vm781, %v4252, 0.0
  %v4273 = vsel %vm782, %v4249, 0.0
  %v4274 = vsel %vm783, %v4246, 0.0
  %v4275 = vsel %vm784, %v4243, 0.0
  %v4276 = vsel %vm785, %v4240, 0.0
  %v4277 = vsel %vm786, %v4237, 0.0
  %v4278 = vsel %vm787, %v4234, 0.0
  %v4279 = vsel %vm788, %v4255, 0.0
  %4280 = vst [vmem:[#allocation3 + $0x180] sm:$0xff] %v4256
  %4281 = vst [vmem:[#allocation3 + $0x188] sm:$0xff] %v4257
  %4282 = vst [vmem:[#allocation3 + $0x190] sm:$0xff] %v4258
  %4283 = vst [vmem:[#allocation3 + $0x198] sm:$0xff] %v4259
  %4284 = vst [vmem:[#allocation3 + $0x1a0] sm:$0xff] %v4260
  %4285 = vst [vmem:[#allocation3 + $0x1a8] sm:$0xff] %v4261
  %4286 = vst [vmem:[#allocation3 + $0x1b0] sm:$0xff] %v4262
  %4287 = vst [vmem:[#allocation3 + $0x1b8] sm:$0xff] %v4263
  %4288 = vst [vmem:[#allocation3 + $0x1c0] sm:$0xff] %v4264
  %4289 = vst [vmem:[#allocation3 + $0x1c8] sm:$0xff] %v4265
  %4290 = vst [vmem:[#allocation3 + $0x1d0] sm:$0xff] %v4266
  %4291 = vst [vmem:[#allocation3 + $0x1d8] sm:$0xff] %v4267
  %4292 = vst [vmem:[#allocation3 + $0x1e0] sm:$0xff] %v4268
  %4293 = vst [vmem:[#allocation3 + $0x1e8] sm:$0xff] %v4269
  %4294 = vst [vmem:[#allocation3 + $0x1f0] sm:$0xff] %v4270
  %4295 = vst [vmem:[#allocation3 + $0x1f8] sm:$0xff] %v4271
  %4296 = vst [vmem:[#allocation3 + $0x200] sm:$0xff] %v4272
  %4297 = vst [vmem:[#allocation3 + $0x208] sm:$0xff] %v4273
  %4298 = vst [vmem:[#allocation3 + $0x210] sm:$0xff] %v4274
  %4299 = vst [vmem:[#allocation3 + $0x218] sm:$0xff] %v4275
  %4300 = vst [vmem:[#allocation3 + $0x220] sm:$0xff] %v4276
  %4301 = vst [vmem:[#allocation3 + $0x228] sm:$0xff] %v4277
  %4302 = vst [vmem:[#allocation3 + $0x230] sm:$0xff] %v4278
  %4303 = vst [vmem:[#allocation3 + $0x238] sm:$0xff] %v4279
  %v4304 = vld [vmem:[#allocation4] sm:$0xff]
  %v4305 = vld [vmem:[#allocation4 + $0x8] sm:$0xff]
  %v4306 = vld [vmem:[#allocation4 + $0x10] sm:$0xff]
  %v4307 = vld [vmem:[#allocation4 + $0x18] sm:$0xff]
  %v4308 = vld [vmem:[#allocation4 + $0x20] sm:$0xff]
  %v4309 = vld [vmem:[#allocation4 + $0x28] sm:$0xff]
  %v4310 = vld [vmem:[#allocation4 + $0x30] sm:$0xff]
  %v4311 = vld [vmem:[#allocation4 + $0x38] sm:$0xff]
  %v4312 = vld [vmem:[#allocation4 + $0x40] sm:$0xff]
  %v4313 = vld [vmem:[#allocation4 + $0x48] sm:$0xff]
  %v4314 = vld [vmem:[#allocation4 + $0x50] sm:$0xff]
  %v4315 = vld [vmem:[#allocation4 + $0x58] sm:$0xff]
  %v4316 = vld [vmem:[#allocation4 + $0x60] sm:$0xff]
  %v4317 = vld [vmem:[#allocation4 + $0x68] sm:$0xff]
  %v4318 = vld [vmem:[#allocation4 + $0x70] sm:$0xff]
  %v4319 = vld [vmem:[#allocation4 + $0x78] sm:$0xff]
  %v4320 = vld [vmem:[#allocation4 + $0x80] sm:$0xff]
  %v4321 = vld [vmem:[#allocation4 + $0x88] sm:$0xff]
  %v4322 = vld [vmem:[#allocation4 + $0x90] sm:$0xff]
  %v4323 = vld [vmem:[#allocation4 + $0x98] sm:$0xff]
  %v4324 = vld [vmem:[#allocation4 + $0xa0] sm:$0xff]
  %v4325 = vld [vmem:[#allocation4 + $0xa8] sm:$0xff]
  %v4326 = vld [vmem:[#allocation4 + $0xb0] sm:$0xff]
  %v4327 = vld [vmem:[#allocation4 + $0xb8] sm:$0xff]
  %4328 = vrot.lane.b32.xlu0 %v4304, 1
  %v4329 = vpop.permute.xlu0 %4328
  %4330 = vrot.lane.b32.xlu0 %v4312, 1
  %v4331 = vpop.permute.xlu0 %4330
  %4332 = vrot.lane.b32.xlu0 %v4320, 1
  %v4333 = vpop.permute.xlu0 %4332
  %4334 = vrot.lane.b32.xlu0 %v4305, 1
  %v4335 = vpop.permute.xlu0 %4334
  %4336 = vrot.lane.b32.xlu0 %v4313, 1
  %v4337 = vpop.permute.xlu0 %4336
  %4338 = vrot.lane.b32.xlu0 %v4321, 1
  %v4339 = vpop.permute.xlu0 %4338
  %4340 = vrot.lane.b32.xlu0 %v4306, 1
  %v4341 = vpop.permute.xlu0 %4340
  %4342 = vrot.lane.b32.xlu0 %v4314, 1
  %v4343 = vpop.permute.xlu0 %4342
  %4344 = vrot.lane.b32.xlu0 %v4322, 1
  %v4345 = vpop.permute.xlu0 %4344
  %4346 = vrot.lane.b32.xlu0 %v4307, 1
  %v4347 = vpop.permute.xlu0 %4346
  %4348 = vrot.lane.b32.xlu0 %v4315, 1
  %v4349 = vpop.permute.xlu0 %4348
  %4350 = vrot.lane.b32.xlu0 %v4323, 1
  %v4351 = vpop.permute.xlu0 %4350
  %4352 = vrot.lane.b32.xlu0 %v4308, 1
  %v4353 = vpop.permute.xlu0 %4352
  %4354 = vrot.lane.b32.xlu0 %v4316, 1
  %v4355 = vpop.permute.xlu0 %4354
  %4356 = vrot.lane.b32.xlu0 %v4324, 1
  %v4357 = vpop.permute.xlu0 %4356
  %4358 = vrot.lane.b32.xlu0 %v4309, 1
  %v4359 = vpop.permute.xlu0 %4358
  %4360 = vrot.lane.b32.xlu0 %v4317, 1
  %v4361 = vpop.permute.xlu0 %4360
  %4362 = vrot.lane.b32.xlu0 %v4325, 1
  %v4363 = vpop.permute.xlu0 %4362
  %4364 = vrot.lane.b32.xlu0 %v4310, 1
  %v4365 = vpop.permute.xlu0 %4364
  %4366 = vrot.lane.b32.xlu0 %v4318, 1
  %v4367 = vpop.permute.xlu0 %4366
  %4368 = vrot.lane.b32.xlu0 %v4326, 1
  %v4369 = vpop.permute.xlu0 %4368
  %4370 = vrot.lane.b32.xlu0 %v4311, 1
  %v4371 = vpop.permute.xlu0 %4370
  %4372 = vrot.lane.b32.xlu0 %v4319, 1
  %v4373 = vpop.permute.xlu0 %4372
  %4374 = vrot.lane.b32.xlu0 %v4327, 1
  %v4375 = vpop.permute.xlu0 %4374
  %v4376 = vsel %vm643, %v4365, %v4371
  %v4377 = vsel %vm643, %v4367, %v4373
  %v4378 = vsel %vm643, %v4369, %v4375
  %v4379 = vsel %vm643, %v4359, %v4365
  %v4380 = vsel %vm643, %v4361, %v4367
  %v4381 = vsel %vm643, %v4363, %v4369
  %v4382 = vsel %vm643, %v4353, %v4359
  %v4383 = vsel %vm643, %v4355, %v4361
  %v4384 = vsel %vm643, %v4357, %v4363
  %v4385 = vsel %vm643, %v4347, %v4353
  %v4386 = vsel %vm643, %v4349, %v4355
  %v4387 = vsel %vm643, %v4351, %v4357
  %v4388 = vsel %vm643, %v4341, %v4347
  %v4389 = vsel %vm643, %v4343, %v4349
  %v4390 = vsel %vm643, %v4345, %v4351
  %v4391 = vsel %vm643, %v4335, %v4341
  %v4392 = vsel %vm643, %v4337, %v4343
  %v4393 = vsel %vm643, %v4339, %v4345
  %v4394 = vsel %vm643, %v4329, %v4335
  %v4395 = vsel %vm643, %v4331, %v4337
  %v4396 = vsel %vm643, %v4333, %v4339
  %v4397 = vsel %vm643, %v4371, %v4329
  %v4398 = vsel %vm643, %v4373, %v4331
  %v4399 = vsel %vm643, %v4375, %v4333
  %v4400 = vsel %vm668, %v4397, 0.0
  %v4401 = vsel %vm669, %v4394, 0.0
  %v4402 = vsel %vm670, %v4391, 0.0
  %v4403 = vsel %vm671, %v4388, 0.0
  %v4404 = vsel %vm672, %v4385, 0.0
  %v4405 = vsel %vm673, %v4382, 0.0
  %v4406 = vsel %vm674, %v4379, 0.0
  %v4407 = vsel %vm675, %v4376, 0.0
  %v4408 = vsel %vm668, %v4398, 0.0
  %v4409 = vsel %vm669, %v4395, 0.0
  %v4410 = vsel %vm670, %v4392, 0.0
  %v4411 = vsel %vm671, %v4389, 0.0
  %v4412 = vsel %vm672, %v4386, 0.0
  %v4413 = vsel %vm673, %v4383, 0.0
  %v4414 = vsel %vm674, %v4380, 0.0
  %v4415 = vsel %vm675, %v4377, 0.0
  %v4416 = vsel %vm668, %v4399, 0.0
  %v4417 = vsel %vm669, %v4396, 0.0
  %v4418 = vsel %vm670, %v4393, 0.0
  %v4419 = vsel %vm671, %v4390, 0.0
  %v4420 = vsel %vm672, %v4387, 0.0
  %v4421 = vsel %vm673, %v4384, 0.0
  %v4422 = vsel %vm674, %v4381, 0.0
  %v4423 = vsel %vm675, %v4378, 0.0
  %4424 = vst [vmem:[#allocation3 + $0x240] sm:$0xff] %v4400
  %4425 = vst [vmem:[#allocation3 + $0x248] sm:$0xff] %v4401
  %4426 = vst [vmem:[#allocation3 + $0x250] sm:$0xff] %v4402
  %4427 = vst [vmem:[#allocation3 + $0x258] sm:$0xff] %v4403
  %4428 = vst [vmem:[#allocation3 + $0x260] sm:$0xff] %v4404
  %4429 = vst [vmem:[#allocation3 + $0x268] sm:$0xff] %v4405
  %4430 = vst [vmem:[#allocation3 + $0x270] sm:$0xff] %v4406
  %4431 = vst [vmem:[#allocation3 + $0x278] sm:$0xff] %v4407
  %4432 = vst [vmem:[#allocation3 + $0x280] sm:$0xff] %v4408
  %4433 = vst [vmem:[#allocation3 + $0x288] sm:$0xff] %v4409
  %4434 = vst [vmem:[#allocation3 + $0x290] sm:$0xff] %v4410
  %4435 = vst [vmem:[#allocation3 + $0x298] sm:$0xff] %v4411
  %4436 = vst [vmem:[#allocation3 + $0x2a0] sm:$0xff] %v4412
  %4437 = vst [vmem:[#allocation3 + $0x2a8] sm:$0xff] %v4413
  %4438 = vst [vmem:[#allocation3 + $0x2b0] sm:$0xff] %v4414
  %4439 = vst [vmem:[#allocation3 + $0x2b8] sm:$0xff] %v4415
  %4440 = vst [vmem:[#allocation3 + $0x2c0] sm:$0xff] %v4416
  %4441 = vst [vmem:[#allocation3 + $0x2c8] sm:$0xff] %v4417
  %4442 = vst [vmem:[#allocation3 + $0x2d0] sm:$0xff] %v4418
  %4443 = vst [vmem:[#allocation3 + $0x2d8] sm:$0xff] %v4419
  %4444 = vst [vmem:[#allocation3 + $0x2e0] sm:$0xff] %v4420
  %4445 = vst [vmem:[#allocation3 + $0x2e8] sm:$0xff] %v4421
  %4446 = vst [vmem:[#allocation3 + $0x2f0] sm:$0xff] %v4422
  %4447 = vst [vmem:[#allocation3 + $0x2f8] sm:$0xff] %v4423
  %4448 = vst [vmem:[#allocation3 + $0x300] sm:$0xff] %v4304
  %4449 = vst [vmem:[#allocation3 + $0x308] sm:$0xff] %v4305
  %4450 = vst [vmem:[#allocation3 + $0x310] sm:$0xff] %v4306
  %4451 = vst [vmem:[#allocation3 + $0x318] sm:$0xff] %v4307
  %4452 = vst [vmem:[#allocation3 + $0x320] sm:$0xff] %v4308
  %4453 = vst [vmem:[#allocation3 + $0x328] sm:$0xff] %v4309
  %4454 = vst [vmem:[#allocation3 + $0x330] sm:$0xff] %v4310
  %4455 = vst [vmem:[#allocation3 + $0x338] sm:$0xff] %v4311
  %4456 = vst [vmem:[#allocation3 + $0x340] sm:$0xff] %v4312
  %4457 = vst [vmem:[#allocation3 + $0x348] sm:$0xff] %v4313
  %4458 = vst [vmem:[#allocation3 + $0x350] sm:$0xff] %v4314
  %4459 = vst [vmem:[#allocation3 + $0x358] sm:$0xff] %v4315
  %4460 = vst [vmem:[#allocation3 + $0x360] sm:$0xff] %v4316
  %4461 = vst [vmem:[#allocation3 + $0x368] sm:$0xff] %v4317
  %4462 = vst [vmem:[#allocation3 + $0x370] sm:$0xff] %v4318
  %4463 = vst [vmem:[#allocation3 + $0x378] sm:$0xff] %v4319
  %4464 = vst [vmem:[#allocation3 + $0x380] sm:$0xff] %v4320
  %4465 = vst [vmem:[#allocation3 + $0x388] sm:$0xff] %v4321
  %4466 = vst [vmem:[#allocation3 + $0x390] sm:$0xff] %v4322
  %4467 = vst [vmem:[#allocation3 + $0x398] sm:$0xff] %v4323
  %4468 = vst [vmem:[#allocation3 + $0x3a0] sm:$0xff] %v4324
  %4469 = vst [vmem:[#allocation3 + $0x3a8] sm:$0xff] %v4325
  %4470 = vst [vmem:[#allocation3 + $0x3b0] sm:$0xff] %v4326
  %4471 = vst [vmem:[#allocation3 + $0x3b8] sm:$0xff] %v4327
  %4472 = vrot.lane.b32.xlu0 %v4304, 127
  %v4473 = vpop.permute.xlu0 %4472
  %4474 = vrot.lane.b32.xlu0 %v4312, 127
  %v4475 = vpop.permute.xlu0 %4474
  %4476 = vrot.lane.b32.xlu0 %v4320, 127
  %v4477 = vpop.permute.xlu0 %4476
  %4478 = vrot.lane.b32.xlu0 %v4305, 127
  %v4479 = vpop.permute.xlu0 %4478
  %4480 = vrot.lane.b32.xlu0 %v4313, 127
  %v4481 = vpop.permute.xlu0 %4480
  %4482 = vrot.lane.b32.xlu0 %v4321, 127
  %v4483 = vpop.permute.xlu0 %4482
  %4484 = vrot.lane.b32.xlu0 %v4306, 127
  %v4485 = vpop.permute.xlu0 %4484
  %4486 = vrot.lane.b32.xlu0 %v4314, 127
  %v4487 = vpop.permute.xlu0 %4486
  %4488 = vrot.lane.b32.xlu0 %v4322, 127
  %v4489 = vpop.permute.xlu0 %4488
  %4490 = vrot.lane.b32.xlu0 %v4307, 127
  %v4491 = vpop.permute.xlu0 %4490
  %4492 = vrot.lane.b32.xlu0 %v4315, 127
  %v4493 = vpop.permute.xlu0 %4492
  %4494 = vrot.lane.b32.xlu0 %v4323, 127
  %v4495 = vpop.permute.xlu0 %4494
  %4496 = vrot.lane.b32.xlu0 %v4308, 127
  %v4497 = vpop.permute.xlu0 %4496
  %4498 = vrot.lane.b32.xlu0 %v4316, 127
  %v4499 = vpop.permute.xlu0 %4498
  %4500 = vrot.lane.b32.xlu0 %v4324, 127
  %v4501 = vpop.permute.xlu0 %4500
  %4502 = vrot.lane.b32.xlu0 %v4309, 127
  %v4503 = vpop.permute.xlu0 %4502
  %4504 = vrot.lane.b32.xlu0 %v4317, 127
  %v4505 = vpop.permute.xlu0 %4504
  %4506 = vrot.lane.b32.xlu0 %v4325, 127
  %v4507 = vpop.permute.xlu0 %4506
  %4508 = vrot.lane.b32.xlu0 %v4310, 127
  %v4509 = vpop.permute.xlu0 %4508
  %4510 = vrot.lane.b32.xlu0 %v4318, 127
  %v4511 = vpop.permute.xlu0 %4510
  %4512 = vrot.lane.b32.xlu0 %v4326, 127
  %v4513 = vpop.permute.xlu0 %4512
  %4514 = vrot.lane.b32.xlu0 %v4311, 127
  %v4515 = vpop.permute.xlu0 %4514
  %4516 = vrot.lane.b32.xlu0 %v4319, 127
  %v4517 = vpop.permute.xlu0 %4516
  %4518 = vrot.lane.b32.xlu0 %v4327, 127
  %v4519 = vpop.permute.xlu0 %4518
  %v4520 = vsel %vm756, %v4509, %v4515
  %v4521 = vsel %vm756, %v4511, %v4517
  %v4522 = vsel %vm756, %v4513, %v4519
  %v4523 = vsel %vm756, %v4503, %v4509
  %v4524 = vsel %vm756, %v4505, %v4511
  %v4525 = vsel %vm756, %v4507, %v4513
  %v4526 = vsel %vm756, %v4497, %v4503
  %v4527 = vsel %vm756, %v4499, %v4505
  %v4528 = vsel %vm756, %v4501, %v4507
  %v4529 = vsel %vm756, %v4491, %v4497
  %v4530 = vsel %vm756, %v4493, %v4499
  %v4531 = vsel %vm756, %v4495, %v4501
  %v4532 = vsel %vm756, %v4485, %v4491
  %v4533 = vsel %vm756, %v4487, %v4493
  %v4534 = vsel %vm756, %v4489, %v4495
  %v4535 = vsel %vm756, %v4479, %v4485
  %v4536 = vsel %vm756, %v4481, %v4487
  %v4537 = vsel %vm756, %v4483, %v4489
  %v4538 = vsel %vm756, %v4473, %v4479
  %v4539 = vsel %vm756, %v4475, %v4481
  %v4540 = vsel %vm756, %v4477, %v4483
  %v4541 = vsel %vm756, %v4515, %v4473
  %v4542 = vsel %vm756, %v4517, %v4475
  %v4543 = vsel %vm756, %v4519, %v4477
  %v4544 = vsel %vm781, %v4538, 0.0
  %v4545 = vsel %vm782, %v4535, 0.0
  %v4546 = vsel %vm783, %v4532, 0.0
  %v4547 = vsel %vm784, %v4529, 0.0
  %v4548 = vsel %vm785, %v4526, 0.0
  %v4549 = vsel %vm786, %v4523, 0.0
  %v4550 = vsel %vm787, %v4520, 0.0
  %v4551 = vsel %vm788, %v4541, 0.0
  %v4552 = vsel %vm781, %v4539, 0.0
  %v4553 = vsel %vm782, %v4536, 0.0
  %v4554 = vsel %vm783, %v4533, 0.0
  %v4555 = vsel %vm784, %v4530, 0.0
  %v4556 = vsel %vm785, %v4527, 0.0
  %v4557 = vsel %vm786, %v4524, 0.0
  %v4558 = vsel %vm787, %v4521, 0.0
  %v4559 = vsel %vm788, %v4542, 0.0
  %v4560 = vsel %vm781, %v4540, 0.0
  %v4561 = vsel %vm782, %v4537, 0.0
  %v4562 = vsel %vm783, %v4534, 0.0
  %v4563 = vsel %vm784, %v4531, 0.0
  %v4564 = vsel %vm785, %v4528, 0.0
  %v4565 = vsel %vm786, %v4525, 0.0
  %v4566 = vsel %vm787, %v4522, 0.0
  %v4567 = vsel %vm788, %v4543, 0.0
  %4568 = vst [vmem:[#allocation3 + $0x3c0] sm:$0xff] %v4544
  %4569 = vst [vmem:[#allocation3 + $0x3c8] sm:$0xff] %v4545
  %4570 = vst [vmem:[#allocation3 + $0x3d0] sm:$0xff] %v4546
  %4571 = vst [vmem:[#allocation3 + $0x3d8] sm:$0xff] %v4547
  %4572 = vst [vmem:[#allocation3 + $0x3e0] sm:$0xff] %v4548
  %4573 = vst [vmem:[#allocation3 + $0x3e8] sm:$0xff] %v4549
  %4574 = vst [vmem:[#allocation3 + $0x3f0] sm:$0xff] %v4550
  %4575 = vst [vmem:[#allocation3 + $0x3f8] sm:$0xff] %v4551
  %4576 = vst [vmem:[#allocation3 + $0x400] sm:$0xff] %v4552
  %4577 = vst [vmem:[#allocation3 + $0x408] sm:$0xff] %v4553
  %4578 = vst [vmem:[#allocation3 + $0x410] sm:$0xff] %v4554
  %4579 = vst [vmem:[#allocation3 + $0x418] sm:$0xff] %v4555
  %4580 = vst [vmem:[#allocation3 + $0x420] sm:$0xff] %v4556
  %4581 = vst [vmem:[#allocation3 + $0x428] sm:$0xff] %v4557
  %4582 = vst [vmem:[#allocation3 + $0x430] sm:$0xff] %v4558
  %4583 = vst [vmem:[#allocation3 + $0x438] sm:$0xff] %v4559
  %4584 = vst [vmem:[#allocation3 + $0x440] sm:$0xff] %v4560
  %4585 = vst [vmem:[#allocation3 + $0x448] sm:$0xff] %v4561
  %4586 = vst [vmem:[#allocation3 + $0x450] sm:$0xff] %v4562
  %4587 = vst [vmem:[#allocation3 + $0x458] sm:$0xff] %v4563
  %4588 = vst [vmem:[#allocation3 + $0x460] sm:$0xff] %v4564
  %4589 = vst [vmem:[#allocation3 + $0x468] sm:$0xff] %v4565
  %4590 = vst [vmem:[#allocation3 + $0x470] sm:$0xff] %v4566
  %4591 = vst [vmem:[#allocation3 + $0x478] sm:$0xff] %v4567
  %v4592 = vld [vmem:[#allocation4] sm:$0xff]
  %v4593 = vld [vmem:[#allocation4 + $0x8] sm:$0xff]
  %v4594 = vld [vmem:[#allocation4 + $0x10] sm:$0xff]
  %v4595 = vld [vmem:[#allocation4 + $0x18] sm:$0xff]
  %v4596 = vld [vmem:[#allocation4 + $0x20] sm:$0xff]
  %v4597 = vld [vmem:[#allocation4 + $0x28] sm:$0xff]
  %v4598 = vld [vmem:[#allocation4 + $0x30] sm:$0xff]
  %v4599 = vld [vmem:[#allocation4 + $0x38] sm:$0xff]
  %v4600 = vld [vmem:[#allocation4 + $0x40] sm:$0xff]
  %v4601 = vld [vmem:[#allocation4 + $0x48] sm:$0xff]
  %v4602 = vld [vmem:[#allocation4 + $0x50] sm:$0xff]
  %v4603 = vld [vmem:[#allocation4 + $0x58] sm:$0xff]
  %v4604 = vld [vmem:[#allocation4 + $0x60] sm:$0xff]
  %v4605 = vld [vmem:[#allocation4 + $0x68] sm:$0xff]
  %v4606 = vld [vmem:[#allocation4 + $0x70] sm:$0xff]
  %v4607 = vld [vmem:[#allocation4 + $0x78] sm:$0xff]
  %v4608 = vld [vmem:[#allocation4 + $0x80] sm:$0xff]
  %v4609 = vld [vmem:[#allocation4 + $0x88] sm:$0xff]
  %v4610 = vld [vmem:[#allocation4 + $0x90] sm:$0xff]
  %v4611 = vld [vmem:[#allocation4 + $0x98] sm:$0xff]
  %v4612 = vld [vmem:[#allocation4 + $0xa0] sm:$0xff]
  %v4613 = vld [vmem:[#allocation4 + $0xa8] sm:$0xff]
  %v4614 = vld [vmem:[#allocation4 + $0xb0] sm:$0xff]
  %v4615 = vld [vmem:[#allocation4 + $0xb8] sm:$0xff]
  %4616 = vrot.lane.b32.xlu0 %v4592, 96
  %v4617 = vpop.permute.xlu0 %4616
  %4618 = vrot.lane.b32.xlu0 %v4600, 96
  %v4619 = vpop.permute.xlu0 %4618
  %4620 = vrot.lane.b32.xlu0 %v4608, 96
  %v4621 = vpop.permute.xlu0 %4620
  %4622 = vrot.lane.b32.xlu0 %v4593, 96
  %v4623 = vpop.permute.xlu0 %4622
  %4624 = vrot.lane.b32.xlu0 %v4601, 96
  %v4625 = vpop.permute.xlu0 %4624
  %4626 = vrot.lane.b32.xlu0 %v4609, 96
  %v4627 = vpop.permute.xlu0 %4626
  %4628 = vrot.lane.b32.xlu0 %v4594, 96
  %v4629 = vpop.permute.xlu0 %4628
  %4630 = vrot.lane.b32.xlu0 %v4602, 96
  %v4631 = vpop.permute.xlu0 %4630
  %4632 = vrot.lane.b32.xlu0 %v4610, 96
  %v4633 = vpop.permute.xlu0 %4632
  %4634 = vrot.lane.b32.xlu0 %v4595, 96
  %v4635 = vpop.permute.xlu0 %4634
  %4636 = vrot.lane.b32.xlu0 %v4603, 96
  %v4637 = vpop.permute.xlu0 %4636
  %4638 = vrot.lane.b32.xlu0 %v4611, 96
  %v4639 = vpop.permute.xlu0 %4638
  %4640 = vrot.lane.b32.xlu0 %v4596, 96
  %v4641 = vpop.permute.xlu0 %4640
  %4642 = vrot.lane.b32.xlu0 %v4604, 96
  %v4643 = vpop.permute.xlu0 %4642
  %4644 = vrot.lane.b32.xlu0 %v4612, 96
  %v4645 = vpop.permute.xlu0 %4644
  %4646 = vrot.lane.b32.xlu0 %v4597, 96
  %v4647 = vpop.permute.xlu0 %4646
  %4648 = vrot.lane.b32.xlu0 %v4605, 96
  %v4649 = vpop.permute.xlu0 %4648
  %4650 = vrot.lane.b32.xlu0 %v4613, 96
  %v4651 = vpop.permute.xlu0 %4650
  %4652 = vrot.lane.b32.xlu0 %v4598, 96
  %v4653 = vpop.permute.xlu0 %4652
  %4654 = vrot.lane.b32.xlu0 %v4606, 96
  %v4655 = vpop.permute.xlu0 %4654
  %4656 = vrot.lane.b32.xlu0 %v4614, 96
  %v4657 = vpop.permute.xlu0 %4656
  %4658 = vrot.lane.b32.xlu0 %v4599, 96
  %v4659 = vpop.permute.xlu0 %4658
  %4660 = vrot.lane.b32.xlu0 %v4607, 96
  %v4661 = vpop.permute.xlu0 %4660
  %4662 = vrot.lane.b32.xlu0 %v4615, 96
  %v4663 = vpop.permute.xlu0 %4662
  %v4664 = vsel %vm1061, %v4653, %v4659
  %v4665 = vsel %vm1061, %v4655, %v4661
  %v4666 = vsel %vm1061, %v4657, %v4663
  %v4667 = vsel %vm1061, %v4647, %v4653
  %v4668 = vsel %vm1061, %v4649, %v4655
  %v4669 = vsel %vm1061, %v4651, %v4657
  %v4670 = vsel %vm1061, %v4641, %v4647
  %v4671 = vsel %vm1061, %v4643, %v4649
  %v4672 = vsel %vm1061, %v4645, %v4651
  %v4673 = vsel %vm1061, %v4635, %v4641
  %v4674 = vsel %vm1061, %v4637, %v4643
  %v4675 = vsel %vm1061, %v4639, %v4645
  %v4676 = vsel %vm1061, %v4629, %v4635
  %v4677 = vsel %vm1061, %v4631, %v4637
  %v4678 = vsel %vm1061, %v4633, %v4639
  %v4679 = vsel %vm1061, %v4623, %v4629
  %v4680 = vsel %vm1061, %v4625, %v4631
  %v4681 = vsel %vm1061, %v4627, %v4633
  %v4682 = vsel %vm1061, %v4617, %v4623
  %v4683 = vsel %vm1061, %v4619, %v4625
  %v4684 = vsel %vm1061, %v4621, %v4627
  %v4685 = vsel %vm1061, %v4659, %v4617
  %v4686 = vsel %vm1061, %v4661, %v4619
  %v4687 = vsel %vm1061, %v4663, %v4621
  %v4688 = vsel %vm1086, %v4682, 0.0
  %v4689 = vsel %vm1087, %v4679, 0.0
  %v4690 = vsel %vm1088, %v4676, 0.0
  %v4691 = vsel %vm1089, %v4673, 0.0
  %v4692 = vsel %vm1090, %v4670, 0.0
  %v4693 = vsel %vm1091, %v4667, 0.0
  %v4694 = vsel %vm1092, %v4664, 0.0
  %v4695 = vsel %vm1093, %v4685, 0.0
  %v4696 = vsel %vm1086, %v4683, 0.0
  %v4697 = vsel %vm1087, %v4680, 0.0
  %v4698 = vsel %vm1088, %v4677, 0.0
  %v4699 = vsel %vm1089, %v4674, 0.0
  %v4700 = vsel %vm1090, %v4671, 0.0
  %v4701 = vsel %vm1091, %v4668, 0.0
  %v4702 = vsel %vm1092, %v4665, 0.0
  %v4703 = vsel %vm1093, %v4686, 0.0
  %v4704 = vsel %vm1086, %v4684, 0.0
  %v4705 = vsel %vm1087, %v4681, 0.0
  %v4706 = vsel %vm1088, %v4678, 0.0
  %v4707 = vsel %vm1089, %v4675, 0.0
  %v4708 = vsel %vm1090, %v4672, 0.0
  %v4709 = vsel %vm1091, %v4669, 0.0
  %v4710 = vsel %vm1092, %v4666, 0.0
  %v4711 = vsel %vm1093, %v4687, 0.0
  %4712 = vrot.lane.b32.xlu0 %v4688, 1
  %v4713 = vpop.permute.xlu0 %4712
  %4714 = vrot.lane.b32.xlu0 %v4696, 1
  %v4715 = vpop.permute.xlu0 %4714
  %4716 = vrot.lane.b32.xlu0 %v4704, 1
  %v4717 = vpop.permute.xlu0 %4716
  %4718 = vrot.lane.b32.xlu0 %v4689, 1
  %v4719 = vpop.permute.xlu0 %4718
  %4720 = vrot.lane.b32.xlu0 %v4697, 1
  %v4721 = vpop.permute.xlu0 %4720
  %4722 = vrot.lane.b32.xlu0 %v4705, 1
  %v4723 = vpop.permute.xlu0 %4722
  %4724 = vrot.lane.b32.xlu0 %v4690, 1
  %v4725 = vpop.permute.xlu0 %4724
  %4726 = vrot.lane.b32.xlu0 %v4698, 1
  %v4727 = vpop.permute.xlu0 %4726
  %4728 = vrot.lane.b32.xlu0 %v4706, 1
  %v4729 = vpop.permute.xlu0 %4728
  %4730 = vrot.lane.b32.xlu0 %v4691, 1
  %v4731 = vpop.permute.xlu0 %4730
  %4732 = vrot.lane.b32.xlu0 %v4699, 1
  %v4733 = vpop.permute.xlu0 %4732
  %4734 = vrot.lane.b32.xlu0 %v4707, 1
  %v4735 = vpop.permute.xlu0 %4734
  %4736 = vrot.lane.b32.xlu0 %v4692, 1
  %v4737 = vpop.permute.xlu0 %4736
  %4738 = vrot.lane.b32.xlu0 %v4700, 1
  %v4739 = vpop.permute.xlu0 %4738
  %4740 = vrot.lane.b32.xlu0 %v4708, 1
  %v4741 = vpop.permute.xlu0 %4740
  %4742 = vrot.lane.b32.xlu0 %v4693, 1
  %v4743 = vpop.permute.xlu0 %4742
  %4744 = vrot.lane.b32.xlu0 %v4701, 1
  %v4745 = vpop.permute.xlu0 %4744
  %4746 = vrot.lane.b32.xlu0 %v4709, 1
  %v4747 = vpop.permute.xlu0 %4746
  %4748 = vrot.lane.b32.xlu0 %v4694, 1
  %v4749 = vpop.permute.xlu0 %4748
  %4750 = vrot.lane.b32.xlu0 %v4702, 1
  %v4751 = vpop.permute.xlu0 %4750
  %4752 = vrot.lane.b32.xlu0 %v4710, 1
  %v4753 = vpop.permute.xlu0 %4752
  %4754 = vrot.lane.b32.xlu0 %v4695, 1
  %v4755 = vpop.permute.xlu0 %4754
  %4756 = vrot.lane.b32.xlu0 %v4703, 1
  %v4757 = vpop.permute.xlu0 %4756
  %4758 = vrot.lane.b32.xlu0 %v4711, 1
  %v4759 = vpop.permute.xlu0 %4758
  %v4760 = vsel %vm643, %v4749, %v4755
  %v4761 = vsel %vm643, %v4751, %v4757
  %v4762 = vsel %vm643, %v4753, %v4759
  %v4763 = vsel %vm643, %v4743, %v4749
  %v4764 = vsel %vm643, %v4745, %v4751
  %v4765 = vsel %vm643, %v4747, %v4753
  %v4766 = vsel %vm643, %v4737, %v4743
  %v4767 = vsel %vm643, %v4739, %v4745
  %v4768 = vsel %vm643, %v4741, %v4747
  %v4769 = vsel %vm643, %v4731, %v4737
  %v4770 = vsel %vm643, %v4733, %v4739
  %v4771 = vsel %vm643, %v4735, %v4741
  %v4772 = vsel %vm643, %v4725, %v4731
  %v4773 = vsel %vm643, %v4727, %v4733
  %v4774 = vsel %vm643, %v4729, %v4735
  %v4775 = vsel %vm643, %v4719, %v4725
  %v4776 = vsel %vm643, %v4721, %v4727
  %v4777 = vsel %vm643, %v4723, %v4729
  %v4778 = vsel %vm643, %v4713, %v4719
  %v4779 = vsel %vm643, %v4715, %v4721
  %v4780 = vsel %vm643, %v4717, %v4723
  %v4781 = vsel %vm643, %v4755, %v4713
  %v4782 = vsel %vm643, %v4757, %v4715
  %v4783 = vsel %vm643, %v4759, %v4717
  %v4784 = vsel %vm668, %v4781, 0.0
  %v4785 = vsel %vm669, %v4778, 0.0
  %v4786 = vsel %vm670, %v4775, 0.0
  %v4787 = vsel %vm671, %v4772, 0.0
  %v4788 = vsel %vm672, %v4769, 0.0
  %v4789 = vsel %vm673, %v4766, 0.0
  %v4790 = vsel %vm674, %v4763, 0.0
  %v4791 = vsel %vm675, %v4760, 0.0
  %v4792 = vsel %vm668, %v4782, 0.0
  %v4793 = vsel %vm669, %v4779, 0.0
  %v4794 = vsel %vm670, %v4776, 0.0
  %v4795 = vsel %vm671, %v4773, 0.0
  %v4796 = vsel %vm672, %v4770, 0.0
  %v4797 = vsel %vm673, %v4767, 0.0
  %v4798 = vsel %vm674, %v4764, 0.0
  %v4799 = vsel %vm675, %v4761, 0.0
  %v4800 = vsel %vm668, %v4783, 0.0
  %v4801 = vsel %vm669, %v4780, 0.0
  %v4802 = vsel %vm670, %v4777, 0.0
  %v4803 = vsel %vm671, %v4774, 0.0
  %v4804 = vsel %vm672, %v4771, 0.0
  %v4805 = vsel %vm673, %v4768, 0.0
  %v4806 = vsel %vm674, %v4765, 0.0
  %v4807 = vsel %vm675, %v4762, 0.0
  %4808 = vst [vmem:[#allocation3 + $0x480] sm:$0xff] %v4784
  %4809 = vst [vmem:[#allocation3 + $0x488] sm:$0xff] %v4785
  %4810 = vst [vmem:[#allocation3 + $0x490] sm:$0xff] %v4786
  %4811 = vst [vmem:[#allocation3 + $0x498] sm:$0xff] %v4787
  %4812 = vst [vmem:[#allocation3 + $0x4a0] sm:$0xff] %v4788
  %4813 = vst [vmem:[#allocation3 + $0x4a8] sm:$0xff] %v4789
  %4814 = vst [vmem:[#allocation3 + $0x4b0] sm:$0xff] %v4790
  %4815 = vst [vmem:[#allocation3 + $0x4b8] sm:$0xff] %v4791
  %4816 = vst [vmem:[#allocation3 + $0x4c0] sm:$0xff] %v4792
  %4817 = vst [vmem:[#allocation3 + $0x4c8] sm:$0xff] %v4793
  %4818 = vst [vmem:[#allocation3 + $0x4d0] sm:$0xff] %v4794
  %4819 = vst [vmem:[#allocation3 + $0x4d8] sm:$0xff] %v4795
  %4820 = vst [vmem:[#allocation3 + $0x4e0] sm:$0xff] %v4796
  %4821 = vst [vmem:[#allocation3 + $0x4e8] sm:$0xff] %v4797
  %4822 = vst [vmem:[#allocation3 + $0x4f0] sm:$0xff] %v4798
  %4823 = vst [vmem:[#allocation3 + $0x4f8] sm:$0xff] %v4799
  %4824 = vst [vmem:[#allocation3 + $0x500] sm:$0xff] %v4800
  %4825 = vst [vmem:[#allocation3 + $0x508] sm:$0xff] %v4801
  %4826 = vst [vmem:[#allocation3 + $0x510] sm:$0xff] %v4802
  %4827 = vst [vmem:[#allocation3 + $0x518] sm:$0xff] %v4803
  %4828 = vst [vmem:[#allocation3 + $0x520] sm:$0xff] %v4804
  %4829 = vst [vmem:[#allocation3 + $0x528] sm:$0xff] %v4805
  %4830 = vst [vmem:[#allocation3 + $0x530] sm:$0xff] %v4806
  %4831 = vst [vmem:[#allocation3 + $0x538] sm:$0xff] %v4807
  %4832 = vst [vmem:[#allocation3 + $0x540] sm:$0xff] %v4688
  %4833 = vst [vmem:[#allocation3 + $0x548] sm:$0xff] %v4689
  %4834 = vst [vmem:[#allocation3 + $0x550] sm:$0xff] %v4690
  %4835 = vst [vmem:[#allocation3 + $0x558] sm:$0xff] %v4691
  %4836 = vst [vmem:[#allocation3 + $0x560] sm:$0xff] %v4692
  %4837 = vst [vmem:[#allocation3 + $0x568] sm:$0xff] %v4693
  %4838 = vst [vmem:[#allocation3 + $0x570] sm:$0xff] %v4694
  %4839 = vst [vmem:[#allocation3 + $0x578] sm:$0xff] %v4695
  %4840 = vst [vmem:[#allocation3 + $0x580] sm:$0xff] %v4696
  %4841 = vst [vmem:[#allocation3 + $0x588] sm:$0xff] %v4697
  %4842 = vst [vmem:[#allocation3 + $0x590] sm:$0xff] %v4698
  %4843 = vst [vmem:[#allocation3 + $0x598] sm:$0xff] %v4699
  %4844 = vst [vmem:[#allocation3 + $0x5a0] sm:$0xff] %v4700
  %4845 = vst [vmem:[#allocation3 + $0x5a8] sm:$0xff] %v4701
  %4846 = vst [vmem:[#allocation3 + $0x5b0] sm:$0xff] %v4702
  %4847 = vst [vmem:[#allocation3 + $0x5b8] sm:$0xff] %v4703
  %4848 = vst [vmem:[#allocation3 + $0x5c0] sm:$0xff] %v4704
  %4849 = vst [vmem:[#allocation3 + $0x5c8] sm:$0xff] %v4705
  %4850 = vst [vmem:[#allocation3 + $0x5d0] sm:$0xff] %v4706
  %4851 = vst [vmem:[#allocation3 + $0x5d8] sm:$0xff] %v4707
  %4852 = vst [vmem:[#allocation3 + $0x5e0] sm:$0xff] %v4708
  %4853 = vst [vmem:[#allocation3 + $0x5e8] sm:$0xff] %v4709
  %4854 = vst [vmem:[#allocation3 + $0x5f0] sm:$0xff] %v4710
  %4855 = vst [vmem:[#allocation3 + $0x5f8] sm:$0xff] %v4711
  %4856 = vrot.lane.b32.xlu0 %v4688, 127
  %v4857 = vpop.permute.xlu0 %4856
  %4858 = vrot.lane.b32.xlu0 %v4696, 127
  %v4859 = vpop.permute.xlu0 %4858
  %4860 = vrot.lane.b32.xlu0 %v4704, 127
  %v4861 = vpop.permute.xlu0 %4860
  %4862 = vrot.lane.b32.xlu0 %v4689, 127
  %v4863 = vpop.permute.xlu0 %4862
  %4864 = vrot.lane.b32.xlu0 %v4697, 127
  %v4865 = vpop.permute.xlu0 %4864
  %4866 = vrot.lane.b32.xlu0 %v4705, 127
  %v4867 = vpop.permute.xlu0 %4866
  %4868 = vrot.lane.b32.xlu0 %v4690, 127
  %v4869 = vpop.permute.xlu0 %4868
  %4870 = vrot.lane.b32.xlu0 %v4698, 127
  %v4871 = vpop.permute.xlu0 %4870
  %4872 = vrot.lane.b32.xlu0 %v4706, 127
  %v4873 = vpop.permute.xlu0 %4872
  %4874 = vrot.lane.b32.xlu0 %v4691, 127
  %v4875 = vpop.permute.xlu0 %4874
  %4876 = vrot.lane.b32.xlu0 %v4699, 127
  %v4877 = vpop.permute.xlu0 %4876
  %4878 = vrot.lane.b32.xlu0 %v4707, 127
  %v4879 = vpop.permute.xlu0 %4878
  %4880 = vrot.lane.b32.xlu0 %v4692, 127
  %v4881 = vpop.permute.xlu0 %4880
  %4882 = vrot.lane.b32.xlu0 %v4700, 127
  %v4883 = vpop.permute.xlu0 %4882
  %4884 = vrot.lane.b32.xlu0 %v4708, 127
  %v4885 = vpop.permute.xlu0 %4884
  %4886 = vrot.lane.b32.xlu0 %v4693, 127
  %v4887 = vpop.permute.xlu0 %4886
  %4888 = vrot.lane.b32.xlu0 %v4701, 127
  %v4889 = vpop.permute.xlu0 %4888
  %4890 = vrot.lane.b32.xlu0 %v4709, 127
  %v4891 = vpop.permute.xlu0 %4890
  %4892 = vrot.lane.b32.xlu0 %v4694, 127
  %v4893 = vpop.permute.xlu0 %4892
  %4894 = vrot.lane.b32.xlu0 %v4702, 127
  %v4895 = vpop.permute.xlu0 %4894
  %4896 = vrot.lane.b32.xlu0 %v4710, 127
  %v4897 = vpop.permute.xlu0 %4896
  %4898 = vrot.lane.b32.xlu0 %v4695, 127
  %v4899 = vpop.permute.xlu0 %4898
  %4900 = vrot.lane.b32.xlu0 %v4703, 127
  %v4901 = vpop.permute.xlu0 %4900
  %4902 = vrot.lane.b32.xlu0 %v4711, 127
  %v4903 = vpop.permute.xlu0 %4902
  %v4904 = vsel %vm756, %v4893, %v4899
  %v4905 = vsel %vm756, %v4895, %v4901
  %v4906 = vsel %vm756, %v4897, %v4903
  %v4907 = vsel %vm756, %v4887, %v4893
  %v4908 = vsel %vm756, %v4889, %v4895
  %v4909 = vsel %vm756, %v4891, %v4897
  %v4910 = vsel %vm756, %v4881, %v4887
  %v4911 = vsel %vm756, %v4883, %v4889
  %v4912 = vsel %vm756, %v4885, %v4891
  %v4913 = vsel %vm756, %v4875, %v4881
  %v4914 = vsel %vm756, %v4877, %v4883
  %v4915 = vsel %vm756, %v4879, %v4885
  %v4916 = vsel %vm756, %v4869, %v4875
  %v4917 = vsel %vm756, %v4871, %v4877
  %v4918 = vsel %vm756, %v4873, %v4879
  %v4919 = vsel %vm756, %v4863, %v4869
  %v4920 = vsel %vm756, %v4865, %v4871
  %v4921 = vsel %vm756, %v4867, %v4873
  %v4922 = vsel %vm756, %v4857, %v4863
  %v4923 = vsel %vm756, %v4859, %v4865
  %v4924 = vsel %vm756, %v4861, %v4867
  %v4925 = vsel %vm756, %v4899, %v4857
  %v4926 = vsel %vm756, %v4901, %v4859
  %v4927 = vsel %vm756, %v4903, %v4861
  %v4928 = vsel %vm781, %v4922, 0.0
  %v4929 = vsel %vm782, %v4919, 0.0
  %v4930 = vsel %vm783, %v4916, 0.0
  %v4931 = vsel %vm784, %v4913, 0.0
  %v4932 = vsel %vm785, %v4910, 0.0
  %v4933 = vsel %vm786, %v4907, 0.0
  %v4934 = vsel %vm787, %v4904, 0.0
  %v4935 = vsel %vm788, %v4925, 0.0
  %v4936 = vsel %vm781, %v4923, 0.0
  %v4937 = vsel %vm782, %v4920, 0.0
  %v4938 = vsel %vm783, %v4917, 0.0
  %v4939 = vsel %vm784, %v4914, 0.0
  %v4940 = vsel %vm785, %v4911, 0.0
  %v4941 = vsel %vm786, %v4908, 0.0
  %v4942 = vsel %vm787, %v4905, 0.0
  %v4943 = vsel %vm788, %v4926, 0.0
  %v4944 = vsel %vm781, %v4924, 0.0
  %v4945 = vsel %vm782, %v4921, 0.0
  %v4946 = vsel %vm783, %v4918, 0.0
  %v4947 = vsel %vm784, %v4915, 0.0
  %v4948 = vsel %vm785, %v4912, 0.0
  %v4949 = vsel %vm786, %v4909, 0.0
  %v4950 = vsel %vm787, %v4906, 0.0
  %v4951 = vsel %vm788, %v4927, 0.0
  %4952 = vst [vmem:[#allocation3 + $0x600] sm:$0xff] %v4928
  %4953 = vst [vmem:[#allocation3 + $0x608] sm:$0xff] %v4929
  %4954 = vst [vmem:[#allocation3 + $0x610] sm:$0xff] %v4930
  %4955 = vst [vmem:[#allocation3 + $0x618] sm:$0xff] %v4931
  %4956 = vst [vmem:[#allocation3 + $0x620] sm:$0xff] %v4932
  %4957 = vst [vmem:[#allocation3 + $0x628] sm:$0xff] %v4933
  %4958 = vst [vmem:[#allocation3 + $0x630] sm:$0xff] %v4934
  %4959 = vst [vmem:[#allocation3 + $0x638] sm:$0xff] %v4935
  %4960 = vst [vmem:[#allocation3 + $0x640] sm:$0xff] %v4936
  %4961 = vst [vmem:[#allocation3 + $0x648] sm:$0xff] %v4937
  %4962 = vst [vmem:[#allocation3 + $0x650] sm:$0xff] %v4938
  %4963 = vst [vmem:[#allocation3 + $0x658] sm:$0xff] %v4939
  %4964 = vst [vmem:[#allocation3 + $0x660] sm:$0xff] %v4940
  %4965 = vst [vmem:[#allocation3 + $0x668] sm:$0xff] %v4941
  %4966 = vst [vmem:[#allocation3 + $0x670] sm:$0xff] %v4942
  %4967 = vst [vmem:[#allocation3 + $0x678] sm:$0xff] %v4943
  %4968 = vst [vmem:[#allocation3 + $0x680] sm:$0xff] %v4944
  %4969 = vst [vmem:[#allocation3 + $0x688] sm:$0xff] %v4945
  %4970 = vst [vmem:[#allocation3 + $0x690] sm:$0xff] %v4946
  %4971 = vst [vmem:[#allocation3 + $0x698] sm:$0xff] %v4947
  %4972 = vst [vmem:[#allocation3 + $0x6a0] sm:$0xff] %v4948
  %4973 = vst [vmem:[#allocation3 + $0x6a8] sm:$0xff] %v4949
  %4974 = vst [vmem:[#allocation3 + $0x6b0] sm:$0xff] %v4950
  %4975 = vst [vmem:[#allocation3 + $0x6b8] sm:$0xff] %v4951
  %v4976 = vld [vmem:[%s6] sm:$0xff]
  %v4977 = vld [vmem:[%s6 + $0x8] sm:$0xff]
  %v4978 = vld [vmem:[%s6 + $0x10] sm:$0xff]
  %v4979 = vld [vmem:[%s6 + $0x18] sm:$0xff]
  %v4980 = vld [vmem:[%s6 + $0x20] sm:$0xff]
  %v4981 = vld [vmem:[%s6 + $0x28] sm:$0xff]
  %v4982 = vld [vmem:[#allocation3] sm:$0xff]
  %v4983 = vld [vmem:[#allocation3 + $0x8] sm:$0xff]
  %v4984 = vld [vmem:[#allocation3 + $0x10] sm:$0xff]
  %v4985 = vld [vmem:[#allocation3 + $0x18] sm:$0xff]
  %v4986 = vld [vmem:[#allocation3 + $0x20] sm:$0xff]
  %v4987 = vld [vmem:[#allocation3 + $0x28] sm:$0xff]
  %v4988 = vld [vmem:[#allocation3 + $0x30] sm:$0xff]
  %v4989 = vld [vmem:[#allocation3 + $0x38] sm:$0xff]
  %v4990 = vld [vmem:[#allocation3 + $0x40] sm:$0xff]
  %v4991 = vld [vmem:[#allocation3 + $0x48] sm:$0xff]
  %v4992 = vld [vmem:[#allocation3 + $0x50] sm:$0xff]
  %v4993 = vld [vmem:[#allocation3 + $0x58] sm:$0xff]
  %v4994 = vld [vmem:[#allocation3 + $0x60] sm:$0xff]
  %v4995 = vld [vmem:[#allocation3 + $0x68] sm:$0xff]
  %v4996 = vld [vmem:[#allocation3 + $0x70] sm:$0xff]
  %v4997 = vld [vmem:[#allocation3 + $0x78] sm:$0xff]
  %v4998 = vld [vmem:[#allocation3 + $0x80] sm:$0xff]
  %v4999 = vld [vmem:[#allocation3 + $0x88] sm:$0xff]
  %v5000 = vld [vmem:[#allocation3 + $0x90] sm:$0xff]
  %v5001 = vld [vmem:[#allocation3 + $0x98] sm:$0xff]
  %v5002 = vld [vmem:[#allocation3 + $0xa0] sm:$0xff]
  %v5003 = vld [vmem:[#allocation3 + $0xa8] sm:$0xff]
  %v5004 = vld [vmem:[#allocation3 + $0xb0] sm:$0xff]
  %v5005 = vld [vmem:[#allocation3 + $0xb8] sm:$0xff]
  %v5006 = vld [vmem:[#allocation3 + $0xc0] sm:$0xff]
  %v5007 = vld [vmem:[#allocation3 + $0xc8] sm:$0xff]
  %v5008 = vld [vmem:[#allocation3 + $0xd0] sm:$0xff]
  %v5009 = vld [vmem:[#allocation3 + $0xd8] sm:$0xff]
  %v5010 = vld [vmem:[#allocation3 + $0xe0] sm:$0xff]
  %v5011 = vld [vmem:[#allocation3 + $0xe8] sm:$0xff]
  %v5012 = vld [vmem:[#allocation3 + $0xf0] sm:$0xff]
  %v5013 = vld [vmem:[#allocation3 + $0xf8] sm:$0xff]
  %v5014 = vld [vmem:[#allocation3 + $0x100] sm:$0xff]
  %v5015 = vld [vmem:[#allocation3 + $0x108] sm:$0xff]
  %v5016 = vld [vmem:[#allocation3 + $0x110] sm:$0xff]
  %v5017 = vld [vmem:[#allocation3 + $0x118] sm:$0xff]
  %v5018 = vld [vmem:[#allocation3 + $0x120] sm:$0xff]
  %v5019 = vld [vmem:[#allocation3 + $0x128] sm:$0xff]
  %v5020 = vld [vmem:[#allocation3 + $0x130] sm:$0xff]
  %v5021 = vld [vmem:[#allocation3 + $0x138] sm:$0xff]
  %v5022 = vld [vmem:[#allocation3 + $0x140] sm:$0xff]
  %v5023 = vld [vmem:[#allocation3 + $0x148] sm:$0xff]
  %v5024 = vld [vmem:[#allocation3 + $0x150] sm:$0xff]
  %v5025 = vld [vmem:[#allocation3 + $0x158] sm:$0xff]
  %v5026 = vld [vmem:[#allocation3 + $0x160] sm:$0xff]
  %v5027 = vld [vmem:[#allocation3 + $0x168] sm:$0xff]
  %v5028 = vld [vmem:[#allocation3 + $0x170] sm:$0xff]
  %v5029 = vld [vmem:[#allocation3 + $0x178] sm:$0xff]
  %v5030 = vld [vmem:[#allocation3 + $0x180] sm:$0xff]
  %v5031 = vld [vmem:[#allocation3 + $0x188] sm:$0xff]
  %v5032 = vld [vmem:[#allocation3 + $0x190] sm:$0xff]
  %v5033 = vld [vmem:[#allocation3 + $0x198] sm:$0xff]
  %v5034 = vld [vmem:[#allocation3 + $0x1a0] sm:$0xff]
  %v5035 = vld [vmem:[#allocation3 + $0x1a8] sm:$0xff]
  %v5036 = vld [vmem:[#allocation3 + $0x1b0] sm:$0xff]
  %v5037 = vld [vmem:[#allocation3 + $0x1b8] sm:$0xff]
  %v5038 = vld [vmem:[#allocation3 + $0x1c0] sm:$0xff]
  %v5039 = vld [vmem:[#allocation3 + $0x1c8] sm:$0xff]
  %v5040 = vld [vmem:[#allocation3 + $0x1d0] sm:$0xff]
  %v5041 = vld [vmem:[#allocation3 + $0x1d8] sm:$0xff]
  %v5042 = vld [vmem:[#allocation3 + $0x1e0] sm:$0xff]
  %v5043 = vld [vmem:[#allocation3 + $0x1e8] sm:$0xff]
  %v5044 = vld [vmem:[#allocation3 + $0x1f0] sm:$0xff]
  %v5045 = vld [vmem:[#allocation3 + $0x1f8] sm:$0xff]
  %v5046 = vld [vmem:[#allocation3 + $0x200] sm:$0xff]
  %v5047 = vld [vmem:[#allocation3 + $0x208] sm:$0xff]
  %v5048 = vld [vmem:[#allocation3 + $0x210] sm:$0xff]
  %v5049 = vld [vmem:[#allocation3 + $0x218] sm:$0xff]
  %v5050 = vld [vmem:[#allocation3 + $0x220] sm:$0xff]
  %v5051 = vld [vmem:[#allocation3 + $0x228] sm:$0xff]
  %v5052 = vld [vmem:[#allocation3 + $0x230] sm:$0xff]
  %v5053 = vld [vmem:[#allocation3 + $0x238] sm:$0xff]
  %v5054 = vld [vmem:[#allocation3 + $0x240] sm:$0xff]
  %v5055 = vld [vmem:[#allocation3 + $0x248] sm:$0xff]
  %v5056 = vld [vmem:[#allocation3 + $0x250] sm:$0xff]
  %v5057 = vld [vmem:[#allocation3 + $0x258] sm:$0xff]
  %v5058 = vld [vmem:[#allocation3 + $0x260] sm:$0xff]
  %v5059 = vld [vmem:[#allocation3 + $0x268] sm:$0xff]
  %v5060 = vld [vmem:[#allocation3 + $0x270] sm:$0xff]
  %v5061 = vld [vmem:[#allocation3 + $0x278] sm:$0xff]
  %v5062 = vld [vmem:[#allocation3 + $0x280] sm:$0xff]
  %v5063 = vld [vmem:[#allocation3 + $0x288] sm:$0xff]
  %v5064 = vld [vmem:[#allocation3 + $0x290] sm:$0xff]
  %v5065 = vld [vmem:[#allocation3 + $0x298] sm:$0xff]
  %v5066 = vld [vmem:[#allocation3 + $0x2a0] sm:$0xff]
  %v5067 = vld [vmem:[#allocation3 + $0x2a8] sm:$0xff]
  %v5068 = vld [vmem:[#allocation3 + $0x2b0] sm:$0xff]
  %v5069 = vld [vmem:[#allocation3 + $0x2b8] sm:$0xff]
  %v5070 = vld [vmem:[#allocation3 + $0x2c0] sm:$0xff]
  %v5071 = vld [vmem:[#allocation3 + $0x2c8] sm:$0xff]
  %v5072 = vld [vmem:[#allocation3 + $0x2d0] sm:$0xff]
  %v5073 = vld [vmem:[#allocation3 + $0x2d8] sm:$0xff]
  %v5074 = vld [vmem:[#allocation3 + $0x2e0] sm:$0xff]
  %v5075 = vld [vmem:[#allocation3 + $0x2e8] sm:$0xff]
  %v5076 = vld [vmem:[#allocation3 + $0x2f0] sm:$0xff]
  %v5077 = vld [vmem:[#allocation3 + $0x2f8] sm:$0xff]
  %v5078 = vld [vmem:[#allocation3 + $0x300] sm:$0xff]
  %v5079 = vld [vmem:[#allocation3 + $0x308] sm:$0xff]
  %v5080 = vld [vmem:[#allocation3 + $0x310] sm:$0xff]
  %v5081 = vld [vmem:[#allocation3 + $0x318] sm:$0xff]
  %v5082 = vld [vmem:[#allocation3 + $0x320] sm:$0xff]
  %v5083 = vld [vmem:[#allocation3 + $0x328] sm:$0xff]
  %v5084 = vld [vmem:[#allocation3 + $0x330] sm:$0xff]
  %v5085 = vld [vmem:[#allocation3 + $0x338] sm:$0xff]
  %v5086 = vld [vmem:[#allocation3 + $0x340] sm:$0xff]
  %v5087 = vld [vmem:[#allocation3 + $0x348] sm:$0xff]
  %v5088 = vld [vmem:[#allocation3 + $0x350] sm:$0xff]
  %v5089 = vld [vmem:[#allocation3 + $0x358] sm:$0xff]
  %v5090 = vld [vmem:[#allocation3 + $0x360] sm:$0xff]
  %v5091 = vld [vmem:[#allocation3 + $0x368] sm:$0xff]
  %v5092 = vld [vmem:[#allocation3 + $0x370] sm:$0xff]
  %v5093 = vld [vmem:[#allocation3 + $0x378] sm:$0xff]
  %v5094 = vld [vmem:[#allocation3 + $0x380] sm:$0xff]
  %v5095 = vld [vmem:[#allocation3 + $0x388] sm:$0xff]
  %v5096 = vld [vmem:[#allocation3 + $0x390] sm:$0xff]
  %v5097 = vld [vmem:[#allocation3 + $0x398] sm:$0xff]
  %v5098 = vld [vmem:[#allocation3 + $0x3a0] sm:$0xff]
  %v5099 = vld [vmem:[#allocation3 + $0x3a8] sm:$0xff]
  %v5100 = vld [vmem:[#allocation3 + $0x3b0] sm:$0xff]
  %v5101 = vld [vmem:[#allocation3 + $0x3b8] sm:$0xff]
  %v5102 = vld [vmem:[#allocation3 + $0x3c0] sm:$0xff]
  %v5103 = vld [vmem:[#allocation3 + $0x3c8] sm:$0xff]
  %v5104 = vld [vmem:[#allocation3 + $0x3d0] sm:$0xff]
  %v5105 = vld [vmem:[#allocation3 + $0x3d8] sm:$0xff]
  %v5106 = vld [vmem:[#allocation3 + $0x3e0] sm:$0xff]
  %v5107 = vld [vmem:[#allocation3 + $0x3e8] sm:$0xff]
  %v5108 = vld [vmem:[#allocation3 + $0x3f0] sm:$0xff]
  %v5109 = vld [vmem:[#allocation3 + $0x3f8] sm:$0xff]
  %v5110 = vld [vmem:[#allocation3 + $0x400] sm:$0xff]
  %v5111 = vld [vmem:[#allocation3 + $0x408] sm:$0xff]
  %v5112 = vld [vmem:[#allocation3 + $0x410] sm:$0xff]
  %v5113 = vld [vmem:[#allocation3 + $0x418] sm:$0xff]
  %v5114 = vld [vmem:[#allocation3 + $0x420] sm:$0xff]
  %v5115 = vld [vmem:[#allocation3 + $0x428] sm:$0xff]
  %v5116 = vld [vmem:[#allocation3 + $0x430] sm:$0xff]
  %v5117 = vld [vmem:[#allocation3 + $0x438] sm:$0xff]
  %v5118 = vld [vmem:[#allocation3 + $0x440] sm:$0xff]
  %v5119 = vld [vmem:[#allocation3 + $0x448] sm:$0xff]
  %v5120 = vld [vmem:[#allocation3 + $0x450] sm:$0xff]
  %v5121 = vld [vmem:[#allocation3 + $0x458] sm:$0xff]
  %v5122 = vld [vmem:[#allocation3 + $0x460] sm:$0xff]
  %v5123 = vld [vmem:[#allocation3 + $0x468] sm:$0xff]
  %v5124 = vld [vmem:[#allocation3 + $0x470] sm:$0xff]
  %v5125 = vld [vmem:[#allocation3 + $0x478] sm:$0xff]
  %v5126 = vld [vmem:[#allocation3 + $0x480] sm:$0xff]
  %v5127 = vld [vmem:[#allocation3 + $0x488] sm:$0xff]
  %v5128 = vld [vmem:[#allocation3 + $0x490] sm:$0xff]
  %v5129 = vld [vmem:[#allocation3 + $0x498] sm:$0xff]
  %v5130 = vld [vmem:[#allocation3 + $0x4a0] sm:$0xff]
  %v5131 = vld [vmem:[#allocation3 + $0x4a8] sm:$0xff]
  %v5132 = vld [vmem:[#allocation3 + $0x4b0] sm:$0xff]
  %v5133 = vld [vmem:[#allocation3 + $0x4b8] sm:$0xff]
  %v5134 = vld [vmem:[#allocation3 + $0x4c0] sm:$0xff]
  %v5135 = vld [vmem:[#allocation3 + $0x4c8] sm:$0xff]
  %v5136 = vld [vmem:[#allocation3 + $0x4d0] sm:$0xff]
  %v5137 = vld [vmem:[#allocation3 + $0x4d8] sm:$0xff]
  %v5138 = vld [vmem:[#allocation3 + $0x4e0] sm:$0xff]
  %v5139 = vld [vmem:[#allocation3 + $0x4e8] sm:$0xff]
  %v5140 = vld [vmem:[#allocation3 + $0x4f0] sm:$0xff]
  %v5141 = vld [vmem:[#allocation3 + $0x4f8] sm:$0xff]
  %v5142 = vld [vmem:[#allocation3 + $0x500] sm:$0xff]
  %v5143 = vld [vmem:[#allocation3 + $0x508] sm:$0xff]
  %v5144 = vld [vmem:[#allocation3 + $0x510] sm:$0xff]
  %v5145 = vld [vmem:[#allocation3 + $0x518] sm:$0xff]
  %v5146 = vld [vmem:[#allocation3 + $0x520] sm:$0xff]
  %v5147 = vld [vmem:[#allocation3 + $0x528] sm:$0xff]
  %v5148 = vld [vmem:[#allocation3 + $0x530] sm:$0xff]
  %v5149 = vld [vmem:[#allocation3 + $0x538] sm:$0xff]
  %v5150 = vld [vmem:[#allocation3 + $0x540] sm:$0xff]
  %v5151 = vld [vmem:[#allocation3 + $0x548] sm:$0xff]
  %v5152 = vld [vmem:[#allocation3 + $0x550] sm:$0xff]
  %v5153 = vld [vmem:[#allocation3 + $0x558] sm:$0xff]
  %v5154 = vld [vmem:[#allocation3 + $0x560] sm:$0xff]
  %v5155 = vld [vmem:[#allocation3 + $0x568] sm:$0xff]
  %v5156 = vld [vmem:[#allocation3 + $0x570] sm:$0xff]
  %v5157 = vld [vmem:[#allocation3 + $0x578] sm:$0xff]
  %v5158 = vld [vmem:[#allocation3 + $0x580] sm:$0xff]
  %v5159 = vld [vmem:[#allocation3 + $0x588] sm:$0xff]
  %v5160 = vld [vmem:[#allocation3 + $0x590] sm:$0xff]
  %v5161 = vld [vmem:[#allocation3 + $0x598] sm:$0xff]
  %v5162 = vld [vmem:[#allocation3 + $0x5a0] sm:$0xff]
  %v5163 = vld [vmem:[#allocation3 + $0x5a8] sm:$0xff]
  %v5164 = vld [vmem:[#allocation3 + $0x5b0] sm:$0xff]
  %v5165 = vld [vmem:[#allocation3 + $0x5b8] sm:$0xff]
  %v5166 = vld [vmem:[#allocation3 + $0x5c0] sm:$0xff]
  %v5167 = vld [vmem:[#allocation3 + $0x5c8] sm:$0xff]
  %v5168 = vld [vmem:[#allocation3 + $0x5d0] sm:$0xff]
  %v5169 = vld [vmem:[#allocation3 + $0x5d8] sm:$0xff]
  %v5170 = vld [vmem:[#allocation3 + $0x5e0] sm:$0xff]
  %v5171 = vld [vmem:[#allocation3 + $0x5e8] sm:$0xff]
  %v5172 = vld [vmem:[#allocation3 + $0x5f0] sm:$0xff]
  %v5173 = vld [vmem:[#allocation3 + $0x5f8] sm:$0xff]
  %v5174 = vld [vmem:[#allocation3 + $0x600] sm:$0xff]
  %v5175 = vld [vmem:[#allocation3 + $0x608] sm:$0xff]
  %v5176 = vld [vmem:[#allocation3 + $0x610] sm:$0xff]
  %v5177 = vld [vmem:[#allocation3 + $0x618] sm:$0xff]
  %v5178 = vld [vmem:[#allocation3 + $0x620] sm:$0xff]
  %v5179 = vld [vmem:[#allocation3 + $0x628] sm:$0xff]
  %v5180 = vld [vmem:[#allocation3 + $0x630] sm:$0xff]
  %v5181 = vld [vmem:[#allocation3 + $0x638] sm:$0xff]
  %v5182 = vld [vmem:[#allocation3 + $0x640] sm:$0xff]
  %v5183 = vld [vmem:[#allocation3 + $0x648] sm:$0xff]
  %v5184 = vld [vmem:[#allocation3 + $0x650] sm:$0xff]
  %v5185 = vld [vmem:[#allocation3 + $0x658] sm:$0xff]
  %v5186 = vld [vmem:[#allocation3 + $0x660] sm:$0xff]
  %v5187 = vld [vmem:[#allocation3 + $0x668] sm:$0xff]
  %v5188 = vld [vmem:[#allocation3 + $0x670] sm:$0xff]
  %v5189 = vld [vmem:[#allocation3 + $0x678] sm:$0xff]
  %v5190 = vld [vmem:[#allocation3 + $0x680] sm:$0xff]
  %v5191 = vld [vmem:[#allocation3 + $0x688] sm:$0xff]
  %v5192 = vld [vmem:[#allocation3 + $0x690] sm:$0xff]
  %v5193 = vld [vmem:[#allocation3 + $0x698] sm:$0xff]
  %v5194 = vld [vmem:[#allocation3 + $0x6a0] sm:$0xff]
  %v5195 = vld [vmem:[#allocation3 + $0x6a8] sm:$0xff]
  %v5196 = vld [vmem:[#allocation3 + $0x6b0] sm:$0xff]
  %v5197 = vld [vmem:[#allocation3 + $0x6b8] sm:$0xff]
  %v5198 = vld [vmem:[%s7] sm:$0xff]
  %v5199 = vld [vmem:[%s7 + $0x8] sm:$0xff]
  %v5200 = vld [vmem:[%s7 + $0x10] sm:$0xff]
  %5202 = vset.pattern.permute.xlu0 0
  %5203 = vperm.xlu0 %5202, %v5198
  %v5204 = vpop.permute.xlu0 %5203
  %5207 = vset.pattern.permute.xlu0 0
  %5208 = vperm.xlu0 %5207, %v5199
  %v5209 = vpop.permute.xlu0 %5208
  %5212 = vset.pattern.permute.xlu0 0
  %5213 = vperm.xlu0 %5212, %v5200
  %v5214 = vpop.permute.xlu0 %5213
  %v5217 = vsel %vm3335, %v4977, 0
  %v5220 = vsel %vm3335, %v4979, 0
  %v5223 = vsel %vm3335, %v4981, 0
  %5225 = vmatprep.subr.mxu0 %v4983
  %5226 = vmatpush1.msra.mxu0 %v4982
  %5227 = vmatprep.subr.mxu0 %v4991
  %5228 = vmatpush1.msra.mxu0 %v4990
  %5229 = vmatprep.subr.mxu0 %v4999
  %5230 = vmatpush1.msra.mxu0 %v4998
  %5231 = vmatprep.subr.mxu0 %v5007
  %5232 = vmatpush1.msra.mxu0 %v5006
  %5233 = vmatprep.subr.mxu0 %v5015
  %5234 = vmatpush1.msra.mxu0 %v5014
  %5235 = vmatprep.subr.mxu0 %v5023
  %5236 = vmatpush1.msra.mxu0 %v5022
  %5237 = vmatprep.subr.mxu0 %v5031
  %5238 = vmatpush1.msra.mxu0 %v5030
  %5239 = vmatprep.subr.mxu0 %v5039
  %5240 = vmatpush1.msra.mxu0 %v5038
  %5241 = vmatprep.subr.mxu0 %v5047
  %5242 = vmatpush1.msra.mxu0 %v5046
  %5243 = vmatprep.subr.mxu0 %v5055
  %5244 = vmatpush1.msra.mxu0 %v5054
  %5245 = vmatprep.subr.mxu0 %v5063
  %5246 = vmatpush1.msra.mxu0 %v5062
  %5247 = vmatprep.subr.mxu0 %v5071
  %5248 = vmatpush1.msra.mxu0 %v5070
  %5249 = vmatprep.subr.mxu0 %v5079
  %5250 = vmatpush1.msra.mxu0 %v5078
  %5251 = vmatprep.subr.mxu0 %v5087
  %5252 = vmatpush1.msra.mxu0 %v5086
  %5253 = vmatprep.subr.mxu0 %v5095
  %5254 = vmatpush1.msra.mxu0 %v5094
  %5255 = vmatprep.subr.mxu0 %v5103
  %5256 = vmatpush1.msra.mxu0 %v5102
  %5257 = vmatprep.subr.mxu0 %v5111
  %5258 = vmatpush1.msra.mxu0 %v5110
  %5259 = vmatprep.subr.mxu0 %v5119
  %5260 = vmatpush1.msra.mxu0 %v5118
  %5261 = vmatprep.subr.mxu0 %v5127
  %5262 = vmatpush1.msra.mxu0 %v5126
  %5263 = vmatprep.subr.mxu0 %v5135
  %5264 = vmatpush1.msra.mxu0 %v5134
  %5265 = vmatprep.subr.mxu0 %v5143
  %5266 = vmatpush1.msra.mxu0 %v5142
  %5267 = vmatprep.subr.mxu0 %v5151
  %5268 = vmatpush1.msra.mxu0 %v5150
  %5269 = vmatprep.subr.mxu0 %v5159
  %5270 = vmatpush1.msra.mxu0 %v5158
  %5271 = vmatprep.subr.mxu0 %v5167
  %5272 = vmatpush1.msra.mxu0 %v5166
  %5273 = vmatprep.subr.mxu0 %v5175
  %5274 = vmatpush1.msra.mxu0 %v5174
  %5275 = vmatprep.subr.mxu0 %v5183
  %5276 = vmatpush1.msra.mxu0 %v5182
  %5277 = vmatprep.subr.mxu0 %v5191
  %5278 = vmatpush1.msra.mxu0 %v5190
  %5279 = vmatprep.subr.mxu0 0.0
  %5280 = vmatpush1.msra.mxu0 0.0
  %5281 = vmatprep.subr.mxu0 0.0
  %5282 = vmatpush1.msra.mxu0 0.0
  %5283 = vmatprep.subr.mxu0 0.0
  %5284 = vmatpush1.msra.mxu0 0.0
  %5285 = vmatprep.subr.mxu0 0.0
  %5286 = vmatpush1.msra.mxu0 0.0
  %5287 = vmatprep.subr.mxu0 0.0
  %5288 = vmatpush1.msra.mxu0 0.0
  %5289 = vmatprep.mubr.f32.mxu0 %v5217
  %5290 = vmatmul.mubr.f32.gmra.mrb[0].mxu0 %v4976
  %v5291 = vpop.f32.mrb[0].mxu0
  %v5292 = vadd.f32 %v5204, %v5291
  %v5293 = vpop.f32.mrb[0].mxu0
  %v5294 = vadd.f32 %v5204, %v5293
  %5295 = vmatprep.mubr.f32.mxu0 %v5220
  %5296 = vmatmul.mubr.f32.gmra.mrb[0].mxu0 %v4978
  %v5297 = vpop.f32.mrb[0].mxu0
  %v5298 = vadd.f32 %v5209, %v5297
  %v5299 = vpop.f32.mrb[0].mxu0
  %v5300 = vadd.f32 %v5209, %v5299
  %5301 = vmatprep.mubr.f32.mxu0 %v5223
  %5302 = vmatmul.mubr.f32.gmra.mrb[0].mxu0 %v4980
  %v5303 = vpop.f32.mrb[0].mxu0
  %v5304 = vadd.f32 %v5214, %v5303
  %v5305 = vpop.f32.mrb[0].mxu0
  %v5306 = vadd.f32 %v5214, %v5305
  %5307 = vdwg.mxu0
  %5308 = vmatprep.subr.mxu0 %v4985
  %5309 = vmatpush1.msra.mxu0 %v4984
  %5310 = vmatprep.subr.mxu0 %v4993
  %5311 = vmatpush1.msra.mxu0 %v4992
  %5312 = vmatprep.subr.mxu0 %v5001
  %5313 = vmatpush1.msra.mxu0 %v5000
  %5314 = vmatprep.subr.mxu0 %v5009
  %5315 = vmatpush1.msra.mxu0 %v5008
  %5316 = vmatprep.subr.mxu0 %v5017
  %5317 = vmatpush1.msra.mxu0 %v5016
  %5318 = vmatprep.subr.mxu0 %v5025
  %5319 = vmatpush1.msra.mxu0 %v5024
  %5320 = vmatprep.subr.mxu0 %v5033
  %5321 = vmatpush1.msra.mxu0 %v5032
  %5322 = vmatprep.subr.mxu0 %v5041
  %5323 = vmatpush1.msra.mxu0 %v5040
  %5324 = vmatprep.subr.mxu0 %v5049
  %5325 = vmatpush1.msra.mxu0 %v5048
  %5326 = vmatprep.subr.mxu0 %v5057
  %5327 = vmatpush1.msra.mxu0 %v5056
  %5328 = vmatprep.subr.mxu0 %v5065
  %5329 = vmatpush1.msra.mxu0 %v5064
  %5330 = vmatprep.subr.mxu0 %v5073
  %5331 = vmatpush1.msra.mxu0 %v5072
  %5332 = vmatprep.subr.mxu0 %v5081
  %5333 = vmatpush1.msra.mxu0 %v5080
  %5334 = vmatprep.subr.mxu0 %v5089
  %5335 = vmatpush1.msra.mxu0 %v5088
  %5336 = vmatprep.subr.mxu0 %v5097
  %5337 = vmatpush1.msra.mxu0 %v5096
  %5338 = vmatprep.subr.mxu0 %v5105
  %5339 = vmatpush1.msra.mxu0 %v5104
  %5340 = vmatprep.subr.mxu0 %v5113
  %5341 = vmatpush1.msra.mxu0 %v5112
  %5342 = vmatprep.subr.mxu0 %v5121
  %5343 = vmatpush1.msra.mxu0 %v5120
  %5344 = vmatprep.subr.mxu0 %v5129
  %5345 = vmatpush1.msra.mxu0 %v5128
  %5346 = vmatprep.subr.mxu0 %v5137
  %5347 = vmatpush1.msra.mxu0 %v5136
  %5348 = vmatprep.subr.mxu0 %v5145
  %5349 = vmatpush1.msra.mxu0 %v5144
  %5350 = vmatprep.subr.mxu0 %v5153
  %5351 = vmatpush1.msra.mxu0 %v5152
  %5352 = vmatprep.subr.mxu0 %v5161
  %5353 = vmatpush1.msra.mxu0 %v5160
  %5354 = vmatprep.subr.mxu0 %v5169
  %5355 = vmatpush1.msra.mxu0 %v5168
  %5356 = vmatprep.subr.mxu0 %v5177
  %5357 = vmatpush1.msra.mxu0 %v5176
  %5358 = vmatprep.subr.mxu0 %v5185
  %5359 = vmatpush1.msra.mxu0 %v5184
  %5360 = vmatprep.subr.mxu0 %v5193
  %5361 = vmatpush1.msra.mxu0 %v5192
  %5362 = vmatprep.subr.mxu0 0.0
  %5363 = vmatpush1.msra.mxu0 0.0
  %5364 = vmatprep.subr.mxu0 0.0
  %5365 = vmatpush1.msra.mxu0 0.0
  %5366 = vmatprep.subr.mxu0 0.0
  %5367 = vmatpush1.msra.mxu0 0.0
  %5368 = vmatprep.subr.mxu0 0.0
  %5369 = vmatpush1.msra.mxu0 0.0
  %5370 = vmatprep.subr.mxu0 0.0
  %5371 = vmatpush1.msra.mxu0 0.0
  %5372 = vmatprep.mubr.f32.mxu0 %v5217
  %5373 = vmatmul.mubr.f32.gmra.mrb[0].mxu0 %v4976
  %v5374 = vpop.f32.mrb[0].mxu0
  %v5375 = vadd.f32 %v5204, %v5374
  %v5376 = vpop.f32.mrb[0].mxu0
  %v5377 = vadd.f32 %v5204, %v5376
  %5378 = vmatprep.mubr.f32.mxu0 %v5220
  %5379 = vmatmul.mubr.f32.gmra.mrb[0].mxu0 %v4978
  %v5380 = vpop.f32.mrb[0].mxu0
  %v5381 = vadd.f32 %v5209, %v5380
  %v5382 = vpop.f32.mrb[0].mxu0
  %v5383 = vadd.f32 %v5209, %v5382
  %5384 = vmatprep.mubr.f32.mxu0 %v5223
  %5385 = vmatmul.mubr.f32.gmra.mrb[0].mxu0 %v4980
  %v5386 = vpop.f32.mrb[0].mxu0
  %v5387 = vadd.f32 %v5214, %v5386
  %v5388 = vpop.f32.mrb[0].mxu0
  %v5389 = vadd.f32 %v5214, %v5388
  %5390 = vdwg.mxu0
  %5391 = vmatprep.subr.mxu0 %v4987
  %5392 = vmatpush1.msra.mxu0 %v4986
  %5393 = vmatprep.subr.mxu0 %v4995
  %5394 = vmatpush1.msra.mxu0 %v4994
  %5395 = vmatprep.subr.mxu0 %v5003
  %5396 = vmatpush1.msra.mxu0 %v5002
  %5397 = vmatprep.subr.mxu0 %v5011
  %5398 = vmatpush1.msra.mxu0 %v5010
  %5399 = vmatprep.subr.mxu0 %v5019
  %5400 = vmatpush1.msra.mxu0 %v5018
  %5401 = vmatprep.subr.mxu0 %v5027
  %5402 = vmatpush1.msra.mxu0 %v5026
  %5403 = vmatprep.subr.mxu0 %v5035
  %5404 = vmatpush1.msra.mxu0 %v5034
  %5405 = vmatprep.subr.mxu0 %v5043
  %5406 = vmatpush1.msra.mxu0 %v5042
  %5407 = vmatprep.subr.mxu0 %v5051
  %5408 = vmatpush1.msra.mxu0 %v5050
  %5409 = vmatprep.subr.mxu0 %v5059
  %5410 = vmatpush1.msra.mxu0 %v5058
  %5411 = vmatprep.subr.mxu0 %v5067
  %5412 = vmatpush1.msra.mxu0 %v5066
  %5413 = vmatprep.subr.mxu0 %v5075
  %5414 = vmatpush1.msra.mxu0 %v5074
  %5415 = vmatprep.subr.mxu0 %v5083
  %5416 = vmatpush1.msra.mxu0 %v5082
  %5417 = vmatprep.subr.mxu0 %v5091
  %5418 = vmatpush1.msra.mxu0 %v5090
  %5419 = vmatprep.subr.mxu0 %v5099
  %5420 = vmatpush1.msra.mxu0 %v5098
  %5421 = vmatprep.subr.mxu0 %v5107
  %5422 = vmatpush1.msra.mxu0 %v5106
  %5423 = vmatprep.subr.mxu0 %v5115
  %5424 = vmatpush1.msra.mxu0 %v5114
  %5425 = vmatprep.subr.mxu0 %v5123
  %5426 = vmatpush1.msra.mxu0 %v5122
  %5427 = vmatprep.subr.mxu0 %v5131
  %5428 = vmatpush1.msra.mxu0 %v5130
  %5429 = vmatprep.subr.mxu0 %v5139
  %5430 = vmatpush1.msra.mxu0 %v5138
  %5431 = vmatprep.subr.mxu0 %v5147
  %5432 = vmatpush1.msra.mxu0 %v5146
  %5433 = vmatprep.subr.mxu0 %v5155
  %5434 = vmatpush1.msra.mxu0 %v5154
  %5435 = vmatprep.subr.mxu0 %v5163
  %5436 = vmatpush1.msra.mxu0 %v5162
  %5437 = vmatprep.subr.mxu0 %v5171
  %5438 = vmatpush1.msra.mxu0 %v5170
  %5439 = vmatprep.subr.mxu0 %v5179
  %5440 = vmatpush1.msra.mxu0 %v5178
  %5441 = vmatprep.subr.mxu0 %v5187
  %5442 = vmatpush1.msra.mxu0 %v5186
  %5443 = vmatprep.subr.mxu0 %v5195
  %5444 = vmatpush1.msra.mxu0 %v5194
  %5445 = vmatprep.subr.mxu0 0.0
  %5446 = vmatpush1.msra.mxu0 0.0
  %5447 = vmatprep.subr.mxu0 0.0
  %5448 = vmatpush1.msra.mxu0 0.0
  %5449 = vmatprep.subr.mxu0 0.0
  %5450 = vmatpush1.msra.mxu0 0.0
  %5451 = vmatprep.subr.mxu0 0.0
  %5452 = vmatpush1.msra.mxu0 0.0
  %5453 = vmatprep.subr.mxu0 0.0
  %5454 = vmatpush1.msra.mxu0 0.0
  %5455 = vmatprep.mubr.f32.mxu0 %v5217
  %5456 = vmatmul.mubr.f32.gmra.mrb[0].mxu0 %v4976
  %v5457 = vpop.f32.mrb[0].mxu0
  %v5458 = vadd.f32 %v5204, %v5457
  %v5459 = vpop.f32.mrb[0].mxu0
  %v5460 = vadd.f32 %v5204, %v5459
  %5461 = vmatprep.mubr.f32.mxu0 %v5220
  %5462 = vmatmul.mubr.f32.gmra.mrb[0].mxu0 %v4978
  %v5463 = vpop.f32.mrb[0].mxu0
  %v5464 = vadd.f32 %v5209, %v5463
  %v5465 = vpop.f32.mrb[0].mxu0
  %v5466 = vadd.f32 %v5209, %v5465
  %5467 = vmatprep.mubr.f32.mxu0 %v5223
  %5468 = vmatmul.mubr.f32.gmra.mrb[0].mxu0 %v4980
  %v5469 = vpop.f32.mrb[0].mxu0
  %v5470 = vadd.f32 %v5214, %v5469
  %v5471 = vpop.f32.mrb[0].mxu0
  %v5472 = vadd.f32 %v5214, %v5471
  %5473 = vdwg.mxu0
  %5474 = vmatprep.subr.mxu0 %v4989
  %5475 = vmatpush1.msra.mxu0 %v4988
  %5476 = vmatprep.subr.mxu0 %v4997
  %5477 = vmatpush1.msra.mxu0 %v4996
  %5478 = vmatprep.subr.mxu0 %v5005
  %5479 = vmatpush1.msra.mxu0 %v5004
  %5480 = vmatprep.subr.mxu0 %v5013
  %5481 = vmatpush1.msra.mxu0 %v5012
  %5482 = vmatprep.subr.mxu0 %v5021
  %5483 = vmatpush1.msra.mxu0 %v5020
  %5484 = vmatprep.subr.mxu0 %v5029
  %5485 = vmatpush1.msra.mxu0 %v5028
  %5486 = vmatprep.subr.mxu0 %v5037
  %5487 = vmatpush1.msra.mxu0 %v5036
  %5488 = vmatprep.subr.mxu0 %v5045
  %5489 = vmatpush1.msra.mxu0 %v5044
  %5490 = vmatprep.subr.mxu0 %v5053
  %5491 = vmatpush1.msra.mxu0 %v5052
  %5492 = vmatprep.subr.mxu0 %v5061
  %5493 = vmatpush1.msra.mxu0 %v5060
  %5494 = vmatprep.subr.mxu0 %v5069
  %5495 = vmatpush1.msra.mxu0 %v5068
  %5496 = vmatprep.subr.mxu0 %v5077
  %5497 = vmatpush1.msra.mxu0 %v5076
  %5498 = vmatprep.subr.mxu0 %v5085
  %5499 = vmatpush1.msra.mxu0 %v5084
  %5500 = vmatprep.subr.mxu0 %v5093
  %5501 = vmatpush1.msra.mxu0 %v5092
  %5502 = vmatprep.subr.mxu0 %v5101
  %5503 = vmatpush1.msra.mxu0 %v5100
  %5504 = vmatprep.subr.mxu0 %v5109
  %5505 = vmatpush1.msra.mxu0 %v5108
  %5506 = vmatprep.subr.mxu0 %v5117
  %5507 = vmatpush1.msra.mxu0 %v5116
  %5508 = vmatprep.subr.mxu0 %v5125
  %5509 = vmatpush1.msra.mxu0 %v5124
  %5510 = vmatprep.subr.mxu0 %v5133
  %5511 = vmatpush1.msra.mxu0 %v5132
  %5512 = vmatprep.subr.mxu0 %v5141
  %5513 = vmatpush1.msra.mxu0 %v5140
  %5514 = vmatprep.subr.mxu0 %v5149
  %5515 = vmatpush1.msra.mxu0 %v5148
  %5516 = vmatprep.subr.mxu0 %v5157
  %5517 = vmatpush1.msra.mxu0 %v5156
  %5518 = vmatprep.subr.mxu0 %v5165
  %5519 = vmatpush1.msra.mxu0 %v5164
  %5520 = vmatprep.subr.mxu0 %v5173
  %5521 = vmatpush1.msra.mxu0 %v5172
  %5522 = vmatprep.subr.mxu0 %v5181
  %5523 = vmatpush1.msra.mxu0 %v5180
  %5524 = vmatprep.subr.mxu0 %v5189
  %5525 = vmatpush1.msra.mxu0 %v5188
  %5526 = vmatprep.subr.mxu0 %v5197
  %5527 = vmatpush1.msra.mxu0 %v5196
  %5528 = vmatprep.subr.mxu0 0.0
  %5529 = vmatpush1.msra.mxu0 0.0
  %5530 = vmatprep.subr.mxu0 0.0
  %5531 = vmatpush1.msra.mxu0 0.0
  %5532 = vmatprep.subr.mxu0 0.0
  %5533 = vmatpush1.msra.mxu0 0.0
  %5534 = vmatprep.subr.mxu0 0.0
  %5535 = vmatpush1.msra.mxu0 0.0
  %5536 = vmatprep.subr.mxu0 0.0
  %5537 = vmatpush1.msra.mxu0 0.0
  %5538 = vmatprep.mubr.f32.mxu0 %v5217
  %5539 = vmatmul.mubr.f32.gmra.mrb[0].mxu0 %v4976
  %v5540 = vpop.f32.mrb[0].mxu0
  %v5541 = vadd.f32 %v5204, %v5540
  %v5542 = vpop.f32.mrb[0].mxu0
  %v5543 = vadd.f32 %v5204, %v5542
  %5544 = vmatprep.mubr.f32.mxu0 %v5220
  %5545 = vmatmul.mubr.f32.gmra.mrb[0].mxu0 %v4978
  %v5546 = vpop.f32.mrb[0].mxu0
  %v5547 = vadd.f32 %v5209, %v5546
  %v5548 = vpop.f32.mrb[0].mxu0
  %v5549 = vadd.f32 %v5209, %v5548
  %5550 = vmatprep.mubr.f32.mxu0 %v5223
  %5551 = vmatmul.mubr.f32.gmra.mrb[0].mxu0 %v4980
  %v5552 = vpop.f32.mrb[0].mxu0
  %v5553 = vadd.f32 %v5214, %v5552
  %v5554 = vpop.f32.mrb[0].mxu0
  %v5555 = vadd.f32 %v5214, %v5554
  %5556 = vdwg.mxu0
  %v5557 = vadd.f32 %v5292, %v5294
  %v5558 = vadd.f32 %v5557, %v5375
  %v5559 = vadd.f32 %v5558, %v5377
  %v5560 = vadd.f32 %v5559, %v5458
  %v5561 = vadd.f32 %v5560, %v5460
  %v5562 = vadd.f32 %v5561, %v5541
  %v5563 = vadd.f32 %v5562, %v5543
  %5564 = vadd.xlane.f32.xlu0 %v5563
  %v5565 = vpop.xlane.xlu0 %5564
  %v5566 = vadd.f32 %v5298, %v5300
  %v5567 = vadd.f32 %v5566, %v5381
  %v5568 = vadd.f32 %v5567, %v5383
  %v5569 = vadd.f32 %v5568, %v5464
  %v5570 = vadd.f32 %v5569, %v5466
  %v5571 = vadd.f32 %v5570, %v5547
  %v5572 = vadd.f32 %v5571, %v5549
  %5573 = vadd.xlane.f32.xlu0 %v5572
  %v5574 = vpop.xlane.xlu0 %5573
  %v5575 = vadd.f32 %v5304, %v5306
  %v5576 = vadd.f32 %v5575, %v5387
  %v5577 = vadd.f32 %v5576, %v5389
  %v5578 = vadd.f32 %v5577, %v5470
  %v5579 = vadd.f32 %v5578, %v5472
  %v5580 = vadd.f32 %v5579, %v5553
  %v5581 = vadd.f32 %v5580, %v5555
  %5582 = vadd.xlane.f32.xlu0 %v5581
  %v5583 = vpop.xlane.xlu0 %5582
  %v5584 = vmul.f32 %v5292, %v5292
  %v5585 = vmul.f32 %v5294, %v5294
  %v5586 = vmul.f32 %v5375, %v5375
  %v5587 = vmul.f32 %v5377, %v5377
  %v5588 = vmul.f32 %v5458, %v5458
  %v5589 = vmul.f32 %v5460, %v5460
  %v5590 = vmul.f32 %v5541, %v5541
  %v5591 = vmul.f32 %v5543, %v5543
  %v5592 = vmul.f32 %v5298, %v5298
  %v5593 = vmul.f32 %v5300, %v5300
  %v5594 = vmul.f32 %v5381, %v5381
  %v5595 = vmul.f32 %v5383, %v5383
  %v5596 = vmul.f32 %v5464, %v5464
  %v5597 = vmul.f32 %v5466, %v5466
  %v5598 = vmul.f32 %v5547, %v5547
  %v5599 = vmul.f32 %v5549, %v5549
  %v5600 = vmul.f32 %v5304, %v5304
  %v5601 = vmul.f32 %v5306, %v5306
  %v5602 = vmul.f32 %v5387, %v5387
  %v5603 = vmul.f32 %v5389, %v5389
  %v5604 = vmul.f32 %v5470, %v5470
  %v5605 = vmul.f32 %v5472, %v5472
  %v5606 = vmul.f32 %v5553, %v5553
  %v5607 = vmul.f32 %v5555, %v5555
  %v5608 = vadd.f32 %v5584, %v5585
  %v5609 = vadd.f32 %v5608, %v5586
  %v5610 = vadd.f32 %v5609, %v5587
  %v5611 = vadd.f32 %v5610, %v5588
  %v5612 = vadd.f32 %v5611, %v5589
  %v5613 = vadd.f32 %v5612, %v5590
  %v5614 = vadd.f32 %v5613, %v5591
  %5615 = vadd.xlane.f32.xlu0 %v5614
  %v5616 = vpop.xlane.xlu0 %5615
  %v5617 = vadd.f32 %v5592, %v5593
  %v5618 = vadd.f32 %v5617, %v5594
  %v5619 = vadd.f32 %v5618, %v5595
  %v5620 = vadd.f32 %v5619, %v5596
  %v5621 = vadd.f32 %v5620, %v5597
  %v5622 = vadd.f32 %v5621, %v5598
  %v5623 = vadd.f32 %v5622, %v5599
  %5624 = vadd.xlane.f32.xlu0 %v5623
  %v5625 = vpop.xlane.xlu0 %5624
  %v5626 = vadd.f32 %v5600, %v5601
  %v5627 = vadd.f32 %v5626, %v5602
  %v5628 = vadd.f32 %v5627, %v5603
  %v5629 = vadd.f32 %v5628, %v5604
  %v5630 = vadd.f32 %v5629, %v5605
  %v5631 = vadd.f32 %v5630, %v5606
  %v5632 = vadd.f32 %v5631, %v5607
  %5633 = vadd.xlane.f32.xlu0 %v5632
  %v5634 = vpop.xlane.xlu0 %5633
  %v5635 = vmul.f32 %v5565, 0.0009765625
  %v5636 = vmul.f32 %v5574, 0.0009765625
  %v5637 = vmul.f32 %v5583, 0.0009765625
  %v5638 = vmul.f32 %v5616, 0.0009765625
  %v5639 = vmul.f32 %v5625, 0.0009765625
  %v5640 = vmul.f32 %v5634, 0.0009765625
  %v5641 = vmul.f32 %v5635, %v5635
  %v5642 = vmul.f32 %v5636, %v5636
  %v5643 = vmul.f32 %v5637, %v5637
  %v5644 = vsub.f32 %v5638, %v5641
  %v5645 = vsub.f32 %v5639, %v5642
  %v5646 = vsub.f32 %v5640, %v5643
  %v5647 = vmax.f32 %v5644, 0.0
  %v5648 = vmax.f32 %v5645, 0.0
  %v5649 = vmax.f32 %v5646, 0.0
  %v5650 = vsub.f32 %v5292, %v5635
  %v5651 = vsub.f32 %v5294, %v5635
  %v5652 = vsub.f32 %v5375, %v5635
  %v5653 = vsub.f32 %v5377, %v5635
  %v5654 = vsub.f32 %v5458, %v5635
  %v5655 = vsub.f32 %v5460, %v5635
  %v5656 = vsub.f32 %v5541, %v5635
  %v5657 = vsub.f32 %v5543, %v5635
  %v5658 = vsub.f32 %v5298, %v5636
  %v5659 = vsub.f32 %v5300, %v5636
  %v5660 = vsub.f32 %v5381, %v5636
  %v5661 = vsub.f32 %v5383, %v5636
  %v5662 = vsub.f32 %v5464, %v5636
  %v5663 = vsub.f32 %v5466, %v5636
  %v5664 = vsub.f32 %v5547, %v5636
  %v5665 = vsub.f32 %v5549, %v5636
  %v5666 = vsub.f32 %v5304, %v5637
  %v5667 = vsub.f32 %v5306, %v5637
  %v5668 = vsub.f32 %v5387, %v5637
  %v5669 = vsub.f32 %v5389, %v5637
  %v5670 = vsub.f32 %v5470, %v5637
  %v5671 = vsub.f32 %v5472, %v5637
  %v5672 = vsub.f32 %v5553, %v5637
  %v5673 = vsub.f32 %v5555, %v5637
  %v5674 = vadd.f32 %v5647, 1e-05
  %v5675 = vadd.f32 %v5648, 1e-05
  %v5676 = vadd.f32 %v5649, 1e-05
  %v5677 = vrsqrt.pop %v5674
  %v5678 = vrsqrt.pop %v5675
  %v5679 = vrsqrt.pop %v5676
  %v5680 = vmul.f32 %v5650, %v5677
  %v5681 = vmul.f32 %v5651, %v5677
  %v5682 = vmul.f32 %v5652, %v5677
  %v5683 = vmul.f32 %v5653, %v5677
  %v5684 = vmul.f32 %v5654, %v5677
  %v5685 = vmul.f32 %v5655, %v5677
  %v5686 = vmul.f32 %v5656, %v5677
  %v5687 = vmul.f32 %v5657, %v5677
  %v5688 = vmul.f32 %v5658, %v5678
  %v5689 = vmul.f32 %v5659, %v5678
  %v5690 = vmul.f32 %v5660, %v5678
  %v5691 = vmul.f32 %v5661, %v5678
  %v5692 = vmul.f32 %v5662, %v5678
  %v5693 = vmul.f32 %v5663, %v5678
  %v5694 = vmul.f32 %v5664, %v5678
  %v5695 = vmul.f32 %v5665, %v5678
  %v5696 = vmul.f32 %v5666, %v5679
  %v5697 = vmul.f32 %v5667, %v5679
  %v5698 = vmul.f32 %v5668, %v5679
  %v5699 = vmul.f32 %v5669, %v5679
  %v5700 = vmul.f32 %v5670, %v5679
  %v5701 = vmul.f32 %v5671, %v5679
  %v5702 = vmul.f32 %v5672, %v5679
  %v5703 = vmul.f32 %v5673, %v5679
  %vm5704 = vcmp.ge.f32.partialorder %v5680, 0.0
  %vm5705 = vcmp.ge.f32.partialorder %v5681, 0.0
  %vm5706 = vcmp.ge.f32.partialorder %v5682, 0.0
  %vm5707 = vcmp.ge.f32.partialorder %v5683, 0.0
  %vm5708 = vcmp.ge.f32.partialorder %v5684, 0.0
  %vm5709 = vcmp.ge.f32.partialorder %v5685, 0.0
  %vm5710 = vcmp.ge.f32.partialorder %v5686, 0.0
  %vm5711 = vcmp.ge.f32.partialorder %v5687, 0.0
  %vm5712 = vcmp.ge.f32.partialorder %v5688, 0.0
  %vm5713 = vcmp.ge.f32.partialorder %v5689, 0.0
  %vm5714 = vcmp.ge.f32.partialorder %v5690, 0.0
  %vm5715 = vcmp.ge.f32.partialorder %v5691, 0.0
  %vm5716 = vcmp.ge.f32.partialorder %v5692, 0.0
  %vm5717 = vcmp.ge.f32.partialorder %v5693, 0.0
  %vm5718 = vcmp.ge.f32.partialorder %v5694, 0.0
  %vm5719 = vcmp.ge.f32.partialorder %v5695, 0.0
  %vm5720 = vcmp.ge.f32.partialorder %v5696, 0.0
  %vm5721 = vcmp.ge.f32.partialorder %v5697, 0.0
  %vm5722 = vcmp.ge.f32.partialorder %v5698, 0.0
  %vm5723 = vcmp.ge.f32.partialorder %v5699, 0.0
  %vm5724 = vcmp.ge.f32.partialorder %v5700, 0.0
  %vm5725 = vcmp.ge.f32.partialorder %v5701, 0.0
  %vm5726 = vcmp.ge.f32.partialorder %v5702, 0.0
  %vm5727 = vcmp.ge.f32.partialorder %v5703, 0.0
  %v5728 = vmul.f32 %v465, %v5680
  %v5729 = vmul.f32 %v465, %v5681
  %v5730 = vmul.f32 %v465, %v5682
  %v5731 = vmul.f32 %v465, %v5683
  %v5732 = vmul.f32 %v465, %v5684
  %v5733 = vmul.f32 %v465, %v5685
  %v5734 = vmul.f32 %v465, %v5686
  %v5735 = vmul.f32 %v465, %v5687
  %v5736 = vmul.f32 %v465, %v5688
  %v5737 = vmul.f32 %v465, %v5689
  %v5738 = vmul.f32 %v465, %v5690
  %v5739 = vmul.f32 %v465, %v5691
  %v5740 = vmul.f32 %v465, %v5692
  %v5741 = vmul.f32 %v465, %v5693
  %v5742 = vmul.f32 %v465, %v5694
  %v5743 = vmul.f32 %v465, %v5695
  %v5744 = vmul.f32 %v465, %v5696
  %v5745 = vmul.f32 %v465, %v5697
  %v5746 = vmul.f32 %v465, %v5698
  %v5747 = vmul.f32 %v465, %v5699
  %v5748 = vmul.f32 %v465, %v5700
  %v5749 = vmul.f32 %v465, %v5701
  %v5750 = vmul.f32 %v465, %v5702
  %v5751 = vmul.f32 %v465, %v5703
  %v5752 = vsel %vm5704, %v5680, %v5728
  %v5753 = vsel %vm5705, %v5681, %v5729
  %v5754 = vsel %vm5706, %v5682, %v5730
  %v5755 = vsel %vm5707, %v5683, %v5731
  %v5756 = vsel %vm5708, %v5684, %v5732
  %v5757 = vsel %vm5709, %v5685, %v5733
  %v5758 = vsel %vm5710, %v5686, %v5734
  %v5759 = vsel %vm5711, %v5687, %v5735
  %v5760 = vsel %vm5712, %v5688, %v5736
  %v5761 = vsel %vm5713, %v5689, %v5737
  %v5762 = vsel %vm5714, %v5690, %v5738
  %v5763 = vsel %vm5715, %v5691, %v5739
  %v5764 = vsel %vm5716, %v5692, %v5740
  %v5765 = vsel %vm5717, %v5693, %v5741
  %v5766 = vsel %vm5718, %v5694, %v5742
  %v5767 = vsel %vm5719, %v5695, %v5743
  %v5768 = vsel %vm5720, %v5696, %v5744
  %v5769 = vsel %vm5721, %v5697, %v5745
  %v5770 = vsel %vm5722, %v5698, %v5746
  %v5771 = vsel %vm5723, %v5699, %v5747
  %v5772 = vsel %vm5724, %v5700, %v5748
  %v5773 = vsel %vm5725, %v5701, %v5749
  %v5774 = vsel %vm5726, %v5702, %v5750
  %v5775 = vsel %vm5727, %v5703, %v5751
  %v5776 = vld [vmem:[%s8] sm:$0x3f]
  %v5777 = vld [vmem:[%s9] sm:$0x3f]
  %5779 = vset.pattern.permute.xlu0 0
  %5780 = vperm.xlu0 %5779, %v5777
  %v5781 = vpop.permute.xlu0 %5780
  %vm5783 = vcmask 195584
  %v5785 = vsel %vm5783, %v5776, 0
  %5787 = vmatprep.subr.mxu0 %v5753
  %5788 = vmatpush1.msra.mxu0 %v5752
  %5789 = vmatprep.subr.mxu0 %v5761
  %5790 = vmatpush1.msra.mxu0 %v5760
  %5791 = vmatprep.subr.mxu0 %v5769
  %5792 = vmatpush1.msra.mxu0 %v5768
  %5793 = vmatprep.subr.mxu0 0.0
  %5794 = vmatpush1.msra.mxu0 0.0
  %5795 = vmatprep.subr.mxu0 0.0
  %5796 = vmatpush1.msra.mxu0 0.0
  %5797 = vmatprep.subr.mxu0 0.0
  %5798 = vmatpush1.msra.mxu0 0.0
  %5799 = vmatprep.subr.mxu0 0.0
  %5800 = vmatpush1.msra.mxu0 0.0
  %5801 = vmatprep.subr.mxu0 0.0
  %5802 = vmatpush1.msra.mxu0 0.0
  %5803 = vmatprep.subr.mxu0 0.0
  %5804 = vmatpush1.msra.mxu0 0.0
  %5805 = vmatprep.subr.mxu0 0.0
  %5806 = vmatpush1.msra.mxu0 0.0
  %5807 = vmatprep.subr.mxu0 0.0
  %5808 = vmatpush1.msra.mxu0 0.0
  %5809 = vmatprep.subr.mxu0 0.0
  %5810 = vmatpush1.msra.mxu0 0.0
  %5811 = vmatprep.subr.mxu0 0.0
  %5812 = vmatpush1.msra.mxu0 0.0
  %5813 = vmatprep.subr.mxu0 0.0
  %5814 = vmatpush1.msra.mxu0 0.0
  %5815 = vmatprep.subr.mxu0 0.0
  %5816 = vmatpush1.msra.mxu0 0.0
  %5817 = vmatprep.subr.mxu0 0.0
  %5818 = vmatpush1.msra.mxu0 0.0
  %5819 = vmatprep.subr.mxu0 0.0
  %5820 = vmatpush1.msra.mxu0 0.0
  %5821 = vmatprep.subr.mxu0 0.0
  %5822 = vmatpush1.msra.mxu0 0.0
  %5823 = vmatprep.subr.mxu0 0.0
  %5824 = vmatpush1.msra.mxu0 0.0
  %5825 = vmatprep.subr.mxu0 0.0
  %5826 = vmatpush1.msra.mxu0 0.0
  %5827 = vmatprep.subr.mxu0 0.0
  %5828 = vmatpush1.msra.mxu0 0.0
  %5829 = vmatprep.subr.mxu0 0.0
  %5830 = vmatpush1.msra.mxu0 0.0
  %5831 = vmatprep.subr.mxu0 0.0
  %5832 = vmatpush1.msra.mxu0 0.0
  %5833 = vmatprep.subr.mxu0 0.0
  %5834 = vmatpush1.msra.mxu0 0.0
  %5835 = vmatprep.subr.mxu0 0.0
  %5836 = vmatpush1.msra.mxu0 0.0
  %5837 = vmatprep.subr.mxu0 0.0
  %5838 = vmatpush1.msra.mxu0 0.0
  %5839 = vmatprep.subr.mxu0 0.0
  %5840 = vmatpush1.msra.mxu0 0.0
  %5841 = vmatprep.subr.mxu0 0.0
  %5842 = vmatpush1.msra.mxu0 0.0
  %5843 = vmatprep.subr.mxu0 0.0
  %5844 = vmatpush1.msra.mxu0 0.0
  %5845 = vmatprep.subr.mxu0 0.0
  %5846 = vmatpush1.msra.mxu0 0.0
  %5847 = vmatprep.subr.mxu0 0.0
  %5848 = vmatpush1.msra.mxu0 0.0
  %5849 = vmatprep.subr.mxu0 0.0
  %5850 = vmatpush1.msra.mxu0 0.0
  %5851 = vmatprep.mubr.f32.mxu0 0.0
  %5852 = vmatmul.mubr.f32.gmra.mrb[0].mxu0 %v5785
  %v5853 = vpop.f32.mrb[0].mxu0
  %v5854 = vadd.f32 %v5781, %v5853
  %v5855 = vpop.f32.mrb[0].mxu0
  %v5856 = vadd.f32 %v5781, %v5855
  %5857 = vdwg.mxu0
  %5858 = vmatprep.subr.mxu0 %v5755
  %5859 = vmatpush1.msra.mxu0 %v5754
  %5860 = vmatprep.subr.mxu0 %v5763
  %5861 = vmatpush1.msra.mxu0 %v5762
  %5862 = vmatprep.subr.mxu0 %v5771
  %5863 = vmatpush1.msra.mxu0 %v5770
  %5864 = vmatprep.subr.mxu0 0.0
  %5865 = vmatpush1.msra.mxu0 0.0
  %5866 = vmatprep.subr.mxu0 0.0
  %5867 = vmatpush1.msra.mxu0 0.0
  %5868 = vmatprep.subr.mxu0 0.0
  %5869 = vmatpush1.msra.mxu0 0.0
  %5870 = vmatprep.subr.mxu0 0.0
  %5871 = vmatpush1.msra.mxu0 0.0
  %5872 = vmatprep.subr.mxu0 0.0
  %5873 = vmatpush1.msra.mxu0 0.0
  %5874 = vmatprep.subr.mxu0 0.0
  %5875 = vmatpush1.msra.mxu0 0.0
  %5876 = vmatprep.subr.mxu0 0.0
  %5877 = vmatpush1.msra.mxu0 0.0
  %5878 = vmatprep.subr.mxu0 0.0
  %5879 = vmatpush1.msra.mxu0 0.0
  %5880 = vmatprep.subr.mxu0 0.0
  %5881 = vmatpush1.msra.mxu0 0.0
  %5882 = vmatprep.subr.mxu0 0.0
  %5883 = vmatpush1.msra.mxu0 0.0
  %5884 = vmatprep.subr.mxu0 0.0
  %5885 = vmatpush1.msra.mxu0 0.0
  %5886 = vmatprep.subr.mxu0 0.0
  %5887 = vmatpush1.msra.mxu0 0.0
  %5888 = vmatprep.subr.mxu0 0.0
  %5889 = vmatpush1.msra.mxu0 0.0
  %5890 = vmatprep.subr.mxu0 0.0
  %5891 = vmatpush1.msra.mxu0 0.0
  %5892 = vmatprep.subr.mxu0 0.0
  %5893 = vmatpush1.msra.mxu0 0.0
  %5894 = vmatprep.subr.mxu0 0.0
  %5895 = vmatpush1.msra.mxu0 0.0
  %5896 = vmatprep.subr.mxu0 0.0
  %5897 = vmatpush1.msra.mxu0 0.0
  %5898 = vmatprep.subr.mxu0 0.0
  %5899 = vmatpush1.msra.mxu0 0.0
  %5900 = vmatprep.subr.mxu0 0.0
  %5901 = vmatpush1.msra.mxu0 0.0
  %5902 = vmatprep.subr.mxu0 0.0
  %5903 = vmatpush1.msra.mxu0 0.0
  %5904 = vmatprep.subr.mxu0 0.0
  %5905 = vmatpush1.msra.mxu0 0.0
  %5906 = vmatprep.subr.mxu0 0.0
  %5907 = vmatpush1.msra.mxu0 0.0
  %5908 = vmatprep.subr.mxu0 0.0
  %5909 = vmatpush1.msra.mxu0 0.0
  %5910 = vmatprep.subr.mxu0 0.0
  %5911 = vmatpush1.msra.mxu0 0.0
  %5912 = vmatprep.subr.mxu0 0.0
  %5913 = vmatpush1.msra.mxu0 0.0
  %5914 = vmatprep.subr.mxu0 0.0
  %5915 = vmatpush1.msra.mxu0 0.0
  %5916 = vmatprep.subr.mxu0 0.0
  %5917 = vmatpush1.msra.mxu0 0.0
  %5918 = vmatprep.subr.mxu0 0.0
  %5919 = vmatpush1.msra.mxu0 0.0
  %5920 = vmatprep.subr.mxu0 0.0
  %5921 = vmatpush1.msra.mxu0 0.0
  %5922 = vmatprep.mubr.f32.mxu0 0.0
  %5923 = vmatmul.mubr.f32.gmra.mrb[0].mxu0 %v5785
  %v5924 = vpop.f32.mrb[0].mxu0
  %v5925 = vadd.f32 %v5781, %v5924
  %v5926 = vpop.f32.mrb[0].mxu0
  %v5927 = vadd.f32 %v5781, %v5926
  %5928 = vdwg.mxu0
  %5929 = vmatprep.subr.mxu0 %v5757
  %5930 = vmatpush1.msra.mxu0 %v5756
  %5931 = vmatprep.subr.mxu0 %v5765
  %5932 = vmatpush1.msra.mxu0 %v5764
  %5933 = vmatprep.subr.mxu0 %v5773
  %5934 = vmatpush1.msra.mxu0 %v5772
  %5935 = vmatprep.subr.mxu0 0.0
  %5936 = vmatpush1.msra.mxu0 0.0
  %5937 = vmatprep.subr.mxu0 0.0
  %5938 = vmatpush1.msra.mxu0 0.0
  %5939 = vmatprep.subr.mxu0 0.0
  %5940 = vmatpush1.msra.mxu0 0.0
  %5941 = vmatprep.subr.mxu0 0.0
  %5942 = vmatpush1.msra.mxu0 0.0
  %5943 = vmatprep.subr.mxu0 0.0
  %5944 = vmatpush1.msra.mxu0 0.0
  %5945 = vmatprep.subr.mxu0 0.0
  %5946 = vmatpush1.msra.mxu0 0.0
  %5947 = vmatprep.subr.mxu0 0.0
  %5948 = vmatpush1.msra.mxu0 0.0
  %5949 = vmatprep.subr.mxu0 0.0
  %5950 = vmatpush1.msra.mxu0 0.0
  %5951 = vmatprep.subr.mxu0 0.0
  %5952 = vmatpush1.msra.mxu0 0.0
  %5953 = vmatprep.subr.mxu0 0.0
  %5954 = vmatpush1.msra.mxu0 0.0
  %5955 = vmatprep.subr.mxu0 0.0
  %5956 = vmatpush1.msra.mxu0 0.0
  %5957 = vmatprep.subr.mxu0 0.0
  %5958 = vmatpush1.msra.mxu0 0.0
  %5959 = vmatprep.subr.mxu0 0.0
  %5960 = vmatpush1.msra.mxu0 0.0
  %5961 = vmatprep.subr.mxu0 0.0
  %5962 = vmatpush1.msra.mxu0 0.0
  %5963 = vmatprep.subr.mxu0 0.0
  %5964 = vmatpush1.msra.mxu0 0.0
  %5965 = vmatprep.subr.mxu0 0.0
  %5966 = vmatpush1.msra.mxu0 0.0
  %5967 = vmatprep.subr.mxu0 0.0
  %5968 = vmatpush1.msra.mxu0 0.0
  %5969 = vmatprep.subr.mxu0 0.0
  %5970 = vmatpush1.msra.mxu0 0.0
  %5971 = vmatprep.subr.mxu0 0.0
  %5972 = vmatpush1.msra.mxu0 0.0
  %5973 = vmatprep.subr.mxu0 0.0
  %5974 = vmatpush1.msra.mxu0 0.0
  %5975 = vmatprep.subr.mxu0 0.0
  %5976 = vmatpush1.msra.mxu0 0.0
  %5977 = vmatprep.subr.mxu0 0.0
  %5978 = vmatpush1.msra.mxu0 0.0
  %5979 = vmatprep.subr.mxu0 0.0
  %5980 = vmatpush1.msra.mxu0 0.0
  %5981 = vmatprep.subr.mxu0 0.0
  %5982 = vmatpush1.msra.mxu0 0.0
  %5983 = vmatprep.subr.mxu0 0.0
  %5984 = vmatpush1.msra.mxu0 0.0
  %5985 = vmatprep.subr.mxu0 0.0
  %5986 = vmatpush1.msra.mxu0 0.0
  %5987 = vmatprep.subr.mxu0 0.0
  %5988 = vmatpush1.msra.mxu0 0.0
  %5989 = vmatprep.subr.mxu0 0.0
  %5990 = vmatpush1.msra.mxu0 0.0
  %5991 = vmatprep.subr.mxu0 0.0
  %5992 = vmatpush1.msra.mxu0 0.0
  %5993 = vmatprep.mubr.f32.mxu0 0.0
  %5994 = vmatmul.mubr.f32.gmra.mrb[0].mxu0 %v5785
  %v5995 = vpop.f32.mrb[0].mxu0
  %v5996 = vadd.f32 %v5781, %v5995
  %v5997 = vpop.f32.mrb[0].mxu0
  %v5998 = vadd.f32 %v5781, %v5997
  %5999 = vdwg.mxu0
  %6000 = vmatprep.subr.mxu0 %v5759
  %6001 = vmatpush1.msra.mxu0 %v5758
  %6002 = vmatprep.subr.mxu0 %v5767
  %6003 = vmatpush1.msra.mxu0 %v5766
  %6004 = vmatprep.subr.mxu0 %v5775
  %6005 = vmatpush1.msra.mxu0 %v5774
  %6006 = vmatprep.subr.mxu0 0.0
  %6007 = vmatpush1.msra.mxu0 0.0
  %6008 = vmatprep.subr.mxu0 0.0
  %6009 = vmatpush1.msra.mxu0 0.0
  %6010 = vmatprep.subr.mxu0 0.0
  %6011 = vmatpush1.msra.mxu0 0.0
  %6012 = vmatprep.subr.mxu0 0.0
  %6013 = vmatpush1.msra.mxu0 0.0
  %6014 = vmatprep.subr.mxu0 0.0
  %6015 = vmatpush1.msra.mxu0 0.0
  %6016 = vmatprep.subr.mxu0 0.0
  %6017 = vmatpush1.msra.mxu0 0.0
  %6018 = vmatprep.subr.mxu0 0.0
  %6019 = vmatpush1.msra.mxu0 0.0
  %6020 = vmatprep.subr.mxu0 0.0
  %6021 = vmatpush1.msra.mxu0 0.0
  %6022 = vmatprep.subr.mxu0 0.0
  %6023 = vmatpush1.msra.mxu0 0.0
  %6024 = vmatprep.subr.mxu0 0.0
  %6025 = vmatpush1.msra.mxu0 0.0
  %6026 = vmatprep.subr.mxu0 0.0
  %6027 = vmatpush1.msra.mxu0 0.0
  %6028 = vmatprep.subr.mxu0 0.0
  %6029 = vmatpush1.msra.mxu0 0.0
  %6030 = vmatprep.subr.mxu0 0.0
  %6031 = vmatpush1.msra.mxu0 0.0
  %6032 = vmatprep.subr.mxu0 0.0
  %6033 = vmatpush1.msra.mxu0 0.0
  %6034 = vmatprep.subr.mxu0 0.0
  %6035 = vmatpush1.msra.mxu0 0.0
  %6036 = vmatprep.subr.mxu0 0.0
  %6037 = vmatpush1.msra.mxu0 0.0
  %6038 = vmatprep.subr.mxu0 0.0
  %6039 = vmatpush1.msra.mxu0 0.0
  %6040 = vmatprep.subr.mxu0 0.0
  %6041 = vmatpush1.msra.mxu0 0.0
  %6042 = vmatprep.subr.mxu0 0.0
  %6043 = vmatpush1.msra.mxu0 0.0
  %6044 = vmatprep.subr.mxu0 0.0
  %6045 = vmatpush1.msra.mxu0 0.0
  %6046 = vmatprep.subr.mxu0 0.0
  %6047 = vmatpush1.msra.mxu0 0.0
  %6048 = vmatprep.subr.mxu0 0.0
  %6049 = vmatpush1.msra.mxu0 0.0
  %6050 = vmatprep.subr.mxu0 0.0
  %6051 = vmatpush1.msra.mxu0 0.0
  %6052 = vmatprep.subr.mxu0 0.0
  %6053 = vmatpush1.msra.mxu0 0.0
  %6054 = vmatprep.subr.mxu0 0.0
  %6055 = vmatpush1.msra.mxu0 0.0
  %6056 = vmatprep.subr.mxu0 0.0
  %6057 = vmatpush1.msra.mxu0 0.0
  %6058 = vmatprep.subr.mxu0 0.0
  %6059 = vmatpush1.msra.mxu0 0.0
  %6060 = vmatprep.subr.mxu0 0.0
  %6061 = vmatpush1.msra.mxu0 0.0
  %6062 = vmatprep.subr.mxu0 0.0
  %6063 = vmatpush1.msra.mxu0 0.0
  %6064 = vmatprep.mubr.f32.mxu0 0.0
  %6065 = vmatmul.mubr.f32.gmra.mrb[0].mxu0 %v5785
  %v6066 = vpop.f32.mrb[0].mxu0
  %v6067 = vadd.f32 %v5781, %v6066
  %v6068 = vpop.f32.mrb[0].mxu0
  %v6069 = vadd.f32 %v5781, %v6068
  %6070 = vdwg.mxu0
  %6071 = vst [vmem:[%s10] sm:$0x3f] %v5854
  %6072 = vst [vmem:[%s10 + $0x8] sm:$0x3f] %v5856
  %6073 = vst [vmem:[%s10 + $0x10] sm:$0x3f] %v5925
  %6074 = vst [vmem:[%s10 + $0x18] sm:$0x3f] %v5927
  %6075 = vst [vmem:[%s10 + $0x20] sm:$0x3f] %v5996
  %6076 = vst [vmem:[%s10 + $0x28] sm:$0x3f] %v5998
  %6077 = vst [vmem:[%s10 + $0x30] sm:$0x3f] %v6067
  %6078 = vst [vmem:[%s10 + $0x38] sm:$0x3f] %v6069
  // Predicated region
  $region42: #{tpu_custom_call.1} parent=0 // pred_check
    _
  $region43: #{tpu_custom_call.1} parent=0 // pred_check_branch
    %6080 = sbr.rel (0) target = $region45
  $region44: #{tpu_custom_call.1} parent=0 // pred_region
    _
  $region45: #{tpu_custom_call.1} parent=0 // pred_fallthru
    _
  // Predicated region
  $region46: #{tpu_custom_call.1} parent=0 // pred_check
    _
  $region47: #{tpu_custom_call.1} parent=0 // pred_check_branch
    %6082 = sbr.rel (0) target = $region49
  $region48: #{tpu_custom_call.1} parent=0 // pred_region
    _
  $region49: #{tpu_custom_call.1} parent=0 // pred_fallthru
    _

</llo_original>
